<compile_context>
chip_gen: v7x
topology: tpu7x:2x2x1
jax: 0.10.0
libtpu: 0.0.40
codegen_flags: <defaults>
</compile_context>

<pallas_src>
import functools
import math

import jax
import jax.numpy as jnp
import numpy as np
from jax.experimental import pallas as pl
from jax.experimental.pallas import tpu as pltpu

# ----------------------------- config ---------------------------------------
NODE_SZ = 16           # original 200
SIZES = (16, 8)        # original (200, 100)
NHEAD = 4
DIM_FF = 64            # original 1024
ENC_HIDDEN = 32
DIM_RED = 8
PROJ_HIDDEN = 256
PROJ_OUT = 128
LEAKY_SLOPE = 0.01
LN_EPS = 1e-5
BATCH = 2

# order in which per-layer / tail weights are passed to the fused kernel
LAYER_KEYS = ("wqkv", "bqkv", "wo", "bo", "ln1g", "ln1b", "w1", "b1",
              "w2", "b2", "ln2g", "ln2b", "we1", "be1", "we2", "be2",
              "we3", "be3", "centers_n")
TAIL_KEYS = ("wdr", "bdr", "wp1", "bp1", "wp2", "bp2")


# ------------------------- shared math helpers ------------------------------
def _leaky(x):
    return jnp.where(x >= 0, x, LEAKY_SLOPE * x)


def _layer_norm(x, g, b):
    mu = jnp.mean(x, axis=-1, keepdims=True)
    var = jnp.mean((x - mu) ** 2, axis=-1, keepdims=True)
    return (x - mu) * jax.lax.rsqrt(var + LN_EPS) * g + b


def _softmax_exact(x):
    """Softmax used by the pure-JAX reference."""
    x = x - jnp.max(x, axis=-1, keepdims=True)
    e = jnp.exp(x)
    return e / jnp.sum(e, axis=-1, keepdims=True)


def _softmax_fast(x):
    """In-kernel softmax: denominator reciprocal goes to the EUP slot."""
    x = x - jnp.max(x, axis=-1, keepdims=True)
    e = jnp.exp(x)
    return e * pl.reciprocal(jnp.sum(e, axis=-1, keepdims=True), approx=True)


# -------------------- in-kernel layout helpers (value ops) -------------------
# Only well-supported Mosaic value primitives: static row/lane slices, leading
# unit-dim add/remove, and concatenation.  No lane-crossing reshapes.
def _to_batched(x2, bsz):
    """(bsz*n, w) batch-major rows -> (bsz, n, w)."""
    n = x2.shape[0] // bsz
    return jnp.concatenate(
        [x2[b * n:(b + 1) * n, :][None] for b in range(bsz)], axis=0)


def _from_batched(x3):
    """(bsz, n, w) -> (bsz*n, w) batch-major rows."""
    return jnp.concatenate([x3[b] for b in range(x3.shape[0])], axis=0)


def _flatten_batch_major(x2, bsz):
    """(bsz*n, d) batch-major rows -> (bsz, n*d); matches torch .reshape(bz, -1)."""
    n = x2.shape[0] // bsz
    rows = []
    for b in range(bsz):
        xb = x2[b * n:(b + 1) * n, :]
        rows.append(jnp.concatenate([xb[i:i + 1, :] for i in range(n)], axis=1))
    return jnp.concatenate(rows, axis=0)


def _unflatten_batch(flat, n, d):
    """(bsz, n*d) -> list of bsz arrays of shape (n, d)."""
    outs = []
    for b in range(flat.shape[0]):
        fb = flat[b:b + 1, :]
        outs.append(jnp.concatenate(
            [fb[:, i * d:(i + 1) * d] for i in range(n)], axis=0))
    return outs


# ------------------------------ fused kernel ---------------------------------
def bnt_fused_kernel(x_ref, *refs, bsz, nhead, num_layers):
    """Entire BNTContrastiveEncoder forward; all activations stay in VMEM/vregs."""
    o_ref = refs[-1]
    w = refs[:-1]
    per_layer = len(LAYER_KEYS)

    nf2 = x_ref[...]                                        # (bsz*node, d) rows
    for li in range(num_layers):
        lw = {k: w[li * per_layer + j][...] for j, k in enumerate(LAYER_KEYS)}
        n = nf2.shape[0] // bsz
        d = nf2.shape[1]
        hd = d // nhead

        # ---- nn.TransformerEncoderLayer (post-norm, ReLU, eval mode) ----
        # wqkv/bqkv already carry the 1/sqrt(head_dim) scale on their Q columns.
        qkv = jnp.dot(nf2, lw["wqkv"],
                      preferred_element_type=jnp.float32) + lw["bqkv"]   # (B*N, 3D)
        q3 = _to_batched(qkv[:, :d], bsz)                    # (B, N, D)
        k3 = _to_batched(qkv[:, d:2 * d], bsz)
        v3 = _to_batched(qkv[:, 2 * d:], bsz)
        heads = []
        for h in range(nhead):                               # static head loop,
            sl = slice(h * hd, (h + 1) * hd)                 # batched over B below
            s = jnp.einsum("bqe,bke->bqk", q3[..., sl], k3[..., sl],
                           preferred_element_type=jnp.float32)
            p = _softmax_fast(s)
            heads.append(jnp.einsum("bqk,bke->bqe", p, v3[..., sl],
                                    preferred_element_type=jnp.float32))
        attn2 = _from_batched(jnp.concatenate(heads, axis=-1))           # (B*N, D)
        attn2 = jnp.dot(attn2, lw["wo"],
                        preferred_element_type=jnp.float32) + lw["bo"]
        y = _layer_norm(nf2 + attn2, lw["ln1g"], lw["ln1b"])
        hid = jnp.maximum(
            jnp.dot(y, lw["w1"], preferred_element_type=jnp.float32) + lw["b1"], 0.0)
        ff = jnp.dot(hid, lw["w2"], preferred_element_type=jnp.float32) + lw["b2"]
        y = _layer_norm(y + ff, lw["ln2g"], lw["ln2b"])                  # (B*N, D)

        # ---- DEC auto-encoder MLP on flattened node features ----
        flat = _flatten_batch_major(y, bsz)                              # (B, N*D)
        e = _leaky(jnp.dot(flat, lw["we1"],
                           preferred_element_type=jnp.float32) + lw["be1"])
        e = _leaky(jnp.dot(e, lw["we2"],
                           preferred_element_type=jnp.float32) + lw["be2"])
        enc_flat = jnp.dot(e, lw["we3"],
                           preferred_element_type=jnp.float32) + lw["be3"]

        # ---- soft cluster assignment (pre-normalized centers) + pooling ----
        enc_list = _unflatten_batch(enc_flat, n, d)                      # B x (N, D)
        enc2 = jnp.concatenate(enc_list, axis=0)                         # (B*N, D)
        cent = lw["centers_n"]                                           # (C, D)
        logits = jax.lax.dot_general(enc2, cent, (((1,), (1,)), ((), ())),
                                     preferred_element_type=jnp.float32)  # (B*N, C)
        assign = _softmax_fast(logits)
        reprs = []
        for b in range(bsz):
            a_b = assign[b * n:(b + 1) * n, :]                           # (N, C)
            reprs.append(jax.lax.dot_general(
                a_b, enc_list[b], (((0,), (0,)), ((), ())),
                preferred_element_type=jnp.float32))                     # (C, D)
        nf2 = jnp.concatenate(reprs, axis=0)                             # (B*C, D)

    # ---- dim_reduction -> flatten -> projector ----
    widx = num_layers * per_layer
    wdr, bdr, wp1, bp1, wp2, bp2 = [w[widx + j][...] for j in range(len(TAIL_KEYS))]
    red = _leaky(jnp.dot(nf2, wdr, preferred_element_type=jnp.float32) + bdr)
    flat = _flatten_batch_major(red, bsz)                                # (B, C*8)
    hproj = jnp.maximum(
        jnp.dot(flat, wp1, preferred_element_type=jnp.float32) + bp1, 0.0)
    o_ref[...] = jnp.dot(hproj, wp2, preferred_element_type=jnp.float32) + bp2


# --------------------------- wrapper / pallas_call ----------------------------
def prepare_kernel_params(params):
    """Hoist loop-invariant work out of the kernel (done once, outside jit):
       - fold 1/sqrt(head_dim) into the Q columns of wqkv / bqkv,
       - pre-normalize cluster centers (logits/||c|| == enc @ (c/||c||)^T)."""
    layers = []
    for lp in params["layers"]:
        d = lp["wqkv"].shape[0]
        hd = d // NHEAD
        colscale = jnp.concatenate(
            [jnp.full((d,), 1.0 / math.sqrt(hd), jnp.float32),
             jnp.ones((2 * d,), jnp.float32)])[None, :]
        cent = lp["centers"]
        cent_n = cent / jnp.sqrt(jnp.sum(cent * cent, axis=1, keepdims=True))
        nl = dict(lp)
        nl["wqkv"] = lp["wqkv"] * colscale
        nl["bqkv"] = lp["bqkv"] * colscale
        nl["centers_n"] = cent_n
        del nl["centers"]
        layers.append(nl)
    kp = {k: v for k, v in params.items() if k != "layers"}
    kp["layers"] = layers
    return kp


def bnt_forward_pallas(x, kparams):
    """x: (B, node_sz, node_sz) correlation matrices -> z: (B, 128)."""
    bsz, n, d = x.shape
    flat_w = []
    for lp in kparams["layers"]:
        flat_w.extend(lp[k] for k in LAYER_KEYS)
    flat_w.extend(kparams[k] for k in TAIL_KEYS)

    x_rows = x.reshape(bsz * n, d)            # free wrapper-side reshape to rows
    kernel = functools.partial(bnt_fused_kernel, bsz=bsz, nhead=NHEAD,
                               num_layers=len(kparams["layers"]))
    n_in = 1 + len(flat_w)
    return pl.pallas_call(
        kernel,
        out_shape=jax.ShapeDtypeStruct((bsz, PROJ_OUT), jnp.float32),
        in_specs=[pl.BlockSpec(memory_space=pltpu.MemorySpace.VMEM)] * n_in,
        out_specs=pl.BlockSpec(memory_space=pltpu.MemorySpace.VMEM),
    )(x_rows, *flat_w)


# ----------------------------- parameters ------------------------------------
def _orthogonalize(centers):
    # Mirrors ClusterAssignment's Gram-Schmidt init (orthogonal=True): row 0 is
    # kept as-is, rows 1.. are orthogonalized against previous rows and normalized.
    c = np.asarray(centers, dtype=np.float64).copy()
    out = np.zeros_like(c)
    out[0] = c[0]
    for i in range(1, c.shape[0]):
        proj = np.zeros_like(c[i])
        for j in range(i):
            u = c[j]
            proj = proj + (np.dot(u, c[i]) / np.dot(u, u)) * u
        c[i] = c[i] - proj
        out[i] = c[i] / np.linalg.norm(c[i])
    return jnp.asarray(out, dtype=jnp.float32)


def init_params(key):
    def dense(k, shape, scale=0.05):
        return scale * jax.random.normal(k, shape, dtype=jnp.float32)

    keys = iter(jax.random.split(key, 64))
    d_model = NODE_SZ                 # pos_encoding='none' -> forward_dim = node_sz
    in_nodes = (NODE_SZ,) + SIZES[:-1]
    layers = []
    for li, out_nodes in enumerate(SIZES):
        n_in = in_nodes[li]
        layers.append(dict(
            wqkv=dense(next(keys), (d_model, 3 * d_model)),
            bqkv=dense(next(keys), (1, 3 * d_model)),
            wo=dense(next(keys), (d_model, d_model)),
            bo=dense(next(keys), (1, d_model)),
            ln1g=jnp.ones((1, d_model), jnp.float32),
            ln1b=jnp.zeros((1, d_model), jnp.float32),
            w1=dense(next(keys), (d_model, DIM_FF)),
            b1=dense(next(keys), (1, DIM_FF)),
            w2=dense(next(keys), (DIM_FF, d_model)),
            b2=dense(next(keys), (1, d_model)),
            ln2g=jnp.ones((1, d_model), jnp.float32),
            ln2b=jnp.zeros((1, d_model), jnp.float32),
            we1=dense(next(keys), (n_in * d_model, ENC_HIDDEN)),
            be1=dense(next(keys), (1, ENC_HIDDEN)),
            we2=dense(next(keys), (ENC_HIDDEN, ENC_HIDDEN)),
            be2=dense(next(keys), (1, ENC_HIDDEN)),
            we3=dense(next(keys), (ENC_HIDDEN, n_in * d_model)),
            be3=dense(next(keys), (1, n_in * d_model)),
            centers=_orthogonalize(dense(next(keys), (out_nodes, d_model), scale=1.0)),
        ))
    return dict(
        layers=layers,
        wdr=dense(next(keys), (d_model, DIM_RED)),
        bdr=dense(next(keys), (1, DIM_RED)),
        wp1=dense(next(keys), (DIM_RED * SIZES[-1], PROJ_HIDDEN)),
        bp1=dense(next(keys), (1, PROJ_HIDDEN)),
        wp2=dense(next(keys), (PROJ_HIDDEN, PROJ_OUT)),
        bp2=dense(next(keys), (1, PROJ_OUT)),
    )


# ----------------------------- pure-JAX reference -----------------------------
def forward_reference(x, params):
    bsz = x.shape[0]
    nf = x
    for lp in params["layers"]:
        n, d = nf.shape[1], nf.shape[2]
        hd = d // NHEAD
        qkv = nf @ lp["wqkv"] + lp["bqkv"]
        q, k, v = qkv[..., :d], qkv[..., d:2 * d], qkv[..., 2 * d:]
        split = lambda t: t.reshape(bsz, n, NHEAD, hd).transpose(0, 2, 1, 3)
        qh, kh, vh = split(q), split(k), split(v)
        s = jnp.einsum("bhqe,bhke->bhqk", qh * (1.0 / math.sqrt(hd)), kh)
        p = _softmax_exact(s)
        attn = jnp.einsum("bhqk,bhke->bhqe", p, vh).transpose(0, 2, 1, 3).reshape(bsz, n, d)
        attn = attn @ lp["wo"] + lp["bo"]
        y = _layer_norm(nf + attn, lp["ln1g"], lp["ln1b"])
        ff = jnp.maximum(y @ lp["w1"] + lp["b1"], 0.0) @ lp["w2"] + lp["b2"]
        y = _layer_norm(y + ff, lp["ln2g"], lp["ln2b"])
        flat = y.reshape(bsz, n * d)
        e = _leaky(flat @ lp["we1"] + lp["be1"])
        e = _leaky(e @ lp["we2"] + lp["be2"])
        enc = (e @ lp["we3"] + lp["be3"]).reshape(bsz, n, d)
        cent = lp["centers"]
        logits = jnp.einsum("bnd,cd->bnc", enc, cent) / jnp.sqrt(jnp.sum(cent * cent, axis=1))
        assign = _softmax_exact(logits)
        nf = jnp.einsum("bnc,bnd->bcd", assign, enc)
    red = _leaky(nf @ params["wdr"] + params["bdr"])
    flat = red.reshape(bsz, -1)
    h = jnp.maximum(flat @ params["wp1"] + params["bp1"], 0.0)
    return h @ params["wp2"] + params["bp2"]


# ---------------------------------- main --------------------------------------
if __name__ == "__main__":
    key = jax.random.PRNGKey(0)
    pkey, xkey = jax.random.split(key)
    params = init_params(pkey)
    corr_matrix = jax.random.normal(xkey, (BATCH, NODE_SZ, NODE_SZ), dtype=jnp.float32)

    kparams = prepare_kernel_params(params)          # one-time hoists, outside jit
    fwd = jax.jit(bnt_forward_pallas)
    z = jax.block_until_ready(fwd(corr_matrix, kparams))

    assert z.shape == (BATCH, PROJ_OUT), z.shape
    z_ref = forward_reference(corr_matrix, params)
    # Tolerance slightly looser than 1e-3 because the kernel's softmax uses the
    # EUP approximate reciprocal (pl.reciprocal(approx=True)).
    np.testing.assert_allclose(np.asarray(z), np.asarray(z_ref), rtol=2e-3, atol=2e-3)

    print("KERNEL_OK")
</pallas_src>

<mosaic_0001>
module attributes {stable_mosaic.version = 11 : i64} {
  func.func @bnt_fused_kernel(%arg0: memref<32x16xf32, #tpu.memory_space<vmem>>, %arg1: memref<16x48xf32, #tpu.memory_space<vmem>>, %arg2: memref<1x48xf32, #tpu.memory_space<vmem>>, %arg3: memref<16x16xf32, #tpu.memory_space<vmem>>, %arg4: memref<1x16xf32, #tpu.memory_space<vmem>>, %arg5: memref<1x16xf32, #tpu.memory_space<vmem>>, %arg6: memref<1x16xf32, #tpu.memory_space<vmem>>, %arg7: memref<16x64xf32, #tpu.memory_space<vmem>>, %arg8: memref<1x64xf32, #tpu.memory_space<vmem>>, %arg9: memref<64x16xf32, #tpu.memory_space<vmem>>, %arg10: memref<1x16xf32, #tpu.memory_space<vmem>>, %arg11: memref<1x16xf32, #tpu.memory_space<vmem>>, %arg12: memref<1x16xf32, #tpu.memory_space<vmem>>, %arg13: memref<256x32xf32, #tpu.memory_space<vmem>>, %arg14: memref<1x32xf32, #tpu.memory_space<vmem>>, %arg15: memref<32x32xf32, #tpu.memory_space<vmem>>, %arg16: memref<1x32xf32, #tpu.memory_space<vmem>>, %arg17: memref<32x256xf32, #tpu.memory_space<vmem>>, %arg18: memref<1x256xf32, #tpu.memory_space<vmem>>, %arg19: memref<16x16xf32, #tpu.memory_space<vmem>>, %arg20: memref<16x48xf32, #tpu.memory_space<vmem>>, %arg21: memref<1x48xf32, #tpu.memory_space<vmem>>, %arg22: memref<16x16xf32, #tpu.memory_space<vmem>>, %arg23: memref<1x16xf32, #tpu.memory_space<vmem>>, %arg24: memref<1x16xf32, #tpu.memory_space<vmem>>, %arg25: memref<1x16xf32, #tpu.memory_space<vmem>>, %arg26: memref<16x64xf32, #tpu.memory_space<vmem>>, %arg27: memref<1x64xf32, #tpu.memory_space<vmem>>, %arg28: memref<64x16xf32, #tpu.memory_space<vmem>>, %arg29: memref<1x16xf32, #tpu.memory_space<vmem>>, %arg30: memref<1x16xf32, #tpu.memory_space<vmem>>, %arg31: memref<1x16xf32, #tpu.memory_space<vmem>>, %arg32: memref<256x32xf32, #tpu.memory_space<vmem>>, %arg33: memref<1x32xf32, #tpu.memory_space<vmem>>, %arg34: memref<32x32xf32, #tpu.memory_space<vmem>>, %arg35: memref<1x32xf32, #tpu.memory_space<vmem>>, %arg36: memref<32x256xf32, #tpu.memory_space<vmem>>, %arg37: memref<1x256xf32, #tpu.memory_space<vmem>>, %arg38: memref<8x16xf32, #tpu.memory_space<vmem>>, %arg39: memref<16x8xf32, #tpu.memory_space<vmem>>, %arg40: memref<1x8xf32, #tpu.memory_space<vmem>>, %arg41: memref<64x256xf32, #tpu.memory_space<vmem>>, %arg42: memref<1x256xf32, #tpu.memory_space<vmem>>, %arg43: memref<256x128xf32, #tpu.memory_space<vmem>>, %arg44: memref<1x128xf32, #tpu.memory_space<vmem>>, %arg45: memref<2x128xf32, #tpu.memory_space<vmem>>) attributes {dimension_semantics = [], scalar_prefetch = 0 : i64, scratch_operands = 0 : i64, tpu.core_type = #tpu.core_type<tc>} {
    %c0 = arith.constant 0 : index
    %c0_0 = arith.constant 0 : index
    %0 = vector.load %arg0[%c0, %c0_0] : memref<32x16xf32, #tpu.memory_space<vmem>>, vector<32x16xf32>
    %c0_1 = arith.constant 0 : index
    %c0_2 = arith.constant 0 : index
    %1 = vector.load %arg1[%c0_1, %c0_2] : memref<16x48xf32, #tpu.memory_space<vmem>>, vector<16x48xf32>
    %c0_3 = arith.constant 0 : index
    %c0_4 = arith.constant 0 : index
    %2 = vector.load %arg2[%c0_3, %c0_4] : memref<1x48xf32, #tpu.memory_space<vmem>>, vector<1x48xf32>
    %c0_5 = arith.constant 0 : index
    %c0_6 = arith.constant 0 : index
    %3 = vector.load %arg3[%c0_5, %c0_6] : memref<16x16xf32, #tpu.memory_space<vmem>>, vector<16x16xf32>
    %c0_7 = arith.constant 0 : index
    %c0_8 = arith.constant 0 : index
    %4 = vector.load %arg4[%c0_7, %c0_8] : memref<1x16xf32, #tpu.memory_space<vmem>>, vector<1x16xf32>
    %c0_9 = arith.constant 0 : index
    %c0_10 = arith.constant 0 : index
    %5 = vector.load %arg5[%c0_9, %c0_10] : memref<1x16xf32, #tpu.memory_space<vmem>>, vector<1x16xf32>
    %c0_11 = arith.constant 0 : index
    %c0_12 = arith.constant 0 : index
    %6 = vector.load %arg6[%c0_11, %c0_12] : memref<1x16xf32, #tpu.memory_space<vmem>>, vector<1x16xf32>
    %c0_13 = arith.constant 0 : index
    %c0_14 = arith.constant 0 : index
    %7 = vector.load %arg7[%c0_13, %c0_14] : memref<16x64xf32, #tpu.memory_space<vmem>>, vector<16x64xf32>
    %c0_15 = arith.constant 0 : index
    %c0_16 = arith.constant 0 : index
    %8 = vector.load %arg8[%c0_15, %c0_16] : memref<1x64xf32, #tpu.memory_space<vmem>>, vector<1x64xf32>
    %c0_17 = arith.constant 0 : index
    %c0_18 = arith.constant 0 : index
    %9 = vector.load %arg9[%c0_17, %c0_18] : memref<64x16xf32, #tpu.memory_space<vmem>>, vector<64x16xf32>
    %c0_19 = arith.constant 0 : index
    %c0_20 = arith.constant 0 : index
    %10 = vector.load %arg10[%c0_19, %c0_20] : memref<1x16xf32, #tpu.memory_space<vmem>>, vector<1x16xf32>
    %c0_21 = arith.constant 0 : index
    %c0_22 = arith.constant 0 : index
    %11 = vector.load %arg11[%c0_21, %c0_22] : memref<1x16xf32, #tpu.memory_space<vmem>>, vector<1x16xf32>
    %c0_23 = arith.constant 0 : index
    %c0_24 = arith.constant 0 : index
    %12 = vector.load %arg12[%c0_23, %c0_24] : memref<1x16xf32, #tpu.memory_space<vmem>>, vector<1x16xf32>
    %c0_25 = arith.constant 0 : index
    %c0_26 = arith.constant 0 : index
    %13 = vector.load %arg13[%c0_25, %c0_26] : memref<256x32xf32, #tpu.memory_space<vmem>>, vector<256x32xf32>
    %c0_27 = arith.constant 0 : index
    %c0_28 = arith.constant 0 : index
    %14 = vector.load %arg14[%c0_27, %c0_28] : memref<1x32xf32, #tpu.memory_space<vmem>>, vector<1x32xf32>
    %c0_29 = arith.constant 0 : index
    %c0_30 = arith.constant 0 : index
    %15 = vector.load %arg15[%c0_29, %c0_30] : memref<32x32xf32, #tpu.memory_space<vmem>>, vector<32x32xf32>
    %c0_31 = arith.constant 0 : index
    %c0_32 = arith.constant 0 : index
    %16 = vector.load %arg16[%c0_31, %c0_32] : memref<1x32xf32, #tpu.memory_space<vmem>>, vector<1x32xf32>
    %c0_33 = arith.constant 0 : index
    %c0_34 = arith.constant 0 : index
    %17 = vector.load %arg17[%c0_33, %c0_34] : memref<32x256xf32, #tpu.memory_space<vmem>>, vector<32x256xf32>
    %c0_35 = arith.constant 0 : index
    %c0_36 = arith.constant 0 : index
    %18 = vector.load %arg18[%c0_35, %c0_36] : memref<1x256xf32, #tpu.memory_space<vmem>>, vector<1x256xf32>
    %c0_37 = arith.constant 0 : index
    %c0_38 = arith.constant 0 : index
    %19 = vector.load %arg19[%c0_37, %c0_38] : memref<16x16xf32, #tpu.memory_space<vmem>>, vector<16x16xf32>
    %cst = arith.constant dense<0.000000e+00> : vector<32x48xf32>
    %20 = tpu.matmul %0, %1, %cst {dimension_numbers = #tpu.dot_dimension_numbers<[1], [0], [0], [1], [0, 0, 1, 1], [], []>} : vector<32x16xf32>, vector<16x48xf32>, vector<32x48xf32> -> vector<32x48xf32>
    %21 = vector.broadcast %2 : vector<1x48xf32> to vector<32x48xf32>
    %22 = arith.addf %20, %21 : vector<32x48xf32>
    %23 = vector.extract_strided_slice %22 {offsets = [0, 0], sizes = [32, 16], strides = [1, 1]} : vector<32x48xf32> to vector<32x16xf32>
    %24 = vector.extract_strided_slice %23 {offsets = [0, 0], sizes = [16, 16], strides = [1, 1]} : vector<32x16xf32> to vector<16x16xf32>
    %25 = vector.shape_cast %24 : vector<16x16xf32> to vector<1x16x16xf32>
    %26 = vector.extract_strided_slice %23 {offsets = [16, 0], sizes = [16, 16], strides = [1, 1]} : vector<32x16xf32> to vector<16x16xf32>
    %27 = vector.shape_cast %26 : vector<16x16xf32> to vector<1x16x16xf32>
    %28 = tpu.concatenate %25, %27 in 0 : vector<1x16x16xf32>, vector<1x16x16xf32> -> vector<2x16x16xf32>
    %29 = vector.extract_strided_slice %22 {offsets = [0, 16], sizes = [32, 16], strides = [1, 1]} : vector<32x48xf32> to vector<32x16xf32>
    %30 = vector.extract_strided_slice %29 {offsets = [0, 0], sizes = [16, 16], strides = [1, 1]} : vector<32x16xf32> to vector<16x16xf32>
    %31 = vector.shape_cast %30 : vector<16x16xf32> to vector<1x16x16xf32>
    %32 = vector.extract_strided_slice %29 {offsets = [16, 0], sizes = [16, 16], strides = [1, 1]} : vector<32x16xf32> to vector<16x16xf32>
    %33 = vector.shape_cast %32 : vector<16x16xf32> to vector<1x16x16xf32>
    %34 = tpu.concatenate %31, %33 in 0 : vector<1x16x16xf32>, vector<1x16x16xf32> -> vector<2x16x16xf32>
    %35 = vector.extract_strided_slice %22 {offsets = [0, 32], sizes = [32, 16], strides = [1, 1]} : vector<32x48xf32> to vector<32x16xf32>
    %36 = vector.extract_strided_slice %35 {offsets = [0, 0], sizes = [16, 16], strides = [1, 1]} : vector<32x16xf32> to vector<16x16xf32>
    %37 = vector.shape_cast %36 : vector<16x16xf32> to vector<1x16x16xf32>
    %38 = vector.extract_strided_slice %35 {offsets = [16, 0], sizes = [16, 16], strides = [1, 1]} : vector<32x16xf32> to vector<16x16xf32>
    %39 = vector.shape_cast %38 : vector<16x16xf32> to vector<1x16x16xf32>
    %40 = tpu.concatenate %37, %39 in 0 : vector<1x16x16xf32>, vector<1x16x16xf32> -> vector<2x16x16xf32>
    %41 = vector.extract_strided_slice %28 {offsets = [0, 0, 0], sizes = [2, 16, 4], strides = [1, 1, 1]} : vector<2x16x16xf32> to vector<2x16x4xf32>
    %42 = vector.extract_strided_slice %34 {offsets = [0, 0, 0], sizes = [2, 16, 4], strides = [1, 1, 1]} : vector<2x16x16xf32> to vector<2x16x4xf32>
    "tpu.trace_start"() <{level = 10 : i32, message = "bqe,bke->bqk"}> : () -> ()
    %cst_39 = arith.constant dense<0.000000e+00> : vector<2x16x16xf32>
    %43 = tpu.matmul %41, %42, %cst_39 {dimension_numbers = #tpu.dot_dimension_numbers<[2], [2], [1], [1], [0, 0, 0, 1, 1, 1], [0], [0]>} : vector<2x16x4xf32>, vector<2x16x4xf32>, vector<2x16x16xf32> -> vector<2x16x16xf32>
    "tpu.trace_stop"() : () -> ()
    %cst_40 = arith.constant dense<0xFF800000> : vector<2x16xf32>
    %44 = vector.multi_reduction <maximumf>, %43, %cst_40 [2] : vector<2x16x16xf32> to vector<2x16xf32>
    %45 = vector.shape_cast %44 : vector<2x16xf32> to vector<2x16x1xf32>
    %46 = vector.broadcast %45 : vector<2x16x1xf32> to vector<2x16x16xf32>
    %47 = arith.subf %43, %46 : vector<2x16x16xf32>
    %48 = math.exp %47 : vector<2x16x16xf32>
    %cst_41 = arith.constant dense<0.000000e+00> : vector<2x16xf32>
    %49 = vector.multi_reduction <add>, %48, %cst_41 [2] : vector<2x16x16xf32> to vector<2x16xf32>
    %50 = vector.shape_cast %49 : vector<2x16xf32> to vector<2x16x1xf32>
    %51 = tpu.reciprocal %50 {approx = true} : vector<2x16x1xf32> -> vector<2x16x1xf32>
    %52 = vector.broadcast %51 : vector<2x16x1xf32> to vector<2x16x16xf32>
    %53 = arith.mulf %48, %52 : vector<2x16x16xf32>
    %54 = vector.extract_strided_slice %40 {offsets = [0, 0, 0], sizes = [2, 16, 4], strides = [1, 1, 1]} : vector<2x16x16xf32> to vector<2x16x4xf32>
    "tpu.trace_start"() <{level = 10 : i32, message = "bqk,bke->bqe"}> : () -> ()
    %cst_42 = arith.constant dense<0.000000e+00> : vector<2x16x4xf32>
    %55 = tpu.matmul %53, %54, %cst_42 {dimension_numbers = #tpu.dot_dimension_numbers<[2], [1], [1], [2], [0, 0, 0, 1, 1, 2], [0], [0]>} : vector<2x16x16xf32>, vector<2x16x4xf32>, vector<2x16x4xf32> -> vector<2x16x4xf32>
    "tpu.trace_stop"() : () -> ()
    %56 = vector.extract_strided_slice %28 {offsets = [0, 0, 4], sizes = [2, 16, 4], strides = [1, 1, 1]} : vector<2x16x16xf32> to vector<2x16x4xf32>
    %57 = vector.extract_strided_slice %34 {offsets = [0, 0, 4], sizes = [2, 16, 4], strides = [1, 1, 1]} : vector<2x16x16xf32> to vector<2x16x4xf32>
    "tpu.trace_start"() <{level = 10 : i32, message = "bqe,bke->bqk"}> : () -> ()
    %cst_43 = arith.constant dense<0.000000e+00> : vector<2x16x16xf32>
    %58 = tpu.matmul %56, %57, %cst_43 {dimension_numbers = #tpu.dot_dimension_numbers<[2], [2], [1], [1], [0, 0, 0, 1, 1, 1], [0], [0]>} : vector<2x16x4xf32>, vector<2x16x4xf32>, vector<2x16x16xf32> -> vector<2x16x16xf32>
    "tpu.trace_stop"() : () -> ()
    %cst_44 = arith.constant dense<0xFF800000> : vector<2x16xf32>
    %59 = vector.multi_reduction <maximumf>, %58, %cst_44 [2] : vector<2x16x16xf32> to vector<2x16xf32>
    %60 = vector.shape_cast %59 : vector<2x16xf32> to vector<2x16x1xf32>
    %61 = vector.broadcast %60 : vector<2x16x1xf32> to vector<2x16x16xf32>
    %62 = arith.subf %58, %61 : vector<2x16x16xf32>
    %63 = math.exp %62 : vector<2x16x16xf32>
    %cst_45 = arith.constant dense<0.000000e+00> : vector<2x16xf32>
    %64 = vector.multi_reduction <add>, %63, %cst_45 [2] : vector<2x16x16xf32> to vector<2x16xf32>
    %65 = vector.shape_cast %64 : vector<2x16xf32> to vector<2x16x1xf32>
    %66 = tpu.reciprocal %65 {approx = true} : vector<2x16x1xf32> -> vector<2x16x1xf32>
    %67 = vector.broadcast %66 : vector<2x16x1xf32> to vector<2x16x16xf32>
    %68 = arith.mulf %63, %67 : vector<2x16x16xf32>
    %69 = vector.extract_strided_slice %40 {offsets = [0, 0, 4], sizes = [2, 16, 4], strides = [1, 1, 1]} : vector<2x16x16xf32> to vector<2x16x4xf32>
    "tpu.trace_start"() <{level = 10 : i32, message = "bqk,bke->bqe"}> : () -> ()
    %cst_46 = arith.constant dense<0.000000e+00> : vector<2x16x4xf32>
    %70 = tpu.matmul %68, %69, %cst_46 {dimension_numbers = #tpu.dot_dimension_numbers<[2], [1], [1], [2], [0, 0, 0, 1, 1, 2], [0], [0]>} : vector<2x16x16xf32>, vector<2x16x4xf32>, vector<2x16x4xf32> -> vector<2x16x4xf32>
    "tpu.trace_stop"() : () -> ()
    %71 = vector.extract_strided_slice %28 {offsets = [0, 0, 8], sizes = [2, 16, 4], strides = [1, 1, 1]} : vector<2x16x16xf32> to vector<2x16x4xf32>
    %72 = vector.extract_strided_slice %34 {offsets = [0, 0, 8], sizes = [2, 16, 4], strides = [1, 1, 1]} : vector<2x16x16xf32> to vector<2x16x4xf32>
    "tpu.trace_start"() <{level = 10 : i32, message = "bqe,bke->bqk"}> : () -> ()
    %cst_47 = arith.constant dense<0.000000e+00> : vector<2x16x16xf32>
    %73 = tpu.matmul %71, %72, %cst_47 {dimension_numbers = #tpu.dot_dimension_numbers<[2], [2], [1], [1], [0, 0, 0, 1, 1, 1], [0], [0]>} : vector<2x16x4xf32>, vector<2x16x4xf32>, vector<2x16x16xf32> -> vector<2x16x16xf32>
    "tpu.trace_stop"() : () -> ()
    %cst_48 = arith.constant dense<0xFF800000> : vector<2x16xf32>
    %74 = vector.multi_reduction <maximumf>, %73, %cst_48 [2] : vector<2x16x16xf32> to vector<2x16xf32>
    %75 = vector.shape_cast %74 : vector<2x16xf32> to vector<2x16x1xf32>
    %76 = vector.broadcast %75 : vector<2x16x1xf32> to vector<2x16x16xf32>
    %77 = arith.subf %73, %76 : vector<2x16x16xf32>
    %78 = math.exp %77 : vector<2x16x16xf32>
    %cst_49 = arith.constant dense<0.000000e+00> : vector<2x16xf32>
    %79 = vector.multi_reduction <add>, %78, %cst_49 [2] : vector<2x16x16xf32> to vector<2x16xf32>
    %80 = vector.shape_cast %79 : vector<2x16xf32> to vector<2x16x1xf32>
    %81 = tpu.reciprocal %80 {approx = true} : vector<2x16x1xf32> -> vector<2x16x1xf32>
    %82 = vector.broadcast %81 : vector<2x16x1xf32> to vector<2x16x16xf32>
    %83 = arith.mulf %78, %82 : vector<2x16x16xf32>
    %84 = vector.extract_strided_slice %40 {offsets = [0, 0, 8], sizes = [2, 16, 4], strides = [1, 1, 1]} : vector<2x16x16xf32> to vector<2x16x4xf32>
    "tpu.trace_start"() <{level = 10 : i32, message = "bqk,bke->bqe"}> : () -> ()
    %cst_50 = arith.constant dense<0.000000e+00> : vector<2x16x4xf32>
    %85 = tpu.matmul %83, %84, %cst_50 {dimension_numbers = #tpu.dot_dimension_numbers<[2], [1], [1], [2], [0, 0, 0, 1, 1, 2], [0], [0]>} : vector<2x16x16xf32>, vector<2x16x4xf32>, vector<2x16x4xf32> -> vector<2x16x4xf32>
    "tpu.trace_stop"() : () -> ()
    %86 = vector.extract_strided_slice %28 {offsets = [0, 0, 12], sizes = [2, 16, 4], strides = [1, 1, 1]} : vector<2x16x16xf32> to vector<2x16x4xf32>
    %87 = vector.extract_strided_slice %34 {offsets = [0, 0, 12], sizes = [2, 16, 4], strides = [1, 1, 1]} : vector<2x16x16xf32> to vector<2x16x4xf32>
    "tpu.trace_start"() <{level = 10 : i32, message = "bqe,bke->bqk"}> : () -> ()
    %cst_51 = arith.constant dense<0.000000e+00> : vector<2x16x16xf32>
    %88 = tpu.matmul %86, %87, %cst_51 {dimension_numbers = #tpu.dot_dimension_numbers<[2], [2], [1], [1], [0, 0, 0, 1, 1, 1], [0], [0]>} : vector<2x16x4xf32>, vector<2x16x4xf32>, vector<2x16x16xf32> -> vector<2x16x16xf32>
    "tpu.trace_stop"() : () -> ()
    %cst_52 = arith.constant dense<0xFF800000> : vector<2x16xf32>
    %89 = vector.multi_reduction <maximumf>, %88, %cst_52 [2] : vector<2x16x16xf32> to vector<2x16xf32>
    %90 = vector.shape_cast %89 : vector<2x16xf32> to vector<2x16x1xf32>
    %91 = vector.broadcast %90 : vector<2x16x1xf32> to vector<2x16x16xf32>
    %92 = arith.subf %88, %91 : vector<2x16x16xf32>
    %93 = math.exp %92 : vector<2x16x16xf32>
    %cst_53 = arith.constant dense<0.000000e+00> : vector<2x16xf32>
    %94 = vector.multi_reduction <add>, %93, %cst_53 [2] : vector<2x16x16xf32> to vector<2x16xf32>
    %95 = vector.shape_cast %94 : vector<2x16xf32> to vector<2x16x1xf32>
    %96 = tpu.reciprocal %95 {approx = true} : vector<2x16x1xf32> -> vector<2x16x1xf32>
    %97 = vector.broadcast %96 : vector<2x16x1xf32> to vector<2x16x16xf32>
    %98 = arith.mulf %93, %97 : vector<2x16x16xf32>
    %99 = vector.extract_strided_slice %40 {offsets = [0, 0, 12], sizes = [2, 16, 4], strides = [1, 1, 1]} : vector<2x16x16xf32> to vector<2x16x4xf32>
    "tpu.trace_start"() <{level = 10 : i32, message = "bqk,bke->bqe"}> : () -> ()
    %cst_54 = arith.constant dense<0.000000e+00> : vector<2x16x4xf32>
    %100 = tpu.matmul %98, %99, %cst_54 {dimension_numbers = #tpu.dot_dimension_numbers<[2], [1], [1], [2], [0, 0, 0, 1, 1, 2], [0], [0]>} : vector<2x16x16xf32>, vector<2x16x4xf32>, vector<2x16x4xf32> -> vector<2x16x4xf32>
    "tpu.trace_stop"() : () -> ()
    %101 = tpu.concatenate %55, %70, %85, %100 in 2 : vector<2x16x4xf32>, vector<2x16x4xf32>, vector<2x16x4xf32>, vector<2x16x4xf32> -> vector<2x16x16xf32>
    %102 = vector.extract_strided_slice %101 {offsets = [0, 0, 0], sizes = [1, 16, 16], strides = [1, 1, 1]} : vector<2x16x16xf32> to vector<1x16x16xf32>
    %103 = vector.shape_cast %102 : vector<1x16x16xf32> to vector<16x16xf32>
    %104 = vector.extract_strided_slice %101 {offsets = [1, 0, 0], sizes = [1, 16, 16], strides = [1, 1, 1]} : vector<2x16x16xf32> to vector<1x16x16xf32>
    %105 = vector.shape_cast %104 : vector<1x16x16xf32> to vector<16x16xf32>
    %106 = tpu.concatenate %103, %105 in 0 : vector<16x16xf32>, vector<16x16xf32> -> vector<32x16xf32>
    %cst_55 = arith.constant dense<0.000000e+00> : vector<32x16xf32>
    %107 = tpu.matmul %106, %3, %cst_55 {dimension_numbers = #tpu.dot_dimension_numbers<[1], [0], [0], [1], [0, 0, 1, 1], [], []>} : vector<32x16xf32>, vector<16x16xf32>, vector<32x16xf32> -> vector<32x16xf32>
    %108 = vector.broadcast %4 : vector<1x16xf32> to vector<32x16xf32>
    %109 = arith.addf %107, %108 : vector<32x16xf32>
    %110 = arith.addf %0, %109 : vector<32x16xf32>
    %cst_56 = arith.constant dense<0.000000e+00> : vector<32xf32>
    %111 = vector.multi_reduction <add>, %110, %cst_56 [1] : vector<32x16xf32> to vector<32xf32>
    %112 = vector.shape_cast %111 : vector<32xf32> to vector<32x1xf32>
    %cst_57 = arith.constant 1.600000e+01 : f32
    %113 = vector.broadcast %cst_57 : f32 to vector<32x1xf32>
    %114 = arith.divf %112, %113 : vector<32x1xf32>
    %115 = vector.broadcast %114 : vector<32x1xf32> to vector<32x16xf32>
    %116 = arith.subf %110, %115 : vector<32x16xf32>
    %117 = arith.mulf %116, %116 : vector<32x16xf32>
    %cst_58 = arith.constant dense<0.000000e+00> : vector<32xf32>
    %118 = vector.multi_reduction <add>, %117, %cst_58 [1] : vector<32x16xf32> to vector<32xf32>
    %119 = vector.shape_cast %118 : vector<32xf32> to vector<32x1xf32>
    %cst_59 = arith.constant 1.600000e+01 : f32
    %120 = vector.broadcast %cst_59 : f32 to vector<32x1xf32>
    %121 = arith.divf %119, %120 : vector<32x1xf32>
    %122 = vector.broadcast %114 : vector<32x1xf32> to vector<32x16xf32>
    %123 = arith.subf %110, %122 : vector<32x16xf32>
    %cst_60 = arith.constant 9.99999974E-6 : f32
    %124 = vector.broadcast %cst_60 : f32 to vector<32x1xf32>
    %125 = arith.addf %121, %124 : vector<32x1xf32>
    %126 = math.rsqrt %125 : vector<32x1xf32>
    %127 = vector.broadcast %126 : vector<32x1xf32> to vector<32x16xf32>
    %128 = arith.mulf %123, %127 : vector<32x16xf32>
    %129 = vector.broadcast %5 : vector<1x16xf32> to vector<32x16xf32>
    %130 = arith.mulf %128, %129 : vector<32x16xf32>
    %131 = vector.broadcast %6 : vector<1x16xf32> to vector<32x16xf32>
    %132 = arith.addf %130, %131 : vector<32x16xf32>
    %cst_61 = arith.constant dense<0.000000e+00> : vector<32x64xf32>
    %133 = tpu.matmul %132, %7, %cst_61 {dimension_numbers = #tpu.dot_dimension_numbers<[1], [0], [0], [1], [0, 0, 1, 1], [], []>} : vector<32x16xf32>, vector<16x64xf32>, vector<32x64xf32> -> vector<32x64xf32>
    %134 = vector.broadcast %8 : vector<1x64xf32> to vector<32x64xf32>
    %135 = arith.addf %133, %134 : vector<32x64xf32>
    %cst_62 = arith.constant 0.000000e+00 : f32
    %136 = vector.broadcast %cst_62 : f32 to vector<32x64xf32>
    %137 = arith.maximumf %135, %136 : vector<32x64xf32>
    %cst_63 = arith.constant dense<0.000000e+00> : vector<32x16xf32>
    %138 = tpu.matmul %137, %9, %cst_63 {dimension_numbers = #tpu.dot_dimension_numbers<[1], [0], [0], [1], [0, 0, 1, 1], [], []>} : vector<32x64xf32>, vector<64x16xf32>, vector<32x16xf32> -> vector<32x16xf32>
    %139 = vector.broadcast %10 : vector<1x16xf32> to vector<32x16xf32>
    %140 = arith.addf %138, %139 : vector<32x16xf32>
    %141 = arith.addf %132, %140 : vector<32x16xf32>
    %cst_64 = arith.constant dense<0.000000e+00> : vector<32xf32>
    %142 = vector.multi_reduction <add>, %141, %cst_64 [1] : vector<32x16xf32> to vector<32xf32>
    %143 = vector.shape_cast %142 : vector<32xf32> to vector<32x1xf32>
    %cst_65 = arith.constant 1.600000e+01 : f32
    %144 = vector.broadcast %cst_65 : f32 to vector<32x1xf32>
    %145 = arith.divf %143, %144 : vector<32x1xf32>
    %146 = vector.broadcast %145 : vector<32x1xf32> to vector<32x16xf32>
    %147 = arith.subf %141, %146 : vector<32x16xf32>
    %148 = arith.mulf %147, %147 : vector<32x16xf32>
    %cst_66 = arith.constant dense<0.000000e+00> : vector<32xf32>
    %149 = vector.multi_reduction <add>, %148, %cst_66 [1] : vector<32x16xf32> to vector<32xf32>
    %150 = vector.shape_cast %149 : vector<32xf32> to vector<32x1xf32>
    %cst_67 = arith.constant 1.600000e+01 : f32
    %151 = vector.broadcast %cst_67 : f32 to vector<32x1xf32>
    %152 = arith.divf %150, %151 : vector<32x1xf32>
    %153 = vector.broadcast %145 : vector<32x1xf32> to vector<32x16xf32>
    %154 = arith.subf %141, %153 : vector<32x16xf32>
    %cst_68 = arith.constant 9.99999974E-6 : f32
    %155 = vector.broadcast %cst_68 : f32 to vector<32x1xf32>
    %156 = arith.addf %152, %155 : vector<32x1xf32>
    %157 = math.rsqrt %156 : vector<32x1xf32>
    %158 = vector.broadcast %157 : vector<32x1xf32> to vector<32x16xf32>
    %159 = arith.mulf %154, %158 : vector<32x16xf32>
    %160 = vector.broadcast %11 : vector<1x16xf32> to vector<32x16xf32>
    %161 = arith.mulf %159, %160 : vector<32x16xf32>
    %162 = vector.broadcast %12 : vector<1x16xf32> to vector<32x16xf32>
    %163 = arith.addf %161, %162 : vector<32x16xf32>
    %164 = vector.extract_strided_slice %163 {offsets = [0, 0], sizes = [16, 16], strides = [1, 1]} : vector<32x16xf32> to vector<16x16xf32>
    %165 = vector.extract_strided_slice %164 {offsets = [0, 0], sizes = [1, 16], strides = [1, 1]} : vector<16x16xf32> to vector<1x16xf32>
    %166 = vector.extract_strided_slice %164 {offsets = [1, 0], sizes = [1, 16], strides = [1, 1]} : vector<16x16xf32> to vector<1x16xf32>
    %167 = vector.extract_strided_slice %164 {offsets = [2, 0], sizes = [1, 16], strides = [1, 1]} : vector<16x16xf32> to vector<1x16xf32>
    %168 = vector.extract_strided_slice %164 {offsets = [3, 0], sizes = [1, 16], strides = [1, 1]} : vector<16x16xf32> to vector<1x16xf32>
    %169 = vector.extract_strided_slice %164 {offsets = [4, 0], sizes = [1, 16], strides = [1, 1]} : vector<16x16xf32> to vector<1x16xf32>
    %170 = vector.extract_strided_slice %164 {offsets = [5, 0], sizes = [1, 16], strides = [1, 1]} : vector<16x16xf32> to vector<1x16xf32>
    %171 = vector.extract_strided_slice %164 {offsets = [6, 0], sizes = [1, 16], strides = [1, 1]} : vector<16x16xf32> to vector<1x16xf32>
    %172 = vector.extract_strided_slice %164 {offsets = [7, 0], sizes = [1, 16], strides = [1, 1]} : vector<16x16xf32> to vector<1x16xf32>
    %173 = vector.extract_strided_slice %164 {offsets = [8, 0], sizes = [1, 16], strides = [1, 1]} : vector<16x16xf32> to vector<1x16xf32>
    %174 = vector.extract_strided_slice %164 {offsets = [9, 0], sizes = [1, 16], strides = [1, 1]} : vector<16x16xf32> to vector<1x16xf32>
    %175 = vector.extract_strided_slice %164 {offsets = [10, 0], sizes = [1, 16], strides = [1, 1]} : vector<16x16xf32> to vector<1x16xf32>
    %176 = vector.extract_strided_slice %164 {offsets = [11, 0], sizes = [1, 16], strides = [1, 1]} : vector<16x16xf32> to vector<1x16xf32>
    %177 = vector.extract_strided_slice %164 {offsets = [12, 0], sizes = [1, 16], strides = [1, 1]} : vector<16x16xf32> to vector<1x16xf32>
    %178 = vector.extract_strided_slice %164 {offsets = [13, 0], sizes = [1, 16], strides = [1, 1]} : vector<16x16xf32> to vector<1x16xf32>
    %179 = vector.extract_strided_slice %164 {offsets = [14, 0], sizes = [1, 16], strides = [1, 1]} : vector<16x16xf32> to vector<1x16xf32>
    %180 = vector.extract_strided_slice %164 {offsets = [15, 0], sizes = [1, 16], strides = [1, 1]} : vector<16x16xf32> to vector<1x16xf32>
    %181 = tpu.concatenate %165, %166, %167, %168, %169, %170, %171, %172, %173, %174, %175, %176, %177, %178, %179, %180 in 1 : vector<1x16xf32>, vector<1x16xf32>, vector<1x16xf32>, vector<1x16xf32>, vector<1x16xf32>, vector<1x16xf32>, vector<1x16xf32>, vector<1x16xf32>, vector<1x16xf32>, vector<1x16xf32>, vector<1x16xf32>, vector<1x16xf32>, vector<1x16xf32>, vector<1x16xf32>, vector<1x16xf32>, vector<1x16xf32> -> vector<1x256xf32>
    %182 = vector.extract_strided_slice %163 {offsets = [16, 0], sizes = [16, 16], strides = [1, 1]} : vector<32x16xf32> to vector<16x16xf32>
    %183 = vector.extract_strided_slice %182 {offsets = [0, 0], sizes = [1, 16], strides = [1, 1]} : vector<16x16xf32> to vector<1x16xf32>
    %184 = vector.extract_strided_slice %182 {offsets = [1, 0], sizes = [1, 16], strides = [1, 1]} : vector<16x16xf32> to vector<1x16xf32>
    %185 = vector.extract_strided_slice %182 {offsets = [2, 0], sizes = [1, 16], strides = [1, 1]} : vector<16x16xf32> to vector<1x16xf32>
    %186 = vector.extract_strided_slice %182 {offsets = [3, 0], sizes = [1, 16], strides = [1, 1]} : vector<16x16xf32> to vector<1x16xf32>
    %187 = vector.extract_strided_slice %182 {offsets = [4, 0], sizes = [1, 16], strides = [1, 1]} : vector<16x16xf32> to vector<1x16xf32>
    %188 = vector.extract_strided_slice %182 {offsets = [5, 0], sizes = [1, 16], strides = [1, 1]} : vector<16x16xf32> to vector<1x16xf32>
    %189 = vector.extract_strided_slice %182 {offsets = [6, 0], sizes = [1, 16], strides = [1, 1]} : vector<16x16xf32> to vector<1x16xf32>
    %190 = vector.extract_strided_slice %182 {offsets = [7, 0], sizes = [1, 16], strides = [1, 1]} : vector<16x16xf32> to vector<1x16xf32>
    %191 = vector.extract_strided_slice %182 {offsets = [8, 0], sizes = [1, 16], strides = [1, 1]} : vector<16x16xf32> to vector<1x16xf32>
    %192 = vector.extract_strided_slice %182 {offsets = [9, 0], sizes = [1, 16], strides = [1, 1]} : vector<16x16xf32> to vector<1x16xf32>
    %193 = vector.extract_strided_slice %182 {offsets = [10, 0], sizes = [1, 16], strides = [1, 1]} : vector<16x16xf32> to vector<1x16xf32>
    %194 = vector.extract_strided_slice %182 {offsets = [11, 0], sizes = [1, 16], strides = [1, 1]} : vector<16x16xf32> to vector<1x16xf32>
    %195 = vector.extract_strided_slice %182 {offsets = [12, 0], sizes = [1, 16], strides = [1, 1]} : vector<16x16xf32> to vector<1x16xf32>
    %196 = vector.extract_strided_slice %182 {offsets = [13, 0], sizes = [1, 16], strides = [1, 1]} : vector<16x16xf32> to vector<1x16xf32>
    %197 = vector.extract_strided_slice %182 {offsets = [14, 0], sizes = [1, 16], strides = [1, 1]} : vector<16x16xf32> to vector<1x16xf32>
    %198 = vector.extract_strided_slice %182 {offsets = [15, 0], sizes = [1, 16], strides = [1, 1]} : vector<16x16xf32> to vector<1x16xf32>
    %199 = tpu.concatenate %183, %184, %185, %186, %187, %188, %189, %190, %191, %192, %193, %194, %195, %196, %197, %198 in 1 : vector<1x16xf32>, vector<1x16xf32>, vector<1x16xf32>, vector<1x16xf32>, vector<1x16xf32>, vector<1x16xf32>, vector<1x16xf32>, vector<1x16xf32>, vector<1x16xf32>, vector<1x16xf32>, vector<1x16xf32>, vector<1x16xf32>, vector<1x16xf32>, vector<1x16xf32>, vector<1x16xf32>, vector<1x16xf32> -> vector<1x256xf32>
    %200 = tpu.concatenate %181, %199 in 0 : vector<1x256xf32>, vector<1x256xf32> -> vector<2x256xf32>
    %cst_69 = arith.constant dense<0.000000e+00> : vector<2x32xf32>
    %201 = tpu.matmul %200, %13, %cst_69 {dimension_numbers = #tpu.dot_dimension_numbers<[1], [0], [0], [1], [0, 0, 1, 1], [], []>} : vector<2x256xf32>, vector<256x32xf32>, vector<2x32xf32> -> vector<2x32xf32>
    %202 = vector.broadcast %14 : vector<1x32xf32> to vector<2x32xf32>
    %203 = arith.addf %201, %202 : vector<2x32xf32>
    %cst_70 = arith.constant 0.000000e+00 : f32
    %204 = vector.broadcast %cst_70 : f32 to vector<2x32xf32>
    %205 = arith.cmpf oge, %203, %204 : vector<2x32xf32>
    %cst_71 = arith.constant 0.00999999977 : f32
    %206 = vector.broadcast %cst_71 : f32 to vector<2x32xf32>
    %207 = arith.mulf %206, %203 : vector<2x32xf32>
    %208 = arith.select %205, %203, %207 : vector<2x32xi1>, vector<2x32xf32>
    %cst_72 = arith.constant dense<0.000000e+00> : vector<2x32xf32>
    %209 = tpu.matmul %208, %15, %cst_72 {dimension_numbers = #tpu.dot_dimension_numbers<[1], [0], [0], [1], [0, 0, 1, 1], [], []>} : vector<2x32xf32>, vector<32x32xf32>, vector<2x32xf32> -> vector<2x32xf32>
    %210 = vector.broadcast %16 : vector<1x32xf32> to vector<2x32xf32>
    %211 = arith.addf %209, %210 : vector<2x32xf32>
    %cst_73 = arith.constant 0.000000e+00 : f32
    %212 = vector.broadcast %cst_73 : f32 to vector<2x32xf32>
    %213 = arith.cmpf oge, %211, %212 : vector<2x32xf32>
    %cst_74 = arith.constant 0.00999999977 : f32
    %214 = vector.broadcast %cst_74 : f32 to vector<2x32xf32>
    %215 = arith.mulf %214, %211 : vector<2x32xf32>
    %216 = arith.select %213, %211, %215 : vector<2x32xi1>, vector<2x32xf32>
    %cst_75 = arith.constant dense<0.000000e+00> : vector<2x256xf32>
    %217 = tpu.matmul %216, %17, %cst_75 {dimension_numbers = #tpu.dot_dimension_numbers<[1], [0], [0], [1], [0, 0, 1, 1], [], []>} : vector<2x32xf32>, vector<32x256xf32>, vector<2x256xf32> -> vector<2x256xf32>
    %218 = vector.broadcast %18 : vector<1x256xf32> to vector<2x256xf32>
    %219 = arith.addf %217, %218 : vector<2x256xf32>
    %220 = vector.extract_strided_slice %219 {offsets = [0, 0], sizes = [1, 256], strides = [1, 1]} : vector<2x256xf32> to vector<1x256xf32>
    %221 = vector.extract_strided_slice %220 {offsets = [0, 0], sizes = [1, 16], strides = [1, 1]} : vector<1x256xf32> to vector<1x16xf32>
    %222 = vector.extract_strided_slice %220 {offsets = [0, 16], sizes = [1, 16], strides = [1, 1]} : vector<1x256xf32> to vector<1x16xf32>
    %223 = vector.extract_strided_slice %220 {offsets = [0, 32], sizes = [1, 16], strides = [1, 1]} : vector<1x256xf32> to vector<1x16xf32>
    %224 = vector.extract_strided_slice %220 {offsets = [0, 48], sizes = [1, 16], strides = [1, 1]} : vector<1x256xf32> to vector<1x16xf32>
    %225 = vector.extract_strided_slice %220 {offsets = [0, 64], sizes = [1, 16], strides = [1, 1]} : vector<1x256xf32> to vector<1x16xf32>
    %226 = vector.extract_strided_slice %220 {offsets = [0, 80], sizes = [1, 16], strides = [1, 1]} : vector<1x256xf32> to vector<1x16xf32>
    %227 = vector.extract_strided_slice %220 {offsets = [0, 96], sizes = [1, 16], strides = [1, 1]} : vector<1x256xf32> to vector<1x16xf32>
    %228 = vector.extract_strided_slice %220 {offsets = [0, 112], sizes = [1, 16], strides = [1, 1]} : vector<1x256xf32> to vector<1x16xf32>
    %229 = vector.extract_strided_slice %220 {offsets = [0, 128], sizes = [1, 16], strides = [1, 1]} : vector<1x256xf32> to vector<1x16xf32>
    %230 = vector.extract_strided_slice %220 {offsets = [0, 144], sizes = [1, 16], strides = [1, 1]} : vector<1x256xf32> to vector<1x16xf32>
    %231 = vector.extract_strided_slice %220 {offsets = [0, 160], sizes = [1, 16], strides = [1, 1]} : vector<1x256xf32> to vector<1x16xf32>
    %232 = vector.extract_strided_slice %220 {offsets = [0, 176], sizes = [1, 16], strides = [1, 1]} : vector<1x256xf32> to vector<1x16xf32>
    %233 = vector.extract_strided_slice %220 {offsets = [0, 192], sizes = [1, 16], strides = [1, 1]} : vector<1x256xf32> to vector<1x16xf32>
    %234 = vector.extract_strided_slice %220 {offsets = [0, 208], sizes = [1, 16], strides = [1, 1]} : vector<1x256xf32> to vector<1x16xf32>
    %235 = vector.extract_strided_slice %220 {offsets = [0, 224], sizes = [1, 16], strides = [1, 1]} : vector<1x256xf32> to vector<1x16xf32>
    %236 = vector.extract_strided_slice %220 {offsets = [0, 240], sizes = [1, 16], strides = [1, 1]} : vector<1x256xf32> to vector<1x16xf32>
    %237 = tpu.concatenate %221, %222, %223, %224, %225, %226, %227, %228, %229, %230, %231, %232, %233, %234, %235, %236 in 0 : vector<1x16xf32>, vector<1x16xf32>, vector<1x16xf32>, vector<1x16xf32>, vector<1x16xf32>, vector<1x16xf32>, vector<1x16xf32>, vector<1x16xf32>, vector<1x16xf32>, vector<1x16xf32>, vector<1x16xf32>, vector<1x16xf32>, vector<1x16xf32>, vector<1x16xf32>, vector<1x16xf32>, vector<1x16xf32> -> vector<16x16xf32>
    %238 = vector.extract_strided_slice %219 {offsets = [1, 0], sizes = [1, 256], strides = [1, 1]} : vector<2x256xf32> to vector<1x256xf32>
    %239 = vector.extract_strided_slice %238 {offsets = [0, 0], sizes = [1, 16], strides = [1, 1]} : vector<1x256xf32> to vector<1x16xf32>
    %240 = vector.extract_strided_slice %238 {offsets = [0, 16], sizes = [1, 16], strides = [1, 1]} : vector<1x256xf32> to vector<1x16xf32>
    %241 = vector.extract_strided_slice %238 {offsets = [0, 32], sizes = [1, 16], strides = [1, 1]} : vector<1x256xf32> to vector<1x16xf32>
    %242 = vector.extract_strided_slice %238 {offsets = [0, 48], sizes = [1, 16], strides = [1, 1]} : vector<1x256xf32> to vector<1x16xf32>
    %243 = vector.extract_strided_slice %238 {offsets = [0, 64], sizes = [1, 16], strides = [1, 1]} : vector<1x256xf32> to vector<1x16xf32>
    %244 = vector.extract_strided_slice %238 {offsets = [0, 80], sizes = [1, 16], strides = [1, 1]} : vector<1x256xf32> to vector<1x16xf32>
    %245 = vector.extract_strided_slice %238 {offsets = [0, 96], sizes = [1, 16], strides = [1, 1]} : vector<1x256xf32> to vector<1x16xf32>
    %246 = vector.extract_strided_slice %238 {offsets = [0, 112], sizes = [1, 16], strides = [1, 1]} : vector<1x256xf32> to vector<1x16xf32>
    %247 = vector.extract_strided_slice %238 {offsets = [0, 128], sizes = [1, 16], strides = [1, 1]} : vector<1x256xf32> to vector<1x16xf32>
    %248 = vector.extract_strided_slice %238 {offsets = [0, 144], sizes = [1, 16], strides = [1, 1]} : vector<1x256xf32> to vector<1x16xf32>
    %249 = vector.extract_strided_slice %238 {offsets = [0, 160], sizes = [1, 16], strides = [1, 1]} : vector<1x256xf32> to vector<1x16xf32>
    %250 = vector.extract_strided_slice %238 {offsets = [0, 176], sizes = [1, 16], strides = [1, 1]} : vector<1x256xf32> to vector<1x16xf32>
    %251 = vector.extract_strided_slice %238 {offsets = [0, 192], sizes = [1, 16], strides = [1, 1]} : vector<1x256xf32> to vector<1x16xf32>
    %252 = vector.extract_strided_slice %238 {offsets = [0, 208], sizes = [1, 16], strides = [1, 1]} : vector<1x256xf32> to vector<1x16xf32>
    %253 = vector.extract_strided_slice %238 {offsets = [0, 224], sizes = [1, 16], strides = [1, 1]} : vector<1x256xf32> to vector<1x16xf32>
    %254 = vector.extract_strided_slice %238 {offsets = [0, 240], sizes = [1, 16], strides = [1, 1]} : vector<1x256xf32> to vector<1x16xf32>
    %255 = tpu.concatenate %239, %240, %241, %242, %243, %244, %245, %246, %247, %248, %249, %250, %251, %252, %253, %254 in 0 : vector<1x16xf32>, vector<1x16xf32>, vector<1x16xf32>, vector<1x16xf32>, vector<1x16xf32>, vector<1x16xf32>, vector<1x16xf32>, vector<1x16xf32>, vector<1x16xf32>, vector<1x16xf32>, vector<1x16xf32>, vector<1x16xf32>, vector<1x16xf32>, vector<1x16xf32>, vector<1x16xf32>, vector<1x16xf32> -> vector<16x16xf32>
    %256 = tpu.concatenate %237, %255 in 0 : vector<16x16xf32>, vector<16x16xf32> -> vector<32x16xf32>
    %cst_76 = arith.constant dense<0.000000e+00> : vector<32x16xf32>
    %257 = tpu.matmul %256, %19, %cst_76 {dimension_numbers = #tpu.dot_dimension_numbers<[1], [1], [0], [0], [0, 0, 1, 0], [], []>} : vector<32x16xf32>, vector<16x16xf32>, vector<32x16xf32> -> vector<32x16xf32>
    %cst_77 = arith.constant dense<0xFF800000> : vector<32xf32>
    %258 = vector.multi_reduction <maximumf>, %257, %cst_77 [1] : vector<32x16xf32> to vector<32xf32>
    %259 = vector.shape_cast %258 : vector<32xf32> to vector<32x1xf32>
    %260 = vector.broadcast %259 : vector<32x1xf32> to vector<32x16xf32>
    %261 = arith.subf %257, %260 : vector<32x16xf32>
    %262 = math.exp %261 : vector<32x16xf32>
    %cst_78 = arith.constant dense<0.000000e+00> : vector<32xf32>
    %263 = vector.multi_reduction <add>, %262, %cst_78 [1] : vector<32x16xf32> to vector<32xf32>
    %264 = vector.shape_cast %263 : vector<32xf32> to vector<32x1xf32>
    %265 = tpu.reciprocal %264 {approx = true} : vector<32x1xf32> -> vector<32x1xf32>
    %266 = vector.broadcast %265 : vector<32x1xf32> to vector<32x16xf32>
    %267 = arith.mulf %262, %266 : vector<32x16xf32>
    %268 = vector.extract_strided_slice %267 {offsets = [0, 0], sizes = [16, 16], strides = [1, 1]} : vector<32x16xf32> to vector<16x16xf32>
    %cst_79 = arith.constant dense<0.000000e+00> : vector<16x16xf32>
    %269 = tpu.matmul %268, %237, %cst_79 {dimension_numbers = #tpu.dot_dimension_numbers<[0], [0], [1], [1], [0, 1, 1, 1], [], []>} : vector<16x16xf32>, vector<16x16xf32>, vector<16x16xf32> -> vector<16x16xf32>
    %270 = vector.extract_strided_slice %267 {offsets = [16, 0], sizes = [16, 16], strides = [1, 1]} : vector<32x16xf32> to vector<16x16xf32>
    %cst_80 = arith.constant dense<0.000000e+00> : vector<16x16xf32>
    %271 = tpu.matmul %270, %255, %cst_80 {dimension_numbers = #tpu.dot_dimension_numbers<[0], [0], [1], [1], [0, 1, 1, 1], [], []>} : vector<16x16xf32>, vector<16x16xf32>, vector<16x16xf32> -> vector<16x16xf32>
    %272 = tpu.concatenate %269, %271 in 0 : vector<16x16xf32>, vector<16x16xf32> -> vector<32x16xf32>
    %c0_81 = arith.constant 0 : index
    %c0_82 = arith.constant 0 : index
    %273 = vector.load %arg20[%c0_81, %c0_82] : memref<16x48xf32, #tpu.memory_space<vmem>>, vector<16x48xf32>
    %c0_83 = arith.constant 0 : index
    %c0_84 = arith.constant 0 : index
    %274 = vector.load %arg21[%c0_83, %c0_84] : memref<1x48xf32, #tpu.memory_space<vmem>>, vector<1x48xf32>
    %c0_85 = arith.constant 0 : index
    %c0_86 = arith.constant 0 : index
    %275 = vector.load %arg22[%c0_85, %c0_86] : memref<16x16xf32, #tpu.memory_space<vmem>>, vector<16x16xf32>
    %c0_87 = arith.constant 0 : index
    %c0_88 = arith.constant 0 : index
    %276 = vector.load %arg23[%c0_87, %c0_88] : memref<1x16xf32, #tpu.memory_space<vmem>>, vector<1x16xf32>
    %c0_89 = arith.constant 0 : index
    %c0_90 = arith.constant 0 : index
    %277 = vector.load %arg24[%c0_89, %c0_90] : memref<1x16xf32, #tpu.memory_space<vmem>>, vector<1x16xf32>
    %c0_91 = arith.constant 0 : index
    %c0_92 = arith.constant 0 : index
    %278 = vector.load %arg25[%c0_91, %c0_92] : memref<1x16xf32, #tpu.memory_space<vmem>>, vector<1x16xf32>
    %c0_93 = arith.constant 0 : index
    %c0_94 = arith.constant 0 : index
    %279 = vector.load %arg26[%c0_93, %c0_94] : memref<16x64xf32, #tpu.memory_space<vmem>>, vector<16x64xf32>
    %c0_95 = arith.constant 0 : index
    %c0_96 = arith.constant 0 : index
    %280 = vector.load %arg27[%c0_95, %c0_96] : memref<1x64xf32, #tpu.memory_space<vmem>>, vector<1x64xf32>
    %c0_97 = arith.constant 0 : index
    %c0_98 = arith.constant 0 : index
    %281 = vector.load %arg28[%c0_97, %c0_98] : memref<64x16xf32, #tpu.memory_space<vmem>>, vector<64x16xf32>
    %c0_99 = arith.constant 0 : index
    %c0_100 = arith.constant 0 : index
    %282 = vector.load %arg29[%c0_99, %c0_100] : memref<1x16xf32, #tpu.memory_space<vmem>>, vector<1x16xf32>
    %c0_101 = arith.constant 0 : index
    %c0_102 = arith.constant 0 : index
    %283 = vector.load %arg30[%c0_101, %c0_102] : memref<1x16xf32, #tpu.memory_space<vmem>>, vector<1x16xf32>
    %c0_103 = arith.constant 0 : index
    %c0_104 = arith.constant 0 : index
    %284 = vector.load %arg31[%c0_103, %c0_104] : memref<1x16xf32, #tpu.memory_space<vmem>>, vector<1x16xf32>
    %c0_105 = arith.constant 0 : index
    %c0_106 = arith.constant 0 : index
    %285 = vector.load %arg32[%c0_105, %c0_106] : memref<256x32xf32, #tpu.memory_space<vmem>>, vector<256x32xf32>
    %c0_107 = arith.constant 0 : index
    %c0_108 = arith.constant 0 : index
    %286 = vector.load %arg33[%c0_107, %c0_108] : memref<1x32xf32, #tpu.memory_space<vmem>>, vector<1x32xf32>
    %c0_109 = arith.constant 0 : index
    %c0_110 = arith.constant 0 : index
    %287 = vector.load %arg34[%c0_109, %c0_110] : memref<32x32xf32, #tpu.memory_space<vmem>>, vector<32x32xf32>
    %c0_111 = arith.constant 0 : index
    %c0_112 = arith.constant 0 : index
    %288 = vector.load %arg35[%c0_111, %c0_112] : memref<1x32xf32, #tpu.memory_space<vmem>>, vector<1x32xf32>
    %c0_113 = arith.constant 0 : index
    %c0_114 = arith.constant 0 : index
    %289 = vector.load %arg36[%c0_113, %c0_114] : memref<32x256xf32, #tpu.memory_space<vmem>>, vector<32x256xf32>
    %c0_115 = arith.constant 0 : index
    %c0_116 = arith.constant 0 : index
    %290 = vector.load %arg37[%c0_115, %c0_116] : memref<1x256xf32, #tpu.memory_space<vmem>>, vector<1x256xf32>
    %c0_117 = arith.constant 0 : index
    %c0_118 = arith.constant 0 : index
    %291 = vector.load %arg38[%c0_117, %c0_118] : memref<8x16xf32, #tpu.memory_space<vmem>>, vector<8x16xf32>
    %cst_119 = arith.constant dense<0.000000e+00> : vector<32x48xf32>
    %292 = tpu.matmul %272, %273, %cst_119 {dimension_numbers = #tpu.dot_dimension_numbers<[1], [0], [0], [1], [0, 0, 1, 1], [], []>} : vector<32x16xf32>, vector<16x48xf32>, vector<32x48xf32> -> vector<32x48xf32>
    %293 = vector.broadcast %274 : vector<1x48xf32> to vector<32x48xf32>
    %294 = arith.addf %292, %293 : vector<32x48xf32>
    %295 = vector.extract_strided_slice %294 {offsets = [0, 0], sizes = [32, 16], strides = [1, 1]} : vector<32x48xf32> to vector<32x16xf32>
    %296 = vector.extract_strided_slice %295 {offsets = [0, 0], sizes = [16, 16], strides = [1, 1]} : vector<32x16xf32> to vector<16x16xf32>
    %297 = vector.shape_cast %296 : vector<16x16xf32> to vector<1x16x16xf32>
    %298 = vector.extract_strided_slice %295 {offsets = [16, 0], sizes = [16, 16], strides = [1, 1]} : vector<32x16xf32> to vector<16x16xf32>
    %299 = vector.shape_cast %298 : vector<16x16xf32> to vector<1x16x16xf32>
    %300 = tpu.concatenate %297, %299 in 0 : vector<1x16x16xf32>, vector<1x16x16xf32> -> vector<2x16x16xf32>
    %301 = vector.extract_strided_slice %294 {offsets = [0, 16], sizes = [32, 16], strides = [1, 1]} : vector<32x48xf32> to vector<32x16xf32>
    %302 = vector.extract_strided_slice %301 {offsets = [0, 0], sizes = [16, 16], strides = [1, 1]} : vector<32x16xf32> to vector<16x16xf32>
    %303 = vector.shape_cast %302 : vector<16x16xf32> to vector<1x16x16xf32>
    %304 = vector.extract_strided_slice %301 {offsets = [16, 0], sizes = [16, 16], strides = [1, 1]} : vector<32x16xf32> to vector<16x16xf32>
    %305 = vector.shape_cast %304 : vector<16x16xf32> to vector<1x16x16xf32>
    %306 = tpu.concatenate %303, %305 in 0 : vector<1x16x16xf32>, vector<1x16x16xf32> -> vector<2x16x16xf32>
    %307 = vector.extract_strided_slice %294 {offsets = [0, 32], sizes = [32, 16], strides = [1, 1]} : vector<32x48xf32> to vector<32x16xf32>
    %308 = vector.extract_strided_slice %307 {offsets = [0, 0], sizes = [16, 16], strides = [1, 1]} : vector<32x16xf32> to vector<16x16xf32>
    %309 = vector.shape_cast %308 : vector<16x16xf32> to vector<1x16x16xf32>
    %310 = vector.extract_strided_slice %307 {offsets = [16, 0], sizes = [16, 16], strides = [1, 1]} : vector<32x16xf32> to vector<16x16xf32>
    %311 = vector.shape_cast %310 : vector<16x16xf32> to vector<1x16x16xf32>
    %312 = tpu.concatenate %309, %311 in 0 : vector<1x16x16xf32>, vector<1x16x16xf32> -> vector<2x16x16xf32>
    %313 = vector.extract_strided_slice %300 {offsets = [0, 0, 0], sizes = [2, 16, 4], strides = [1, 1, 1]} : vector<2x16x16xf32> to vector<2x16x4xf32>
    %314 = vector.extract_strided_slice %306 {offsets = [0, 0, 0], sizes = [2, 16, 4], strides = [1, 1, 1]} : vector<2x16x16xf32> to vector<2x16x4xf32>
    "tpu.trace_start"() <{level = 10 : i32, message = "bqe,bke->bqk"}> : () -> ()
    %cst_120 = arith.constant dense<0.000000e+00> : vector<2x16x16xf32>
    %315 = tpu.matmul %313, %314, %cst_120 {dimension_numbers = #tpu.dot_dimension_numbers<[2], [2], [1], [1], [0, 0, 0, 1, 1, 1], [0], [0]>} : vector<2x16x4xf32>, vector<2x16x4xf32>, vector<2x16x16xf32> -> vector<2x16x16xf32>
    "tpu.trace_stop"() : () -> ()
    %cst_121 = arith.constant dense<0xFF800000> : vector<2x16xf32>
    %316 = vector.multi_reduction <maximumf>, %315, %cst_121 [2] : vector<2x16x16xf32> to vector<2x16xf32>
    %317 = vector.shape_cast %316 : vector<2x16xf32> to vector<2x16x1xf32>
    %318 = vector.broadcast %317 : vector<2x16x1xf32> to vector<2x16x16xf32>
    %319 = arith.subf %315, %318 : vector<2x16x16xf32>
    %320 = math.exp %319 : vector<2x16x16xf32>
    %cst_122 = arith.constant dense<0.000000e+00> : vector<2x16xf32>
    %321 = vector.multi_reduction <add>, %320, %cst_122 [2] : vector<2x16x16xf32> to vector<2x16xf32>
    %322 = vector.shape_cast %321 : vector<2x16xf32> to vector<2x16x1xf32>
    %323 = tpu.reciprocal %322 {approx = true} : vector<2x16x1xf32> -> vector<2x16x1xf32>
    %324 = vector.broadcast %323 : vector<2x16x1xf32> to vector<2x16x16xf32>
    %325 = arith.mulf %320, %324 : vector<2x16x16xf32>
    %326 = vector.extract_strided_slice %312 {offsets = [0, 0, 0], sizes = [2, 16, 4], strides = [1, 1, 1]} : vector<2x16x16xf32> to vector<2x16x4xf32>
    "tpu.trace_start"() <{level = 10 : i32, message = "bqk,bke->bqe"}> : () -> ()
    %cst_123 = arith.constant dense<0.000000e+00> : vector<2x16x4xf32>
    %327 = tpu.matmul %325, %326, %cst_123 {dimension_numbers = #tpu.dot_dimension_numbers<[2], [1], [1], [2], [0, 0, 0, 1, 1, 2], [0], [0]>} : vector<2x16x16xf32>, vector<2x16x4xf32>, vector<2x16x4xf32> -> vector<2x16x4xf32>
    "tpu.trace_stop"() : () -> ()
    %328 = vector.extract_strided_slice %300 {offsets = [0, 0, 4], sizes = [2, 16, 4], strides = [1, 1, 1]} : vector<2x16x16xf32> to vector<2x16x4xf32>
    %329 = vector.extract_strided_slice %306 {offsets = [0, 0, 4], sizes = [2, 16, 4], strides = [1, 1, 1]} : vector<2x16x16xf32> to vector<2x16x4xf32>
    "tpu.trace_start"() <{level = 10 : i32, message = "bqe,bke->bqk"}> : () -> ()
    %cst_124 = arith.constant dense<0.000000e+00> : vector<2x16x16xf32>
    %330 = tpu.matmul %328, %329, %cst_124 {dimension_numbers = #tpu.dot_dimension_numbers<[2], [2], [1], [1], [0, 0, 0, 1, 1, 1], [0], [0]>} : vector<2x16x4xf32>, vector<2x16x4xf32>, vector<2x16x16xf32> -> vector<2x16x16xf32>
    "tpu.trace_stop"() : () -> ()
    %cst_125 = arith.constant dense<0xFF800000> : vector<2x16xf32>
    %331 = vector.multi_reduction <maximumf>, %330, %cst_125 [2] : vector<2x16x16xf32> to vector<2x16xf32>
    %332 = vector.shape_cast %331 : vector<2x16xf32> to vector<2x16x1xf32>
    %333 = vector.broadcast %332 : vector<2x16x1xf32> to vector<2x16x16xf32>
    %334 = arith.subf %330, %333 : vector<2x16x16xf32>
    %335 = math.exp %334 : vector<2x16x16xf32>
    %cst_126 = arith.constant dense<0.000000e+00> : vector<2x16xf32>
    %336 = vector.multi_reduction <add>, %335, %cst_126 [2] : vector<2x16x16xf32> to vector<2x16xf32>
    %337 = vector.shape_cast %336 : vector<2x16xf32> to vector<2x16x1xf32>
    %338 = tpu.reciprocal %337 {approx = true} : vector<2x16x1xf32> -> vector<2x16x1xf32>
    %339 = vector.broadcast %338 : vector<2x16x1xf32> to vector<2x16x16xf32>
    %340 = arith.mulf %335, %339 : vector<2x16x16xf32>
    %341 = vector.extract_strided_slice %312 {offsets = [0, 0, 4], sizes = [2, 16, 4], strides = [1, 1, 1]} : vector<2x16x16xf32> to vector<2x16x4xf32>
    "tpu.trace_start"() <{level = 10 : i32, message = "bqk,bke->bqe"}> : () -> ()
    %cst_127 = arith.constant dense<0.000000e+00> : vector<2x16x4xf32>
    %342 = tpu.matmul %340, %341, %cst_127 {dimension_numbers = #tpu.dot_dimension_numbers<[2], [1], [1], [2], [0, 0, 0, 1, 1, 2], [0], [0]>} : vector<2x16x16xf32>, vector<2x16x4xf32>, vector<2x16x4xf32> -> vector<2x16x4xf32>
    "tpu.trace_stop"() : () -> ()
    %343 = vector.extract_strided_slice %300 {offsets = [0, 0, 8], sizes = [2, 16, 4], strides = [1, 1, 1]} : vector<2x16x16xf32> to vector<2x16x4xf32>
    %344 = vector.extract_strided_slice %306 {offsets = [0, 0, 8], sizes = [2, 16, 4], strides = [1, 1, 1]} : vector<2x16x16xf32> to vector<2x16x4xf32>
    "tpu.trace_start"() <{level = 10 : i32, message = "bqe,bke->bqk"}> : () -> ()
    %cst_128 = arith.constant dense<0.000000e+00> : vector<2x16x16xf32>
    %345 = tpu.matmul %343, %344, %cst_128 {dimension_numbers = #tpu.dot_dimension_numbers<[2], [2], [1], [1], [0, 0, 0, 1, 1, 1], [0], [0]>} : vector<2x16x4xf32>, vector<2x16x4xf32>, vector<2x16x16xf32> -> vector<2x16x16xf32>
    "tpu.trace_stop"() : () -> ()
    %cst_129 = arith.constant dense<0xFF800000> : vector<2x16xf32>
    %346 = vector.multi_reduction <maximumf>, %345, %cst_129 [2] : vector<2x16x16xf32> to vector<2x16xf32>
    %347 = vector.shape_cast %346 : vector<2x16xf32> to vector<2x16x1xf32>
    %348 = vector.broadcast %347 : vector<2x16x1xf32> to vector<2x16x16xf32>
    %349 = arith.subf %345, %348 : vector<2x16x16xf32>
    %350 = math.exp %349 : vector<2x16x16xf32>
    %cst_130 = arith.constant dense<0.000000e+00> : vector<2x16xf32>
    %351 = vector.multi_reduction <add>, %350, %cst_130 [2] : vector<2x16x16xf32> to vector<2x16xf32>
    %352 = vector.shape_cast %351 : vector<2x16xf32> to vector<2x16x1xf32>
    %353 = tpu.reciprocal %352 {approx = true} : vector<2x16x1xf32> -> vector<2x16x1xf32>
    %354 = vector.broadcast %353 : vector<2x16x1xf32> to vector<2x16x16xf32>
    %355 = arith.mulf %350, %354 : vector<2x16x16xf32>
    %356 = vector.extract_strided_slice %312 {offsets = [0, 0, 8], sizes = [2, 16, 4], strides = [1, 1, 1]} : vector<2x16x16xf32> to vector<2x16x4xf32>
    "tpu.trace_start"() <{level = 10 : i32, message = "bqk,bke->bqe"}> : () -> ()
    %cst_131 = arith.constant dense<0.000000e+00> : vector<2x16x4xf32>
    %357 = tpu.matmul %355, %356, %cst_131 {dimension_numbers = #tpu.dot_dimension_numbers<[2], [1], [1], [2], [0, 0, 0, 1, 1, 2], [0], [0]>} : vector<2x16x16xf32>, vector<2x16x4xf32>, vector<2x16x4xf32> -> vector<2x16x4xf32>
    "tpu.trace_stop"() : () -> ()
    %358 = vector.extract_strided_slice %300 {offsets = [0, 0, 12], sizes = [2, 16, 4], strides = [1, 1, 1]} : vector<2x16x16xf32> to vector<2x16x4xf32>
    %359 = vector.extract_strided_slice %306 {offsets = [0, 0, 12], sizes = [2, 16, 4], strides = [1, 1, 1]} : vector<2x16x16xf32> to vector<2x16x4xf32>
    "tpu.trace_start"() <{level = 10 : i32, message = "bqe,bke->bqk"}> : () -> ()
    %cst_132 = arith.constant dense<0.000000e+00> : vector<2x16x16xf32>
    %360 = tpu.matmul %358, %359, %cst_132 {dimension_numbers = #tpu.dot_dimension_numbers<[2], [2], [1], [1], [0, 0, 0, 1, 1, 1], [0], [0]>} : vector<2x16x4xf32>, vector<2x16x4xf32>, vector<2x16x16xf32> -> vector<2x16x16xf32>
    "tpu.trace_stop"() : () -> ()
    %cst_133 = arith.constant dense<0xFF800000> : vector<2x16xf32>
    %361 = vector.multi_reduction <maximumf>, %360, %cst_133 [2] : vector<2x16x16xf32> to vector<2x16xf32>
    %362 = vector.shape_cast %361 : vector<2x16xf32> to vector<2x16x1xf32>
    %363 = vector.broadcast %362 : vector<2x16x1xf32> to vector<2x16x16xf32>
    %364 = arith.subf %360, %363 : vector<2x16x16xf32>
    %365 = math.exp %364 : vector<2x16x16xf32>
    %cst_134 = arith.constant dense<0.000000e+00> : vector<2x16xf32>
    %366 = vector.multi_reduction <add>, %365, %cst_134 [2] : vector<2x16x16xf32> to vector<2x16xf32>
    %367 = vector.shape_cast %366 : vector<2x16xf32> to vector<2x16x1xf32>
    %368 = tpu.reciprocal %367 {approx = true} : vector<2x16x1xf32> -> vector<2x16x1xf32>
    %369 = vector.broadcast %368 : vector<2x16x1xf32> to vector<2x16x16xf32>
    %370 = arith.mulf %365, %369 : vector<2x16x16xf32>
    %371 = vector.extract_strided_slice %312 {offsets = [0, 0, 12], sizes = [2, 16, 4], strides = [1, 1, 1]} : vector<2x16x16xf32> to vector<2x16x4xf32>
    "tpu.trace_start"() <{level = 10 : i32, message = "bqk,bke->bqe"}> : () -> ()
    %cst_135 = arith.constant dense<0.000000e+00> : vector<2x16x4xf32>
    %372 = tpu.matmul %370, %371, %cst_135 {dimension_numbers = #tpu.dot_dimension_numbers<[2], [1], [1], [2], [0, 0, 0, 1, 1, 2], [0], [0]>} : vector<2x16x16xf32>, vector<2x16x4xf32>, vector<2x16x4xf32> -> vector<2x16x4xf32>
    "tpu.trace_stop"() : () -> ()
    %373 = tpu.concatenate %327, %342, %357, %372 in 2 : vector<2x16x4xf32>, vector<2x16x4xf32>, vector<2x16x4xf32>, vector<2x16x4xf32> -> vector<2x16x16xf32>
    %374 = vector.extract_strided_slice %373 {offsets = [0, 0, 0], sizes = [1, 16, 16], strides = [1, 1, 1]} : vector<2x16x16xf32> to vector<1x16x16xf32>
    %375 = vector.shape_cast %374 : vector<1x16x16xf32> to vector<16x16xf32>
    %376 = vector.extract_strided_slice %373 {offsets = [1, 0, 0], sizes = [1, 16, 16], strides = [1, 1, 1]} : vector<2x16x16xf32> to vector<1x16x16xf32>
    %377 = vector.shape_cast %376 : vector<1x16x16xf32> to vector<16x16xf32>
    %378 = tpu.concatenate %375, %377 in 0 : vector<16x16xf32>, vector<16x16xf32> -> vector<32x16xf32>
    %cst_136 = arith.constant dense<0.000000e+00> : vector<32x16xf32>
    %379 = tpu.matmul %378, %275, %cst_136 {dimension_numbers = #tpu.dot_dimension_numbers<[1], [0], [0], [1], [0, 0, 1, 1], [], []>} : vector<32x16xf32>, vector<16x16xf32>, vector<32x16xf32> -> vector<32x16xf32>
    %380 = vector.broadcast %276 : vector<1x16xf32> to vector<32x16xf32>
    %381 = arith.addf %379, %380 : vector<32x16xf32>
    %382 = arith.addf %272, %381 : vector<32x16xf32>
    %cst_137 = arith.constant dense<0.000000e+00> : vector<32xf32>
    %383 = vector.multi_reduction <add>, %382, %cst_137 [1] : vector<32x16xf32> to vector<32xf32>
    %384 = vector.shape_cast %383 : vector<32xf32> to vector<32x1xf32>
    %cst_138 = arith.constant 1.600000e+01 : f32
    %385 = vector.broadcast %cst_138 : f32 to vector<32x1xf32>
    %386 = arith.divf %384, %385 : vector<32x1xf32>
    %387 = vector.broadcast %386 : vector<32x1xf32> to vector<32x16xf32>
    %388 = arith.subf %382, %387 : vector<32x16xf32>
    %389 = arith.mulf %388, %388 : vector<32x16xf32>
    %cst_139 = arith.constant dense<0.000000e+00> : vector<32xf32>
    %390 = vector.multi_reduction <add>, %389, %cst_139 [1] : vector<32x16xf32> to vector<32xf32>
    %391 = vector.shape_cast %390 : vector<32xf32> to vector<32x1xf32>
    %cst_140 = arith.constant 1.600000e+01 : f32
    %392 = vector.broadcast %cst_140 : f32 to vector<32x1xf32>
    %393 = arith.divf %391, %392 : vector<32x1xf32>
    %394 = vector.broadcast %386 : vector<32x1xf32> to vector<32x16xf32>
    %395 = arith.subf %382, %394 : vector<32x16xf32>
    %cst_141 = arith.constant 9.99999974E-6 : f32
    %396 = vector.broadcast %cst_141 : f32 to vector<32x1xf32>
    %397 = arith.addf %393, %396 : vector<32x1xf32>
    %398 = math.rsqrt %397 : vector<32x1xf32>
    %399 = vector.broadcast %398 : vector<32x1xf32> to vector<32x16xf32>
    %400 = arith.mulf %395, %399 : vector<32x16xf32>
    %401 = vector.broadcast %277 : vector<1x16xf32> to vector<32x16xf32>
    %402 = arith.mulf %400, %401 : vector<32x16xf32>
    %403 = vector.broadcast %278 : vector<1x16xf32> to vector<32x16xf32>
    %404 = arith.addf %402, %403 : vector<32x16xf32>
    %cst_142 = arith.constant dense<0.000000e+00> : vector<32x64xf32>
    %405 = tpu.matmul %404, %279, %cst_142 {dimension_numbers = #tpu.dot_dimension_numbers<[1], [0], [0], [1], [0, 0, 1, 1], [], []>} : vector<32x16xf32>, vector<16x64xf32>, vector<32x64xf32> -> vector<32x64xf32>
    %406 = vector.broadcast %280 : vector<1x64xf32> to vector<32x64xf32>
    %407 = arith.addf %405, %406 : vector<32x64xf32>
    %cst_143 = arith.constant 0.000000e+00 : f32
    %408 = vector.broadcast %cst_143 : f32 to vector<32x64xf32>
    %409 = arith.maximumf %407, %408 : vector<32x64xf32>
    %cst_144 = arith.constant dense<0.000000e+00> : vector<32x16xf32>
    %410 = tpu.matmul %409, %281, %cst_144 {dimension_numbers = #tpu.dot_dimension_numbers<[1], [0], [0], [1], [0, 0, 1, 1], [], []>} : vector<32x64xf32>, vector<64x16xf32>, vector<32x16xf32> -> vector<32x16xf32>
    %411 = vector.broadcast %282 : vector<1x16xf32> to vector<32x16xf32>
    %412 = arith.addf %410, %411 : vector<32x16xf32>
    %413 = arith.addf %404, %412 : vector<32x16xf32>
    %cst_145 = arith.constant dense<0.000000e+00> : vector<32xf32>
    %414 = vector.multi_reduction <add>, %413, %cst_145 [1] : vector<32x16xf32> to vector<32xf32>
    %415 = vector.shape_cast %414 : vector<32xf32> to vector<32x1xf32>
    %cst_146 = arith.constant 1.600000e+01 : f32
    %416 = vector.broadcast %cst_146 : f32 to vector<32x1xf32>
    %417 = arith.divf %415, %416 : vector<32x1xf32>
    %418 = vector.broadcast %417 : vector<32x1xf32> to vector<32x16xf32>
    %419 = arith.subf %413, %418 : vector<32x16xf32>
    %420 = arith.mulf %419, %419 : vector<32x16xf32>
    %cst_147 = arith.constant dense<0.000000e+00> : vector<32xf32>
    %421 = vector.multi_reduction <add>, %420, %cst_147 [1] : vector<32x16xf32> to vector<32xf32>
    %422 = vector.shape_cast %421 : vector<32xf32> to vector<32x1xf32>
    %cst_148 = arith.constant 1.600000e+01 : f32
    %423 = vector.broadcast %cst_148 : f32 to vector<32x1xf32>
    %424 = arith.divf %422, %423 : vector<32x1xf32>
    %425 = vector.broadcast %417 : vector<32x1xf32> to vector<32x16xf32>
    %426 = arith.subf %413, %425 : vector<32x16xf32>
    %cst_149 = arith.constant 9.99999974E-6 : f32
    %427 = vector.broadcast %cst_149 : f32 to vector<32x1xf32>
    %428 = arith.addf %424, %427 : vector<32x1xf32>
    %429 = math.rsqrt %428 : vector<32x1xf32>
    %430 = vector.broadcast %429 : vector<32x1xf32> to vector<32x16xf32>
    %431 = arith.mulf %426, %430 : vector<32x16xf32>
    %432 = vector.broadcast %283 : vector<1x16xf32> to vector<32x16xf32>
    %433 = arith.mulf %431, %432 : vector<32x16xf32>
    %434 = vector.broadcast %284 : vector<1x16xf32> to vector<32x16xf32>
    %435 = arith.addf %433, %434 : vector<32x16xf32>
    %436 = vector.extract_strided_slice %435 {offsets = [0, 0], sizes = [16, 16], strides = [1, 1]} : vector<32x16xf32> to vector<16x16xf32>
    %437 = vector.extract_strided_slice %436 {offsets = [0, 0], sizes = [1, 16], strides = [1, 1]} : vector<16x16xf32> to vector<1x16xf32>
    %438 = vector.extract_strided_slice %436 {offsets = [1, 0], sizes = [1, 16], strides = [1, 1]} : vector<16x16xf32> to vector<1x16xf32>
    %439 = vector.extract_strided_slice %436 {offsets = [2, 0], sizes = [1, 16], strides = [1, 1]} : vector<16x16xf32> to vector<1x16xf32>
    %440 = vector.extract_strided_slice %436 {offsets = [3, 0], sizes = [1, 16], strides = [1, 1]} : vector<16x16xf32> to vector<1x16xf32>
    %441 = vector.extract_strided_slice %436 {offsets = [4, 0], sizes = [1, 16], strides = [1, 1]} : vector<16x16xf32> to vector<1x16xf32>
    %442 = vector.extract_strided_slice %436 {offsets = [5, 0], sizes = [1, 16], strides = [1, 1]} : vector<16x16xf32> to vector<1x16xf32>
    %443 = vector.extract_strided_slice %436 {offsets = [6, 0], sizes = [1, 16], strides = [1, 1]} : vector<16x16xf32> to vector<1x16xf32>
    %444 = vector.extract_strided_slice %436 {offsets = [7, 0], sizes = [1, 16], strides = [1, 1]} : vector<16x16xf32> to vector<1x16xf32>
    %445 = vector.extract_strided_slice %436 {offsets = [8, 0], sizes = [1, 16], strides = [1, 1]} : vector<16x16xf32> to vector<1x16xf32>
    %446 = vector.extract_strided_slice %436 {offsets = [9, 0], sizes = [1, 16], strides = [1, 1]} : vector<16x16xf32> to vector<1x16xf32>
    %447 = vector.extract_strided_slice %436 {offsets = [10, 0], sizes = [1, 16], strides = [1, 1]} : vector<16x16xf32> to vector<1x16xf32>
    %448 = vector.extract_strided_slice %436 {offsets = [11, 0], sizes = [1, 16], strides = [1, 1]} : vector<16x16xf32> to vector<1x16xf32>
    %449 = vector.extract_strided_slice %436 {offsets = [12, 0], sizes = [1, 16], strides = [1, 1]} : vector<16x16xf32> to vector<1x16xf32>
    %450 = vector.extract_strided_slice %436 {offsets = [13, 0], sizes = [1, 16], strides = [1, 1]} : vector<16x16xf32> to vector<1x16xf32>
    %451 = vector.extract_strided_slice %436 {offsets = [14, 0], sizes = [1, 16], strides = [1, 1]} : vector<16x16xf32> to vector<1x16xf32>
    %452 = vector.extract_strided_slice %436 {offsets = [15, 0], sizes = [1, 16], strides = [1, 1]} : vector<16x16xf32> to vector<1x16xf32>
    %453 = tpu.concatenate %437, %438, %439, %440, %441, %442, %443, %444, %445, %446, %447, %448, %449, %450, %451, %452 in 1 : vector<1x16xf32>, vector<1x16xf32>, vector<1x16xf32>, vector<1x16xf32>, vector<1x16xf32>, vector<1x16xf32>, vector<1x16xf32>, vector<1x16xf32>, vector<1x16xf32>, vector<1x16xf32>, vector<1x16xf32>, vector<1x16xf32>, vector<1x16xf32>, vector<1x16xf32>, vector<1x16xf32>, vector<1x16xf32> -> vector<1x256xf32>
    %454 = vector.extract_strided_slice %435 {offsets = [16, 0], sizes = [16, 16], strides = [1, 1]} : vector<32x16xf32> to vector<16x16xf32>
    %455 = vector.extract_strided_slice %454 {offsets = [0, 0], sizes = [1, 16], strides = [1, 1]} : vector<16x16xf32> to vector<1x16xf32>
    %456 = vector.extract_strided_slice %454 {offsets = [1, 0], sizes = [1, 16], strides = [1, 1]} : vector<16x16xf32> to vector<1x16xf32>
    %457 = vector.extract_strided_slice %454 {offsets = [2, 0], sizes = [1, 16], strides = [1, 1]} : vector<16x16xf32> to vector<1x16xf32>
    %458 = vector.extract_strided_slice %454 {offsets = [3, 0], sizes = [1, 16], strides = [1, 1]} : vector<16x16xf32> to vector<1x16xf32>
    %459 = vector.extract_strided_slice %454 {offsets = [4, 0], sizes = [1, 16], strides = [1, 1]} : vector<16x16xf32> to vector<1x16xf32>
    %460 = vector.extract_strided_slice %454 {offsets = [5, 0], sizes = [1, 16], strides = [1, 1]} : vector<16x16xf32> to vector<1x16xf32>
    %461 = vector.extract_strided_slice %454 {offsets = [6, 0], sizes = [1, 16], strides = [1, 1]} : vector<16x16xf32> to vector<1x16xf32>
    %462 = vector.extract_strided_slice %454 {offsets = [7, 0], sizes = [1, 16], strides = [1, 1]} : vector<16x16xf32> to vector<1x16xf32>
    %463 = vector.extract_strided_slice %454 {offsets = [8, 0], sizes = [1, 16], strides = [1, 1]} : vector<16x16xf32> to vector<1x16xf32>
    %464 = vector.extract_strided_slice %454 {offsets = [9, 0], sizes = [1, 16], strides = [1, 1]} : vector<16x16xf32> to vector<1x16xf32>
    %465 = vector.extract_strided_slice %454 {offsets = [10, 0], sizes = [1, 16], strides = [1, 1]} : vector<16x16xf32> to vector<1x16xf32>
    %466 = vector.extract_strided_slice %454 {offsets = [11, 0], sizes = [1, 16], strides = [1, 1]} : vector<16x16xf32> to vector<1x16xf32>
    %467 = vector.extract_strided_slice %454 {offsets = [12, 0], sizes = [1, 16], strides = [1, 1]} : vector<16x16xf32> to vector<1x16xf32>
    %468 = vector.extract_strided_slice %454 {offsets = [13, 0], sizes = [1, 16], strides = [1, 1]} : vector<16x16xf32> to vector<1x16xf32>
    %469 = vector.extract_strided_slice %454 {offsets = [14, 0], sizes = [1, 16], strides = [1, 1]} : vector<16x16xf32> to vector<1x16xf32>
    %470 = vector.extract_strided_slice %454 {offsets = [15, 0], sizes = [1, 16], strides = [1, 1]} : vector<16x16xf32> to vector<1x16xf32>
    %471 = tpu.concatenate %455, %456, %457, %458, %459, %460, %461, %462, %463, %464, %465, %466, %467, %468, %469, %470 in 1 : vector<1x16xf32>, vector<1x16xf32>, vector<1x16xf32>, vector<1x16xf32>, vector<1x16xf32>, vector<1x16xf32>, vector<1x16xf32>, vector<1x16xf32>, vector<1x16xf32>, vector<1x16xf32>, vector<1x16xf32>, vector<1x16xf32>, vector<1x16xf32>, vector<1x16xf32>, vector<1x16xf32>, vector<1x16xf32> -> vector<1x256xf32>
    %472 = tpu.concatenate %453, %471 in 0 : vector<1x256xf32>, vector<1x256xf32> -> vector<2x256xf32>
    %cst_150 = arith.constant dense<0.000000e+00> : vector<2x32xf32>
    %473 = tpu.matmul %472, %285, %cst_150 {dimension_numbers = #tpu.dot_dimension_numbers<[1], [0], [0], [1], [0, 0, 1, 1], [], []>} : vector<2x256xf32>, vector<256x32xf32>, vector<2x32xf32> -> vector<2x32xf32>
    %474 = vector.broadcast %286 : vector<1x32xf32> to vector<2x32xf32>
    %475 = arith.addf %473, %474 : vector<2x32xf32>
    %cst_151 = arith.constant 0.000000e+00 : f32
    %476 = vector.broadcast %cst_151 : f32 to vector<2x32xf32>
    %477 = arith.cmpf oge, %475, %476 : vector<2x32xf32>
    %cst_152 = arith.constant 0.00999999977 : f32
    %478 = vector.broadcast %cst_152 : f32 to vector<2x32xf32>
    %479 = arith.mulf %478, %475 : vector<2x32xf32>
    %480 = arith.select %477, %475, %479 : vector<2x32xi1>, vector<2x32xf32>
    %cst_153 = arith.constant dense<0.000000e+00> : vector<2x32xf32>
    %481 = tpu.matmul %480, %287, %cst_153 {dimension_numbers = #tpu.dot_dimension_numbers<[1], [0], [0], [1], [0, 0, 1, 1], [], []>} : vector<2x32xf32>, vector<32x32xf32>, vector<2x32xf32> -> vector<2x32xf32>
    %482 = vector.broadcast %288 : vector<1x32xf32> to vector<2x32xf32>
    %483 = arith.addf %481, %482 : vector<2x32xf32>
    %cst_154 = arith.constant 0.000000e+00 : f32
    %484 = vector.broadcast %cst_154 : f32 to vector<2x32xf32>
    %485 = arith.cmpf oge, %483, %484 : vector<2x32xf32>
    %cst_155 = arith.constant 0.00999999977 : f32
    %486 = vector.broadcast %cst_155 : f32 to vector<2x32xf32>
    %487 = arith.mulf %486, %483 : vector<2x32xf32>
    %488 = arith.select %485, %483, %487 : vector<2x32xi1>, vector<2x32xf32>
    %cst_156 = arith.constant dense<0.000000e+00> : vector<2x256xf32>
    %489 = tpu.matmul %488, %289, %cst_156 {dimension_numbers = #tpu.dot_dimension_numbers<[1], [0], [0], [1], [0, 0, 1, 1], [], []>} : vector<2x32xf32>, vector<32x256xf32>, vector<2x256xf32> -> vector<2x256xf32>
    %490 = vector.broadcast %290 : vector<1x256xf32> to vector<2x256xf32>
    %491 = arith.addf %489, %490 : vector<2x256xf32>
    %492 = vector.extract_strided_slice %491 {offsets = [0, 0], sizes = [1, 256], strides = [1, 1]} : vector<2x256xf32> to vector<1x256xf32>
    %493 = vector.extract_strided_slice %492 {offsets = [0, 0], sizes = [1, 16], strides = [1, 1]} : vector<1x256xf32> to vector<1x16xf32>
    %494 = vector.extract_strided_slice %492 {offsets = [0, 16], sizes = [1, 16], strides = [1, 1]} : vector<1x256xf32> to vector<1x16xf32>
    %495 = vector.extract_strided_slice %492 {offsets = [0, 32], sizes = [1, 16], strides = [1, 1]} : vector<1x256xf32> to vector<1x16xf32>
    %496 = vector.extract_strided_slice %492 {offsets = [0, 48], sizes = [1, 16], strides = [1, 1]} : vector<1x256xf32> to vector<1x16xf32>
    %497 = vector.extract_strided_slice %492 {offsets = [0, 64], sizes = [1, 16], strides = [1, 1]} : vector<1x256xf32> to vector<1x16xf32>
    %498 = vector.extract_strided_slice %492 {offsets = [0, 80], sizes = [1, 16], strides = [1, 1]} : vector<1x256xf32> to vector<1x16xf32>
    %499 = vector.extract_strided_slice %492 {offsets = [0, 96], sizes = [1, 16], strides = [1, 1]} : vector<1x256xf32> to vector<1x16xf32>
    %500 = vector.extract_strided_slice %492 {offsets = [0, 112], sizes = [1, 16], strides = [1, 1]} : vector<1x256xf32> to vector<1x16xf32>
    %501 = vector.extract_strided_slice %492 {offsets = [0, 128], sizes = [1, 16], strides = [1, 1]} : vector<1x256xf32> to vector<1x16xf32>
    %502 = vector.extract_strided_slice %492 {offsets = [0, 144], sizes = [1, 16], strides = [1, 1]} : vector<1x256xf32> to vector<1x16xf32>
    %503 = vector.extract_strided_slice %492 {offsets = [0, 160], sizes = [1, 16], strides = [1, 1]} : vector<1x256xf32> to vector<1x16xf32>
    %504 = vector.extract_strided_slice %492 {offsets = [0, 176], sizes = [1, 16], strides = [1, 1]} : vector<1x256xf32> to vector<1x16xf32>
    %505 = vector.extract_strided_slice %492 {offsets = [0, 192], sizes = [1, 16], strides = [1, 1]} : vector<1x256xf32> to vector<1x16xf32>
    %506 = vector.extract_strided_slice %492 {offsets = [0, 208], sizes = [1, 16], strides = [1, 1]} : vector<1x256xf32> to vector<1x16xf32>
    %507 = vector.extract_strided_slice %492 {offsets = [0, 224], sizes = [1, 16], strides = [1, 1]} : vector<1x256xf32> to vector<1x16xf32>
    %508 = vector.extract_strided_slice %492 {offsets = [0, 240], sizes = [1, 16], strides = [1, 1]} : vector<1x256xf32> to vector<1x16xf32>
    %509 = tpu.concatenate %493, %494, %495, %496, %497, %498, %499, %500, %501, %502, %503, %504, %505, %506, %507, %508 in 0 : vector<1x16xf32>, vector<1x16xf32>, vector<1x16xf32>, vector<1x16xf32>, vector<1x16xf32>, vector<1x16xf32>, vector<1x16xf32>, vector<1x16xf32>, vector<1x16xf32>, vector<1x16xf32>, vector<1x16xf32>, vector<1x16xf32>, vector<1x16xf32>, vector<1x16xf32>, vector<1x16xf32>, vector<1x16xf32> -> vector<16x16xf32>
    %510 = vector.extract_strided_slice %491 {offsets = [1, 0], sizes = [1, 256], strides = [1, 1]} : vector<2x256xf32> to vector<1x256xf32>
    %511 = vector.extract_strided_slice %510 {offsets = [0, 0], sizes = [1, 16], strides = [1, 1]} : vector<1x256xf32> to vector<1x16xf32>
    %512 = vector.extract_strided_slice %510 {offsets = [0, 16], sizes = [1, 16], strides = [1, 1]} : vector<1x256xf32> to vector<1x16xf32>
    %513 = vector.extract_strided_slice %510 {offsets = [0, 32], sizes = [1, 16], strides = [1, 1]} : vector<1x256xf32> to vector<1x16xf32>
    %514 = vector.extract_strided_slice %510 {offsets = [0, 48], sizes = [1, 16], strides = [1, 1]} : vector<1x256xf32> to vector<1x16xf32>
    %515 = vector.extract_strided_slice %510 {offsets = [0, 64], sizes = [1, 16], strides = [1, 1]} : vector<1x256xf32> to vector<1x16xf32>
    %516 = vector.extract_strided_slice %510 {offsets = [0, 80], sizes = [1, 16], strides = [1, 1]} : vector<1x256xf32> to vector<1x16xf32>
    %517 = vector.extract_strided_slice %510 {offsets = [0, 96], sizes = [1, 16], strides = [1, 1]} : vector<1x256xf32> to vector<1x16xf32>
    %518 = vector.extract_strided_slice %510 {offsets = [0, 112], sizes = [1, 16], strides = [1, 1]} : vector<1x256xf32> to vector<1x16xf32>
    %519 = vector.extract_strided_slice %510 {offsets = [0, 128], sizes = [1, 16], strides = [1, 1]} : vector<1x256xf32> to vector<1x16xf32>
    %520 = vector.extract_strided_slice %510 {offsets = [0, 144], sizes = [1, 16], strides = [1, 1]} : vector<1x256xf32> to vector<1x16xf32>
    %521 = vector.extract_strided_slice %510 {offsets = [0, 160], sizes = [1, 16], strides = [1, 1]} : vector<1x256xf32> to vector<1x16xf32>
    %522 = vector.extract_strided_slice %510 {offsets = [0, 176], sizes = [1, 16], strides = [1, 1]} : vector<1x256xf32> to vector<1x16xf32>
    %523 = vector.extract_strided_slice %510 {offsets = [0, 192], sizes = [1, 16], strides = [1, 1]} : vector<1x256xf32> to vector<1x16xf32>
    %524 = vector.extract_strided_slice %510 {offsets = [0, 208], sizes = [1, 16], strides = [1, 1]} : vector<1x256xf32> to vector<1x16xf32>
    %525 = vector.extract_strided_slice %510 {offsets = [0, 224], sizes = [1, 16], strides = [1, 1]} : vector<1x256xf32> to vector<1x16xf32>
    %526 = vector.extract_strided_slice %510 {offsets = [0, 240], sizes = [1, 16], strides = [1, 1]} : vector<1x256xf32> to vector<1x16xf32>
    %527 = tpu.concatenate %511, %512, %513, %514, %515, %516, %517, %518, %519, %520, %521, %522, %523, %524, %525, %526 in 0 : vector<1x16xf32>, vector<1x16xf32>, vector<1x16xf32>, vector<1x16xf32>, vector<1x16xf32>, vector<1x16xf32>, vector<1x16xf32>, vector<1x16xf32>, vector<1x16xf32>, vector<1x16xf32>, vector<1x16xf32>, vector<1x16xf32>, vector<1x16xf32>, vector<1x16xf32>, vector<1x16xf32>, vector<1x16xf32> -> vector<16x16xf32>
    %528 = tpu.concatenate %509, %527 in 0 : vector<16x16xf32>, vector<16x16xf32> -> vector<32x16xf32>
    %cst_157 = arith.constant dense<0.000000e+00> : vector<32x8xf32>
    %529 = tpu.matmul %528, %291, %cst_157 {dimension_numbers = #tpu.dot_dimension_numbers<[1], [1], [0], [0], [0, 0, 1, 0], [], []>} : vector<32x16xf32>, vector<8x16xf32>, vector<32x8xf32> -> vector<32x8xf32>
    %cst_158 = arith.constant dense<0xFF800000> : vector<32xf32>
    %530 = vector.multi_reduction <maximumf>, %529, %cst_158 [1] : vector<32x8xf32> to vector<32xf32>
    %531 = vector.shape_cast %530 : vector<32xf32> to vector<32x1xf32>
    %532 = vector.broadcast %531 : vector<32x1xf32> to vector<32x8xf32>
    %533 = arith.subf %529, %532 : vector<32x8xf32>
    %534 = math.exp %533 : vector<32x8xf32>
    %cst_159 = arith.constant dense<0.000000e+00> : vector<32xf32>
    %535 = vector.multi_reduction <add>, %534, %cst_159 [1] : vector<32x8xf32> to vector<32xf32>
    %536 = vector.shape_cast %535 : vector<32xf32> to vector<32x1xf32>
    %537 = tpu.reciprocal %536 {approx = true} : vector<32x1xf32> -> vector<32x1xf32>
    %538 = vector.broadcast %537 : vector<32x1xf32> to vector<32x8xf32>
    %539 = arith.mulf %534, %538 : vector<32x8xf32>
    %540 = vector.extract_strided_slice %539 {offsets = [0, 0], sizes = [16, 8], strides = [1, 1]} : vector<32x8xf32> to vector<16x8xf32>
    %cst_160 = arith.constant dense<0.000000e+00> : vector<8x16xf32>
    %541 = tpu.matmul %540, %509, %cst_160 {dimension_numbers = #tpu.dot_dimension_numbers<[0], [0], [1], [1], [0, 1, 1, 1], [], []>} : vector<16x8xf32>, vector<16x16xf32>, vector<8x16xf32> -> vector<8x16xf32>
    %542 = vector.extract_strided_slice %539 {offsets = [16, 0], sizes = [16, 8], strides = [1, 1]} : vector<32x8xf32> to vector<16x8xf32>
    %cst_161 = arith.constant dense<0.000000e+00> : vector<8x16xf32>
    %543 = tpu.matmul %542, %527, %cst_161 {dimension_numbers = #tpu.dot_dimension_numbers<[0], [0], [1], [1], [0, 1, 1, 1], [], []>} : vector<16x8xf32>, vector<16x16xf32>, vector<8x16xf32> -> vector<8x16xf32>
    %544 = tpu.concatenate %541, %543 in 0 : vector<8x16xf32>, vector<8x16xf32> -> vector<16x16xf32>
    %c0_162 = arith.constant 0 : index
    %c0_163 = arith.constant 0 : index
    %545 = vector.load %arg39[%c0_162, %c0_163] : memref<16x8xf32, #tpu.memory_space<vmem>>, vector<16x8xf32>
    %c0_164 = arith.constant 0 : index
    %c0_165 = arith.constant 0 : index
    %546 = vector.load %arg40[%c0_164, %c0_165] : memref<1x8xf32, #tpu.memory_space<vmem>>, vector<1x8xf32>
    %c0_166 = arith.constant 0 : index
    %c0_167 = arith.constant 0 : index
    %547 = vector.load %arg41[%c0_166, %c0_167] : memref<64x256xf32, #tpu.memory_space<vmem>>, vector<64x256xf32>
    %c0_168 = arith.constant 0 : index
    %c0_169 = arith.constant 0 : index
    %548 = vector.load %arg42[%c0_168, %c0_169] : memref<1x256xf32, #tpu.memory_space<vmem>>, vector<1x256xf32>
    %c0_170 = arith.constant 0 : index
    %c0_171 = arith.constant 0 : index
    %549 = vector.load %arg43[%c0_170, %c0_171] : memref<256x128xf32, #tpu.memory_space<vmem>>, vector<256x128xf32>
    %c0_172 = arith.constant 0 : index
    %c0_173 = arith.constant 0 : index
    %550 = vector.load %arg44[%c0_172, %c0_173] : memref<1x128xf32, #tpu.memory_space<vmem>>, vector<1x128xf32>
    %cst_174 = arith.constant dense<0.000000e+00> : vector<16x8xf32>
    %551 = tpu.matmul %544, %545, %cst_174 {dimension_numbers = #tpu.dot_dimension_numbers<[1], [0], [0], [1], [0, 0, 1, 1], [], []>} : vector<16x16xf32>, vector<16x8xf32>, vector<16x8xf32> -> vector<16x8xf32>
    %552 = vector.broadcast %546 : vector<1x8xf32> to vector<16x8xf32>
    %553 = arith.addf %551, %552 : vector<16x8xf32>
    %cst_175 = arith.constant 0.000000e+00 : f32
    %554 = vector.broadcast %cst_175 : f32 to vector<16x8xf32>
    %555 = arith.cmpf oge, %553, %554 : vector<16x8xf32>
    %cst_176 = arith.constant 0.00999999977 : f32
    %556 = vector.broadcast %cst_176 : f32 to vector<16x8xf32>
    %557 = arith.mulf %556, %553 : vector<16x8xf32>
    %558 = arith.select %555, %553, %557 : vector<16x8xi1>, vector<16x8xf32>
    %559 = vector.extract_strided_slice %558 {offsets = [0, 0], sizes = [8, 8], strides = [1, 1]} : vector<16x8xf32> to vector<8x8xf32>
    %560 = vector.extract_strided_slice %559 {offsets = [0, 0], sizes = [1, 8], strides = [1, 1]} : vector<8x8xf32> to vector<1x8xf32>
    %561 = vector.extract_strided_slice %559 {offsets = [1, 0], sizes = [1, 8], strides = [1, 1]} : vector<8x8xf32> to vector<1x8xf32>
    %562 = vector.extract_strided_slice %559 {offsets = [2, 0], sizes = [1, 8], strides = [1, 1]} : vector<8x8xf32> to vector<1x8xf32>
    %563 = vector.extract_strided_slice %559 {offsets = [3, 0], sizes = [1, 8], strides = [1, 1]} : vector<8x8xf32> to vector<1x8xf32>
    %564 = vector.extract_strided_slice %559 {offsets = [4, 0], sizes = [1, 8], strides = [1, 1]} : vector<8x8xf32> to vector<1x8xf32>
    %565 = vector.extract_strided_slice %559 {offsets = [5, 0], sizes = [1, 8], strides = [1, 1]} : vector<8x8xf32> to vector<1x8xf32>
    %566 = vector.extract_strided_slice %559 {offsets = [6, 0], sizes = [1, 8], strides = [1, 1]} : vector<8x8xf32> to vector<1x8xf32>
    %567 = vector.extract_strided_slice %559 {offsets = [7, 0], sizes = [1, 8], strides = [1, 1]} : vector<8x8xf32> to vector<1x8xf32>
    %568 = tpu.concatenate %560, %561, %562, %563, %564, %565, %566, %567 in 1 : vector<1x8xf32>, vector<1x8xf32>, vector<1x8xf32>, vector<1x8xf32>, vector<1x8xf32>, vector<1x8xf32>, vector<1x8xf32>, vector<1x8xf32> -> vector<1x64xf32>
    %569 = vector.extract_strided_slice %558 {offsets = [8, 0], sizes = [8, 8], strides = [1, 1]} : vector<16x8xf32> to vector<8x8xf32>
    %570 = vector.extract_strided_slice %569 {offsets = [0, 0], sizes = [1, 8], strides = [1, 1]} : vector<8x8xf32> to vector<1x8xf32>
    %571 = vector.extract_strided_slice %569 {offsets = [1, 0], sizes = [1, 8], strides = [1, 1]} : vector<8x8xf32> to vector<1x8xf32>
    %572 = vector.extract_strided_slice %569 {offsets = [2, 0], sizes = [1, 8], strides = [1, 1]} : vector<8x8xf32> to vector<1x8xf32>
    %573 = vector.extract_strided_slice %569 {offsets = [3, 0], sizes = [1, 8], strides = [1, 1]} : vector<8x8xf32> to vector<1x8xf32>
    %574 = vector.extract_strided_slice %569 {offsets = [4, 0], sizes = [1, 8], strides = [1, 1]} : vector<8x8xf32> to vector<1x8xf32>
    %575 = vector.extract_strided_slice %569 {offsets = [5, 0], sizes = [1, 8], strides = [1, 1]} : vector<8x8xf32> to vector<1x8xf32>
    %576 = vector.extract_strided_slice %569 {offsets = [6, 0], sizes = [1, 8], strides = [1, 1]} : vector<8x8xf32> to vector<1x8xf32>
    %577 = vector.extract_strided_slice %569 {offsets = [7, 0], sizes = [1, 8], strides = [1, 1]} : vector<8x8xf32> to vector<1x8xf32>
    %578 = tpu.concatenate %570, %571, %572, %573, %574, %575, %576, %577 in 1 : vector<1x8xf32>, vector<1x8xf32>, vector<1x8xf32>, vector<1x8xf32>, vector<1x8xf32>, vector<1x8xf32>, vector<1x8xf32>, vector<1x8xf32> -> vector<1x64xf32>
    %579 = tpu.concatenate %568, %578 in 0 : vector<1x64xf32>, vector<1x64xf32> -> vector<2x64xf32>
    %cst_177 = arith.constant dense<0.000000e+00> : vector<2x256xf32>
    %580 = tpu.matmul %579, %547, %cst_177 {dimension_numbers = #tpu.dot_dimension_numbers<[1], [0], [0], [1], [0, 0, 1, 1], [], []>} : vector<2x64xf32>, vector<64x256xf32>, vector<2x256xf32> -> vector<2x256xf32>
    %581 = vector.broadcast %548 : vector<1x256xf32> to vector<2x256xf32>
    %582 = arith.addf %580, %581 : vector<2x256xf32>
    %cst_178 = arith.constant 0.000000e+00 : f32
    %583 = vector.broadcast %cst_178 : f32 to vector<2x256xf32>
    %584 = arith.maximumf %582, %583 : vector<2x256xf32>
    %cst_179 = arith.constant dense<0.000000e+00> : vector<2x128xf32>
    %585 = tpu.matmul %584, %549, %cst_179 {dimension_numbers = #tpu.dot_dimension_numbers<[1], [0], [0], [1], [0, 0, 1, 1], [], []>} : vector<2x256xf32>, vector<256x128xf32>, vector<2x128xf32> -> vector<2x128xf32>
    %586 = vector.broadcast %550 : vector<1x128xf32> to vector<2x128xf32>
    %587 = arith.addf %585, %586 : vector<2x128xf32>
    %c0_180 = arith.constant 0 : index
    %c0_181 = arith.constant 0 : index
    %588 = vector.load %arg45[%c0_180, %c0_181] : memref<2x128xf32, #tpu.memory_space<vmem>>, vector<2x128xf32>
    tpu.vector_store %arg45[%c0_180, %c0_181], %587 {strides = array<i32>} : memref<2x128xf32, #tpu.memory_space<vmem>>, vector<2x128xf32>,
    return
  }
}

</mosaic_0001>

<llo_original>
// kernel: bnt_forward_pallas.1
$region0: #{bnt_forward_pallas.1}
  #allocation0 [shape = 'u32[]', space=smem, size = 0x4, offset = 0x4, fixed_abs, tag = 'smem constant byte address 0x4 - core index']
  #allocation1 [shape = 'u32[144,128]{1,0:T(1,128)}', space=vmem, size = 0x12000, scoped, tag = 'internal scratch']
  %s0 = inlined_call_operand.smem [shape: u32[46], index: -1, kind: input, shape index: {}]
  %s1 = sld [smem:[%s0]]
  %s2 = scalar_lea.smem %s0, 1
  %s3 = sld [smem:[%s2]]
  %s4 = scalar_lea.smem %s0, 2
  %s5 = sld [smem:[%s4]]
  %s6 = scalar_lea.smem %s0, 3
  %s7 = sld [smem:[%s6]]
  %s8 = scalar_lea.smem %s0, 4
  %s9 = sld [smem:[%s8]]
  %s10 = scalar_lea.smem %s0, 5
  %s11 = sld [smem:[%s10]]
  %s12 = scalar_lea.smem %s0, 6
  %s13 = sld [smem:[%s12]]
  %s14 = scalar_lea.smem %s0, 7
  %s15 = sld [smem:[%s14]]
  %s16 = scalar_lea.smem %s0, 8
  %s17 = sld [smem:[%s16]]
  %s18 = scalar_lea.smem %s0, 9
  %s19 = sld [smem:[%s18]]
  %s20 = scalar_lea.smem %s0, 10
  %s21 = sld [smem:[%s20]]
  %s22 = scalar_lea.smem %s0, 11
  %s23 = sld [smem:[%s22]]
  %s24 = scalar_lea.smem %s0, 12
  %s25 = sld [smem:[%s24]]
  %s26 = scalar_lea.smem %s0, 13
  %s27 = sld [smem:[%s26]]
  %s28 = scalar_lea.smem %s0, 14
  %s29 = sld [smem:[%s28]]
  %s30 = scalar_lea.smem %s0, 15
  %s31 = sld [smem:[%s30]]
  %s32 = scalar_lea.smem %s0, 16
  %s33 = sld [smem:[%s32]]
  %s34 = scalar_lea.smem %s0, 17
  %s35 = sld [smem:[%s34]]
  %s36 = scalar_lea.smem %s0, 18
  %s37 = sld [smem:[%s36]]
  %s38 = scalar_lea.smem %s0, 19
  %s39 = sld [smem:[%s38]]
  %s40 = scalar_lea.smem %s0, 20
  %s41 = sld [smem:[%s40]]
  %s42 = scalar_lea.smem %s0, 21
  %s43 = sld [smem:[%s42]]
  %s44 = scalar_lea.smem %s0, 22
  %s45 = sld [smem:[%s44]]
  %s46 = scalar_lea.smem %s0, 23
  %s47 = sld [smem:[%s46]]
  %s48 = scalar_lea.smem %s0, 24
  %s49 = sld [smem:[%s48]]
  %s50 = scalar_lea.smem %s0, 25
  %s51 = sld [smem:[%s50]]
  %s52 = scalar_lea.smem %s0, 26
  %s53 = sld [smem:[%s52]]
  %s54 = scalar_lea.smem %s0, 27
  %s55 = sld [smem:[%s54]]
  %s56 = scalar_lea.smem %s0, 28
  %s57 = sld [smem:[%s56]]
  %s58 = scalar_lea.smem %s0, 29
  %s59 = sld [smem:[%s58]]
  %s60 = scalar_lea.smem %s0, 30
  %s61 = sld [smem:[%s60]]
  %s62 = scalar_lea.smem %s0, 31
  %s63 = sld [smem:[%s62]]
  %s64 = scalar_lea.smem %s0, 32
  %s65 = sld [smem:[%s64]]
  %s66 = scalar_lea.smem %s0, 33
  %s67 = sld [smem:[%s66]]
  %s68 = scalar_lea.smem %s0, 34
  %s69 = sld [smem:[%s68]]
  %s70 = scalar_lea.smem %s0, 35
  %s71 = sld [smem:[%s70]]
  %s72 = scalar_lea.smem %s0, 36
  %s73 = sld [smem:[%s72]]
  %s74 = scalar_lea.smem %s0, 37
  %s75 = sld [smem:[%s74]]
  %s76 = scalar_lea.smem %s0, 38
  %s77 = sld [smem:[%s76]]
  %s78 = scalar_lea.smem %s0, 39
  %s79 = sld [smem:[%s78]]
  %s80 = scalar_lea.smem %s0, 40
  %s81 = sld [smem:[%s80]]
  %s82 = scalar_lea.smem %s0, 41
  %s83 = sld [smem:[%s82]]
  %s84 = scalar_lea.smem %s0, 42
  %s85 = sld [smem:[%s84]]
  %s86 = scalar_lea.smem %s0, 43
  %s87 = sld [smem:[%s86]]
  %s88 = scalar_lea.smem %s0, 44
  %s89 = sld [smem:[%s88]]
  %s90 = scalar_lea.smem %s0, 45
  %s91 = sld [smem:[%s90]]
  %s92 = sld [smem:[#allocation0]]
  $region246: #{bnt_forward_pallas.1} parent=0
    _
  %s94 = ssub.s32 1, %s92
  %s95 = scalar_select 0, %s94, %s92
  $region1: #{bnt_forward_pallas.1} parent=0
    #allocation2 [shape = 'u8[512]{0}', space=vmem, size = 0x400, scoped, tag = 'input window, operand 2, single buffered']
    #allocation3 [shape = 's32[1]{0}', space=sflag, size = 0x4, scoped, tag = 'scoped memory for bnt_forward_pallas.1']
    #allocation4 [shape = 's32[1]{0}', space=sflag, size = 0x4, scoped, tag = 'scoped memory for bnt_forward_pallas.1']
    #allocation5 [shape = 'u8[512]{0}', space=vmem, size = 0x400, scoped, tag = 'input window, operand 4, single buffered']
    #allocation6 [shape = 's32[1]{0}', space=sflag, size = 0x4, scoped, tag = 'scoped memory for bnt_forward_pallas.1']
    #allocation7 [shape = 'u8[512]{0}', space=vmem, size = 0x400, scoped, tag = 'input window, operand 5, single buffered']
    #allocation8 [shape = 'u8[512]{0}', space=vmem, size = 0x400, scoped, tag = 'input window, operand 6, single buffered']
    #allocation9 [shape = 's32[1]{0}', space=sflag, size = 0x4, scoped, tag = 'scoped memory for bnt_forward_pallas.1']
    #allocation10 [shape = 'u8[512]{0}', space=vmem, size = 0x400, scoped, tag = 'input window, operand 8, single buffered']
    #allocation11 [shape = 'u8[512]{0}', space=vmem, size = 0x400, scoped, tag = 'input window, operand 10, single buffered']
    #allocation12 [shape = 's32[1]{0}', space=sflag, size = 0x4, scoped, tag = 'scoped memory for bnt_forward_pallas.1']
    #allocation13 [shape = 'u8[512]{0}', space=vmem, size = 0x400, scoped, tag = 'input window, operand 11, single buffered']
    #allocation14 [shape = 'u8[512]{0}', space=vmem, size = 0x400, scoped, tag = 'input window, operand 12, single buffered']
    #allocation15 [shape = 's32[1]{0}', space=sflag, size = 0x4, scoped, tag = 'scoped memory for bnt_forward_pallas.1']
    #allocation16 [shape = 'u8[512]{0}', space=vmem, size = 0x400, scoped, tag = 'input window, operand 14, single buffered']
    #allocation17 [shape = 'u8[512]{0}', space=vmem, size = 0x400, scoped, tag = 'input window, operand 16, single buffered']
    #allocation18 [shape = 's32[1]{0}', space=sflag, size = 0x4, scoped, tag = 'scoped memory for bnt_forward_pallas.1']
    #allocation19 [shape = 'u8[1024]{0}', space=vmem, size = 0x400, scoped, tag = 'input window, operand 18, single buffered']
    #allocation20 [shape = 'u8[512]{0}', space=vmem, size = 0x400, scoped, tag = 'input window, operand 40, single buffered']
    #allocation21 [shape = 's32[1]{0}', space=sflag, size = 0x4, scoped, tag = 'scoped memory for bnt_forward_pallas.1']
    #allocation22 [shape = 'u8[1024]{0}', space=vmem, size = 0x400, scoped, tag = 'input window, operand 42, single buffered']
    #allocation23 [shape = 'u8[512]{0}', space=vmem, size = 0x400, scoped, tag = 'input window, operand 44, single buffered']
    #allocation24 [shape = 's32[1]{0}', space=sflag, size = 0x4, scoped, tag = 'scoped memory for bnt_forward_pallas.1']
    #allocation25 [shape = 'u8[1024]{0}', space=vmem, size = 0x400, scoped, tag = 'output window, operand 0, single buffered']
    %96 = vsyncpa [#allocation3], 0
    %97 = vsyncpa [#allocation6], 0
    %98 = vsyncpa [#allocation9], 0
    %99 = vsyncpa [#allocation12], 0
    %100 = vsyncpa [#allocation15], 0
    %101 = vsyncpa [#allocation18], 0
    %102 = vsyncpa [#allocation21], 0
    %103 = vsyncpa [#allocation24], 0
    %104 = vsyncpa [#allocation4], 0
    // Predicated region
    $region2: #{bnt_forward_pallas.1} parent=1 // pred_check
      _
    $region3: #{bnt_forward_pallas.1} parent=1 // pred_check_branch
      %106 = sbr.rel (0) target = $region5
    $region4: #{bnt_forward_pallas.1} parent=1 // pred_region
      _
    $region5: #{bnt_forward_pallas.1} parent=1 // pred_fallthru
      _
    // Predicated region
    $region6: #{bnt_forward_pallas.1} parent=1 // pred_check
      _
    $region7: #{bnt_forward_pallas.1} parent=1 // pred_check_branch
      %108 = sbr.rel (0) target = $region9
    $region8: #{bnt_forward_pallas.1} parent=1 // pred_region
      _
    $region9: #{bnt_forward_pallas.1} parent=1 // pred_fallthru
      _
    // Predicated region
    $region10: #{bnt_forward_pallas.1} parent=1 // pred_check
      _
    $region11: #{bnt_forward_pallas.1} parent=1 // pred_check_branch
      %110 = sbr.rel (0) target = $region13
    $region12: #{bnt_forward_pallas.1} parent=1 // pred_region
      %s112 = ssub.s32 16, 16
      %113 = vsyncadd [#allocation3], %s112
      %s115 = sshll.u32 [#allocation2], 4
      %s116 = int_to_ptr.vmem [resolvable:$true] %s115
      %118 = dma.hbm_to_vmem [thread:$0]  %s5, 16, %s116, [#allocation3]
    $region13: #{bnt_forward_pallas.1} parent=1 // pred_fallthru
      _
    // Predicated region
    $region14: #{bnt_forward_pallas.1} parent=1 // pred_check
      _
    $region15: #{bnt_forward_pallas.1} parent=1 // pred_check_branch
      %120 = sbr.rel (0) target = $region17
    $region16: #{bnt_forward_pallas.1} parent=1 // pred_region
      _
    $region17: #{bnt_forward_pallas.1} parent=1 // pred_fallthru
      _
    // Predicated region
    $region18: #{bnt_forward_pallas.1} parent=1 // pred_check
      _
    $region19: #{bnt_forward_pallas.1} parent=1 // pred_check_branch
      %122 = sbr.rel (0) target = $region21
    $region20: #{bnt_forward_pallas.1} parent=1 // pred_region
      %s124 = ssub.s32 16, 16
      %125 = vsyncadd [#allocation6], %s124
      %s127 = sshll.u32 [#allocation5], 4
      %s128 = int_to_ptr.vmem [resolvable:$true] %s127
      %130 = dma.hbm_to_vmem [thread:$0]  %s9, 16, %s128, [#allocation6]
    $region21: #{bnt_forward_pallas.1} parent=1 // pred_fallthru
      _
    // Predicated region
    $region22: #{bnt_forward_pallas.1} parent=1 // pred_check
      _
    $region23: #{bnt_forward_pallas.1} parent=1 // pred_check_branch
      %132 = sbr.rel (0) target = $region25
    $region24: #{bnt_forward_pallas.1} parent=1 // pred_region
      %s134 = ssub.s32 16, 16
      %135 = vsyncadd [#allocation6], %s134
      %s137 = sshll.u32 [#allocation7], 4
      %s138 = int_to_ptr.vmem [resolvable:$true] %s137
      %140 = dma.hbm_to_vmem [thread:$0]  %s11, 16, %s138, [#allocation6]
    $region25: #{bnt_forward_pallas.1} parent=1 // pred_fallthru
      _
    // Predicated region
    $region26: #{bnt_forward_pallas.1} parent=1 // pred_check
      _
    $region27: #{bnt_forward_pallas.1} parent=1 // pred_check_branch
      %142 = sbr.rel (0) target = $region29
    $region28: #{bnt_forward_pallas.1} parent=1 // pred_region
      %s144 = ssub.s32 16, 16
      %145 = vsyncadd [#allocation9], %s144
      %s147 = sshll.u32 [#allocation8], 4
      %s148 = int_to_ptr.vmem [resolvable:$true] %s147
      %150 = dma.hbm_to_vmem [thread:$0]  %s13, 16, %s148, [#allocation9]
    $region29: #{bnt_forward_pallas.1} parent=1 // pred_fallthru
      _
    // Predicated region
    $region30: #{bnt_forward_pallas.1} parent=1 // pred_check
      _
    $region31: #{bnt_forward_pallas.1} parent=1 // pred_check_branch
      %152 = sbr.rel (0) target = $region33
    $region32: #{bnt_forward_pallas.1} parent=1 // pred_region
      _
    $region33: #{bnt_forward_pallas.1} parent=1 // pred_fallthru
      _
    // Predicated region
    $region34: #{bnt_forward_pallas.1} parent=1 // pred_check
      _
    $region35: #{bnt_forward_pallas.1} parent=1 // pred_check_branch
      %154 = sbr.rel (0) target = $region37
    $region36: #{bnt_forward_pallas.1} parent=1 // pred_region
      %s156 = ssub.s32 16, 16
      %157 = vsyncadd [#allocation9], %s156
      %s159 = sshll.u32 [#allocation10], 4
      %s160 = int_to_ptr.vmem [resolvable:$true] %s159
      %162 = dma.hbm_to_vmem [thread:$0]  %s17, 16, %s160, [#allocation9]
    $region37: #{bnt_forward_pallas.1} parent=1 // pred_fallthru
      _
    // Predicated region
    $region38: #{bnt_forward_pallas.1} parent=1 // pred_check
      _
    $region39: #{bnt_forward_pallas.1} parent=1 // pred_check_branch
      %164 = sbr.rel (0) target = $region41
    $region40: #{bnt_forward_pallas.1} parent=1 // pred_region
      _
    $region41: #{bnt_forward_pallas.1} parent=1 // pred_fallthru
      _
    // Predicated region
    $region42: #{bnt_forward_pallas.1} parent=1 // pred_check
      _
    $region43: #{bnt_forward_pallas.1} parent=1 // pred_check_branch
      %166 = sbr.rel (0) target = $region45
    $region44: #{bnt_forward_pallas.1} parent=1 // pred_region
      %s168 = ssub.s32 16, 16
      %169 = vsyncadd [#allocation12], %s168
      %s171 = sshll.u32 [#allocation11], 4
      %s172 = int_to_ptr.vmem [resolvable:$true] %s171
      %174 = dma.hbm_to_vmem [thread:$0]  %s21, 16, %s172, [#allocation12]
    $region45: #{bnt_forward_pallas.1} parent=1 // pred_fallthru
      _
    // Predicated region
    $region46: #{bnt_forward_pallas.1} parent=1 // pred_check
      _
    $region47: #{bnt_forward_pallas.1} parent=1 // pred_check_branch
      %176 = sbr.rel (0) target = $region49
    $region48: #{bnt_forward_pallas.1} parent=1 // pred_region
      %s178 = ssub.s32 16, 16
      %179 = vsyncadd [#allocation12], %s178
      %s181 = sshll.u32 [#allocation13], 4
      %s182 = int_to_ptr.vmem [resolvable:$true] %s181
      %184 = dma.hbm_to_vmem [thread:$0]  %s23, 16, %s182, [#allocation12]
    $region49: #{bnt_forward_pallas.1} parent=1 // pred_fallthru
      _
    // Predicated region
    $region50: #{bnt_forward_pallas.1} parent=1 // pred_check
      _
    $region51: #{bnt_forward_pallas.1} parent=1 // pred_check_branch
      %186 = sbr.rel (0) target = $region53
    $region52: #{bnt_forward_pallas.1} parent=1 // pred_region
      %s188 = ssub.s32 16, 16
      %189 = vsyncadd [#allocation15], %s188
      %s191 = sshll.u32 [#allocation14], 4
      %s192 = int_to_ptr.vmem [resolvable:$true] %s191
      %194 = dma.hbm_to_vmem [thread:$0]  %s25, 16, %s192, [#allocation15]
    $region53: #{bnt_forward_pallas.1} parent=1 // pred_fallthru
      _
    // Predicated region
    $region54: #{bnt_forward_pallas.1} parent=1 // pred_check
      _
    $region55: #{bnt_forward_pallas.1} parent=1 // pred_check_branch
      %196 = sbr.rel (0) target = $region57
    $region56: #{bnt_forward_pallas.1} parent=1 // pred_region
      _
    $region57: #{bnt_forward_pallas.1} parent=1 // pred_fallthru
      _
    // Predicated region
    $region58: #{bnt_forward_pallas.1} parent=1 // pred_check
      _
    $region59: #{bnt_forward_pallas.1} parent=1 // pred_check_branch
      %198 = sbr.rel (0) target = $region61
    $region60: #{bnt_forward_pallas.1} parent=1 // pred_region
      %s200 = ssub.s32 16, 16
      %201 = vsyncadd [#allocation15], %s200
      %s203 = sshll.u32 [#allocation16], 4
      %s204 = int_to_ptr.vmem [resolvable:$true] %s203
      %206 = dma.hbm_to_vmem [thread:$0]  %s29, 16, %s204, [#allocation15]
    $region61: #{bnt_forward_pallas.1} parent=1 // pred_fallthru
      _
    // Predicated region
    $region62: #{bnt_forward_pallas.1} parent=1 // pred_check
      _
    $region63: #{bnt_forward_pallas.1} parent=1 // pred_check_branch
      %208 = sbr.rel (0) target = $region65
    $region64: #{bnt_forward_pallas.1} parent=1 // pred_region
      _
    $region65: #{bnt_forward_pallas.1} parent=1 // pred_fallthru
      _
    // Predicated region
    $region66: #{bnt_forward_pallas.1} parent=1 // pred_check
      _
    $region67: #{bnt_forward_pallas.1} parent=1 // pred_check_branch
      %210 = sbr.rel (0) target = $region69
    $region68: #{bnt_forward_pallas.1} parent=1 // pred_region
      %s212 = ssub.s32 16, 16
      %213 = vsyncadd [#allocation18], %s212
      %s215 = sshll.u32 [#allocation17], 4
      %s216 = int_to_ptr.vmem [resolvable:$true] %s215
      %218 = dma.hbm_to_vmem [thread:$0]  %s33, 16, %s216, [#allocation18]
    $region69: #{bnt_forward_pallas.1} parent=1 // pred_fallthru
      _
    // Predicated region
    $region70: #{bnt_forward_pallas.1} parent=1 // pred_check
      _
    $region71: #{bnt_forward_pallas.1} parent=1 // pred_check_branch
      %220 = sbr.rel (0) target = $region73
    $region72: #{bnt_forward_pallas.1} parent=1 // pred_region
      _
    $region73: #{bnt_forward_pallas.1} parent=1 // pred_fallthru
      _
    // Predicated region
    $region74: #{bnt_forward_pallas.1} parent=1 // pred_check
      _
    $region75: #{bnt_forward_pallas.1} parent=1 // pred_check_branch
      %222 = sbr.rel (0) target = $region77
    $region76: #{bnt_forward_pallas.1} parent=1 // pred_region
      %s224 = ssub.s32 32, 32
      %225 = vsyncadd [#allocation18], %s224
      %s227 = sshll.u32 [#allocation19], 4
      %s228 = int_to_ptr.vmem [resolvable:$true] %s227
      %230 = dma.hbm_to_vmem [thread:$0]  %s37, 32, %s228, [#allocation18]
    $region77: #{bnt_forward_pallas.1} parent=1 // pred_fallthru
      _
    // Predicated region
    $region78: #{bnt_forward_pallas.1} parent=1 // pred_check
      _
    $region79: #{bnt_forward_pallas.1} parent=1 // pred_check_branch
      %232 = sbr.rel (0) target = $region81
    $region80: #{bnt_forward_pallas.1} parent=1 // pred_region
      _
    $region81: #{bnt_forward_pallas.1} parent=1 // pred_fallthru
      _
    // Predicated region
    $region82: #{bnt_forward_pallas.1} parent=1 // pred_check
      _
    $region83: #{bnt_forward_pallas.1} parent=1 // pred_check_branch
      %234 = sbr.rel (0) target = $region85
    $region84: #{bnt_forward_pallas.1} parent=1 // pred_region
      _
    $region85: #{bnt_forward_pallas.1} parent=1 // pred_fallthru
      _
    // Predicated region
    $region86: #{bnt_forward_pallas.1} parent=1 // pred_check
      _
    $region87: #{bnt_forward_pallas.1} parent=1 // pred_check_branch
      %236 = sbr.rel (0) target = $region89
    $region88: #{bnt_forward_pallas.1} parent=1 // pred_region
      _
    $region89: #{bnt_forward_pallas.1} parent=1 // pred_fallthru
      _
    // Predicated region
    $region90: #{bnt_forward_pallas.1} parent=1 // pred_check
      _
    $region91: #{bnt_forward_pallas.1} parent=1 // pred_check_branch
      %238 = sbr.rel (0) target = $region93
    $region92: #{bnt_forward_pallas.1} parent=1 // pred_region
      _
    $region93: #{bnt_forward_pallas.1} parent=1 // pred_fallthru
      _
    // Predicated region
    $region94: #{bnt_forward_pallas.1} parent=1 // pred_check
      _
    $region95: #{bnt_forward_pallas.1} parent=1 // pred_check_branch
      %240 = sbr.rel (0) target = $region97
    $region96: #{bnt_forward_pallas.1} parent=1 // pred_region
      _
    $region97: #{bnt_forward_pallas.1} parent=1 // pred_fallthru
      _
    // Predicated region
    $region98: #{bnt_forward_pallas.1} parent=1 // pred_check
      _
    $region99: #{bnt_forward_pallas.1} parent=1 // pred_check_branch
      %242 = sbr.rel (0) target = $region101
    $region100: #{bnt_forward_pallas.1} parent=1 // pred_region
      _
    $region101: #{bnt_forward_pallas.1} parent=1 // pred_fallthru
      _
    // Predicated region
    $region102: #{bnt_forward_pallas.1} parent=1 // pred_check
      _
    $region103: #{bnt_forward_pallas.1} parent=1 // pred_check_branch
      %244 = sbr.rel (0) target = $region105
    $region104: #{bnt_forward_pallas.1} parent=1 // pred_region
      _
    $region105: #{bnt_forward_pallas.1} parent=1 // pred_fallthru
      _
    // Predicated region
    $region106: #{bnt_forward_pallas.1} parent=1 // pred_check
      _
    $region107: #{bnt_forward_pallas.1} parent=1 // pred_check_branch
      %246 = sbr.rel (0) target = $region109
    $region108: #{bnt_forward_pallas.1} parent=1 // pred_region
      _
    $region109: #{bnt_forward_pallas.1} parent=1 // pred_fallthru
      _
    // Predicated region
    $region110: #{bnt_forward_pallas.1} parent=1 // pred_check
      _
    $region111: #{bnt_forward_pallas.1} parent=1 // pred_check_branch
      %248 = sbr.rel (0) target = $region113
    $region112: #{bnt_forward_pallas.1} parent=1 // pred_region
      _
    $region113: #{bnt_forward_pallas.1} parent=1 // pred_fallthru
      _
    // Predicated region
    $region114: #{bnt_forward_pallas.1} parent=1 // pred_check
      _
    $region115: #{bnt_forward_pallas.1} parent=1 // pred_check_branch
      %250 = sbr.rel (0) target = $region117
    $region116: #{bnt_forward_pallas.1} parent=1 // pred_region
      _
    $region117: #{bnt_forward_pallas.1} parent=1 // pred_fallthru
      _
    // Predicated region
    $region118: #{bnt_forward_pallas.1} parent=1 // pred_check
      _
    $region119: #{bnt_forward_pallas.1} parent=1 // pred_check_branch
      %252 = sbr.rel (0) target = $region121
    $region120: #{bnt_forward_pallas.1} parent=1 // pred_region
      _
    $region121: #{bnt_forward_pallas.1} parent=1 // pred_fallthru
      _
    // Predicated region
    $region122: #{bnt_forward_pallas.1} parent=1 // pred_check
      _
    $region123: #{bnt_forward_pallas.1} parent=1 // pred_check_branch
      %254 = sbr.rel (0) target = $region125
    $region124: #{bnt_forward_pallas.1} parent=1 // pred_region
      _
    $region125: #{bnt_forward_pallas.1} parent=1 // pred_fallthru
      _
    // Predicated region
    $region126: #{bnt_forward_pallas.1} parent=1 // pred_check
      _
    $region127: #{bnt_forward_pallas.1} parent=1 // pred_check_branch
      %256 = sbr.rel (0) target = $region129
    $region128: #{bnt_forward_pallas.1} parent=1 // pred_region
      _
    $region129: #{bnt_forward_pallas.1} parent=1 // pred_fallthru
      _
    // Predicated region
    $region130: #{bnt_forward_pallas.1} parent=1 // pred_check
      _
    $region131: #{bnt_forward_pallas.1} parent=1 // pred_check_branch
      %258 = sbr.rel (0) target = $region133
    $region132: #{bnt_forward_pallas.1} parent=1 // pred_region
      _
    $region133: #{bnt_forward_pallas.1} parent=1 // pred_fallthru
      _
    // Predicated region
    $region134: #{bnt_forward_pallas.1} parent=1 // pred_check
      _
    $region135: #{bnt_forward_pallas.1} parent=1 // pred_check_branch
      %260 = sbr.rel (0) target = $region137
    $region136: #{bnt_forward_pallas.1} parent=1 // pred_region
      _
    $region137: #{bnt_forward_pallas.1} parent=1 // pred_fallthru
      _
    // Predicated region
    $region138: #{bnt_forward_pallas.1} parent=1 // pred_check
      _
    $region139: #{bnt_forward_pallas.1} parent=1 // pred_check_branch
      %262 = sbr.rel (0) target = $region141
    $region140: #{bnt_forward_pallas.1} parent=1 // pred_region
      _
    $region141: #{bnt_forward_pallas.1} parent=1 // pred_fallthru
      _
    // Predicated region
    $region142: #{bnt_forward_pallas.1} parent=1 // pred_check
      _
    $region143: #{bnt_forward_pallas.1} parent=1 // pred_check_branch
      %264 = sbr.rel (0) target = $region145
    $region144: #{bnt_forward_pallas.1} parent=1 // pred_region
      _
    $region145: #{bnt_forward_pallas.1} parent=1 // pred_fallthru
      _
    // Predicated region
    $region146: #{bnt_forward_pallas.1} parent=1 // pred_check
      _
    $region147: #{bnt_forward_pallas.1} parent=1 // pred_check_branch
      %266 = sbr.rel (0) target = $region149
    $region148: #{bnt_forward_pallas.1} parent=1 // pred_region
      _
    $region149: #{bnt_forward_pallas.1} parent=1 // pred_fallthru
      _
    // Predicated region
    $region150: #{bnt_forward_pallas.1} parent=1 // pred_check
      _
    $region151: #{bnt_forward_pallas.1} parent=1 // pred_check_branch
      %268 = sbr.rel (0) target = $region153
    $region152: #{bnt_forward_pallas.1} parent=1 // pred_region
      _
    $region153: #{bnt_forward_pallas.1} parent=1 // pred_fallthru
      _
    // Predicated region
    $region154: #{bnt_forward_pallas.1} parent=1 // pred_check
      _
    $region155: #{bnt_forward_pallas.1} parent=1 // pred_check_branch
      %270 = sbr.rel (0) target = $region157
    $region156: #{bnt_forward_pallas.1} parent=1 // pred_region
      _
    $region157: #{bnt_forward_pallas.1} parent=1 // pred_fallthru
      _
    // Predicated region
    $region158: #{bnt_forward_pallas.1} parent=1 // pred_check
      _
    $region159: #{bnt_forward_pallas.1} parent=1 // pred_check_branch
      %272 = sbr.rel (0) target = $region161
    $region160: #{bnt_forward_pallas.1} parent=1 // pred_region
      _
    $region161: #{bnt_forward_pallas.1} parent=1 // pred_fallthru
      _
    // Predicated region
    $region162: #{bnt_forward_pallas.1} parent=1 // pred_check
      _
    $region163: #{bnt_forward_pallas.1} parent=1 // pred_check_branch
      %274 = sbr.rel (0) target = $region165
    $region164: #{bnt_forward_pallas.1} parent=1 // pred_region
      %s276 = ssub.s32 16, 16
      %277 = vsyncadd [#allocation21], %s276
      %s279 = sshll.u32 [#allocation20], 4
      %s280 = int_to_ptr.vmem [resolvable:$true] %s279
      %282 = dma.hbm_to_vmem [thread:$0]  %s81, 16, %s280, [#allocation21]
    $region165: #{bnt_forward_pallas.1} parent=1 // pred_fallthru
      _
    // Predicated region
    $region166: #{bnt_forward_pallas.1} parent=1 // pred_check
      _
    $region167: #{bnt_forward_pallas.1} parent=1 // pred_check_branch
      %284 = sbr.rel (0) target = $region169
    $region168: #{bnt_forward_pallas.1} parent=1 // pred_region
      _
    $region169: #{bnt_forward_pallas.1} parent=1 // pred_fallthru
      _
    // Predicated region
    $region170: #{bnt_forward_pallas.1} parent=1 // pred_check
      _
    $region171: #{bnt_forward_pallas.1} parent=1 // pred_check_branch
      %286 = sbr.rel (0) target = $region173
    $region172: #{bnt_forward_pallas.1} parent=1 // pred_region
      %s288 = ssub.s32 32, 32
      %289 = vsyncadd [#allocation21], %s288
      %s291 = sshll.u32 [#allocation22], 4
      %s292 = int_to_ptr.vmem [resolvable:$true] %s291
      %294 = dma.hbm_to_vmem [thread:$0]  %s85, 32, %s292, [#allocation21]
    $region173: #{bnt_forward_pallas.1} parent=1 // pred_fallthru
      _
    // Predicated region
    $region174: #{bnt_forward_pallas.1} parent=1 // pred_check
      _
    $region175: #{bnt_forward_pallas.1} parent=1 // pred_check_branch
      %296 = sbr.rel (0) target = $region177
    $region176: #{bnt_forward_pallas.1} parent=1 // pred_region
      _
    $region177: #{bnt_forward_pallas.1} parent=1 // pred_fallthru
      _
    // Predicated region
    $region178: #{bnt_forward_pallas.1} parent=1 // pred_check
      _
    $region179: #{bnt_forward_pallas.1} parent=1 // pred_check_branch
      %298 = sbr.rel (0) target = $region181
    $region180: #{bnt_forward_pallas.1} parent=1 // pred_region
      %s300 = ssub.s32 16, 16
      %301 = vsyncadd [#allocation24], %s300
      %s303 = sshll.u32 [#allocation23], 4
      %s304 = int_to_ptr.vmem [resolvable:$true] %s303
      %306 = dma.hbm_to_vmem [thread:$0]  %s89, 16, %s304, [#allocation24]
    $region181: #{bnt_forward_pallas.1} parent=1 // pred_fallthru
      _
    // Predicated region
    $region182: #{bnt_forward_pallas.1} parent=1 // pred_check
      _
    $region183: #{bnt_forward_pallas.1} parent=1 // pred_check_branch
      %308 = sbr.rel (0) target = $region185
    $region184: #{bnt_forward_pallas.1} parent=1 // pred_region
      %309 = dma.done [#allocation3], 16
    $region185: #{bnt_forward_pallas.1} parent=1 // pred_fallthru
      _
    // Predicated region
    $region186: #{bnt_forward_pallas.1} parent=1 // pred_check
      _
    $region187: #{bnt_forward_pallas.1} parent=1 // pred_check_branch
      %311 = sbr.rel (0) target = $region189
    $region188: #{bnt_forward_pallas.1} parent=1 // pred_region
      %312 = dma.done [#allocation6], 16
    $region189: #{bnt_forward_pallas.1} parent=1 // pred_fallthru
      _
    // Predicated region
    $region190: #{bnt_forward_pallas.1} parent=1 // pred_check
      _
    $region191: #{bnt_forward_pallas.1} parent=1 // pred_check_branch
      %314 = sbr.rel (0) target = $region193
    $region192: #{bnt_forward_pallas.1} parent=1 // pred_region
      %315 = dma.done [#allocation6], 16
    $region193: #{bnt_forward_pallas.1} parent=1 // pred_fallthru
      _
    // Predicated region
    $region194: #{bnt_forward_pallas.1} parent=1 // pred_check
      _
    $region195: #{bnt_forward_pallas.1} parent=1 // pred_check_branch
      %317 = sbr.rel (0) target = $region197
    $region196: #{bnt_forward_pallas.1} parent=1 // pred_region
      %318 = dma.done [#allocation9], 16
    $region197: #{bnt_forward_pallas.1} parent=1 // pred_fallthru
      _
    // Predicated region
    $region198: #{bnt_forward_pallas.1} parent=1 // pred_check
      _
    $region199: #{bnt_forward_pallas.1} parent=1 // pred_check_branch
      %320 = sbr.rel (0) target = $region201
    $region200: #{bnt_forward_pallas.1} parent=1 // pred_region
      %321 = dma.done [#allocation9], 16
    $region201: #{bnt_forward_pallas.1} parent=1 // pred_fallthru
      _
    // Predicated region
    $region202: #{bnt_forward_pallas.1} parent=1 // pred_check
      _
    $region203: #{bnt_forward_pallas.1} parent=1 // pred_check_branch
      %323 = sbr.rel (0) target = $region205
    $region204: #{bnt_forward_pallas.1} parent=1 // pred_region
      %324 = dma.done [#allocation12], 16
    $region205: #{bnt_forward_pallas.1} parent=1 // pred_fallthru
      _
    // Predicated region
    $region206: #{bnt_forward_pallas.1} parent=1 // pred_check
      _
    $region207: #{bnt_forward_pallas.1} parent=1 // pred_check_branch
      %326 = sbr.rel (0) target = $region209
    $region208: #{bnt_forward_pallas.1} parent=1 // pred_region
      %327 = dma.done [#allocation12], 16
    $region209: #{bnt_forward_pallas.1} parent=1 // pred_fallthru
      _
    // Predicated region
    $region210: #{bnt_forward_pallas.1} parent=1 // pred_check
      _
    $region211: #{bnt_forward_pallas.1} parent=1 // pred_check_branch
      %329 = sbr.rel (0) target = $region213
    $region212: #{bnt_forward_pallas.1} parent=1 // pred_region
      %330 = dma.done [#allocation15], 16
    $region213: #{bnt_forward_pallas.1} parent=1 // pred_fallthru
      _
    // Predicated region
    $region214: #{bnt_forward_pallas.1} parent=1 // pred_check
      _
    $region215: #{bnt_forward_pallas.1} parent=1 // pred_check_branch
      %332 = sbr.rel (0) target = $region217
    $region216: #{bnt_forward_pallas.1} parent=1 // pred_region
      %333 = dma.done [#allocation15], 16
    $region217: #{bnt_forward_pallas.1} parent=1 // pred_fallthru
      _
    // Predicated region
    $region218: #{bnt_forward_pallas.1} parent=1 // pred_check
      _
    $region219: #{bnt_forward_pallas.1} parent=1 // pred_check_branch
      %335 = sbr.rel (0) target = $region221
    $region220: #{bnt_forward_pallas.1} parent=1 // pred_region
      %336 = dma.done [#allocation18], 16
    $region221: #{bnt_forward_pallas.1} parent=1 // pred_fallthru
      _
    // Predicated region
    $region222: #{bnt_forward_pallas.1} parent=1 // pred_check
      _
    $region223: #{bnt_forward_pallas.1} parent=1 // pred_check_branch
      %338 = sbr.rel (0) target = $region225
    $region224: #{bnt_forward_pallas.1} parent=1 // pred_region
      %339 = dma.done [#allocation18], 32
    $region225: #{bnt_forward_pallas.1} parent=1 // pred_fallthru
      _
    // Predicated region
    $region226: #{bnt_forward_pallas.1} parent=1 // pred_check
      _
    $region227: #{bnt_forward_pallas.1} parent=1 // pred_check_branch
      %341 = sbr.rel (0) target = $region229
    $region228: #{bnt_forward_pallas.1} parent=1 // pred_region
      %342 = dma.done [#allocation21], 16
    $region229: #{bnt_forward_pallas.1} parent=1 // pred_fallthru
      _
    // Predicated region
    $region230: #{bnt_forward_pallas.1} parent=1 // pred_check
      _
    $region231: #{bnt_forward_pallas.1} parent=1 // pred_check_branch
      %344 = sbr.rel (0) target = $region233
    $region232: #{bnt_forward_pallas.1} parent=1 // pred_region
      %345 = dma.done [#allocation21], 32
    $region233: #{bnt_forward_pallas.1} parent=1 // pred_fallthru
      _
    // Predicated region
    $region234: #{bnt_forward_pallas.1} parent=1 // pred_check
      _
    $region235: #{bnt_forward_pallas.1} parent=1 // pred_check_branch
      %347 = sbr.rel (0) target = $region237
    $region236: #{bnt_forward_pallas.1} parent=1 // pred_region
      %348 = dma.done [#allocation24], 16
    $region237: #{bnt_forward_pallas.1} parent=1 // pred_fallthru
      _
    %v349 = vld [vmem:[%s1] sm:$0xff]
    %v350 = vld [vmem:[%s1 + $0x8] sm:$0xff]
    %v351 = vld [vmem:[%s1 + $0x10] sm:$0xff]
    %v352 = vld [vmem:[%s1 + $0x18] sm:$0xff]
    %v353 = vld [vmem:[%s3] sm:$0xff]
    %v354 = vld [vmem:[%s3 + $0x8] sm:$0xff]
    %v355 = vld [vmem:[#allocation2] sm:$0x1]
    %v356 = vld [vmem:[%s7] sm:$0xff]
    %v357 = vld [vmem:[%s7 + $0x8] sm:$0xff]
    %v358 = vld [vmem:[#allocation5] sm:$0x1]
    %v359 = vld [vmem:[#allocation7] sm:$0x1]
    %v360 = vld [vmem:[#allocation8] sm:$0x1]
    %v361 = vld [vmem:[%s15] sm:$0xff]
    %v362 = vld [vmem:[%s15 + $0x8] sm:$0xff]
    %v363 = vld [vmem:[#allocation10] sm:$0x1]
    %v364 = vld [vmem:[%s19] sm:$0xff]
    %v365 = vld [vmem:[%s19 + $0x8] sm:$0xff]
    %v366 = vld [vmem:[%s19 + $0x10] sm:$0xff]
    %v367 = vld [vmem:[%s19 + $0x18] sm:$0xff]
    %v368 = vld [vmem:[%s19 + $0x20] sm:$0xff]
    %v369 = vld [vmem:[%s19 + $0x28] sm:$0xff]
    %v370 = vld [vmem:[%s19 + $0x30] sm:$0xff]
    %v371 = vld [vmem:[%s19 + $0x38] sm:$0xff]
    %v372 = vld [vmem:[#allocation11] sm:$0x1]
    %v373 = vld [vmem:[#allocation13] sm:$0x1]
    %v374 = vld [vmem:[#allocation14] sm:$0x1]
    %v375 = vld [vmem:[%s27] sm:$0xff]
    %v376 = vld [vmem:[%s27 + $0x8] sm:$0xff]
    %v377 = vld [vmem:[%s27 + $0x10] sm:$0xff]
    %v378 = vld [vmem:[%s27 + $0x18] sm:$0xff]
    %v379 = vld [vmem:[%s27 + $0x20] sm:$0xff]
    %v380 = vld [vmem:[%s27 + $0x28] sm:$0xff]
    %v381 = vld [vmem:[%s27 + $0x30] sm:$0xff]
    %v382 = vld [vmem:[%s27 + $0x38] sm:$0xff]
    %v383 = vld [vmem:[%s27 + $0x40] sm:$0xff]
    %v384 = vld [vmem:[%s27 + $0x48] sm:$0xff]
    %v385 = vld [vmem:[%s27 + $0x50] sm:$0xff]
    %v386 = vld [vmem:[%s27 + $0x58] sm:$0xff]
    %v387 = vld [vmem:[%s27 + $0x60] sm:$0xff]
    %v388 = vld [vmem:[%s27 + $0x68] sm:$0xff]
    %v389 = vld [vmem:[%s27 + $0x70] sm:$0xff]
    %v390 = vld [vmem:[%s27 + $0x78] sm:$0xff]
    %v391 = vld [vmem:[%s27 + $0x80] sm:$0xff]
    %v392 = vld [vmem:[%s27 + $0x88] sm:$0xff]
    %v393 = vld [vmem:[%s27 + $0x90] sm:$0xff]
    %v394 = vld [vmem:[%s27 + $0x98] sm:$0xff]
    %v395 = vld [vmem:[%s27 + $0xa0] sm:$0xff]
    %v396 = vld [vmem:[%s27 + $0xa8] sm:$0xff]
    %v397 = vld [vmem:[%s27 + $0xb0] sm:$0xff]
    %v398 = vld [vmem:[%s27 + $0xb8] sm:$0xff]
    %v399 = vld [vmem:[%s27 + $0xc0] sm:$0xff]
    %v400 = vld [vmem:[%s27 + $0xc8] sm:$0xff]
    %v401 = vld [vmem:[%s27 + $0xd0] sm:$0xff]
    %v402 = vld [vmem:[%s27 + $0xd8] sm:$0xff]
    %v403 = vld [vmem:[%s27 + $0xe0] sm:$0xff]
    %v404 = vld [vmem:[%s27 + $0xe8] sm:$0xff]
    %v405 = vld [vmem:[%s27 + $0xf0] sm:$0xff]
    %v406 = vld [vmem:[%s27 + $0xf8] sm:$0xff]
    %v407 = vld [vmem:[#allocation16] sm:$0x1]
    %v408 = vld [vmem:[%s31] sm:$0xff]
    %v409 = vld [vmem:[%s31 + $0x8] sm:$0xff]
    %v410 = vld [vmem:[%s31 + $0x10] sm:$0xff]
    %v411 = vld [vmem:[%s31 + $0x18] sm:$0xff]
    %v412 = vld [vmem:[#allocation17] sm:$0x1]
    %v413 = vld [vmem:[%s35] sm:$0xff]
    %v414 = vld [vmem:[%s35 + $0x8] sm:$0xff]
    %v415 = vld [vmem:[%s35 + $0x10] sm:$0xff]
    %v416 = vld [vmem:[%s35 + $0x18] sm:$0xff]
    %v417 = vld [vmem:[%s35 + $0x20] sm:$0xff]
    %v418 = vld [vmem:[%s35 + $0x28] sm:$0xff]
    %v419 = vld [vmem:[%s35 + $0x30] sm:$0xff]
    %v420 = vld [vmem:[%s35 + $0x38] sm:$0xff]
    %v421 = vld [vmem:[#allocation19] sm:$0x3]
    %v422 = vld [vmem:[%s39] sm:$0xff]
    %v423 = vld [vmem:[%s39 + $0x8] sm:$0xff]
    %v425 = vlaneseq
    %v426 = vshrl.u32 %v425, 7
    %v427 = vsub.s32 0, %v426
    %v428 = vrot.slane %v355, %v427
    %vm430 = vcmask 130048
    %v432 = vsel %vm430, %v349, 0
    %v435 = vsel %vm430, %v350, 0
    %v438 = vsel %vm430, %v351, 0
    %v441 = vsel %vm430, %v352, 0
    %443 = vmatprep.subr.mxu0 0.0
    %444 = vmatpush1.msra.mxu0 %v353
    %445 = vmatprep.subr.mxu0 0.0
    %446 = vmatpush1.msra.mxu0 %v354
    %447 = vmatprep.subr.mxu0 0.0
    %448 = vmatpush1.msra.mxu0 0.0
    %449 = vmatprep.subr.mxu0 0.0
    %450 = vmatpush1.msra.mxu0 0.0
    %451 = vmatprep.subr.mxu0 0.0
    %452 = vmatpush1.msra.mxu0 0.0
    %453 = vmatprep.subr.mxu0 0.0
    %454 = vmatpush1.msra.mxu0 0.0
    %455 = vmatprep.subr.mxu0 0.0
    %456 = vmatpush1.msra.mxu0 0.0
    %457 = vmatprep.subr.mxu0 0.0
    %458 = vmatpush1.msra.mxu0 0.0
    %459 = vmatprep.subr.mxu0 0.0
    %460 = vmatpush1.msra.mxu0 0.0
    %461 = vmatprep.subr.mxu0 0.0
    %462 = vmatpush1.msra.mxu0 0.0
    %463 = vmatprep.subr.mxu0 0.0
    %464 = vmatpush1.msra.mxu0 0.0
    %465 = vmatprep.subr.mxu0 0.0
    %466 = vmatpush1.msra.mxu0 0.0
    %467 = vmatprep.subr.mxu0 0.0
    %468 = vmatpush1.msra.mxu0 0.0
    %469 = vmatprep.subr.mxu0 0.0
    %470 = vmatpush1.msra.mxu0 0.0
    %471 = vmatprep.subr.mxu0 0.0
    %472 = vmatpush1.msra.mxu0 0.0
    %473 = vmatprep.subr.mxu0 0.0
    %474 = vmatpush1.msra.mxu0 0.0
    %475 = vmatprep.subr.mxu0 0.0
    %476 = vmatpush1.msra.mxu0 0.0
    %477 = vmatprep.subr.mxu0 0.0
    %478 = vmatpush1.msra.mxu0 0.0
    %479 = vmatprep.subr.mxu0 0.0
    %480 = vmatpush1.msra.mxu0 0.0
    %481 = vmatprep.subr.mxu0 0.0
    %482 = vmatpush1.msra.mxu0 0.0
    %483 = vmatprep.subr.mxu0 0.0
    %484 = vmatpush1.msra.mxu0 0.0
    %485 = vmatprep.subr.mxu0 0.0
    %486 = vmatpush1.msra.mxu0 0.0
    %487 = vmatprep.subr.mxu0 0.0
    %488 = vmatpush1.msra.mxu0 0.0
    %489 = vmatprep.subr.mxu0 0.0
    %490 = vmatpush1.msra.mxu0 0.0
    %491 = vmatprep.subr.mxu0 0.0
    %492 = vmatpush1.msra.mxu0 0.0
    %493 = vmatprep.subr.mxu0 0.0
    %494 = vmatpush1.msra.mxu0 0.0
    %495 = vmatprep.subr.mxu0 0.0
    %496 = vmatpush1.msra.mxu0 0.0
    %497 = vmatprep.subr.mxu0 0.0
    %498 = vmatpush1.msra.mxu0 0.0
    %499 = vmatprep.subr.mxu0 0.0
    %500 = vmatpush1.msra.mxu0 0.0
    %501 = vmatprep.subr.mxu0 0.0
    %502 = vmatpush1.msra.mxu0 0.0
    %503 = vmatprep.subr.mxu0 0.0
    %504 = vmatpush1.msra.mxu0 0.0
    %505 = vmatprep.subr.mxu0 0.0
    %506 = vmatpush1.msra.mxu0 0.0
    %507 = vmatprep.mubr.f32.mxu0 0.0
    %508 = vmatmul.mubr.f32.gmra.mrb[0].mxu0 %v432
    %v509 = vpop.f32.mrb[0].mxu0
    %v510 = vadd.f32 %v428, %v509
    %v511 = vpop.f32.mrb[0].mxu0
    %512 = vmatprep.mubr.f32.mxu0 0.0
    %513 = vmatmul.mubr.f32.gmra.mrb[0].mxu0 %v435
    %v514 = vpop.f32.mrb[0].mxu0
    %v515 = vadd.f32 %v428, %v514
    %v516 = vpop.f32.mrb[0].mxu0
    %517 = vmatprep.mubr.f32.mxu0 0.0
    %518 = vmatmul.mubr.f32.gmra.mrb[0].mxu0 %v438
    %v519 = vpop.f32.mrb[0].mxu0
    %v520 = vadd.f32 %v428, %v519
    %v521 = vpop.f32.mrb[0].mxu0
    %522 = vmatprep.mubr.f32.mxu0 0.0
    %523 = vmatmul.mubr.f32.gmra.mrb[0].mxu0 %v441
    %v524 = vpop.f32.mrb[0].mxu0
    %v525 = vadd.f32 %v428, %v524
    %v526 = vpop.f32.mrb[0].mxu0
    %527 = vdwg.mxu0
    %530 = vrot.lane.b32.xlu0 %v510, 112
    %v531 = vpop.permute.xlu0 %530
    %532 = vrot.lane.b32.xlu0 %v515, 112
    %v533 = vpop.permute.xlu0 %532
    %vm534 = vcmask 31744
    %v535 = vsel %vm534, %v510, 0
    %v537 = vsel %vm534, %v515, 0
    %v539 = vsel %vm534, %v531, 0
    %v541 = vsel %vm534, %v533, 0
    %543 = vmatprep.subr.mxu0 0.0
    %544 = vmatpush1.xpose.msra.mxu0 %v539
    %545 = vmatprep.subr.mxu0 0.0
    %546 = vmatpush1.xpose.msra.mxu0 %v541
    %547 = vmatprep.subr.mxu0 0.0
    %548 = vmatpush1.xpose.msra.mxu0 0.0
    %549 = vmatprep.subr.mxu0 0.0
    %550 = vmatpush1.xpose.msra.mxu0 0.0
    %551 = vmatprep.subr.mxu0 0.0
    %552 = vmatpush1.xpose.msra.mxu0 0.0
    %553 = vmatprep.subr.mxu0 0.0
    %554 = vmatpush1.xpose.msra.mxu0 0.0
    %555 = vmatprep.subr.mxu0 0.0
    %556 = vmatpush1.xpose.msra.mxu0 0.0
    %557 = vmatprep.subr.mxu0 0.0
    %558 = vmatpush1.xpose.msra.mxu0 0.0
    %559 = vmatprep.subr.mxu0 0.0
    %560 = vmatpush1.xpose.msra.mxu0 0.0
    %561 = vmatprep.subr.mxu0 0.0
    %562 = vmatpush1.xpose.msra.mxu0 0.0
    %563 = vmatprep.subr.mxu0 0.0
    %564 = vmatpush1.xpose.msra.mxu0 0.0
    %565 = vmatprep.subr.mxu0 0.0
    %566 = vmatpush1.xpose.msra.mxu0 0.0
    %567 = vmatprep.subr.mxu0 0.0
    %568 = vmatpush1.xpose.msra.mxu0 0.0
    %569 = vmatprep.subr.mxu0 0.0
    %570 = vmatpush1.xpose.msra.mxu0 0.0
    %571 = vmatprep.subr.mxu0 0.0
    %572 = vmatpush1.xpose.msra.mxu0 0.0
    %573 = vmatprep.subr.mxu0 0.0
    %574 = vmatpush1.xpose.msra.mxu0 0.0
    %575 = vmatprep.subr.mxu0 0.0
    %576 = vmatpush1.xpose.msra.mxu0 0.0
    %577 = vmatprep.subr.mxu0 0.0
    %578 = vmatpush1.xpose.msra.mxu0 0.0
    %579 = vmatprep.subr.mxu0 0.0
    %580 = vmatpush1.xpose.msra.mxu0 0.0
    %581 = vmatprep.subr.mxu0 0.0
    %582 = vmatpush1.xpose.msra.mxu0 0.0
    %583 = vmatprep.subr.mxu0 0.0
    %584 = vmatpush1.xpose.msra.mxu0 0.0
    %585 = vmatprep.subr.mxu0 0.0
    %586 = vmatpush1.xpose.msra.mxu0 0.0
    %587 = vmatprep.subr.mxu0 0.0
    %588 = vmatpush1.xpose.msra.mxu0 0.0
    %589 = vmatprep.subr.mxu0 0.0
    %590 = vmatpush1.xpose.msra.mxu0 0.0
    %591 = vmatprep.subr.mxu0 0.0
    %592 = vmatpush1.xpose.msra.mxu0 0.0
    %593 = vmatprep.subr.mxu0 0.0
    %594 = vmatpush1.xpose.msra.mxu0 0.0
    %595 = vmatprep.subr.mxu0 0.0
    %596 = vmatpush1.xpose.msra.mxu0 0.0
    %597 = vmatprep.subr.mxu0 0.0
    %598 = vmatpush1.xpose.msra.mxu0 0.0
    %599 = vmatprep.subr.mxu0 0.0
    %600 = vmatpush1.xpose.msra.mxu0 0.0
    %601 = vmatprep.subr.mxu0 0.0
    %602 = vmatpush1.xpose.msra.mxu0 0.0
    %603 = vmatprep.subr.mxu0 0.0
    %604 = vmatpush1.xpose.msra.mxu0 0.0
    %605 = vmatprep.subr.mxu0 0.0
    %606 = vmatpush1.xpose.msra.mxu0 0.0
    %607 = vmatprep.mubr.f32.mxu0 0.0
    %608 = vmatmul.mubr.f32.gmra.mrb[0].mxu0 %v535
    %v609 = vpop.f32.mrb[0].mxu0
    %v610 = vadd.f32 0.0, %v609
    %v611 = vpop.f32.mrb[0].mxu0
    %612 = vmatprep.mubr.f32.mxu0 0.0
    %613 = vmatmul.mubr.f32.gmra.mrb[0].mxu0 %v537
    %v614 = vpop.f32.mrb[0].mxu0
    %v615 = vadd.f32 0.0, %v614
    %v616 = vpop.f32.mrb[0].mxu0
    %617 = vdwg.mxu0
    %620 = vrot.lane.b32.xlu0 %v520, 112
    %v621 = vpop.permute.xlu0 %620
    %622 = vrot.lane.b32.xlu0 %v525, 112
    %v623 = vpop.permute.xlu0 %622
    %v624 = vsel %vm534, %v520, 0
    %v626 = vsel %vm534, %v525, 0
    %v628 = vsel %vm534, %v621, 0
    %v630 = vsel %vm534, %v623, 0
    %632 = vmatprep.subr.mxu0 0.0
    %633 = vmatpush1.xpose.msra.mxu0 %v628
    %634 = vmatprep.subr.mxu0 0.0
    %635 = vmatpush1.xpose.msra.mxu0 %v630
    %636 = vmatprep.subr.mxu0 0.0
    %637 = vmatpush1.xpose.msra.mxu0 0.0
    %638 = vmatprep.subr.mxu0 0.0
    %639 = vmatpush1.xpose.msra.mxu0 0.0
    %640 = vmatprep.subr.mxu0 0.0
    %641 = vmatpush1.xpose.msra.mxu0 0.0
    %642 = vmatprep.subr.mxu0 0.0
    %643 = vmatpush1.xpose.msra.mxu0 0.0
    %644 = vmatprep.subr.mxu0 0.0
    %645 = vmatpush1.xpose.msra.mxu0 0.0
    %646 = vmatprep.subr.mxu0 0.0
    %647 = vmatpush1.xpose.msra.mxu0 0.0
    %648 = vmatprep.subr.mxu0 0.0
    %649 = vmatpush1.xpose.msra.mxu0 0.0
    %650 = vmatprep.subr.mxu0 0.0
    %651 = vmatpush1.xpose.msra.mxu0 0.0
    %652 = vmatprep.subr.mxu0 0.0
    %653 = vmatpush1.xpose.msra.mxu0 0.0
    %654 = vmatprep.subr.mxu0 0.0
    %655 = vmatpush1.xpose.msra.mxu0 0.0
    %656 = vmatprep.subr.mxu0 0.0
    %657 = vmatpush1.xpose.msra.mxu0 0.0
    %658 = vmatprep.subr.mxu0 0.0
    %659 = vmatpush1.xpose.msra.mxu0 0.0
    %660 = vmatprep.subr.mxu0 0.0
    %661 = vmatpush1.xpose.msra.mxu0 0.0
    %662 = vmatprep.subr.mxu0 0.0
    %663 = vmatpush1.xpose.msra.mxu0 0.0
    %664 = vmatprep.subr.mxu0 0.0
    %665 = vmatpush1.xpose.msra.mxu0 0.0
    %666 = vmatprep.subr.mxu0 0.0
    %667 = vmatpush1.xpose.msra.mxu0 0.0
    %668 = vmatprep.subr.mxu0 0.0
    %669 = vmatpush1.xpose.msra.mxu0 0.0
    %670 = vmatprep.subr.mxu0 0.0
    %671 = vmatpush1.xpose.msra.mxu0 0.0
    %672 = vmatprep.subr.mxu0 0.0
    %673 = vmatpush1.xpose.msra.mxu0 0.0
    %674 = vmatprep.subr.mxu0 0.0
    %675 = vmatpush1.xpose.msra.mxu0 0.0
    %676 = vmatprep.subr.mxu0 0.0
    %677 = vmatpush1.xpose.msra.mxu0 0.0
    %678 = vmatprep.subr.mxu0 0.0
    %679 = vmatpush1.xpose.msra.mxu0 0.0
    %680 = vmatprep.subr.mxu0 0.0
    %681 = vmatpush1.xpose.msra.mxu0 0.0
    %682 = vmatprep.subr.mxu0 0.0
    %683 = vmatpush1.xpose.msra.mxu0 0.0
    %684 = vmatprep.subr.mxu0 0.0
    %685 = vmatpush1.xpose.msra.mxu0 0.0
    %686 = vmatprep.subr.mxu0 0.0
    %687 = vmatpush1.xpose.msra.mxu0 0.0
    %688 = vmatprep.subr.mxu0 0.0
    %689 = vmatpush1.xpose.msra.mxu0 0.0
    %690 = vmatprep.subr.mxu0 0.0
    %691 = vmatpush1.xpose.msra.mxu0 0.0
    %692 = vmatprep.subr.mxu0 0.0
    %693 = vmatpush1.xpose.msra.mxu0 0.0
    %694 = vmatprep.subr.mxu0 0.0
    %695 = vmatpush1.xpose.msra.mxu0 0.0
    %696 = vmatprep.mubr.f32.mxu0 0.0
    %697 = vmatmul.mubr.f32.gmra.mrb[0].mxu0 %v624
    %v698 = vpop.f32.mrb[0].mxu0
    %v699 = vadd.f32 0.0, %v698
    %v700 = vpop.f32.mrb[0].mxu0
    %701 = vmatprep.mubr.f32.mxu0 0.0
    %702 = vmatmul.mubr.f32.gmra.mrb[0].mxu0 %v626
    %v703 = vpop.f32.mrb[0].mxu0
    %v704 = vadd.f32 0.0, %v703
    %v705 = vpop.f32.mrb[0].mxu0
    %706 = vdwg.mxu0
    %v707 = vsel %vm430, %v610, -inf
    %708 = vmax.xlane.f32.xlu0 %v707
    %v709 = vpop.xlane.xlu0 %708
    %v710 = vsel %vm430, %v615, -inf
    %711 = vmax.xlane.f32.xlu0 %v710
    %v712 = vpop.xlane.xlu0 %711
    %v713 = vsel %vm430, %v699, -inf
    %714 = vmax.xlane.f32.xlu0 %v713
    %v715 = vpop.xlane.xlu0 %714
    %v716 = vsel %vm430, %v704, -inf
    %717 = vmax.xlane.f32.xlu0 %v716
    %v718 = vpop.xlane.xlu0 %717
    %v719 = vsub.f32 %v610, %v709
    %v720 = vsub.f32 %v615, %v712
    %v721 = vsub.f32 %v699, %v715
    %v722 = vsub.f32 %v704, %v718
    %v723 = vmul.f32 %v719, 1.442695
    %v724 = vpow.pop %v723
    %v725 = vmul.f32 %v720, 1.442695
    %v726 = vpow.pop %v725
    %v727 = vmul.f32 %v721, 1.442695
    %v728 = vpow.pop %v727
    %v729 = vmul.f32 %v722, 1.442695
    %v730 = vpow.pop %v729
    %v731 = vsel %vm430, %v724, 0.0
    %732 = vadd.xlane.f32.xlu0 %v731
    %v733 = vpop.xlane.xlu0 %732
    %v734 = vsel %vm430, %v726, 0.0
    %735 = vadd.xlane.f32.xlu0 %v734
    %v736 = vpop.xlane.xlu0 %735
    %v737 = vsel %vm430, %v728, 0.0
    %738 = vadd.xlane.f32.xlu0 %v737
    %v739 = vpop.xlane.xlu0 %738
    %v740 = vsel %vm430, %v730, 0.0
    %741 = vadd.xlane.f32.xlu0 %v740
    %v742 = vpop.xlane.xlu0 %741
    %v743 = vrcp.pop %v733
    %v744 = vrcp.pop %v736
    %v745 = vrcp.pop %v739
    %v746 = vrcp.pop %v742
    %v747 = vmul.f32 %v724, %v743
    %v748 = vmul.f32 %v726, %v744
    %v749 = vmul.f32 %v728, %v745
    %v750 = vmul.f32 %v730, %v746
    %751 = vrot.lane.b32.xlu0 %v510, 96
    %v752 = vpop.permute.xlu0 %751
    %753 = vrot.lane.b32.xlu0 %v515, 96
    %v754 = vpop.permute.xlu0 %753
    %v758 = vsel %vm430, %v747, 0
    %v761 = vsel %vm430, %v748, 0
    %763 = vmatprep.subr.mxu0 0.0
    %764 = vmatpush1.msra.mxu0 %v752
    %765 = vmatprep.subr.mxu0 0.0
    %766 = vmatpush1.msra.mxu0 %v754
    %767 = vmatprep.subr.mxu0 0.0
    %768 = vmatpush1.msra.mxu0 0.0
    %769 = vmatprep.subr.mxu0 0.0
    %770 = vmatpush1.msra.mxu0 0.0
    %771 = vmatprep.subr.mxu0 0.0
    %772 = vmatpush1.msra.mxu0 0.0
    %773 = vmatprep.subr.mxu0 0.0
    %774 = vmatpush1.msra.mxu0 0.0
    %775 = vmatprep.subr.mxu0 0.0
    %776 = vmatpush1.msra.mxu0 0.0
    %777 = vmatprep.subr.mxu0 0.0
    %778 = vmatpush1.msra.mxu0 0.0
    %779 = vmatprep.subr.mxu0 0.0
    %780 = vmatpush1.msra.mxu0 0.0
    %781 = vmatprep.subr.mxu0 0.0
    %782 = vmatpush1.msra.mxu0 0.0
    %783 = vmatprep.subr.mxu0 0.0
    %784 = vmatpush1.msra.mxu0 0.0
    %785 = vmatprep.subr.mxu0 0.0
    %786 = vmatpush1.msra.mxu0 0.0
    %787 = vmatprep.subr.mxu0 0.0
    %788 = vmatpush1.msra.mxu0 0.0
    %789 = vmatprep.subr.mxu0 0.0
    %790 = vmatpush1.msra.mxu0 0.0
    %791 = vmatprep.subr.mxu0 0.0
    %792 = vmatpush1.msra.mxu0 0.0
    %793 = vmatprep.subr.mxu0 0.0
    %794 = vmatpush1.msra.mxu0 0.0
    %795 = vmatprep.subr.mxu0 0.0
    %796 = vmatpush1.msra.mxu0 0.0
    %797 = vmatprep.subr.mxu0 0.0
    %798 = vmatpush1.msra.mxu0 0.0
    %799 = vmatprep.subr.mxu0 0.0
    %800 = vmatpush1.msra.mxu0 0.0
    %801 = vmatprep.subr.mxu0 0.0
    %802 = vmatpush1.msra.mxu0 0.0
    %803 = vmatprep.subr.mxu0 0.0
    %804 = vmatpush1.msra.mxu0 0.0
    %805 = vmatprep.subr.mxu0 0.0
    %806 = vmatpush1.msra.mxu0 0.0
    %807 = vmatprep.subr.mxu0 0.0
    %808 = vmatpush1.msra.mxu0 0.0
    %809 = vmatprep.subr.mxu0 0.0
    %810 = vmatpush1.msra.mxu0 0.0
    %811 = vmatprep.subr.mxu0 0.0
    %812 = vmatpush1.msra.mxu0 0.0
    %813 = vmatprep.subr.mxu0 0.0
    %814 = vmatpush1.msra.mxu0 0.0
    %815 = vmatprep.subr.mxu0 0.0
    %816 = vmatpush1.msra.mxu0 0.0
    %817 = vmatprep.subr.mxu0 0.0
    %818 = vmatpush1.msra.mxu0 0.0
    %819 = vmatprep.subr.mxu0 0.0
    %820 = vmatpush1.msra.mxu0 0.0
    %821 = vmatprep.subr.mxu0 0.0
    %822 = vmatpush1.msra.mxu0 0.0
    %823 = vmatprep.subr.mxu0 0.0
    %824 = vmatpush1.msra.mxu0 0.0
    %825 = vmatprep.subr.mxu0 0.0
    %826 = vmatpush1.msra.mxu0 0.0
    %827 = vmatprep.mubr.f32.mxu0 0.0
    %828 = vmatmul.mubr.f32.gmra.mrb[0].mxu0 %v758
    %v829 = vpop.f32.mrb[0].mxu0
    %v830 = vadd.f32 0.0, %v829
    %v831 = vpop.f32.mrb[0].mxu0
    %832 = vmatprep.mubr.f32.mxu0 0.0
    %833 = vmatmul.mubr.f32.gmra.mrb[0].mxu0 %v761
    %v834 = vpop.f32.mrb[0].mxu0
    %v835 = vadd.f32 0.0, %v834
    %v836 = vpop.f32.mrb[0].mxu0
    %837 = vdwg.mxu0
    %838 = vrot.lane.b32.xlu0 %v520, 96
    %v839 = vpop.permute.xlu0 %838
    %840 = vrot.lane.b32.xlu0 %v525, 96
    %v841 = vpop.permute.xlu0 %840
    %v845 = vsel %vm430, %v749, 0
    %v848 = vsel %vm430, %v750, 0
    %850 = vmatprep.subr.mxu0 0.0
    %851 = vmatpush1.msra.mxu0 %v839
    %852 = vmatprep.subr.mxu0 0.0
    %853 = vmatpush1.msra.mxu0 %v841
    %854 = vmatprep.subr.mxu0 0.0
    %855 = vmatpush1.msra.mxu0 0.0
    %856 = vmatprep.subr.mxu0 0.0
    %857 = vmatpush1.msra.mxu0 0.0
    %858 = vmatprep.subr.mxu0 0.0
    %859 = vmatpush1.msra.mxu0 0.0
    %860 = vmatprep.subr.mxu0 0.0
    %861 = vmatpush1.msra.mxu0 0.0
    %862 = vmatprep.subr.mxu0 0.0
    %863 = vmatpush1.msra.mxu0 0.0
    %864 = vmatprep.subr.mxu0 0.0
    %865 = vmatpush1.msra.mxu0 0.0
    %866 = vmatprep.subr.mxu0 0.0
    %867 = vmatpush1.msra.mxu0 0.0
    %868 = vmatprep.subr.mxu0 0.0
    %869 = vmatpush1.msra.mxu0 0.0
    %870 = vmatprep.subr.mxu0 0.0
    %871 = vmatpush1.msra.mxu0 0.0
    %872 = vmatprep.subr.mxu0 0.0
    %873 = vmatpush1.msra.mxu0 0.0
    %874 = vmatprep.subr.mxu0 0.0
    %875 = vmatpush1.msra.mxu0 0.0
    %876 = vmatprep.subr.mxu0 0.0
    %877 = vmatpush1.msra.mxu0 0.0
    %878 = vmatprep.subr.mxu0 0.0
    %879 = vmatpush1.msra.mxu0 0.0
    %880 = vmatprep.subr.mxu0 0.0
    %881 = vmatpush1.msra.mxu0 0.0
    %882 = vmatprep.subr.mxu0 0.0
    %883 = vmatpush1.msra.mxu0 0.0
    %884 = vmatprep.subr.mxu0 0.0
    %885 = vmatpush1.msra.mxu0 0.0
    %886 = vmatprep.subr.mxu0 0.0
    %887 = vmatpush1.msra.mxu0 0.0
    %888 = vmatprep.subr.mxu0 0.0
    %889 = vmatpush1.msra.mxu0 0.0
    %890 = vmatprep.subr.mxu0 0.0
    %891 = vmatpush1.msra.mxu0 0.0
    %892 = vmatprep.subr.mxu0 0.0
    %893 = vmatpush1.msra.mxu0 0.0
    %894 = vmatprep.subr.mxu0 0.0
    %895 = vmatpush1.msra.mxu0 0.0
    %896 = vmatprep.subr.mxu0 0.0
    %897 = vmatpush1.msra.mxu0 0.0
    %898 = vmatprep.subr.mxu0 0.0
    %899 = vmatpush1.msra.mxu0 0.0
    %900 = vmatprep.subr.mxu0 0.0
    %901 = vmatpush1.msra.mxu0 0.0
    %902 = vmatprep.subr.mxu0 0.0
    %903 = vmatpush1.msra.mxu0 0.0
    %904 = vmatprep.subr.mxu0 0.0
    %905 = vmatpush1.msra.mxu0 0.0
    %906 = vmatprep.subr.mxu0 0.0
    %907 = vmatpush1.msra.mxu0 0.0
    %908 = vmatprep.subr.mxu0 0.0
    %909 = vmatpush1.msra.mxu0 0.0
    %910 = vmatprep.subr.mxu0 0.0
    %911 = vmatpush1.msra.mxu0 0.0
    %912 = vmatprep.subr.mxu0 0.0
    %913 = vmatpush1.msra.mxu0 0.0
    %914 = vmatprep.mubr.f32.mxu0 0.0
    %915 = vmatmul.mubr.f32.gmra.mrb[0].mxu0 %v845
    %v916 = vpop.f32.mrb[0].mxu0
    %v917 = vadd.f32 0.0, %v916
    %v918 = vpop.f32.mrb[0].mxu0
    %919 = vmatprep.mubr.f32.mxu0 0.0
    %920 = vmatmul.mubr.f32.gmra.mrb[0].mxu0 %v848
    %v921 = vpop.f32.mrb[0].mxu0
    %v922 = vadd.f32 0.0, %v921
    %v923 = vpop.f32.mrb[0].mxu0
    %924 = vdwg.mxu0
    %925 = vrot.lane.b32.xlu0 %v510, 124
    %v926 = vpop.permute.xlu0 %925
    %927 = vrot.lane.b32.xlu0 %v515, 124
    %v928 = vpop.permute.xlu0 %927
    %929 = vrot.lane.b32.xlu0 %v510, 108
    %v930 = vpop.permute.xlu0 %929
    %931 = vrot.lane.b32.xlu0 %v515, 108
    %v932 = vpop.permute.xlu0 %931
    %v933 = vsel %vm534, %v926, 0
    %v935 = vsel %vm534, %v928, 0
    %v937 = vsel %vm534, %v930, 0
    %v939 = vsel %vm534, %v932, 0
    %941 = vmatprep.subr.mxu0 0.0
    %942 = vmatpush1.xpose.msra.mxu0 %v937
    %943 = vmatprep.subr.mxu0 0.0
    %944 = vmatpush1.xpose.msra.mxu0 %v939
    %945 = vmatprep.subr.mxu0 0.0
    %946 = vmatpush1.xpose.msra.mxu0 0.0
    %947 = vmatprep.subr.mxu0 0.0
    %948 = vmatpush1.xpose.msra.mxu0 0.0
    %949 = vmatprep.subr.mxu0 0.0
    %950 = vmatpush1.xpose.msra.mxu0 0.0
    %951 = vmatprep.subr.mxu0 0.0
    %952 = vmatpush1.xpose.msra.mxu0 0.0
    %953 = vmatprep.subr.mxu0 0.0
    %954 = vmatpush1.xpose.msra.mxu0 0.0
    %955 = vmatprep.subr.mxu0 0.0
    %956 = vmatpush1.xpose.msra.mxu0 0.0
    %957 = vmatprep.subr.mxu0 0.0
    %958 = vmatpush1.xpose.msra.mxu0 0.0
    %959 = vmatprep.subr.mxu0 0.0
    %960 = vmatpush1.xpose.msra.mxu0 0.0
    %961 = vmatprep.subr.mxu0 0.0
    %962 = vmatpush1.xpose.msra.mxu0 0.0
    %963 = vmatprep.subr.mxu0 0.0
    %964 = vmatpush1.xpose.msra.mxu0 0.0
    %965 = vmatprep.subr.mxu0 0.0
    %966 = vmatpush1.xpose.msra.mxu0 0.0
    %967 = vmatprep.subr.mxu0 0.0
    %968 = vmatpush1.xpose.msra.mxu0 0.0
    %969 = vmatprep.subr.mxu0 0.0
    %970 = vmatpush1.xpose.msra.mxu0 0.0
    %971 = vmatprep.subr.mxu0 0.0
    %972 = vmatpush1.xpose.msra.mxu0 0.0
    %973 = vmatprep.subr.mxu0 0.0
    %974 = vmatpush1.xpose.msra.mxu0 0.0
    %975 = vmatprep.subr.mxu0 0.0
    %976 = vmatpush1.xpose.msra.mxu0 0.0
    %977 = vmatprep.subr.mxu0 0.0
    %978 = vmatpush1.xpose.msra.mxu0 0.0
    %979 = vmatprep.subr.mxu0 0.0
    %980 = vmatpush1.xpose.msra.mxu0 0.0
    %981 = vmatprep.subr.mxu0 0.0
    %982 = vmatpush1.xpose.msra.mxu0 0.0
    %983 = vmatprep.subr.mxu0 0.0
    %984 = vmatpush1.xpose.msra.mxu0 0.0
    %985 = vmatprep.subr.mxu0 0.0
    %986 = vmatpush1.xpose.msra.mxu0 0.0
    %987 = vmatprep.subr.mxu0 0.0
    %988 = vmatpush1.xpose.msra.mxu0 0.0
    %989 = vmatprep.subr.mxu0 0.0
    %990 = vmatpush1.xpose.msra.mxu0 0.0
    %991 = vmatprep.subr.mxu0 0.0
    %992 = vmatpush1.xpose.msra.mxu0 0.0
    %993 = vmatprep.subr.mxu0 0.0
    %994 = vmatpush1.xpose.msra.mxu0 0.0
    %995 = vmatprep.subr.mxu0 0.0
    %996 = vmatpush1.xpose.msra.mxu0 0.0
    %997 = vmatprep.subr.mxu0 0.0
    %998 = vmatpush1.xpose.msra.mxu0 0.0
    %999 = vmatprep.subr.mxu0 0.0
    %1000 = vmatpush1.xpose.msra.mxu0 0.0
    %1001 = vmatprep.subr.mxu0 0.0
    %1002 = vmatpush1.xpose.msra.mxu0 0.0
    %1003 = vmatprep.subr.mxu0 0.0
    %1004 = vmatpush1.xpose.msra.mxu0 0.0
    %1005 = vmatprep.mubr.f32.mxu0 0.0
    %1006 = vmatmul.mubr.f32.gmra.mrb[0].mxu0 %v933
    %v1007 = vpop.f32.mrb[0].mxu0
    %v1008 = vadd.f32 0.0, %v1007
    %v1009 = vpop.f32.mrb[0].mxu0
    %1010 = vmatprep.mubr.f32.mxu0 0.0
    %1011 = vmatmul.mubr.f32.gmra.mrb[0].mxu0 %v935
    %v1012 = vpop.f32.mrb[0].mxu0
    %v1013 = vadd.f32 0.0, %v1012
    %v1014 = vpop.f32.mrb[0].mxu0
    %1015 = vdwg.mxu0
    %1016 = vrot.lane.b32.xlu0 %v520, 124
    %v1017 = vpop.permute.xlu0 %1016
    %1018 = vrot.lane.b32.xlu0 %v525, 124
    %v1019 = vpop.permute.xlu0 %1018
    %1020 = vrot.lane.b32.xlu0 %v520, 108
    %v1021 = vpop.permute.xlu0 %1020
    %1022 = vrot.lane.b32.xlu0 %v525, 108
    %v1023 = vpop.permute.xlu0 %1022
    %v1024 = vsel %vm534, %v1017, 0
    %v1026 = vsel %vm534, %v1019, 0
    %v1028 = vsel %vm534, %v1021, 0
    %v1030 = vsel %vm534, %v1023, 0
    %1032 = vmatprep.subr.mxu0 0.0
    %1033 = vmatpush1.xpose.msra.mxu0 %v1028
    %1034 = vmatprep.subr.mxu0 0.0
    %1035 = vmatpush1.xpose.msra.mxu0 %v1030
    %1036 = vmatprep.subr.mxu0 0.0
    %1037 = vmatpush1.xpose.msra.mxu0 0.0
    %1038 = vmatprep.subr.mxu0 0.0
    %1039 = vmatpush1.xpose.msra.mxu0 0.0
    %1040 = vmatprep.subr.mxu0 0.0
    %1041 = vmatpush1.xpose.msra.mxu0 0.0
    %1042 = vmatprep.subr.mxu0 0.0
    %1043 = vmatpush1.xpose.msra.mxu0 0.0
    %1044 = vmatprep.subr.mxu0 0.0
    %1045 = vmatpush1.xpose.msra.mxu0 0.0
    %1046 = vmatprep.subr.mxu0 0.0
    %1047 = vmatpush1.xpose.msra.mxu0 0.0
    %1048 = vmatprep.subr.mxu0 0.0
    %1049 = vmatpush1.xpose.msra.mxu0 0.0
    %1050 = vmatprep.subr.mxu0 0.0
    %1051 = vmatpush1.xpose.msra.mxu0 0.0
    %1052 = vmatprep.subr.mxu0 0.0
    %1053 = vmatpush1.xpose.msra.mxu0 0.0
    %1054 = vmatprep.subr.mxu0 0.0
    %1055 = vmatpush1.xpose.msra.mxu0 0.0
    %1056 = vmatprep.subr.mxu0 0.0
    %1057 = vmatpush1.xpose.msra.mxu0 0.0
    %1058 = vmatprep.subr.mxu0 0.0
    %1059 = vmatpush1.xpose.msra.mxu0 0.0
    %1060 = vmatprep.subr.mxu0 0.0
    %1061 = vmatpush1.xpose.msra.mxu0 0.0
    %1062 = vmatprep.subr.mxu0 0.0
    %1063 = vmatpush1.xpose.msra.mxu0 0.0
    %1064 = vmatprep.subr.mxu0 0.0
    %1065 = vmatpush1.xpose.msra.mxu0 0.0
    %1066 = vmatprep.subr.mxu0 0.0
    %1067 = vmatpush1.xpose.msra.mxu0 0.0
    %1068 = vmatprep.subr.mxu0 0.0
    %1069 = vmatpush1.xpose.msra.mxu0 0.0
    %1070 = vmatprep.subr.mxu0 0.0
    %1071 = vmatpush1.xpose.msra.mxu0 0.0
    %1072 = vmatprep.subr.mxu0 0.0
    %1073 = vmatpush1.xpose.msra.mxu0 0.0
    %1074 = vmatprep.subr.mxu0 0.0
    %1075 = vmatpush1.xpose.msra.mxu0 0.0
    %1076 = vmatprep.subr.mxu0 0.0
    %1077 = vmatpush1.xpose.msra.mxu0 0.0
    %1078 = vmatprep.subr.mxu0 0.0
    %1079 = vmatpush1.xpose.msra.mxu0 0.0
    %1080 = vmatprep.subr.mxu0 0.0
    %1081 = vmatpush1.xpose.msra.mxu0 0.0
    %1082 = vmatprep.subr.mxu0 0.0
    %1083 = vmatpush1.xpose.msra.mxu0 0.0
    %1084 = vmatprep.subr.mxu0 0.0
    %1085 = vmatpush1.xpose.msra.mxu0 0.0
    %1086 = vmatprep.subr.mxu0 0.0
    %1087 = vmatpush1.xpose.msra.mxu0 0.0
    %1088 = vmatprep.subr.mxu0 0.0
    %1089 = vmatpush1.xpose.msra.mxu0 0.0
    %1090 = vmatprep.subr.mxu0 0.0
    %1091 = vmatpush1.xpose.msra.mxu0 0.0
    %1092 = vmatprep.subr.mxu0 0.0
    %1093 = vmatpush1.xpose.msra.mxu0 0.0
    %1094 = vmatprep.subr.mxu0 0.0
    %1095 = vmatpush1.xpose.msra.mxu0 0.0
    %1096 = vmatprep.mubr.f32.mxu0 0.0
    %1097 = vmatmul.mubr.f32.gmra.mrb[0].mxu0 %v1024
    %v1098 = vpop.f32.mrb[0].mxu0
    %v1099 = vadd.f32 0.0, %v1098
    %v1100 = vpop.f32.mrb[0].mxu0
    %1101 = vmatprep.mubr.f32.mxu0 0.0
    %1102 = vmatmul.mubr.f32.gmra.mrb[0].mxu0 %v1026
    %v1103 = vpop.f32.mrb[0].mxu0
    %v1104 = vadd.f32 0.0, %v1103
    %v1105 = vpop.f32.mrb[0].mxu0
    %1106 = vdwg.mxu0
    %v1107 = vsel %vm430, %v1008, -inf
    %1108 = vmax.xlane.f32.xlu0 %v1107
    %v1109 = vpop.xlane.xlu0 %1108
    %v1110 = vsel %vm430, %v1013, -inf
    %1111 = vmax.xlane.f32.xlu0 %v1110
    %v1112 = vpop.xlane.xlu0 %1111
    %v1113 = vsel %vm430, %v1099, -inf
    %1114 = vmax.xlane.f32.xlu0 %v1113
    %v1115 = vpop.xlane.xlu0 %1114
    %v1116 = vsel %vm430, %v1104, -inf
    %1117 = vmax.xlane.f32.xlu0 %v1116
    %v1118 = vpop.xlane.xlu0 %1117
    %v1119 = vsub.f32 %v1008, %v1109
    %v1120 = vsub.f32 %v1013, %v1112
    %v1121 = vsub.f32 %v1099, %v1115
    %v1122 = vsub.f32 %v1104, %v1118
    %v1123 = vmul.f32 %v1119, 1.442695
    %v1124 = vpow.pop %v1123
    %v1125 = vmul.f32 %v1120, 1.442695
    %v1126 = vpow.pop %v1125
    %v1127 = vmul.f32 %v1121, 1.442695
    %v1128 = vpow.pop %v1127
    %v1129 = vmul.f32 %v1122, 1.442695
    %v1130 = vpow.pop %v1129
    %v1131 = vsel %vm430, %v1124, 0.0
    %1132 = vadd.xlane.f32.xlu0 %v1131
    %v1133 = vpop.xlane.xlu0 %1132
    %v1134 = vsel %vm430, %v1126, 0.0
    %1135 = vadd.xlane.f32.xlu0 %v1134
    %v1136 = vpop.xlane.xlu0 %1135
    %v1137 = vsel %vm430, %v1128, 0.0
    %1138 = vadd.xlane.f32.xlu0 %v1137
    %v1139 = vpop.xlane.xlu0 %1138
    %v1140 = vsel %vm430, %v1130, 0.0
    %1141 = vadd.xlane.f32.xlu0 %v1140
    %v1142 = vpop.xlane.xlu0 %1141
    %v1143 = vrcp.pop %v1133
    %v1144 = vrcp.pop %v1136
    %v1145 = vrcp.pop %v1139
    %v1146 = vrcp.pop %v1142
    %v1147 = vmul.f32 %v1124, %v1143
    %v1148 = vmul.f32 %v1126, %v1144
    %v1149 = vmul.f32 %v1128, %v1145
    %v1150 = vmul.f32 %v1130, %v1146
    %1151 = vrot.lane.b32.xlu0 %v510, 92
    %v1152 = vpop.permute.xlu0 %1151
    %1153 = vrot.lane.b32.xlu0 %v515, 92
    %v1154 = vpop.permute.xlu0 %1153
    %v1158 = vsel %vm430, %v1147, 0
    %v1161 = vsel %vm430, %v1148, 0
    %1163 = vmatprep.subr.mxu0 0.0
    %1164 = vmatpush1.msra.mxu0 %v1152
    %1165 = vmatprep.subr.mxu0 0.0
    %1166 = vmatpush1.msra.mxu0 %v1154
    %1167 = vmatprep.subr.mxu0 0.0
    %1168 = vmatpush1.msra.mxu0 0.0
    %1169 = vmatprep.subr.mxu0 0.0
    %1170 = vmatpush1.msra.mxu0 0.0
    %1171 = vmatprep.subr.mxu0 0.0
    %1172 = vmatpush1.msra.mxu0 0.0
    %1173 = vmatprep.subr.mxu0 0.0
    %1174 = vmatpush1.msra.mxu0 0.0
    %1175 = vmatprep.subr.mxu0 0.0
    %1176 = vmatpush1.msra.mxu0 0.0
    %1177 = vmatprep.subr.mxu0 0.0
    %1178 = vmatpush1.msra.mxu0 0.0
    %1179 = vmatprep.subr.mxu0 0.0
    %1180 = vmatpush1.msra.mxu0 0.0
    %1181 = vmatprep.subr.mxu0 0.0
    %1182 = vmatpush1.msra.mxu0 0.0
    %1183 = vmatprep.subr.mxu0 0.0
    %1184 = vmatpush1.msra.mxu0 0.0
    %1185 = vmatprep.subr.mxu0 0.0
    %1186 = vmatpush1.msra.mxu0 0.0
    %1187 = vmatprep.subr.mxu0 0.0
    %1188 = vmatpush1.msra.mxu0 0.0
    %1189 = vmatprep.subr.mxu0 0.0
    %1190 = vmatpush1.msra.mxu0 0.0
    %1191 = vmatprep.subr.mxu0 0.0
    %1192 = vmatpush1.msra.mxu0 0.0
    %1193 = vmatprep.subr.mxu0 0.0
    %1194 = vmatpush1.msra.mxu0 0.0
    %1195 = vmatprep.subr.mxu0 0.0
    %1196 = vmatpush1.msra.mxu0 0.0
    %1197 = vmatprep.subr.mxu0 0.0
    %1198 = vmatpush1.msra.mxu0 0.0
    %1199 = vmatprep.subr.mxu0 0.0
    %1200 = vmatpush1.msra.mxu0 0.0
    %1201 = vmatprep.subr.mxu0 0.0
    %1202 = vmatpush1.msra.mxu0 0.0
    %1203 = vmatprep.subr.mxu0 0.0
    %1204 = vmatpush1.msra.mxu0 0.0
    %1205 = vmatprep.subr.mxu0 0.0
    %1206 = vmatpush1.msra.mxu0 0.0
    %1207 = vmatprep.subr.mxu0 0.0
    %1208 = vmatpush1.msra.mxu0 0.0
    %1209 = vmatprep.subr.mxu0 0.0
    %1210 = vmatpush1.msra.mxu0 0.0
    %1211 = vmatprep.subr.mxu0 0.0
    %1212 = vmatpush1.msra.mxu0 0.0
    %1213 = vmatprep.subr.mxu0 0.0
    %1214 = vmatpush1.msra.mxu0 0.0
    %1215 = vmatprep.subr.mxu0 0.0
    %1216 = vmatpush1.msra.mxu0 0.0
    %1217 = vmatprep.subr.mxu0 0.0
    %1218 = vmatpush1.msra.mxu0 0.0
    %1219 = vmatprep.subr.mxu0 0.0
    %1220 = vmatpush1.msra.mxu0 0.0
    %1221 = vmatprep.subr.mxu0 0.0
    %1222 = vmatpush1.msra.mxu0 0.0
    %1223 = vmatprep.subr.mxu0 0.0
    %1224 = vmatpush1.msra.mxu0 0.0
    %1225 = vmatprep.subr.mxu0 0.0
    %1226 = vmatpush1.msra.mxu0 0.0
    %1227 = vmatprep.mubr.f32.mxu0 0.0
    %1228 = vmatmul.mubr.f32.gmra.mrb[0].mxu0 %v1158
    %v1229 = vpop.f32.mrb[0].mxu0
    %v1230 = vadd.f32 0.0, %v1229
    %v1231 = vpop.f32.mrb[0].mxu0
    %1232 = vmatprep.mubr.f32.mxu0 0.0
    %1233 = vmatmul.mubr.f32.gmra.mrb[0].mxu0 %v1161
    %v1234 = vpop.f32.mrb[0].mxu0
    %v1235 = vadd.f32 0.0, %v1234
    %v1236 = vpop.f32.mrb[0].mxu0
    %1237 = vdwg.mxu0
    %1238 = vrot.lane.b32.xlu0 %v520, 92
    %v1239 = vpop.permute.xlu0 %1238
    %1240 = vrot.lane.b32.xlu0 %v525, 92
    %v1241 = vpop.permute.xlu0 %1240
    %v1245 = vsel %vm430, %v1149, 0
    %v1248 = vsel %vm430, %v1150, 0
    %1250 = vmatprep.subr.mxu0 0.0
    %1251 = vmatpush1.msra.mxu0 %v1239
    %1252 = vmatprep.subr.mxu0 0.0
    %1253 = vmatpush1.msra.mxu0 %v1241
    %1254 = vmatprep.subr.mxu0 0.0
    %1255 = vmatpush1.msra.mxu0 0.0
    %1256 = vmatprep.subr.mxu0 0.0
    %1257 = vmatpush1.msra.mxu0 0.0
    %1258 = vmatprep.subr.mxu0 0.0
    %1259 = vmatpush1.msra.mxu0 0.0
    %1260 = vmatprep.subr.mxu0 0.0
    %1261 = vmatpush1.msra.mxu0 0.0
    %1262 = vmatprep.subr.mxu0 0.0
    %1263 = vmatpush1.msra.mxu0 0.0
    %1264 = vmatprep.subr.mxu0 0.0
    %1265 = vmatpush1.msra.mxu0 0.0
    %1266 = vmatprep.subr.mxu0 0.0
    %1267 = vmatpush1.msra.mxu0 0.0
    %1268 = vmatprep.subr.mxu0 0.0
    %1269 = vmatpush1.msra.mxu0 0.0
    %1270 = vmatprep.subr.mxu0 0.0
    %1271 = vmatpush1.msra.mxu0 0.0
    %1272 = vmatprep.subr.mxu0 0.0
    %1273 = vmatpush1.msra.mxu0 0.0
    %1274 = vmatprep.subr.mxu0 0.0
    %1275 = vmatpush1.msra.mxu0 0.0
    %1276 = vmatprep.subr.mxu0 0.0
    %1277 = vmatpush1.msra.mxu0 0.0
    %1278 = vmatprep.subr.mxu0 0.0
    %1279 = vmatpush1.msra.mxu0 0.0
    %1280 = vmatprep.subr.mxu0 0.0
    %1281 = vmatpush1.msra.mxu0 0.0
    %1282 = vmatprep.subr.mxu0 0.0
    %1283 = vmatpush1.msra.mxu0 0.0
    %1284 = vmatprep.subr.mxu0 0.0
    %1285 = vmatpush1.msra.mxu0 0.0
    %1286 = vmatprep.subr.mxu0 0.0
    %1287 = vmatpush1.msra.mxu0 0.0
    %1288 = vmatprep.subr.mxu0 0.0
    %1289 = vmatpush1.msra.mxu0 0.0
    %1290 = vmatprep.subr.mxu0 0.0
    %1291 = vmatpush1.msra.mxu0 0.0
    %1292 = vmatprep.subr.mxu0 0.0
    %1293 = vmatpush1.msra.mxu0 0.0
    %1294 = vmatprep.subr.mxu0 0.0
    %1295 = vmatpush1.msra.mxu0 0.0
    %1296 = vmatprep.subr.mxu0 0.0
    %1297 = vmatpush1.msra.mxu0 0.0
    %1298 = vmatprep.subr.mxu0 0.0
    %1299 = vmatpush1.msra.mxu0 0.0
    %1300 = vmatprep.subr.mxu0 0.0
    %1301 = vmatpush1.msra.mxu0 0.0
    %1302 = vmatprep.subr.mxu0 0.0
    %1303 = vmatpush1.msra.mxu0 0.0
    %1304 = vmatprep.subr.mxu0 0.0
    %1305 = vmatpush1.msra.mxu0 0.0
    %1306 = vmatprep.subr.mxu0 0.0
    %1307 = vmatpush1.msra.mxu0 0.0
    %1308 = vmatprep.subr.mxu0 0.0
    %1309 = vmatpush1.msra.mxu0 0.0
    %1310 = vmatprep.subr.mxu0 0.0
    %1311 = vmatpush1.msra.mxu0 0.0
    %1312 = vmatprep.subr.mxu0 0.0
    %1313 = vmatpush1.msra.mxu0 0.0
    %1314 = vmatprep.mubr.f32.mxu0 0.0
    %1315 = vmatmul.mubr.f32.gmra.mrb[0].mxu0 %v1245
    %v1316 = vpop.f32.mrb[0].mxu0
    %v1317 = vadd.f32 0.0, %v1316
    %v1318 = vpop.f32.mrb[0].mxu0
    %1319 = vmatprep.mubr.f32.mxu0 0.0
    %1320 = vmatmul.mubr.f32.gmra.mrb[0].mxu0 %v1248
    %v1321 = vpop.f32.mrb[0].mxu0
    %v1322 = vadd.f32 0.0, %v1321
    %v1323 = vpop.f32.mrb[0].mxu0
    %1324 = vdwg.mxu0
    %1325 = vrot.lane.b32.xlu0 %v510, 120
    %v1326 = vpop.permute.xlu0 %1325
    %1327 = vrot.lane.b32.xlu0 %v515, 120
    %v1328 = vpop.permute.xlu0 %1327
    %1329 = vrot.lane.b32.xlu0 %v510, 104
    %v1330 = vpop.permute.xlu0 %1329
    %1331 = vrot.lane.b32.xlu0 %v515, 104
    %v1332 = vpop.permute.xlu0 %1331
    %v1333 = vsel %vm534, %v1326, 0
    %v1335 = vsel %vm534, %v1328, 0
    %v1337 = vsel %vm534, %v1330, 0
    %v1339 = vsel %vm534, %v1332, 0
    %1341 = vmatprep.subr.mxu0 0.0
    %1342 = vmatpush1.xpose.msra.mxu0 %v1337
    %1343 = vmatprep.subr.mxu0 0.0
    %1344 = vmatpush1.xpose.msra.mxu0 %v1339
    %1345 = vmatprep.subr.mxu0 0.0
    %1346 = vmatpush1.xpose.msra.mxu0 0.0
    %1347 = vmatprep.subr.mxu0 0.0
    %1348 = vmatpush1.xpose.msra.mxu0 0.0
    %1349 = vmatprep.subr.mxu0 0.0
    %1350 = vmatpush1.xpose.msra.mxu0 0.0
    %1351 = vmatprep.subr.mxu0 0.0
    %1352 = vmatpush1.xpose.msra.mxu0 0.0
    %1353 = vmatprep.subr.mxu0 0.0
    %1354 = vmatpush1.xpose.msra.mxu0 0.0
    %1355 = vmatprep.subr.mxu0 0.0
    %1356 = vmatpush1.xpose.msra.mxu0 0.0
    %1357 = vmatprep.subr.mxu0 0.0
    %1358 = vmatpush1.xpose.msra.mxu0 0.0
    %1359 = vmatprep.subr.mxu0 0.0
    %1360 = vmatpush1.xpose.msra.mxu0 0.0
    %1361 = vmatprep.subr.mxu0 0.0
    %1362 = vmatpush1.xpose.msra.mxu0 0.0
    %1363 = vmatprep.subr.mxu0 0.0
    %1364 = vmatpush1.xpose.msra.mxu0 0.0
    %1365 = vmatprep.subr.mxu0 0.0
    %1366 = vmatpush1.xpose.msra.mxu0 0.0
    %1367 = vmatprep.subr.mxu0 0.0
    %1368 = vmatpush1.xpose.msra.mxu0 0.0
    %1369 = vmatprep.subr.mxu0 0.0
    %1370 = vmatpush1.xpose.msra.mxu0 0.0
    %1371 = vmatprep.subr.mxu0 0.0
    %1372 = vmatpush1.xpose.msra.mxu0 0.0
    %1373 = vmatprep.subr.mxu0 0.0
    %1374 = vmatpush1.xpose.msra.mxu0 0.0
    %1375 = vmatprep.subr.mxu0 0.0
    %1376 = vmatpush1.xpose.msra.mxu0 0.0
    %1377 = vmatprep.subr.mxu0 0.0
    %1378 = vmatpush1.xpose.msra.mxu0 0.0
    %1379 = vmatprep.subr.mxu0 0.0
    %1380 = vmatpush1.xpose.msra.mxu0 0.0
    %1381 = vmatprep.subr.mxu0 0.0
    %1382 = vmatpush1.xpose.msra.mxu0 0.0
    %1383 = vmatprep.subr.mxu0 0.0
    %1384 = vmatpush1.xpose.msra.mxu0 0.0
    %1385 = vmatprep.subr.mxu0 0.0
    %1386 = vmatpush1.xpose.msra.mxu0 0.0
    %1387 = vmatprep.subr.mxu0 0.0
    %1388 = vmatpush1.xpose.msra.mxu0 0.0
    %1389 = vmatprep.subr.mxu0 0.0
    %1390 = vmatpush1.xpose.msra.mxu0 0.0
    %1391 = vmatprep.subr.mxu0 0.0
    %1392 = vmatpush1.xpose.msra.mxu0 0.0
    %1393 = vmatprep.subr.mxu0 0.0
    %1394 = vmatpush1.xpose.msra.mxu0 0.0
    %1395 = vmatprep.subr.mxu0 0.0
    %1396 = vmatpush1.xpose.msra.mxu0 0.0
    %1397 = vmatprep.subr.mxu0 0.0
    %1398 = vmatpush1.xpose.msra.mxu0 0.0
    %1399 = vmatprep.subr.mxu0 0.0
    %1400 = vmatpush1.xpose.msra.mxu0 0.0
    %1401 = vmatprep.subr.mxu0 0.0
    %1402 = vmatpush1.xpose.msra.mxu0 0.0
    %1403 = vmatprep.subr.mxu0 0.0
    %1404 = vmatpush1.xpose.msra.mxu0 0.0
    %1405 = vmatprep.mubr.f32.mxu0 0.0
    %1406 = vmatmul.mubr.f32.gmra.mrb[0].mxu0 %v1333
    %v1407 = vpop.f32.mrb[0].mxu0
    %v1408 = vadd.f32 0.0, %v1407
    %v1409 = vpop.f32.mrb[0].mxu0
    %1410 = vmatprep.mubr.f32.mxu0 0.0
    %1411 = vmatmul.mubr.f32.gmra.mrb[0].mxu0 %v1335
    %v1412 = vpop.f32.mrb[0].mxu0
    %v1413 = vadd.f32 0.0, %v1412
    %v1414 = vpop.f32.mrb[0].mxu0
    %1415 = vdwg.mxu0
    %1416 = vrot.lane.b32.xlu0 %v520, 120
    %v1417 = vpop.permute.xlu0 %1416
    %1418 = vrot.lane.b32.xlu0 %v525, 120
    %v1419 = vpop.permute.xlu0 %1418
    %1420 = vrot.lane.b32.xlu0 %v520, 104
    %v1421 = vpop.permute.xlu0 %1420
    %1422 = vrot.lane.b32.xlu0 %v525, 104
    %v1423 = vpop.permute.xlu0 %1422
    %v1424 = vsel %vm534, %v1417, 0
    %v1426 = vsel %vm534, %v1419, 0
    %v1428 = vsel %vm534, %v1421, 0
    %v1430 = vsel %vm534, %v1423, 0
    %1432 = vmatprep.subr.mxu0 0.0
    %1433 = vmatpush1.xpose.msra.mxu0 %v1428
    %1434 = vmatprep.subr.mxu0 0.0
    %1435 = vmatpush1.xpose.msra.mxu0 %v1430
    %1436 = vmatprep.subr.mxu0 0.0
    %1437 = vmatpush1.xpose.msra.mxu0 0.0
    %1438 = vmatprep.subr.mxu0 0.0
    %1439 = vmatpush1.xpose.msra.mxu0 0.0
    %1440 = vmatprep.subr.mxu0 0.0
    %1441 = vmatpush1.xpose.msra.mxu0 0.0
    %1442 = vmatprep.subr.mxu0 0.0
    %1443 = vmatpush1.xpose.msra.mxu0 0.0
    %1444 = vmatprep.subr.mxu0 0.0
    %1445 = vmatpush1.xpose.msra.mxu0 0.0
    %1446 = vmatprep.subr.mxu0 0.0
    %1447 = vmatpush1.xpose.msra.mxu0 0.0
    %1448 = vmatprep.subr.mxu0 0.0
    %1449 = vmatpush1.xpose.msra.mxu0 0.0
    %1450 = vmatprep.subr.mxu0 0.0
    %1451 = vmatpush1.xpose.msra.mxu0 0.0
    %1452 = vmatprep.subr.mxu0 0.0
    %1453 = vmatpush1.xpose.msra.mxu0 0.0
    %1454 = vmatprep.subr.mxu0 0.0
    %1455 = vmatpush1.xpose.msra.mxu0 0.0
    %1456 = vmatprep.subr.mxu0 0.0
    %1457 = vmatpush1.xpose.msra.mxu0 0.0
    %1458 = vmatprep.subr.mxu0 0.0
    %1459 = vmatpush1.xpose.msra.mxu0 0.0
    %1460 = vmatprep.subr.mxu0 0.0
    %1461 = vmatpush1.xpose.msra.mxu0 0.0
    %1462 = vmatprep.subr.mxu0 0.0
    %1463 = vmatpush1.xpose.msra.mxu0 0.0
    %1464 = vmatprep.subr.mxu0 0.0
    %1465 = vmatpush1.xpose.msra.mxu0 0.0
    %1466 = vmatprep.subr.mxu0 0.0
    %1467 = vmatpush1.xpose.msra.mxu0 0.0
    %1468 = vmatprep.subr.mxu0 0.0
    %1469 = vmatpush1.xpose.msra.mxu0 0.0
    %1470 = vmatprep.subr.mxu0 0.0
    %1471 = vmatpush1.xpose.msra.mxu0 0.0
    %1472 = vmatprep.subr.mxu0 0.0
    %1473 = vmatpush1.xpose.msra.mxu0 0.0
    %1474 = vmatprep.subr.mxu0 0.0
    %1475 = vmatpush1.xpose.msra.mxu0 0.0
    %1476 = vmatprep.subr.mxu0 0.0
    %1477 = vmatpush1.xpose.msra.mxu0 0.0
    %1478 = vmatprep.subr.mxu0 0.0
    %1479 = vmatpush1.xpose.msra.mxu0 0.0
    %1480 = vmatprep.subr.mxu0 0.0
    %1481 = vmatpush1.xpose.msra.mxu0 0.0
    %1482 = vmatprep.subr.mxu0 0.0
    %1483 = vmatpush1.xpose.msra.mxu0 0.0
    %1484 = vmatprep.subr.mxu0 0.0
    %1485 = vmatpush1.xpose.msra.mxu0 0.0
    %1486 = vmatprep.subr.mxu0 0.0
    %1487 = vmatpush1.xpose.msra.mxu0 0.0
    %1488 = vmatprep.subr.mxu0 0.0
    %1489 = vmatpush1.xpose.msra.mxu0 0.0
    %1490 = vmatprep.subr.mxu0 0.0
    %1491 = vmatpush1.xpose.msra.mxu0 0.0
    %1492 = vmatprep.subr.mxu0 0.0
    %1493 = vmatpush1.xpose.msra.mxu0 0.0
    %1494 = vmatprep.subr.mxu0 0.0
    %1495 = vmatpush1.xpose.msra.mxu0 0.0
    %1496 = vmatprep.mubr.f32.mxu0 0.0
    %1497 = vmatmul.mubr.f32.gmra.mrb[0].mxu0 %v1424
    %v1498 = vpop.f32.mrb[0].mxu0
    %v1499 = vadd.f32 0.0, %v1498
    %v1500 = vpop.f32.mrb[0].mxu0
    %1501 = vmatprep.mubr.f32.mxu0 0.0
    %1502 = vmatmul.mubr.f32.gmra.mrb[0].mxu0 %v1426
    %v1503 = vpop.f32.mrb[0].mxu0
    %v1504 = vadd.f32 0.0, %v1503
    %v1505 = vpop.f32.mrb[0].mxu0
    %1506 = vdwg.mxu0
    %v1507 = vsel %vm430, %v1408, -inf
    %1508 = vmax.xlane.f32.xlu0 %v1507
    %v1509 = vpop.xlane.xlu0 %1508
    %v1510 = vsel %vm430, %v1413, -inf
    %1511 = vmax.xlane.f32.xlu0 %v1510
    %v1512 = vpop.xlane.xlu0 %1511
    %v1513 = vsel %vm430, %v1499, -inf
    %1514 = vmax.xlane.f32.xlu0 %v1513
    %v1515 = vpop.xlane.xlu0 %1514
    %v1516 = vsel %vm430, %v1504, -inf
    %1517 = vmax.xlane.f32.xlu0 %v1516
    %v1518 = vpop.xlane.xlu0 %1517
    %v1519 = vsub.f32 %v1408, %v1509
    %v1520 = vsub.f32 %v1413, %v1512
    %v1521 = vsub.f32 %v1499, %v1515
    %v1522 = vsub.f32 %v1504, %v1518
    %v1523 = vmul.f32 %v1519, 1.442695
    %v1524 = vpow.pop %v1523
    %v1525 = vmul.f32 %v1520, 1.442695
    %v1526 = vpow.pop %v1525
    %v1527 = vmul.f32 %v1521, 1.442695
    %v1528 = vpow.pop %v1527
    %v1529 = vmul.f32 %v1522, 1.442695
    %v1530 = vpow.pop %v1529
    %v1531 = vsel %vm430, %v1524, 0.0
    %1532 = vadd.xlane.f32.xlu0 %v1531
    %v1533 = vpop.xlane.xlu0 %1532
    %v1534 = vsel %vm430, %v1526, 0.0
    %1535 = vadd.xlane.f32.xlu0 %v1534
    %v1536 = vpop.xlane.xlu0 %1535
    %v1537 = vsel %vm430, %v1528, 0.0
    %1538 = vadd.xlane.f32.xlu0 %v1537
    %v1539 = vpop.xlane.xlu0 %1538
    %v1540 = vsel %vm430, %v1530, 0.0
    %1541 = vadd.xlane.f32.xlu0 %v1540
    %v1542 = vpop.xlane.xlu0 %1541
    %v1543 = vrcp.pop %v1533
    %v1544 = vrcp.pop %v1536
    %v1545 = vrcp.pop %v1539
    %v1546 = vrcp.pop %v1542
    %v1547 = vmul.f32 %v1524, %v1543
    %v1548 = vmul.f32 %v1526, %v1544
    %v1549 = vmul.f32 %v1528, %v1545
    %v1550 = vmul.f32 %v1530, %v1546
    %1551 = vrot.lane.b32.xlu0 %v510, 88
    %v1552 = vpop.permute.xlu0 %1551
    %1553 = vrot.lane.b32.xlu0 %v515, 88
    %v1554 = vpop.permute.xlu0 %1553
    %v1558 = vsel %vm430, %v1547, 0
    %v1561 = vsel %vm430, %v1548, 0
    %1563 = vmatprep.subr.mxu0 0.0
    %1564 = vmatpush1.msra.mxu0 %v1552
    %1565 = vmatprep.subr.mxu0 0.0
    %1566 = vmatpush1.msra.mxu0 %v1554
    %1567 = vmatprep.subr.mxu0 0.0
    %1568 = vmatpush1.msra.mxu0 0.0
    %1569 = vmatprep.subr.mxu0 0.0
    %1570 = vmatpush1.msra.mxu0 0.0
    %1571 = vmatprep.subr.mxu0 0.0
    %1572 = vmatpush1.msra.mxu0 0.0
    %1573 = vmatprep.subr.mxu0 0.0
    %1574 = vmatpush1.msra.mxu0 0.0
    %1575 = vmatprep.subr.mxu0 0.0
    %1576 = vmatpush1.msra.mxu0 0.0
    %1577 = vmatprep.subr.mxu0 0.0
    %1578 = vmatpush1.msra.mxu0 0.0
    %1579 = vmatprep.subr.mxu0 0.0
    %1580 = vmatpush1.msra.mxu0 0.0
    %1581 = vmatprep.subr.mxu0 0.0
    %1582 = vmatpush1.msra.mxu0 0.0
    %1583 = vmatprep.subr.mxu0 0.0
    %1584 = vmatpush1.msra.mxu0 0.0
    %1585 = vmatprep.subr.mxu0 0.0
    %1586 = vmatpush1.msra.mxu0 0.0
    %1587 = vmatprep.subr.mxu0 0.0
    %1588 = vmatpush1.msra.mxu0 0.0
    %1589 = vmatprep.subr.mxu0 0.0
    %1590 = vmatpush1.msra.mxu0 0.0
    %1591 = vmatprep.subr.mxu0 0.0
    %1592 = vmatpush1.msra.mxu0 0.0
    %1593 = vmatprep.subr.mxu0 0.0
    %1594 = vmatpush1.msra.mxu0 0.0
    %1595 = vmatprep.subr.mxu0 0.0
    %1596 = vmatpush1.msra.mxu0 0.0
    %1597 = vmatprep.subr.mxu0 0.0
    %1598 = vmatpush1.msra.mxu0 0.0
    %1599 = vmatprep.subr.mxu0 0.0
    %1600 = vmatpush1.msra.mxu0 0.0
    %1601 = vmatprep.subr.mxu0 0.0
    %1602 = vmatpush1.msra.mxu0 0.0
    %1603 = vmatprep.subr.mxu0 0.0
    %1604 = vmatpush1.msra.mxu0 0.0
    %1605 = vmatprep.subr.mxu0 0.0
    %1606 = vmatpush1.msra.mxu0 0.0
    %1607 = vmatprep.subr.mxu0 0.0
    %1608 = vmatpush1.msra.mxu0 0.0
    %1609 = vmatprep.subr.mxu0 0.0
    %1610 = vmatpush1.msra.mxu0 0.0
    %1611 = vmatprep.subr.mxu0 0.0
    %1612 = vmatpush1.msra.mxu0 0.0
    %1613 = vmatprep.subr.mxu0 0.0
    %1614 = vmatpush1.msra.mxu0 0.0
    %1615 = vmatprep.subr.mxu0 0.0
    %1616 = vmatpush1.msra.mxu0 0.0
    %1617 = vmatprep.subr.mxu0 0.0
    %1618 = vmatpush1.msra.mxu0 0.0
    %1619 = vmatprep.subr.mxu0 0.0
    %1620 = vmatpush1.msra.mxu0 0.0
    %1621 = vmatprep.subr.mxu0 0.0
    %1622 = vmatpush1.msra.mxu0 0.0
    %1623 = vmatprep.subr.mxu0 0.0
    %1624 = vmatpush1.msra.mxu0 0.0
    %1625 = vmatprep.subr.mxu0 0.0
    %1626 = vmatpush1.msra.mxu0 0.0
    %1627 = vmatprep.mubr.f32.mxu0 0.0
    %1628 = vmatmul.mubr.f32.gmra.mrb[0].mxu0 %v1558
    %v1629 = vpop.f32.mrb[0].mxu0
    %v1630 = vadd.f32 0.0, %v1629
    %v1631 = vpop.f32.mrb[0].mxu0
    %1632 = vmatprep.mubr.f32.mxu0 0.0
    %1633 = vmatmul.mubr.f32.gmra.mrb[0].mxu0 %v1561
    %v1634 = vpop.f32.mrb[0].mxu0
    %v1635 = vadd.f32 0.0, %v1634
    %v1636 = vpop.f32.mrb[0].mxu0
    %1637 = vdwg.mxu0
    %1638 = vrot.lane.b32.xlu0 %v520, 88
    %v1639 = vpop.permute.xlu0 %1638
    %1640 = vrot.lane.b32.xlu0 %v525, 88
    %v1641 = vpop.permute.xlu0 %1640
    %v1645 = vsel %vm430, %v1549, 0
    %v1648 = vsel %vm430, %v1550, 0
    %1650 = vmatprep.subr.mxu0 0.0
    %1651 = vmatpush1.msra.mxu0 %v1639
    %1652 = vmatprep.subr.mxu0 0.0
    %1653 = vmatpush1.msra.mxu0 %v1641
    %1654 = vmatprep.subr.mxu0 0.0
    %1655 = vmatpush1.msra.mxu0 0.0
    %1656 = vmatprep.subr.mxu0 0.0
    %1657 = vmatpush1.msra.mxu0 0.0
    %1658 = vmatprep.subr.mxu0 0.0
    %1659 = vmatpush1.msra.mxu0 0.0
    %1660 = vmatprep.subr.mxu0 0.0
    %1661 = vmatpush1.msra.mxu0 0.0
    %1662 = vmatprep.subr.mxu0 0.0
    %1663 = vmatpush1.msra.mxu0 0.0
    %1664 = vmatprep.subr.mxu0 0.0
    %1665 = vmatpush1.msra.mxu0 0.0
    %1666 = vmatprep.subr.mxu0 0.0
    %1667 = vmatpush1.msra.mxu0 0.0
    %1668 = vmatprep.subr.mxu0 0.0
    %1669 = vmatpush1.msra.mxu0 0.0
    %1670 = vmatprep.subr.mxu0 0.0
    %1671 = vmatpush1.msra.mxu0 0.0
    %1672 = vmatprep.subr.mxu0 0.0
    %1673 = vmatpush1.msra.mxu0 0.0
    %1674 = vmatprep.subr.mxu0 0.0
    %1675 = vmatpush1.msra.mxu0 0.0
    %1676 = vmatprep.subr.mxu0 0.0
    %1677 = vmatpush1.msra.mxu0 0.0
    %1678 = vmatprep.subr.mxu0 0.0
    %1679 = vmatpush1.msra.mxu0 0.0
    %1680 = vmatprep.subr.mxu0 0.0
    %1681 = vmatpush1.msra.mxu0 0.0
    %1682 = vmatprep.subr.mxu0 0.0
    %1683 = vmatpush1.msra.mxu0 0.0
    %1684 = vmatprep.subr.mxu0 0.0
    %1685 = vmatpush1.msra.mxu0 0.0
    %1686 = vmatprep.subr.mxu0 0.0
    %1687 = vmatpush1.msra.mxu0 0.0
    %1688 = vmatprep.subr.mxu0 0.0
    %1689 = vmatpush1.msra.mxu0 0.0
    %1690 = vmatprep.subr.mxu0 0.0
    %1691 = vmatpush1.msra.mxu0 0.0
    %1692 = vmatprep.subr.mxu0 0.0
    %1693 = vmatpush1.msra.mxu0 0.0
    %1694 = vmatprep.subr.mxu0 0.0
    %1695 = vmatpush1.msra.mxu0 0.0
    %1696 = vmatprep.subr.mxu0 0.0
    %1697 = vmatpush1.msra.mxu0 0.0
    %1698 = vmatprep.subr.mxu0 0.0
    %1699 = vmatpush1.msra.mxu0 0.0
    %1700 = vmatprep.subr.mxu0 0.0
    %1701 = vmatpush1.msra.mxu0 0.0
    %1702 = vmatprep.subr.mxu0 0.0
    %1703 = vmatpush1.msra.mxu0 0.0
    %1704 = vmatprep.subr.mxu0 0.0
    %1705 = vmatpush1.msra.mxu0 0.0
    %1706 = vmatprep.subr.mxu0 0.0
    %1707 = vmatpush1.msra.mxu0 0.0
    %1708 = vmatprep.subr.mxu0 0.0
    %1709 = vmatpush1.msra.mxu0 0.0
    %1710 = vmatprep.subr.mxu0 0.0
    %1711 = vmatpush1.msra.mxu0 0.0
    %1712 = vmatprep.subr.mxu0 0.0
    %1713 = vmatpush1.msra.mxu0 0.0
    %1714 = vmatprep.mubr.f32.mxu0 0.0
    %1715 = vmatmul.mubr.f32.gmra.mrb[0].mxu0 %v1645
    %v1716 = vpop.f32.mrb[0].mxu0
    %v1717 = vadd.f32 0.0, %v1716
    %v1718 = vpop.f32.mrb[0].mxu0
    %1719 = vmatprep.mubr.f32.mxu0 0.0
    %1720 = vmatmul.mubr.f32.gmra.mrb[0].mxu0 %v1648
    %v1721 = vpop.f32.mrb[0].mxu0
    %v1722 = vadd.f32 0.0, %v1721
    %v1723 = vpop.f32.mrb[0].mxu0
    %1724 = vdwg.mxu0
    %1725 = vrot.lane.b32.xlu0 %v510, 116
    %v1726 = vpop.permute.xlu0 %1725
    %1727 = vrot.lane.b32.xlu0 %v515, 116
    %v1728 = vpop.permute.xlu0 %1727
    %1729 = vrot.lane.b32.xlu0 %v510, 100
    %v1730 = vpop.permute.xlu0 %1729
    %1731 = vrot.lane.b32.xlu0 %v515, 100
    %v1732 = vpop.permute.xlu0 %1731
    %v1733 = vsel %vm534, %v1726, 0
    %v1735 = vsel %vm534, %v1728, 0
    %v1737 = vsel %vm534, %v1730, 0
    %v1739 = vsel %vm534, %v1732, 0
    %1741 = vmatprep.subr.mxu0 0.0
    %1742 = vmatpush1.xpose.msra.mxu0 %v1737
    %1743 = vmatprep.subr.mxu0 0.0
    %1744 = vmatpush1.xpose.msra.mxu0 %v1739
    %1745 = vmatprep.subr.mxu0 0.0
    %1746 = vmatpush1.xpose.msra.mxu0 0.0
    %1747 = vmatprep.subr.mxu0 0.0
    %1748 = vmatpush1.xpose.msra.mxu0 0.0
    %1749 = vmatprep.subr.mxu0 0.0
    %1750 = vmatpush1.xpose.msra.mxu0 0.0
    %1751 = vmatprep.subr.mxu0 0.0
    %1752 = vmatpush1.xpose.msra.mxu0 0.0
    %1753 = vmatprep.subr.mxu0 0.0
    %1754 = vmatpush1.xpose.msra.mxu0 0.0
    %1755 = vmatprep.subr.mxu0 0.0
    %1756 = vmatpush1.xpose.msra.mxu0 0.0
    %1757 = vmatprep.subr.mxu0 0.0
    %1758 = vmatpush1.xpose.msra.mxu0 0.0
    %1759 = vmatprep.subr.mxu0 0.0
    %1760 = vmatpush1.xpose.msra.mxu0 0.0
    %1761 = vmatprep.subr.mxu0 0.0
    %1762 = vmatpush1.xpose.msra.mxu0 0.0
    %1763 = vmatprep.subr.mxu0 0.0
    %1764 = vmatpush1.xpose.msra.mxu0 0.0
    %1765 = vmatprep.subr.mxu0 0.0
    %1766 = vmatpush1.xpose.msra.mxu0 0.0
    %1767 = vmatprep.subr.mxu0 0.0
    %1768 = vmatpush1.xpose.msra.mxu0 0.0
    %1769 = vmatprep.subr.mxu0 0.0
    %1770 = vmatpush1.xpose.msra.mxu0 0.0
    %1771 = vmatprep.subr.mxu0 0.0
    %1772 = vmatpush1.xpose.msra.mxu0 0.0
    %1773 = vmatprep.subr.mxu0 0.0
    %1774 = vmatpush1.xpose.msra.mxu0 0.0
    %1775 = vmatprep.subr.mxu0 0.0
    %1776 = vmatpush1.xpose.msra.mxu0 0.0
    %1777 = vmatprep.subr.mxu0 0.0
    %1778 = vmatpush1.xpose.msra.mxu0 0.0
    %1779 = vmatprep.subr.mxu0 0.0
    %1780 = vmatpush1.xpose.msra.mxu0 0.0
    %1781 = vmatprep.subr.mxu0 0.0
    %1782 = vmatpush1.xpose.msra.mxu0 0.0
    %1783 = vmatprep.subr.mxu0 0.0
    %1784 = vmatpush1.xpose.msra.mxu0 0.0
    %1785 = vmatprep.subr.mxu0 0.0
    %1786 = vmatpush1.xpose.msra.mxu0 0.0
    %1787 = vmatprep.subr.mxu0 0.0
    %1788 = vmatpush1.xpose.msra.mxu0 0.0
    %1789 = vmatprep.subr.mxu0 0.0
    %1790 = vmatpush1.xpose.msra.mxu0 0.0
    %1791 = vmatprep.subr.mxu0 0.0
    %1792 = vmatpush1.xpose.msra.mxu0 0.0
    %1793 = vmatprep.subr.mxu0 0.0
    %1794 = vmatpush1.xpose.msra.mxu0 0.0
    %1795 = vmatprep.subr.mxu0 0.0
    %1796 = vmatpush1.xpose.msra.mxu0 0.0
    %1797 = vmatprep.subr.mxu0 0.0
    %1798 = vmatpush1.xpose.msra.mxu0 0.0
    %1799 = vmatprep.subr.mxu0 0.0
    %1800 = vmatpush1.xpose.msra.mxu0 0.0
    %1801 = vmatprep.subr.mxu0 0.0
    %1802 = vmatpush1.xpose.msra.mxu0 0.0
    %1803 = vmatprep.subr.mxu0 0.0
    %1804 = vmatpush1.xpose.msra.mxu0 0.0
    %1805 = vmatprep.mubr.f32.mxu0 0.0
    %1806 = vmatmul.mubr.f32.gmra.mrb[0].mxu0 %v1733
    %v1807 = vpop.f32.mrb[0].mxu0
    %v1808 = vadd.f32 0.0, %v1807
    %v1809 = vpop.f32.mrb[0].mxu0
    %1810 = vmatprep.mubr.f32.mxu0 0.0
    %1811 = vmatmul.mubr.f32.gmra.mrb[0].mxu0 %v1735
    %v1812 = vpop.f32.mrb[0].mxu0
    %v1813 = vadd.f32 0.0, %v1812
    %v1814 = vpop.f32.mrb[0].mxu0
    %1815 = vdwg.mxu0
    %1816 = vrot.lane.b32.xlu0 %v520, 116
    %v1817 = vpop.permute.xlu0 %1816
    %1818 = vrot.lane.b32.xlu0 %v525, 116
    %v1819 = vpop.permute.xlu0 %1818
    %1820 = vrot.lane.b32.xlu0 %v520, 100
    %v1821 = vpop.permute.xlu0 %1820
    %1822 = vrot.lane.b32.xlu0 %v525, 100
    %v1823 = vpop.permute.xlu0 %1822
    %v1824 = vsel %vm534, %v1817, 0
    %v1826 = vsel %vm534, %v1819, 0
    %v1828 = vsel %vm534, %v1821, 0
    %v1830 = vsel %vm534, %v1823, 0
    %1832 = vmatprep.subr.mxu0 0.0
    %1833 = vmatpush1.xpose.msra.mxu0 %v1828
    %1834 = vmatprep.subr.mxu0 0.0
    %1835 = vmatpush1.xpose.msra.mxu0 %v1830
    %1836 = vmatprep.subr.mxu0 0.0
    %1837 = vmatpush1.xpose.msra.mxu0 0.0
    %1838 = vmatprep.subr.mxu0 0.0
    %1839 = vmatpush1.xpose.msra.mxu0 0.0
    %1840 = vmatprep.subr.mxu0 0.0
    %1841 = vmatpush1.xpose.msra.mxu0 0.0
    %1842 = vmatprep.subr.mxu0 0.0
    %1843 = vmatpush1.xpose.msra.mxu0 0.0
    %1844 = vmatprep.subr.mxu0 0.0
    %1845 = vmatpush1.xpose.msra.mxu0 0.0
    %1846 = vmatprep.subr.mxu0 0.0
    %1847 = vmatpush1.xpose.msra.mxu0 0.0
    %1848 = vmatprep.subr.mxu0 0.0
    %1849 = vmatpush1.xpose.msra.mxu0 0.0
    %1850 = vmatprep.subr.mxu0 0.0
    %1851 = vmatpush1.xpose.msra.mxu0 0.0
    %1852 = vmatprep.subr.mxu0 0.0
    %1853 = vmatpush1.xpose.msra.mxu0 0.0
    %1854 = vmatprep.subr.mxu0 0.0
    %1855 = vmatpush1.xpose.msra.mxu0 0.0
    %1856 = vmatprep.subr.mxu0 0.0
    %1857 = vmatpush1.xpose.msra.mxu0 0.0
    %1858 = vmatprep.subr.mxu0 0.0
    %1859 = vmatpush1.xpose.msra.mxu0 0.0
    %1860 = vmatprep.subr.mxu0 0.0
    %1861 = vmatpush1.xpose.msra.mxu0 0.0
    %1862 = vmatprep.subr.mxu0 0.0
    %1863 = vmatpush1.xpose.msra.mxu0 0.0
    %1864 = vmatprep.subr.mxu0 0.0
    %1865 = vmatpush1.xpose.msra.mxu0 0.0
    %1866 = vmatprep.subr.mxu0 0.0
    %1867 = vmatpush1.xpose.msra.mxu0 0.0
    %1868 = vmatprep.subr.mxu0 0.0
    %1869 = vmatpush1.xpose.msra.mxu0 0.0
    %1870 = vmatprep.subr.mxu0 0.0
    %1871 = vmatpush1.xpose.msra.mxu0 0.0
    %1872 = vmatprep.subr.mxu0 0.0
    %1873 = vmatpush1.xpose.msra.mxu0 0.0
    %1874 = vmatprep.subr.mxu0 0.0
    %1875 = vmatpush1.xpose.msra.mxu0 0.0
    %1876 = vmatprep.subr.mxu0 0.0
    %1877 = vmatpush1.xpose.msra.mxu0 0.0
    %1878 = vmatprep.subr.mxu0 0.0
    %1879 = vmatpush1.xpose.msra.mxu0 0.0
    %1880 = vmatprep.subr.mxu0 0.0
    %1881 = vmatpush1.xpose.msra.mxu0 0.0
    %1882 = vmatprep.subr.mxu0 0.0
    %1883 = vmatpush1.xpose.msra.mxu0 0.0
    %1884 = vmatprep.subr.mxu0 0.0
    %1885 = vmatpush1.xpose.msra.mxu0 0.0
    %1886 = vmatprep.subr.mxu0 0.0
    %1887 = vmatpush1.xpose.msra.mxu0 0.0
    %1888 = vmatprep.subr.mxu0 0.0
    %1889 = vmatpush1.xpose.msra.mxu0 0.0
    %1890 = vmatprep.subr.mxu0 0.0
    %1891 = vmatpush1.xpose.msra.mxu0 0.0
    %1892 = vmatprep.subr.mxu0 0.0
    %1893 = vmatpush1.xpose.msra.mxu0 0.0
    %1894 = vmatprep.subr.mxu0 0.0
    %1895 = vmatpush1.xpose.msra.mxu0 0.0
    %1896 = vmatprep.mubr.f32.mxu0 0.0
    %1897 = vmatmul.mubr.f32.gmra.mrb[0].mxu0 %v1824
    %v1898 = vpop.f32.mrb[0].mxu0
    %v1899 = vadd.f32 0.0, %v1898
    %v1900 = vpop.f32.mrb[0].mxu0
    %1901 = vmatprep.mubr.f32.mxu0 0.0
    %1902 = vmatmul.mubr.f32.gmra.mrb[0].mxu0 %v1826
    %v1903 = vpop.f32.mrb[0].mxu0
    %v1904 = vadd.f32 0.0, %v1903
    %v1905 = vpop.f32.mrb[0].mxu0
    %1906 = vdwg.mxu0
    %v1907 = vsel %vm430, %v1808, -inf
    %1908 = vmax.xlane.f32.xlu0 %v1907
    %v1909 = vpop.xlane.xlu0 %1908
    %v1910 = vsel %vm430, %v1813, -inf
    %1911 = vmax.xlane.f32.xlu0 %v1910
    %v1912 = vpop.xlane.xlu0 %1911
    %v1913 = vsel %vm430, %v1899, -inf
    %1914 = vmax.xlane.f32.xlu0 %v1913
    %v1915 = vpop.xlane.xlu0 %1914
    %v1916 = vsel %vm430, %v1904, -inf
    %1917 = vmax.xlane.f32.xlu0 %v1916
    %v1918 = vpop.xlane.xlu0 %1917
    %v1919 = vsub.f32 %v1808, %v1909
    %v1920 = vsub.f32 %v1813, %v1912
    %v1921 = vsub.f32 %v1899, %v1915
    %v1922 = vsub.f32 %v1904, %v1918
    %v1923 = vmul.f32 %v1919, 1.442695
    %v1924 = vpow.pop %v1923
    %v1925 = vmul.f32 %v1920, 1.442695
    %v1926 = vpow.pop %v1925
    %v1927 = vmul.f32 %v1921, 1.442695
    %v1928 = vpow.pop %v1927
    %v1929 = vmul.f32 %v1922, 1.442695
    %v1930 = vpow.pop %v1929
    %v1931 = vsel %vm430, %v1924, 0.0
    %1932 = vadd.xlane.f32.xlu0 %v1931
    %v1933 = vpop.xlane.xlu0 %1932
    %v1934 = vsel %vm430, %v1926, 0.0
    %1935 = vadd.xlane.f32.xlu0 %v1934
    %v1936 = vpop.xlane.xlu0 %1935
    %v1937 = vsel %vm430, %v1928, 0.0
    %1938 = vadd.xlane.f32.xlu0 %v1937
    %v1939 = vpop.xlane.xlu0 %1938
    %v1940 = vsel %vm430, %v1930, 0.0
    %1941 = vadd.xlane.f32.xlu0 %v1940
    %v1942 = vpop.xlane.xlu0 %1941
    %v1943 = vrcp.pop %v1933
    %v1944 = vrcp.pop %v1936
    %v1945 = vrcp.pop %v1939
    %v1946 = vrcp.pop %v1942
    %v1947 = vmul.f32 %v1924, %v1943
    %v1948 = vmul.f32 %v1926, %v1944
    %v1949 = vmul.f32 %v1928, %v1945
    %v1950 = vmul.f32 %v1930, %v1946
    %1951 = vrot.lane.b32.xlu0 %v510, 84
    %v1952 = vpop.permute.xlu0 %1951
    %1953 = vrot.lane.b32.xlu0 %v515, 84
    %v1954 = vpop.permute.xlu0 %1953
    %v1958 = vsel %vm430, %v1947, 0
    %v1961 = vsel %vm430, %v1948, 0
    %1963 = vmatprep.subr.mxu0 0.0
    %1964 = vmatpush1.msra.mxu0 %v1952
    %1965 = vmatprep.subr.mxu0 0.0
    %1966 = vmatpush1.msra.mxu0 %v1954
    %1967 = vmatprep.subr.mxu0 0.0
    %1968 = vmatpush1.msra.mxu0 0.0
    %1969 = vmatprep.subr.mxu0 0.0
    %1970 = vmatpush1.msra.mxu0 0.0
    %1971 = vmatprep.subr.mxu0 0.0
    %1972 = vmatpush1.msra.mxu0 0.0
    %1973 = vmatprep.subr.mxu0 0.0
    %1974 = vmatpush1.msra.mxu0 0.0
    %1975 = vmatprep.subr.mxu0 0.0
    %1976 = vmatpush1.msra.mxu0 0.0
    %1977 = vmatprep.subr.mxu0 0.0
    %1978 = vmatpush1.msra.mxu0 0.0
    %1979 = vmatprep.subr.mxu0 0.0
    %1980 = vmatpush1.msra.mxu0 0.0
    %1981 = vmatprep.subr.mxu0 0.0
    %1982 = vmatpush1.msra.mxu0 0.0
    %1983 = vmatprep.subr.mxu0 0.0
    %1984 = vmatpush1.msra.mxu0 0.0
    %1985 = vmatprep.subr.mxu0 0.0
    %1986 = vmatpush1.msra.mxu0 0.0
    %1987 = vmatprep.subr.mxu0 0.0
    %1988 = vmatpush1.msra.mxu0 0.0
    %1989 = vmatprep.subr.mxu0 0.0
    %1990 = vmatpush1.msra.mxu0 0.0
    %1991 = vmatprep.subr.mxu0 0.0
    %1992 = vmatpush1.msra.mxu0 0.0
    %1993 = vmatprep.subr.mxu0 0.0
    %1994 = vmatpush1.msra.mxu0 0.0
    %1995 = vmatprep.subr.mxu0 0.0
    %1996 = vmatpush1.msra.mxu0 0.0
    %1997 = vmatprep.subr.mxu0 0.0
    %1998 = vmatpush1.msra.mxu0 0.0
    %1999 = vmatprep.subr.mxu0 0.0
    %2000 = vmatpush1.msra.mxu0 0.0
    %2001 = vmatprep.subr.mxu0 0.0
    %2002 = vmatpush1.msra.mxu0 0.0
    %2003 = vmatprep.subr.mxu0 0.0
    %2004 = vmatpush1.msra.mxu0 0.0
    %2005 = vmatprep.subr.mxu0 0.0
    %2006 = vmatpush1.msra.mxu0 0.0
    %2007 = vmatprep.subr.mxu0 0.0
    %2008 = vmatpush1.msra.mxu0 0.0
    %2009 = vmatprep.subr.mxu0 0.0
    %2010 = vmatpush1.msra.mxu0 0.0
    %2011 = vmatprep.subr.mxu0 0.0
    %2012 = vmatpush1.msra.mxu0 0.0
    %2013 = vmatprep.subr.mxu0 0.0
    %2014 = vmatpush1.msra.mxu0 0.0
    %2015 = vmatprep.subr.mxu0 0.0
    %2016 = vmatpush1.msra.mxu0 0.0
    %2017 = vmatprep.subr.mxu0 0.0
    %2018 = vmatpush1.msra.mxu0 0.0
    %2019 = vmatprep.subr.mxu0 0.0
    %2020 = vmatpush1.msra.mxu0 0.0
    %2021 = vmatprep.subr.mxu0 0.0
    %2022 = vmatpush1.msra.mxu0 0.0
    %2023 = vmatprep.subr.mxu0 0.0
    %2024 = vmatpush1.msra.mxu0 0.0
    %2025 = vmatprep.subr.mxu0 0.0
    %2026 = vmatpush1.msra.mxu0 0.0
    %2027 = vmatprep.mubr.f32.mxu0 0.0
    %2028 = vmatmul.mubr.f32.gmra.mrb[0].mxu0 %v1958
    %v2029 = vpop.f32.mrb[0].mxu0
    %v2030 = vadd.f32 0.0, %v2029
    %v2031 = vpop.f32.mrb[0].mxu0
    %2032 = vmatprep.mubr.f32.mxu0 0.0
    %2033 = vmatmul.mubr.f32.gmra.mrb[0].mxu0 %v1961
    %v2034 = vpop.f32.mrb[0].mxu0
    %v2035 = vadd.f32 0.0, %v2034
    %v2036 = vpop.f32.mrb[0].mxu0
    %2037 = vdwg.mxu0
    %2038 = vrot.lane.b32.xlu0 %v520, 84
    %v2039 = vpop.permute.xlu0 %2038
    %2040 = vrot.lane.b32.xlu0 %v525, 84
    %v2041 = vpop.permute.xlu0 %2040
    %v2045 = vsel %vm430, %v1949, 0
    %v2048 = vsel %vm430, %v1950, 0
    %2050 = vmatprep.subr.mxu0 0.0
    %2051 = vmatpush1.msra.mxu0 %v2039
    %2052 = vmatprep.subr.mxu0 0.0
    %2053 = vmatpush1.msra.mxu0 %v2041
    %2054 = vmatprep.subr.mxu0 0.0
    %2055 = vmatpush1.msra.mxu0 0.0
    %2056 = vmatprep.subr.mxu0 0.0
    %2057 = vmatpush1.msra.mxu0 0.0
    %2058 = vmatprep.subr.mxu0 0.0
    %2059 = vmatpush1.msra.mxu0 0.0
    %2060 = vmatprep.subr.mxu0 0.0
    %2061 = vmatpush1.msra.mxu0 0.0
    %2062 = vmatprep.subr.mxu0 0.0
    %2063 = vmatpush1.msra.mxu0 0.0
    %2064 = vmatprep.subr.mxu0 0.0
    %2065 = vmatpush1.msra.mxu0 0.0
    %2066 = vmatprep.subr.mxu0 0.0
    %2067 = vmatpush1.msra.mxu0 0.0
    %2068 = vmatprep.subr.mxu0 0.0
    %2069 = vmatpush1.msra.mxu0 0.0
    %2070 = vmatprep.subr.mxu0 0.0
    %2071 = vmatpush1.msra.mxu0 0.0
    %2072 = vmatprep.subr.mxu0 0.0
    %2073 = vmatpush1.msra.mxu0 0.0
    %2074 = vmatprep.subr.mxu0 0.0
    %2075 = vmatpush1.msra.mxu0 0.0
    %2076 = vmatprep.subr.mxu0 0.0
    %2077 = vmatpush1.msra.mxu0 0.0
    %2078 = vmatprep.subr.mxu0 0.0
    %2079 = vmatpush1.msra.mxu0 0.0
    %2080 = vmatprep.subr.mxu0 0.0
    %2081 = vmatpush1.msra.mxu0 0.0
    %2082 = vmatprep.subr.mxu0 0.0
    %2083 = vmatpush1.msra.mxu0 0.0
    %2084 = vmatprep.subr.mxu0 0.0
    %2085 = vmatpush1.msra.mxu0 0.0
    %2086 = vmatprep.subr.mxu0 0.0
    %2087 = vmatpush1.msra.mxu0 0.0
    %2088 = vmatprep.subr.mxu0 0.0
    %2089 = vmatpush1.msra.mxu0 0.0
    %2090 = vmatprep.subr.mxu0 0.0
    %2091 = vmatpush1.msra.mxu0 0.0
    %2092 = vmatprep.subr.mxu0 0.0
    %2093 = vmatpush1.msra.mxu0 0.0
    %2094 = vmatprep.subr.mxu0 0.0
    %2095 = vmatpush1.msra.mxu0 0.0
    %2096 = vmatprep.subr.mxu0 0.0
    %2097 = vmatpush1.msra.mxu0 0.0
    %2098 = vmatprep.subr.mxu0 0.0
    %2099 = vmatpush1.msra.mxu0 0.0
    %2100 = vmatprep.subr.mxu0 0.0
    %2101 = vmatpush1.msra.mxu0 0.0
    %2102 = vmatprep.subr.mxu0 0.0
    %2103 = vmatpush1.msra.mxu0 0.0
    %2104 = vmatprep.subr.mxu0 0.0
    %2105 = vmatpush1.msra.mxu0 0.0
    %2106 = vmatprep.subr.mxu0 0.0
    %2107 = vmatpush1.msra.mxu0 0.0
    %2108 = vmatprep.subr.mxu0 0.0
    %2109 = vmatpush1.msra.mxu0 0.0
    %2110 = vmatprep.subr.mxu0 0.0
    %2111 = vmatpush1.msra.mxu0 0.0
    %2112 = vmatprep.subr.mxu0 0.0
    %2113 = vmatpush1.msra.mxu0 0.0
    %2114 = vmatprep.mubr.f32.mxu0 0.0
    %2115 = vmatmul.mubr.f32.gmra.mrb[0].mxu0 %v2045
    %v2116 = vpop.f32.mrb[0].mxu0
    %v2117 = vadd.f32 0.0, %v2116
    %v2118 = vpop.f32.mrb[0].mxu0
    %2119 = vmatprep.mubr.f32.mxu0 0.0
    %2120 = vmatmul.mubr.f32.gmra.mrb[0].mxu0 %v2048
    %v2121 = vpop.f32.mrb[0].mxu0
    %v2122 = vadd.f32 0.0, %v2121
    %v2123 = vpop.f32.mrb[0].mxu0
    %2124 = vdwg.mxu0
    %2129 = vrot.lane.b32.xlu0 %v1230, 4
    %v2130 = vpop.permute.xlu0 %2129
    %2131 = vrot.lane.b32.xlu0 %v1235, 4
    %v2132 = vpop.permute.xlu0 %2131
    %2133 = vrot.lane.b32.xlu0 %v1317, 4
    %v2134 = vpop.permute.xlu0 %2133
    %2135 = vrot.lane.b32.xlu0 %v1322, 4
    %v2136 = vpop.permute.xlu0 %2135
    %2145 = vrot.lane.b32.xlu0 %v1630, 8
    %v2146 = vpop.permute.xlu0 %2145
    %2147 = vrot.lane.b32.xlu0 %v1635, 8
    %v2148 = vpop.permute.xlu0 %2147
    %2149 = vrot.lane.b32.xlu0 %v1717, 8
    %v2150 = vpop.permute.xlu0 %2149
    %2151 = vrot.lane.b32.xlu0 %v1722, 8
    %v2152 = vpop.permute.xlu0 %2151
    %2161 = vrot.lane.b32.xlu0 %v2030, 12
    %v2162 = vpop.permute.xlu0 %2161
    %2163 = vrot.lane.b32.xlu0 %v2035, 12
    %v2164 = vpop.permute.xlu0 %2163
    %2165 = vrot.lane.b32.xlu0 %v2117, 12
    %v2166 = vpop.permute.xlu0 %2165
    %2167 = vrot.lane.b32.xlu0 %v2122, 12
    %v2168 = vpop.permute.xlu0 %2167
    %v2173 = vsel %vm534, %v830, %v2130
    %v2174 = vsel %vm534, %v835, %v2132
    %v2175 = vsel %vm534, %v917, %v2134
    %v2176 = vsel %vm534, %v922, %v2136
    %vm2177 = vcmask 64512
    %v2178 = vsel %vm2177, %v2173, %v2146
    %v2179 = vsel %vm2177, %v2174, %v2148
    %v2180 = vsel %vm2177, %v2175, %v2150
    %v2181 = vsel %vm2177, %v2176, %v2152
    %vm2182 = vcmask 97280
    %v2183 = vsel %vm2182, %v2178, %v2162
    %v2184 = vsel %vm2182, %v2179, %v2164
    %v2185 = vsel %vm2182, %v2180, %v2166
    %v2186 = vsel %vm2182, %v2181, %v2168
    %v2188 = vlaneseq
    %v2189 = vshrl.u32 %v2188, 7
    %v2190 = vsub.s32 0, %v2189
    %v2191 = vrot.slane %v358, %v2190
    %v2194 = vsel %vm430, %v2183, 0
    %v2197 = vsel %vm430, %v2184, 0
    %v2200 = vsel %vm430, %v2185, 0
    %v2203 = vsel %vm430, %v2186, 0
    %2205 = vmatprep.subr.mxu0 0.0
    %2206 = vmatpush1.msra.mxu0 %v356
    %2207 = vmatprep.subr.mxu0 0.0
    %2208 = vmatpush1.msra.mxu0 %v357
    %2209 = vmatprep.subr.mxu0 0.0
    %2210 = vmatpush1.msra.mxu0 0.0
    %2211 = vmatprep.subr.mxu0 0.0
    %2212 = vmatpush1.msra.mxu0 0.0
    %2213 = vmatprep.subr.mxu0 0.0
    %2214 = vmatpush1.msra.mxu0 0.0
    %2215 = vmatprep.subr.mxu0 0.0
    %2216 = vmatpush1.msra.mxu0 0.0
    %2217 = vmatprep.subr.mxu0 0.0
    %2218 = vmatpush1.msra.mxu0 0.0
    %2219 = vmatprep.subr.mxu0 0.0
    %2220 = vmatpush1.msra.mxu0 0.0
    %2221 = vmatprep.subr.mxu0 0.0
    %2222 = vmatpush1.msra.mxu0 0.0
    %2223 = vmatprep.subr.mxu0 0.0
    %2224 = vmatpush1.msra.mxu0 0.0
    %2225 = vmatprep.subr.mxu0 0.0
    %2226 = vmatpush1.msra.mxu0 0.0
    %2227 = vmatprep.subr.mxu0 0.0
    %2228 = vmatpush1.msra.mxu0 0.0
    %2229 = vmatprep.subr.mxu0 0.0
    %2230 = vmatpush1.msra.mxu0 0.0
    %2231 = vmatprep.subr.mxu0 0.0
    %2232 = vmatpush1.msra.mxu0 0.0
    %2233 = vmatprep.subr.mxu0 0.0
    %2234 = vmatpush1.msra.mxu0 0.0
    %2235 = vmatprep.subr.mxu0 0.0
    %2236 = vmatpush1.msra.mxu0 0.0
    %2237 = vmatprep.subr.mxu0 0.0
    %2238 = vmatpush1.msra.mxu0 0.0
    %2239 = vmatprep.subr.mxu0 0.0
    %2240 = vmatpush1.msra.mxu0 0.0
    %2241 = vmatprep.subr.mxu0 0.0
    %2242 = vmatpush1.msra.mxu0 0.0
    %2243 = vmatprep.subr.mxu0 0.0
    %2244 = vmatpush1.msra.mxu0 0.0
    %2245 = vmatprep.subr.mxu0 0.0
    %2246 = vmatpush1.msra.mxu0 0.0
    %2247 = vmatprep.subr.mxu0 0.0
    %2248 = vmatpush1.msra.mxu0 0.0
    %2249 = vmatprep.subr.mxu0 0.0
    %2250 = vmatpush1.msra.mxu0 0.0
    %2251 = vmatprep.subr.mxu0 0.0
    %2252 = vmatpush1.msra.mxu0 0.0
    %2253 = vmatprep.subr.mxu0 0.0
    %2254 = vmatpush1.msra.mxu0 0.0
    %2255 = vmatprep.subr.mxu0 0.0
    %2256 = vmatpush1.msra.mxu0 0.0
    %2257 = vmatprep.subr.mxu0 0.0
    %2258 = vmatpush1.msra.mxu0 0.0
    %2259 = vmatprep.subr.mxu0 0.0
    %2260 = vmatpush1.msra.mxu0 0.0
    %2261 = vmatprep.subr.mxu0 0.0
    %2262 = vmatpush1.msra.mxu0 0.0
    %2263 = vmatprep.subr.mxu0 0.0
    %2264 = vmatpush1.msra.mxu0 0.0
    %2265 = vmatprep.subr.mxu0 0.0
    %2266 = vmatpush1.msra.mxu0 0.0
    %2267 = vmatprep.subr.mxu0 0.0
    %2268 = vmatpush1.msra.mxu0 0.0
    %2269 = vmatprep.mubr.f32.mxu0 0.0
    %2270 = vmatmul.mubr.f32.gmra.mrb[0].mxu0 %v2194
    %v2271 = vpop.f32.mrb[0].mxu0
    %v2272 = vadd.f32 %v2191, %v2271
    %v2273 = vpop.f32.mrb[0].mxu0
    %2274 = vmatprep.mubr.f32.mxu0 0.0
    %2275 = vmatmul.mubr.f32.gmra.mrb[0].mxu0 %v2197
    %v2276 = vpop.f32.mrb[0].mxu0
    %v2277 = vadd.f32 %v2191, %v2276
    %v2278 = vpop.f32.mrb[0].mxu0
    %2279 = vmatprep.mubr.f32.mxu0 0.0
    %2280 = vmatmul.mubr.f32.gmra.mrb[0].mxu0 %v2200
    %v2281 = vpop.f32.mrb[0].mxu0
    %v2282 = vadd.f32 %v2191, %v2281
    %v2283 = vpop.f32.mrb[0].mxu0
    %2284 = vmatprep.mubr.f32.mxu0 0.0
    %2285 = vmatmul.mubr.f32.gmra.mrb[0].mxu0 %v2203
    %v2286 = vpop.f32.mrb[0].mxu0
    %v2287 = vadd.f32 %v2191, %v2286
    %v2288 = vpop.f32.mrb[0].mxu0
    %2289 = vdwg.mxu0
    %v2290 = vadd.f32 %v349, %v2272
    %v2291 = vadd.f32 %v350, %v2277
    %v2292 = vadd.f32 %v351, %v2282
    %v2293 = vadd.f32 %v352, %v2287
    %v2294 = vsel %vm430, %v2290, 0.0
    %2295 = vadd.xlane.f32.xlu0 %v2294
    %v2296 = vpop.xlane.xlu0 %2295
    %v2297 = vsel %vm430, %v2291, 0.0
    %2298 = vadd.xlane.f32.xlu0 %v2297
    %v2299 = vpop.xlane.xlu0 %2298
    %v2300 = vsel %vm430, %v2292, 0.0
    %2301 = vadd.xlane.f32.xlu0 %v2300
    %v2302 = vpop.xlane.xlu0 %2301
    %v2303 = vsel %vm430, %v2293, 0.0
    %2304 = vadd.xlane.f32.xlu0 %v2303
    %v2305 = vpop.xlane.xlu0 %2304
    %v2306 = vrcp.pop 16.0
    %v2307 = vmul.f32 %v2296, %v2306
    %v2308 = vmul.f32 %v2299, %v2306
    %v2309 = vmul.f32 %v2302, %v2306
    %v2310 = vmul.f32 %v2305, %v2306
    %v2311 = vsub.f32 %v2290, %v2307
    %v2312 = vsub.f32 %v2291, %v2308
    %v2313 = vsub.f32 %v2292, %v2309
    %v2314 = vsub.f32 %v2293, %v2310
    %v2315 = vmul.f32 %v2311, %v2311
    %v2316 = vmul.f32 %v2312, %v2312
    %v2317 = vmul.f32 %v2313, %v2313
    %v2318 = vmul.f32 %v2314, %v2314
    %v2319 = vsel %vm430, %v2315, 0.0
    %2320 = vadd.xlane.f32.xlu0 %v2319
    %v2321 = vpop.xlane.xlu0 %2320
    %v2322 = vsel %vm430, %v2316, 0.0
    %2323 = vadd.xlane.f32.xlu0 %v2322
    %v2324 = vpop.xlane.xlu0 %2323
    %v2325 = vsel %vm430, %v2317, 0.0
    %2326 = vadd.xlane.f32.xlu0 %v2325
    %v2327 = vpop.xlane.xlu0 %2326
    %v2328 = vsel %vm430, %v2318, 0.0
    %2329 = vadd.xlane.f32.xlu0 %v2328
    %v2330 = vpop.xlane.xlu0 %2329
    %v2331 = vmul.f32 %v2321, %v2306
    %v2332 = vmul.f32 %v2324, %v2306
    %v2333 = vmul.f32 %v2327, %v2306
    %v2334 = vmul.f32 %v2330, %v2306
    %v2335 = vadd.f32 %v2331, 1e-05
    %v2336 = vadd.f32 %v2332, 1e-05
    %v2337 = vadd.f32 %v2333, 1e-05
    %v2338 = vadd.f32 %v2334, 1e-05
    %v2339 = vrsqrt.pop %v2335
    %v2340 = vrsqrt.pop %v2336
    %v2341 = vrsqrt.pop %v2337
    %v2342 = vrsqrt.pop %v2338
    %v2343 = vmul.f32 %v2311, %v2339
    %v2344 = vmul.f32 %v2312, %v2340
    %v2345 = vmul.f32 %v2313, %v2341
    %v2346 = vmul.f32 %v2314, %v2342
    %v2348 = vlaneseq
    %v2349 = vshrl.u32 %v2348, 7
    %v2350 = vsub.s32 0, %v2349
    %v2351 = vrot.slane %v359, %v2350
    %v2353 = vmul.f32 %v2343, %v2351
    %v2354 = vmul.f32 %v2344, %v2351
    %v2355 = vmul.f32 %v2345, %v2351
    %v2356 = vmul.f32 %v2346, %v2351
    %v2358 = vlaneseq
    %v2359 = vshrl.u32 %v2358, 7
    %v2360 = vsub.s32 0, %v2359
    %v2361 = vrot.slane %v360, %v2360
    %v2363 = vadd.f32 %v2353, %v2361
    %v2364 = vadd.f32 %v2354, %v2361
    %v2365 = vadd.f32 %v2355, %v2361
    %v2366 = vadd.f32 %v2356, %v2361
    %v2368 = vlaneseq
    %v2369 = vshrl.u32 %v2368, 7
    %v2370 = vsub.s32 0, %v2369
    %v2371 = vrot.slane %v363, %v2370
    %v2374 = vsel %vm430, %v2363, 0
    %v2377 = vsel %vm430, %v2364, 0
    %v2380 = vsel %vm430, %v2365, 0
    %v2383 = vsel %vm430, %v2366, 0
    %2385 = vmatprep.subr.mxu0 0.0
    %2386 = vmatpush1.msra.mxu0 %v361
    %2387 = vmatprep.subr.mxu0 0.0
    %2388 = vmatpush1.msra.mxu0 %v362
    %2389 = vmatprep.subr.mxu0 0.0
    %2390 = vmatpush1.msra.mxu0 0.0
    %2391 = vmatprep.subr.mxu0 0.0
    %2392 = vmatpush1.msra.mxu0 0.0
    %2393 = vmatprep.subr.mxu0 0.0
    %2394 = vmatpush1.msra.mxu0 0.0
    %2395 = vmatprep.subr.mxu0 0.0
    %2396 = vmatpush1.msra.mxu0 0.0
    %2397 = vmatprep.subr.mxu0 0.0
    %2398 = vmatpush1.msra.mxu0 0.0
    %2399 = vmatprep.subr.mxu0 0.0
    %2400 = vmatpush1.msra.mxu0 0.0
    %2401 = vmatprep.subr.mxu0 0.0
    %2402 = vmatpush1.msra.mxu0 0.0
    %2403 = vmatprep.subr.mxu0 0.0
    %2404 = vmatpush1.msra.mxu0 0.0
    %2405 = vmatprep.subr.mxu0 0.0
    %2406 = vmatpush1.msra.mxu0 0.0
    %2407 = vmatprep.subr.mxu0 0.0
    %2408 = vmatpush1.msra.mxu0 0.0
    %2409 = vmatprep.subr.mxu0 0.0
    %2410 = vmatpush1.msra.mxu0 0.0
    %2411 = vmatprep.subr.mxu0 0.0
    %2412 = vmatpush1.msra.mxu0 0.0
    %2413 = vmatprep.subr.mxu0 0.0
    %2414 = vmatpush1.msra.mxu0 0.0
    %2415 = vmatprep.subr.mxu0 0.0
    %2416 = vmatpush1.msra.mxu0 0.0
    %2417 = vmatprep.subr.mxu0 0.0
    %2418 = vmatpush1.msra.mxu0 0.0
    %2419 = vmatprep.subr.mxu0 0.0
    %2420 = vmatpush1.msra.mxu0 0.0
    %2421 = vmatprep.subr.mxu0 0.0
    %2422 = vmatpush1.msra.mxu0 0.0
    %2423 = vmatprep.subr.mxu0 0.0
    %2424 = vmatpush1.msra.mxu0 0.0
    %2425 = vmatprep.subr.mxu0 0.0
    %2426 = vmatpush1.msra.mxu0 0.0
    %2427 = vmatprep.subr.mxu0 0.0
    %2428 = vmatpush1.msra.mxu0 0.0
    %2429 = vmatprep.subr.mxu0 0.0
    %2430 = vmatpush1.msra.mxu0 0.0
    %2431 = vmatprep.subr.mxu0 0.0
    %2432 = vmatpush1.msra.mxu0 0.0
    %2433 = vmatprep.subr.mxu0 0.0
    %2434 = vmatpush1.msra.mxu0 0.0
    %2435 = vmatprep.subr.mxu0 0.0
    %2436 = vmatpush1.msra.mxu0 0.0
    %2437 = vmatprep.subr.mxu0 0.0
    %2438 = vmatpush1.msra.mxu0 0.0
    %2439 = vmatprep.subr.mxu0 0.0
    %2440 = vmatpush1.msra.mxu0 0.0
    %2441 = vmatprep.subr.mxu0 0.0
    %2442 = vmatpush1.msra.mxu0 0.0
    %2443 = vmatprep.subr.mxu0 0.0
    %2444 = vmatpush1.msra.mxu0 0.0
    %2445 = vmatprep.subr.mxu0 0.0
    %2446 = vmatpush1.msra.mxu0 0.0
    %2447 = vmatprep.subr.mxu0 0.0
    %2448 = vmatpush1.msra.mxu0 0.0
    %2449 = vmatprep.mubr.f32.mxu0 0.0
    %2450 = vmatmul.mubr.f32.gmra.mrb[0].mxu0 %v2374
    %v2451 = vpop.f32.mrb[0].mxu0
    %v2452 = vadd.f32 %v2371, %v2451
    %v2453 = vpop.f32.mrb[0].mxu0
    %2454 = vmatprep.mubr.f32.mxu0 0.0
    %2455 = vmatmul.mubr.f32.gmra.mrb[0].mxu0 %v2377
    %v2456 = vpop.f32.mrb[0].mxu0
    %v2457 = vadd.f32 %v2371, %v2456
    %v2458 = vpop.f32.mrb[0].mxu0
    %2459 = vmatprep.mubr.f32.mxu0 0.0
    %2460 = vmatmul.mubr.f32.gmra.mrb[0].mxu0 %v2380
    %v2461 = vpop.f32.mrb[0].mxu0
    %v2462 = vadd.f32 %v2371, %v2461
    %v2463 = vpop.f32.mrb[0].mxu0
    %2464 = vmatprep.mubr.f32.mxu0 0.0
    %2465 = vmatmul.mubr.f32.gmra.mrb[0].mxu0 %v2383
    %v2466 = vpop.f32.mrb[0].mxu0
    %v2467 = vadd.f32 %v2371, %v2466
    %v2468 = vpop.f32.mrb[0].mxu0
    %2469 = vdwg.mxu0
    %v2470 = vmax.f32 %v2452, 0.0
    %v2471 = vmax.f32 %v2457, 0.0
    %v2472 = vmax.f32 %v2462, 0.0
    %v2473 = vmax.f32 %v2467, 0.0
    %v2475 = vlaneseq
    %v2476 = vshrl.u32 %v2475, 7
    %v2477 = vsub.s32 0, %v2476
    %v2478 = vrot.slane %v372, %v2477
    %vm2480 = vcmask 523264
    %v2482 = vsel %vm2480, %v2470, 0
    %v2485 = vsel %vm2480, %v2471, 0
    %v2488 = vsel %vm2480, %v2472, 0
    %v2491 = vsel %vm2480, %v2473, 0
    %2493 = vmatprep.subr.mxu0 0.0
    %2494 = vmatpush1.msra.mxu0 %v364
    %2495 = vmatprep.subr.mxu0 0.0
    %2496 = vmatpush1.msra.mxu0 %v365
    %2497 = vmatprep.subr.mxu0 0.0
    %2498 = vmatpush1.msra.mxu0 %v366
    %2499 = vmatprep.subr.mxu0 0.0
    %2500 = vmatpush1.msra.mxu0 %v367
    %2501 = vmatprep.subr.mxu0 0.0
    %2502 = vmatpush1.msra.mxu0 %v368
    %2503 = vmatprep.subr.mxu0 0.0
    %2504 = vmatpush1.msra.mxu0 %v369
    %2505 = vmatprep.subr.mxu0 0.0
    %2506 = vmatpush1.msra.mxu0 %v370
    %2507 = vmatprep.subr.mxu0 0.0
    %2508 = vmatpush1.msra.mxu0 %v371
    %2509 = vmatprep.subr.mxu0 0.0
    %2510 = vmatpush1.msra.mxu0 0.0
    %2511 = vmatprep.subr.mxu0 0.0
    %2512 = vmatpush1.msra.mxu0 0.0
    %2513 = vmatprep.subr.mxu0 0.0
    %2514 = vmatpush1.msra.mxu0 0.0
    %2515 = vmatprep.subr.mxu0 0.0
    %2516 = vmatpush1.msra.mxu0 0.0
    %2517 = vmatprep.subr.mxu0 0.0
    %2518 = vmatpush1.msra.mxu0 0.0
    %2519 = vmatprep.subr.mxu0 0.0
    %2520 = vmatpush1.msra.mxu0 0.0
    %2521 = vmatprep.subr.mxu0 0.0
    %2522 = vmatpush1.msra.mxu0 0.0
    %2523 = vmatprep.subr.mxu0 0.0
    %2524 = vmatpush1.msra.mxu0 0.0
    %2525 = vmatprep.subr.mxu0 0.0
    %2526 = vmatpush1.msra.mxu0 0.0
    %2527 = vmatprep.subr.mxu0 0.0
    %2528 = vmatpush1.msra.mxu0 0.0
    %2529 = vmatprep.subr.mxu0 0.0
    %2530 = vmatpush1.msra.mxu0 0.0
    %2531 = vmatprep.subr.mxu0 0.0
    %2532 = vmatpush1.msra.mxu0 0.0
    %2533 = vmatprep.subr.mxu0 0.0
    %2534 = vmatpush1.msra.mxu0 0.0
    %2535 = vmatprep.subr.mxu0 0.0
    %2536 = vmatpush1.msra.mxu0 0.0
    %2537 = vmatprep.subr.mxu0 0.0
    %2538 = vmatpush1.msra.mxu0 0.0
    %2539 = vmatprep.subr.mxu0 0.0
    %2540 = vmatpush1.msra.mxu0 0.0
    %2541 = vmatprep.subr.mxu0 0.0
    %2542 = vmatpush1.msra.mxu0 0.0
    %2543 = vmatprep.subr.mxu0 0.0
    %2544 = vmatpush1.msra.mxu0 0.0
    %2545 = vmatprep.subr.mxu0 0.0
    %2546 = vmatpush1.msra.mxu0 0.0
    %2547 = vmatprep.subr.mxu0 0.0
    %2548 = vmatpush1.msra.mxu0 0.0
    %2549 = vmatprep.subr.mxu0 0.0
    %2550 = vmatpush1.msra.mxu0 0.0
    %2551 = vmatprep.subr.mxu0 0.0
    %2552 = vmatpush1.msra.mxu0 0.0
    %2553 = vmatprep.subr.mxu0 0.0
    %2554 = vmatpush1.msra.mxu0 0.0
    %2555 = vmatprep.subr.mxu0 0.0
    %2556 = vmatpush1.msra.mxu0 0.0
    %2557 = vmatprep.mubr.f32.mxu0 0.0
    %2558 = vmatmul.mubr.f32.gmra.mrb[0].mxu0 %v2482
    %v2559 = vpop.f32.mrb[0].mxu0
    %v2560 = vadd.f32 %v2478, %v2559
    %v2561 = vpop.f32.mrb[0].mxu0
    %2562 = vmatprep.mubr.f32.mxu0 0.0
    %2563 = vmatmul.mubr.f32.gmra.mrb[0].mxu0 %v2485
    %v2564 = vpop.f32.mrb[0].mxu0
    %v2565 = vadd.f32 %v2478, %v2564
    %v2566 = vpop.f32.mrb[0].mxu0
    %2567 = vmatprep.mubr.f32.mxu0 0.0
    %2568 = vmatmul.mubr.f32.gmra.mrb[0].mxu0 %v2488
    %v2569 = vpop.f32.mrb[0].mxu0
    %v2570 = vadd.f32 %v2478, %v2569
    %v2571 = vpop.f32.mrb[0].mxu0
    %2572 = vmatprep.mubr.f32.mxu0 0.0
    %2573 = vmatmul.mubr.f32.gmra.mrb[0].mxu0 %v2491
    %v2574 = vpop.f32.mrb[0].mxu0
    %v2575 = vadd.f32 %v2478, %v2574
    %v2576 = vpop.f32.mrb[0].mxu0
    %2577 = vdwg.mxu0
    %v2578 = vadd.f32 %v2363, %v2560
    %v2579 = vadd.f32 %v2364, %v2565
    %v2580 = vadd.f32 %v2365, %v2570
    %v2581 = vadd.f32 %v2366, %v2575
    %v2582 = vsel %vm430, %v2578, 0.0
    %2583 = vadd.xlane.f32.xlu0 %v2582
    %v2584 = vpop.xlane.xlu0 %2583
    %v2585 = vsel %vm430, %v2579, 0.0
    %2586 = vadd.xlane.f32.xlu0 %v2585
    %v2587 = vpop.xlane.xlu0 %2586
    %v2588 = vsel %vm430, %v2580, 0.0
    %2589 = vadd.xlane.f32.xlu0 %v2588
    %v2590 = vpop.xlane.xlu0 %2589
    %v2591 = vsel %vm430, %v2581, 0.0
    %2592 = vadd.xlane.f32.xlu0 %v2591
    %v2593 = vpop.xlane.xlu0 %2592
    %v2594 = vmul.f32 %v2584, %v2306
    %v2595 = vmul.f32 %v2587, %v2306
    %v2596 = vmul.f32 %v2590, %v2306
    %v2597 = vmul.f32 %v2593, %v2306
    %v2598 = vsub.f32 %v2578, %v2594
    %v2599 = vsub.f32 %v2579, %v2595
    %v2600 = vsub.f32 %v2580, %v2596
    %v2601 = vsub.f32 %v2581, %v2597
    %v2602 = vmul.f32 %v2598, %v2598
    %v2603 = vmul.f32 %v2599, %v2599
    %v2604 = vmul.f32 %v2600, %v2600
    %v2605 = vmul.f32 %v2601, %v2601
    %v2606 = vsel %vm430, %v2602, 0.0
    %2607 = vadd.xlane.f32.xlu0 %v2606
    %v2608 = vpop.xlane.xlu0 %2607
    %v2609 = vsel %vm430, %v2603, 0.0
    %2610 = vadd.xlane.f32.xlu0 %v2609
    %v2611 = vpop.xlane.xlu0 %2610
    %v2612 = vsel %vm430, %v2604, 0.0
    %2613 = vadd.xlane.f32.xlu0 %v2612
    %v2614 = vpop.xlane.xlu0 %2613
    %v2615 = vsel %vm430, %v2605, 0.0
    %2616 = vadd.xlane.f32.xlu0 %v2615
    %v2617 = vpop.xlane.xlu0 %2616
    %v2618 = vmul.f32 %v2608, %v2306
    %v2619 = vmul.f32 %v2611, %v2306
    %v2620 = vmul.f32 %v2614, %v2306
    %v2621 = vmul.f32 %v2617, %v2306
    %v2622 = vadd.f32 %v2618, 1e-05
    %v2623 = vadd.f32 %v2619, 1e-05
    %v2624 = vadd.f32 %v2620, 1e-05
    %v2625 = vadd.f32 %v2621, 1e-05
    %v2626 = vrsqrt.pop %v2622
    %v2627 = vrsqrt.pop %v2623
    %v2628 = vrsqrt.pop %v2624
    %v2629 = vrsqrt.pop %v2625
    %v2630 = vmul.f32 %v2598, %v2626
    %v2631 = vmul.f32 %v2599, %v2627
    %v2632 = vmul.f32 %v2600, %v2628
    %v2633 = vmul.f32 %v2601, %v2629
    %v2635 = vlaneseq
    %v2636 = vshrl.u32 %v2635, 7
    %v2637 = vsub.s32 0, %v2636
    %v2638 = vrot.slane %v373, %v2637
    %v2640 = vmul.f32 %v2630, %v2638
    %v2641 = vmul.f32 %v2631, %v2638
    %v2642 = vmul.f32 %v2632, %v2638
    %v2643 = vmul.f32 %v2633, %v2638
    %v2645 = vlaneseq
    %v2646 = vshrl.u32 %v2645, 7
    %v2647 = vsub.s32 0, %v2646
    %v2648 = vrot.slane %v374, %v2647
    %v2650 = vadd.f32 %v2640, %v2648
    %v2651 = vadd.f32 %v2641, %v2648
    %v2652 = vadd.f32 %v2642, %v2648
    %v2653 = vadd.f32 %v2643, %v2648
    %v2655 = vrot.slane %v2650, 1
    %2656 = vrot.lane.b32.xlu0 %v2655, 16
    %v2657 = vpop.permute.xlu0 %2656
    %v2659 = vrot.slane %v2650, 2
    %2660 = vrot.lane.b32.xlu0 %v2659, 32
    %v2661 = vpop.permute.xlu0 %2660
    %v2663 = vrot.slane %v2650, 3
    %2664 = vrot.lane.b32.xlu0 %v2663, 48
    %v2665 = vpop.permute.xlu0 %2664
    %v2667 = vrot.slane %v2650, 4
    %2668 = vrot.lane.b32.xlu0 %v2667, 64
    %v2669 = vpop.permute.xlu0 %2668
    %v2671 = vrot.slane %v2650, 5
    %2672 = vrot.lane.b32.xlu0 %v2671, 80
    %v2673 = vpop.permute.xlu0 %2672
    %v2675 = vrot.slane %v2650, 6
    %2676 = vrot.lane.b32.xlu0 %v2675, 96
    %v2677 = vpop.permute.xlu0 %2676
    %v2679 = vrot.slane %v2650, 7
    %2680 = vrot.lane.b32.xlu0 %v2679, 112
    %v2681 = vpop.permute.xlu0 %2680
    %v2684 = vrot.slane %v2651, 1
    %2685 = vrot.lane.b32.xlu0 %v2684, 16
    %v2686 = vpop.permute.xlu0 %2685
    %v2688 = vrot.slane %v2651, 2
    %2689 = vrot.lane.b32.xlu0 %v2688, 32
    %v2690 = vpop.permute.xlu0 %2689
    %v2692 = vrot.slane %v2651, 3
    %2693 = vrot.lane.b32.xlu0 %v2692, 48
    %v2694 = vpop.permute.xlu0 %2693
    %v2696 = vrot.slane %v2651, 4
    %2697 = vrot.lane.b32.xlu0 %v2696, 64
    %v2698 = vpop.permute.xlu0 %2697
    %v2700 = vrot.slane %v2651, 5
    %2701 = vrot.lane.b32.xlu0 %v2700, 80
    %v2702 = vpop.permute.xlu0 %2701
    %v2704 = vrot.slane %v2651, 6
    %2705 = vrot.lane.b32.xlu0 %v2704, 96
    %v2706 = vpop.permute.xlu0 %2705
    %v2708 = vrot.slane %v2651, 7
    %2709 = vrot.lane.b32.xlu0 %v2708, 112
    %v2710 = vpop.permute.xlu0 %2709
    %v2712 = vsel %vm430, %v2650, %v2657
    %vm2713 = vcmask 261120
    %v2714 = vsel %vm2713, %v2712, %v2661
    %vm2715 = vcmask 392192
    %v2716 = vsel %vm2715, %v2714, %v2665
    %v2717 = vsel %vm2480, %v2716, %v2669
    %vm2718 = vcmask 654336
    %v2719 = vsel %vm2718, %v2717, %v2673
    %vm2720 = vcmask 785408
    %v2721 = vsel %vm2720, %v2719, %v2677
    %vm2722 = vcmask 916480
    %v2723 = vsel %vm2722, %v2721, %v2681
    %v2724 = vsel %vm430, %v2651, %v2686
    %v2725 = vsel %vm2713, %v2724, %v2690
    %v2726 = vsel %vm2715, %v2725, %v2694
    %v2727 = vsel %vm2480, %v2726, %v2698
    %v2728 = vsel %vm2718, %v2727, %v2702
    %v2729 = vsel %vm2720, %v2728, %v2706
    %v2730 = vsel %vm2722, %v2729, %v2710
    %v2732 = vrot.slane %v2652, 1
    %2733 = vrot.lane.b32.xlu0 %v2732, 16
    %v2734 = vpop.permute.xlu0 %2733
    %v2736 = vrot.slane %v2652, 2
    %2737 = vrot.lane.b32.xlu0 %v2736, 32
    %v2738 = vpop.permute.xlu0 %2737
    %v2740 = vrot.slane %v2652, 3
    %2741 = vrot.lane.b32.xlu0 %v2740, 48
    %v2742 = vpop.permute.xlu0 %2741
    %v2744 = vrot.slane %v2652, 4
    %2745 = vrot.lane.b32.xlu0 %v2744, 64
    %v2746 = vpop.permute.xlu0 %2745
    %v2748 = vrot.slane %v2652, 5
    %2749 = vrot.lane.b32.xlu0 %v2748, 80
    %v2750 = vpop.permute.xlu0 %2749
    %v2752 = vrot.slane %v2652, 6
    %2753 = vrot.lane.b32.xlu0 %v2752, 96
    %v2754 = vpop.permute.xlu0 %2753
    %v2756 = vrot.slane %v2652, 7
    %2757 = vrot.lane.b32.xlu0 %v2756, 112
    %v2758 = vpop.permute.xlu0 %2757
    %v2761 = vrot.slane %v2653, 1
    %2762 = vrot.lane.b32.xlu0 %v2761, 16
    %v2763 = vpop.permute.xlu0 %2762
    %v2765 = vrot.slane %v2653, 2
    %2766 = vrot.lane.b32.xlu0 %v2765, 32
    %v2767 = vpop.permute.xlu0 %2766
    %v2769 = vrot.slane %v2653, 3
    %2770 = vrot.lane.b32.xlu0 %v2769, 48
    %v2771 = vpop.permute.xlu0 %2770
    %v2773 = vrot.slane %v2653, 4
    %2774 = vrot.lane.b32.xlu0 %v2773, 64
    %v2775 = vpop.permute.xlu0 %2774
    %v2777 = vrot.slane %v2653, 5
    %2778 = vrot.lane.b32.xlu0 %v2777, 80
    %v2779 = vpop.permute.xlu0 %2778
    %v2781 = vrot.slane %v2653, 6
    %2782 = vrot.lane.b32.xlu0 %v2781, 96
    %v2783 = vpop.permute.xlu0 %2782
    %v2785 = vrot.slane %v2653, 7
    %2786 = vrot.lane.b32.xlu0 %v2785, 112
    %v2787 = vpop.permute.xlu0 %2786
    %v2789 = vsel %vm430, %v2652, %v2734
    %v2790 = vsel %vm2713, %v2789, %v2738
    %v2791 = vsel %vm2715, %v2790, %v2742
    %v2792 = vsel %vm2480, %v2791, %v2746
    %v2793 = vsel %vm2718, %v2792, %v2750
    %v2794 = vsel %vm2720, %v2793, %v2754
    %v2795 = vsel %vm2722, %v2794, %v2758
    %v2796 = vsel %vm430, %v2653, %v2763
    %v2797 = vsel %vm2713, %v2796, %v2767
    %v2798 = vsel %vm2715, %v2797, %v2771
    %v2799 = vsel %vm2480, %v2798, %v2775
    %v2800 = vsel %vm2718, %v2799, %v2779
    %v2801 = vsel %vm2720, %v2800, %v2783
    %v2802 = vsel %vm2722, %v2801, %v2787
    %v2805 = vrot.slane %v2795, 7
    %v2806 = vrot.slane %v2802, 7
    %vm2809 = vcmask 1040384
    %v2810 = vsel %vm2809, %v2723, %v2805
    %v2811 = vsel %vm2809, %v2730, %v2806
    %v2813 = vlaneseq
    %v2814 = vshrl.u32 %v2813, 7
    %v2815 = vsub.s32 0, %v2814
    %v2816 = vrot.slane %v407, %v2815
    %2818 = vmatprep.subr.mxu0 0.0
    %2819 = vmatpush1.msra.mxu0 %v375
    %2820 = vmatprep.subr.mxu0 0.0
    %2821 = vmatpush1.msra.mxu0 %v376
    %2822 = vmatprep.subr.mxu0 0.0
    %2823 = vmatpush1.msra.mxu0 %v377
    %2824 = vmatprep.subr.mxu0 0.0
    %2825 = vmatpush1.msra.mxu0 %v378
    %2826 = vmatprep.subr.mxu0 0.0
    %2827 = vmatpush1.msra.mxu0 %v379
    %2828 = vmatprep.subr.mxu0 0.0
    %2829 = vmatpush1.msra.mxu0 %v380
    %2830 = vmatprep.subr.mxu0 0.0
    %2831 = vmatpush1.msra.mxu0 %v381
    %2832 = vmatprep.subr.mxu0 0.0
    %2833 = vmatpush1.msra.mxu0 %v382
    %2834 = vmatprep.subr.mxu0 0.0
    %2835 = vmatpush1.msra.mxu0 %v383
    %2836 = vmatprep.subr.mxu0 0.0
    %2837 = vmatpush1.msra.mxu0 %v384
    %2838 = vmatprep.subr.mxu0 0.0
    %2839 = vmatpush1.msra.mxu0 %v385
    %2840 = vmatprep.subr.mxu0 0.0
    %2841 = vmatpush1.msra.mxu0 %v386
    %2842 = vmatprep.subr.mxu0 0.0
    %2843 = vmatpush1.msra.mxu0 %v387
    %2844 = vmatprep.subr.mxu0 0.0
    %2845 = vmatpush1.msra.mxu0 %v388
    %2846 = vmatprep.subr.mxu0 0.0
    %2847 = vmatpush1.msra.mxu0 %v389
    %2848 = vmatprep.subr.mxu0 0.0
    %2849 = vmatpush1.msra.mxu0 %v390
    %2850 = vmatprep.subr.mxu0 0.0
    %2851 = vmatpush1.msra.mxu0 %v391
    %2852 = vmatprep.subr.mxu0 0.0
    %2853 = vmatpush1.msra.mxu0 %v392
    %2854 = vmatprep.subr.mxu0 0.0
    %2855 = vmatpush1.msra.mxu0 %v393
    %2856 = vmatprep.subr.mxu0 0.0
    %2857 = vmatpush1.msra.mxu0 %v394
    %2858 = vmatprep.subr.mxu0 0.0
    %2859 = vmatpush1.msra.mxu0 %v395
    %2860 = vmatprep.subr.mxu0 0.0
    %2861 = vmatpush1.msra.mxu0 %v396
    %2862 = vmatprep.subr.mxu0 0.0
    %2863 = vmatpush1.msra.mxu0 %v397
    %2864 = vmatprep.subr.mxu0 0.0
    %2865 = vmatpush1.msra.mxu0 %v398
    %2866 = vmatprep.subr.mxu0 0.0
    %2867 = vmatpush1.msra.mxu0 %v399
    %2868 = vmatprep.subr.mxu0 0.0
    %2869 = vmatpush1.msra.mxu0 %v400
    %2870 = vmatprep.subr.mxu0 0.0
    %2871 = vmatpush1.msra.mxu0 %v401
    %2872 = vmatprep.subr.mxu0 0.0
    %2873 = vmatpush1.msra.mxu0 %v402
    %2874 = vmatprep.subr.mxu0 0.0
    %2875 = vmatpush1.msra.mxu0 %v403
    %2876 = vmatprep.subr.mxu0 0.0
    %2877 = vmatpush1.msra.mxu0 %v404
    %2878 = vmatprep.subr.mxu0 0.0
    %2879 = vmatpush1.msra.mxu0 %v405
    %2880 = vmatprep.subr.mxu0 0.0
    %2881 = vmatpush1.msra.mxu0 %v406
    %2882 = vmatprep.mubr.f32.mxu0 %v2811
    %2883 = vmatmul.mubr.f32.gmra.mrb[0].mxu0 %v2810
    %v2884 = vpop.f32.mrb[0].mxu0
    %v2885 = vadd.f32 %v2816, %v2884
    %v2886 = vpop.f32.mrb[0].mxu0
    %2887 = vdwg.mxu0
    %vm2888 = vcmp.ge.f32.partialorder %v2885, 0.0
    %v2889 = vmul.f32 %v2885, 0.01
    %v2890 = vsel %vm2888, %v2885, %v2889
    %v2892 = vlaneseq
    %v2893 = vshrl.u32 %v2892, 7
    %v2894 = vsub.s32 0, %v2893
    %v2895 = vrot.slane %v412, %v2894
    %v2898 = vsel %vm2713, %v2890, 0
    %2900 = vmatprep.subr.mxu0 0.0
    %2901 = vmatpush1.msra.mxu0 %v408
    %2902 = vmatprep.subr.mxu0 0.0
    %2903 = vmatpush1.msra.mxu0 %v409
    %2904 = vmatprep.subr.mxu0 0.0
    %2905 = vmatpush1.msra.mxu0 %v410
    %2906 = vmatprep.subr.mxu0 0.0
    %2907 = vmatpush1.msra.mxu0 %v411
    %2908 = vmatprep.subr.mxu0 0.0
    %2909 = vmatpush1.msra.mxu0 0.0
    %2910 = vmatprep.subr.mxu0 0.0
    %2911 = vmatpush1.msra.mxu0 0.0
    %2912 = vmatprep.subr.mxu0 0.0
    %2913 = vmatpush1.msra.mxu0 0.0
    %2914 = vmatprep.subr.mxu0 0.0
    %2915 = vmatpush1.msra.mxu0 0.0
    %2916 = vmatprep.subr.mxu0 0.0
    %2917 = vmatpush1.msra.mxu0 0.0
    %2918 = vmatprep.subr.mxu0 0.0
    %2919 = vmatpush1.msra.mxu0 0.0
    %2920 = vmatprep.subr.mxu0 0.0
    %2921 = vmatpush1.msra.mxu0 0.0
    %2922 = vmatprep.subr.mxu0 0.0
    %2923 = vmatpush1.msra.mxu0 0.0
    %2924 = vmatprep.subr.mxu0 0.0
    %2925 = vmatpush1.msra.mxu0 0.0
    %2926 = vmatprep.subr.mxu0 0.0
    %2927 = vmatpush1.msra.mxu0 0.0
    %2928 = vmatprep.subr.mxu0 0.0
    %2929 = vmatpush1.msra.mxu0 0.0
    %2930 = vmatprep.subr.mxu0 0.0
    %2931 = vmatpush1.msra.mxu0 0.0
    %2932 = vmatprep.subr.mxu0 0.0
    %2933 = vmatpush1.msra.mxu0 0.0
    %2934 = vmatprep.subr.mxu0 0.0
    %2935 = vmatpush1.msra.mxu0 0.0
    %2936 = vmatprep.subr.mxu0 0.0
    %2937 = vmatpush1.msra.mxu0 0.0
    %2938 = vmatprep.subr.mxu0 0.0
    %2939 = vmatpush1.msra.mxu0 0.0
    %2940 = vmatprep.subr.mxu0 0.0
    %2941 = vmatpush1.msra.mxu0 0.0
    %2942 = vmatprep.subr.mxu0 0.0
    %2943 = vmatpush1.msra.mxu0 0.0
    %2944 = vmatprep.subr.mxu0 0.0
    %2945 = vmatpush1.msra.mxu0 0.0
    %2946 = vmatprep.subr.mxu0 0.0
    %2947 = vmatpush1.msra.mxu0 0.0
    %2948 = vmatprep.subr.mxu0 0.0
    %2949 = vmatpush1.msra.mxu0 0.0
    %2950 = vmatprep.subr.mxu0 0.0
    %2951 = vmatpush1.msra.mxu0 0.0
    %2952 = vmatprep.subr.mxu0 0.0
    %2953 = vmatpush1.msra.mxu0 0.0
    %2954 = vmatprep.subr.mxu0 0.0
    %2955 = vmatpush1.msra.mxu0 0.0
    %2956 = vmatprep.subr.mxu0 0.0
    %2957 = vmatpush1.msra.mxu0 0.0
    %2958 = vmatprep.subr.mxu0 0.0
    %2959 = vmatpush1.msra.mxu0 0.0
    %2960 = vmatprep.subr.mxu0 0.0
    %2961 = vmatpush1.msra.mxu0 0.0
    %2962 = vmatprep.subr.mxu0 0.0
    %2963 = vmatpush1.msra.mxu0 0.0
    %2964 = vmatprep.mubr.f32.mxu0 0.0
    %2965 = vmatmul.mubr.f32.gmra.mrb[0].mxu0 %v2898
    %v2966 = vpop.f32.mrb[0].mxu0
    %v2967 = vadd.f32 %v2895, %v2966
    %v2968 = vpop.f32.mrb[0].mxu0
    %2969 = vdwg.mxu0
    %vm2970 = vcmp.ge.f32.partialorder %v2967, 0.0
    %v2971 = vmul.f32 %v2967, 0.01
    %v2972 = vsel %vm2970, %v2967, %v2971
    %v2974 = vlaneseq
    %v2975 = vshrl.u32 %v2974, 7
    %v2976 = vsub.s32 0, %v2975
    %v2977 = vrot.slane %v421, %v2976
    %v2978 = vlaneseq
    %v2979 = vshrl.u32 %v2978, 7
    %v2980 = vsub.s32 1, %v2979
    %v2981 = vrot.slane %v421, %v2980
    %v2985 = vsel %vm2713, %v2972, 0
    %2987 = vmatprep.subr.mxu0 %v414
    %2988 = vmatpush1.msra.mxu0 %v413
    %2989 = vmatprep.subr.mxu0 %v416
    %2990 = vmatpush1.msra.mxu0 %v415
    %2991 = vmatprep.subr.mxu0 %v418
    %2992 = vmatpush1.msra.mxu0 %v417
    %2993 = vmatprep.subr.mxu0 %v420
    %2994 = vmatpush1.msra.mxu0 %v419
    %2995 = vmatprep.subr.mxu0 0.0
    %2996 = vmatpush1.msra.mxu0 0.0
    %2997 = vmatprep.subr.mxu0 0.0
    %2998 = vmatpush1.msra.mxu0 0.0
    %2999 = vmatprep.subr.mxu0 0.0
    %3000 = vmatpush1.msra.mxu0 0.0
    %3001 = vmatprep.subr.mxu0 0.0
    %3002 = vmatpush1.msra.mxu0 0.0
    %3003 = vmatprep.subr.mxu0 0.0
    %3004 = vmatpush1.msra.mxu0 0.0
    %3005 = vmatprep.subr.mxu0 0.0
    %3006 = vmatpush1.msra.mxu0 0.0
    %3007 = vmatprep.subr.mxu0 0.0
    %3008 = vmatpush1.msra.mxu0 0.0
    %3009 = vmatprep.subr.mxu0 0.0
    %3010 = vmatpush1.msra.mxu0 0.0
    %3011 = vmatprep.subr.mxu0 0.0
    %3012 = vmatpush1.msra.mxu0 0.0
    %3013 = vmatprep.subr.mxu0 0.0
    %3014 = vmatpush1.msra.mxu0 0.0
    %3015 = vmatprep.subr.mxu0 0.0
    %3016 = vmatpush1.msra.mxu0 0.0
    %3017 = vmatprep.subr.mxu0 0.0
    %3018 = vmatpush1.msra.mxu0 0.0
    %3019 = vmatprep.subr.mxu0 0.0
    %3020 = vmatpush1.msra.mxu0 0.0
    %3021 = vmatprep.subr.mxu0 0.0
    %3022 = vmatpush1.msra.mxu0 0.0
    %3023 = vmatprep.subr.mxu0 0.0
    %3024 = vmatpush1.msra.mxu0 0.0
    %3025 = vmatprep.subr.mxu0 0.0
    %3026 = vmatpush1.msra.mxu0 0.0
    %3027 = vmatprep.subr.mxu0 0.0
    %3028 = vmatpush1.msra.mxu0 0.0
    %3029 = vmatprep.subr.mxu0 0.0
    %3030 = vmatpush1.msra.mxu0 0.0
    %3031 = vmatprep.subr.mxu0 0.0
    %3032 = vmatpush1.msra.mxu0 0.0
    %3033 = vmatprep.subr.mxu0 0.0
    %3034 = vmatpush1.msra.mxu0 0.0
    %3035 = vmatprep.subr.mxu0 0.0
    %3036 = vmatpush1.msra.mxu0 0.0
    %3037 = vmatprep.subr.mxu0 0.0
    %3038 = vmatpush1.msra.mxu0 0.0
    %3039 = vmatprep.subr.mxu0 0.0
    %3040 = vmatpush1.msra.mxu0 0.0
    %3041 = vmatprep.subr.mxu0 0.0
    %3042 = vmatpush1.msra.mxu0 0.0
    %3043 = vmatprep.subr.mxu0 0.0
    %3044 = vmatpush1.msra.mxu0 0.0
    %3045 = vmatprep.subr.mxu0 0.0
    %3046 = vmatpush1.msra.mxu0 0.0
    %3047 = vmatprep.subr.mxu0 0.0
    %3048 = vmatpush1.msra.mxu0 0.0
    %3049 = vmatprep.subr.mxu0 0.0
    %3050 = vmatpush1.msra.mxu0 0.0
    %3051 = vmatprep.mubr.f32.mxu0 0.0
    %3052 = vmatmul.mubr.f32.gmra.mrb[0].mxu0 %v2985
    %v3053 = vpop.f32.mrb[0].mxu0
    %v3054 = vadd.f32 %v2977, %v3053
    %v3055 = vpop.f32.mrb[0].mxu0
    %v3056 = vadd.f32 %v2981, %v3055
    %3057 = vdwg.mxu0
    %v3059 = vrot.slane %v3054, 7
    %3060 = vrot.lane.b32.xlu0 %v3059, 112
    %v3061 = vpop.permute.xlu0 %3060
    %v3063 = vrot.slane %v3054, 6
    %3064 = vrot.lane.b32.xlu0 %v3063, 96
    %v3065 = vpop.permute.xlu0 %3064
    %v3067 = vrot.slane %v3054, 5
    %3068 = vrot.lane.b32.xlu0 %v3067, 80
    %v3069 = vpop.permute.xlu0 %3068
    %v3071 = vrot.slane %v3054, 4
    %3072 = vrot.lane.b32.xlu0 %v3071, 64
    %v3073 = vpop.permute.xlu0 %3072
    %v3075 = vrot.slane %v3054, 3
    %3076 = vrot.lane.b32.xlu0 %v3075, 48
    %v3077 = vpop.permute.xlu0 %3076
    %v3079 = vrot.slane %v3054, 2
    %3080 = vrot.lane.b32.xlu0 %v3079, 32
    %v3081 = vpop.permute.xlu0 %3080
    %v3083 = vrot.slane %v3054, 1
    %3084 = vrot.lane.b32.xlu0 %v3083, 16
    %v3085 = vpop.permute.xlu0 %3084
    %v3088 = vrot.slane %v3056, 7
    %3089 = vrot.lane.b32.xlu0 %v3088, 112
    %v3090 = vpop.permute.xlu0 %3089
    %v3092 = vrot.slane %v3056, 6
    %3093 = vrot.lane.b32.xlu0 %v3092, 96
    %v3094 = vpop.permute.xlu0 %3093
    %v3096 = vrot.slane %v3056, 5
    %3097 = vrot.lane.b32.xlu0 %v3096, 80
    %v3098 = vpop.permute.xlu0 %3097
    %v3100 = vrot.slane %v3056, 4
    %3101 = vrot.lane.b32.xlu0 %v3100, 64
    %v3102 = vpop.permute.xlu0 %3101
    %v3104 = vrot.slane %v3056, 3
    %3105 = vrot.lane.b32.xlu0 %v3104, 48
    %v3106 = vpop.permute.xlu0 %3105
    %v3108 = vrot.slane %v3056, 2
    %3109 = vrot.lane.b32.xlu0 %v3108, 32
    %v3110 = vpop.permute.xlu0 %3109
    %v3112 = vrot.slane %v3056, 1
    %3113 = vrot.lane.b32.xlu0 %v3112, 16
    %v3114 = vpop.permute.xlu0 %3113
    %v3116 = vsel %vm2809, %v3054, %v3061
    %vm3117 = vcmask 1041408
    %v3118 = vsel %vm3117, %v3116, %v3065
    %vm3119 = vcmask 1042432
    %v3120 = vsel %vm3119, %v3118, %v3069
    %vm3121 = vcmask 1043456
    %v3122 = vsel %vm3121, %v3120, %v3073
    %vm3123 = vcmask 1044480
    %v3124 = vsel %vm3123, %v3122, %v3077
    %vm3125 = vcmask 1045504
    %v3126 = vsel %vm3125, %v3124, %v3081
    %vm3127 = vcmask 1046528
    %v3128 = vsel %vm3127, %v3126, %v3085
    %v3129 = vsel %vm2809, %v3056, %v3090
    %v3130 = vsel %vm3117, %v3129, %v3094
    %v3131 = vsel %vm3119, %v3130, %v3098
    %v3132 = vsel %vm3121, %v3131, %v3102
    %v3133 = vsel %vm3123, %v3132, %v3106
    %v3134 = vsel %vm3125, %v3133, %v3110
    %v3135 = vsel %vm3127, %v3134, %v3114
    %3137 = vrot.lane.b32.xlu0 %v3054, 112
    %v3138 = vpop.permute.xlu0 %3137
    %3140 = vrot.lane.b32.xlu0 %v3059, 96
    %v3141 = vpop.permute.xlu0 %3140
    %3143 = vrot.lane.b32.xlu0 %v3063, 80
    %v3144 = vpop.permute.xlu0 %3143
    %3146 = vrot.lane.b32.xlu0 %v3067, 64
    %v3147 = vpop.permute.xlu0 %3146
    %3149 = vrot.lane.b32.xlu0 %v3071, 48
    %v3150 = vpop.permute.xlu0 %3149
    %3152 = vrot.lane.b32.xlu0 %v3075, 32
    %v3153 = vpop.permute.xlu0 %3152
    %3155 = vrot.lane.b32.xlu0 %v3079, 16
    %v3156 = vpop.permute.xlu0 %3155
    %3159 = vrot.lane.b32.xlu0 %v3056, 112
    %v3160 = vpop.permute.xlu0 %3159
    %3162 = vrot.lane.b32.xlu0 %v3088, 96
    %v3163 = vpop.permute.xlu0 %3162
    %3165 = vrot.lane.b32.xlu0 %v3092, 80
    %v3166 = vpop.permute.xlu0 %3165
    %3168 = vrot.lane.b32.xlu0 %v3096, 64
    %v3169 = vpop.permute.xlu0 %3168
    %3171 = vrot.lane.b32.xlu0 %v3100, 48
    %v3172 = vpop.permute.xlu0 %3171
    %3174 = vrot.lane.b32.xlu0 %v3104, 32
    %v3175 = vpop.permute.xlu0 %3174
    %3177 = vrot.lane.b32.xlu0 %v3108, 16
    %v3178 = vpop.permute.xlu0 %3177
    %v3180 = vsel %vm2809, %v3083, %v3138
    %v3181 = vsel %vm3117, %v3180, %v3141
    %v3182 = vsel %vm3119, %v3181, %v3144
    %v3183 = vsel %vm3121, %v3182, %v3147
    %v3184 = vsel %vm3123, %v3183, %v3150
    %v3185 = vsel %vm3125, %v3184, %v3153
    %v3186 = vsel %vm3127, %v3185, %v3156
    %v3187 = vsel %vm2809, %v3112, %v3160
    %v3188 = vsel %vm3117, %v3187, %v3163
    %v3189 = vsel %vm3119, %v3188, %v3166
    %v3190 = vsel %vm3121, %v3189, %v3169
    %v3191 = vsel %vm3123, %v3190, %v3172
    %v3192 = vsel %vm3125, %v3191, %v3175
    %v3193 = vsel %vm3127, %v3192, %v3178
    %v3195 = vsel %vm430, %v3128, 0
    %v3198 = vsel %vm430, %v3135, 0
    %v3201 = vsel %vm430, %v3186, 0
    %v3204 = vsel %vm430, %v3193, 0
    %v3207 = vsel %vm430, %v422, 0
    %v3210 = vsel %vm430, %v423, 0
    %3212 = vmatprep.subr.mxu0 0.0
    %3213 = vmatpush1.xpose.msra.mxu0 %v3207
    %3214 = vmatprep.subr.mxu0 0.0
    %3215 = vmatpush1.xpose.msra.mxu0 %v3210
    %3216 = vmatprep.subr.mxu0 0.0
    %3217 = vmatpush1.xpose.msra.mxu0 0.0
    %3218 = vmatprep.subr.mxu0 0.0
    %3219 = vmatpush1.xpose.msra.mxu0 0.0
    %3220 = vmatprep.subr.mxu0 0.0
    %3221 = vmatpush1.xpose.msra.mxu0 0.0
    %3222 = vmatprep.subr.mxu0 0.0
    %3223 = vmatpush1.xpose.msra.mxu0 0.0
    %3224 = vmatprep.subr.mxu0 0.0
    %3225 = vmatpush1.xpose.msra.mxu0 0.0
    %3226 = vmatprep.subr.mxu0 0.0
    %3227 = vmatpush1.xpose.msra.mxu0 0.0
    %3228 = vmatprep.subr.mxu0 0.0
    %3229 = vmatpush1.xpose.msra.mxu0 0.0
    %3230 = vmatprep.subr.mxu0 0.0
    %3231 = vmatpush1.xpose.msra.mxu0 0.0
    %3232 = vmatprep.subr.mxu0 0.0
    %3233 = vmatpush1.xpose.msra.mxu0 0.0
    %3234 = vmatprep.subr.mxu0 0.0
    %3235 = vmatpush1.xpose.msra.mxu0 0.0
    %3236 = vmatprep.subr.mxu0 0.0
    %3237 = vmatpush1.xpose.msra.mxu0 0.0
    %3238 = vmatprep.subr.mxu0 0.0
    %3239 = vmatpush1.xpose.msra.mxu0 0.0
    %3240 = vmatprep.subr.mxu0 0.0
    %3241 = vmatpush1.xpose.msra.mxu0 0.0
    %3242 = vmatprep.subr.mxu0 0.0
    %3243 = vmatpush1.xpose.msra.mxu0 0.0
    %3244 = vmatprep.subr.mxu0 0.0
    %3245 = vmatpush1.xpose.msra.mxu0 0.0
    %3246 = vmatprep.subr.mxu0 0.0
    %3247 = vmatpush1.xpose.msra.mxu0 0.0
    %3248 = vmatprep.subr.mxu0 0.0
    %3249 = vmatpush1.xpose.msra.mxu0 0.0
    %3250 = vmatprep.subr.mxu0 0.0
    %3251 = vmatpush1.xpose.msra.mxu0 0.0
    %3252 = vmatprep.subr.mxu0 0.0
    %3253 = vmatpush1.xpose.msra.mxu0 0.0
    %3254 = vmatprep.subr.mxu0 0.0
    %3255 = vmatpush1.xpose.msra.mxu0 0.0
    %3256 = vmatprep.subr.mxu0 0.0
    %3257 = vmatpush1.xpose.msra.mxu0 0.0
    %3258 = vmatprep.subr.mxu0 0.0
    %3259 = vmatpush1.xpose.msra.mxu0 0.0
    %3260 = vmatprep.subr.mxu0 0.0
    %3261 = vmatpush1.xpose.msra.mxu0 0.0
    %3262 = vmatprep.subr.mxu0 0.0
    %3263 = vmatpush1.xpose.msra.mxu0 0.0
    %3264 = vmatprep.subr.mxu0 0.0
    %3265 = vmatpush1.xpose.msra.mxu0 0.0
    %3266 = vmatprep.subr.mxu0 0.0
    %3267 = vmatpush1.xpose.msra.mxu0 0.0
    %3268 = vmatprep.subr.mxu0 0.0
    %3269 = vmatpush1.xpose.msra.mxu0 0.0
    %3270 = vmatprep.subr.mxu0 0.0
    %3271 = vmatpush1.xpose.msra.mxu0 0.0
    %3272 = vmatprep.subr.mxu0 0.0
    %3273 = vmatpush1.xpose.msra.mxu0 0.0
    %3274 = vmatprep.subr.mxu0 0.0
    %3275 = vmatpush1.xpose.msra.mxu0 0.0
    %3276 = vmatprep.mubr.f32.mxu0 0.0
    %3277 = vmatmul.mubr.f32.gmra.mrb[0].mxu0 %v3195
    %v3278 = vpop.f32.mrb[0].mxu0
    %v3279 = vadd.f32 0.0, %v3278
    %v3280 = vpop.f32.mrb[0].mxu0
    %3281 = vmatprep.mubr.f32.mxu0 0.0
    %3282 = vmatmul.mubr.f32.gmra.mrb[0].mxu0 %v3198
    %v3283 = vpop.f32.mrb[0].mxu0
    %v3284 = vadd.f32 0.0, %v3283
    %v3285 = vpop.f32.mrb[0].mxu0
    %3286 = vmatprep.mubr.f32.mxu0 0.0
    %3287 = vmatmul.mubr.f32.gmra.mrb[0].mxu0 %v3201
    %v3288 = vpop.f32.mrb[0].mxu0
    %v3289 = vadd.f32 0.0, %v3288
    %v3290 = vpop.f32.mrb[0].mxu0
    %3291 = vmatprep.mubr.f32.mxu0 0.0
    %3292 = vmatmul.mubr.f32.gmra.mrb[0].mxu0 %v3204
    %v3293 = vpop.f32.mrb[0].mxu0
    %v3294 = vadd.f32 0.0, %v3293
    %v3295 = vpop.f32.mrb[0].mxu0
    %3296 = vdwg.mxu0
    %v3297 = vsel %vm430, %v3279, -inf
    %3298 = vmax.xlane.f32.xlu0 %v3297
    %v3299 = vpop.xlane.xlu0 %3298
    %v3300 = vsel %vm430, %v3284, -inf
    %3301 = vmax.xlane.f32.xlu0 %v3300
    %v3302 = vpop.xlane.xlu0 %3301
    %v3303 = vsel %vm430, %v3289, -inf
    %3304 = vmax.xlane.f32.xlu0 %v3303
    %v3305 = vpop.xlane.xlu0 %3304
    %v3306 = vsel %vm430, %v3294, -inf
    %3307 = vmax.xlane.f32.xlu0 %v3306
    %v3308 = vpop.xlane.xlu0 %3307
    %v3309 = vsub.f32 %v3279, %v3299
    %v3310 = vsub.f32 %v3284, %v3302
    %v3311 = vsub.f32 %v3289, %v3305
    %v3312 = vsub.f32 %v3294, %v3308
    %v3313 = vmul.f32 %v3309, 1.442695
    %v3314 = vpow.pop %v3313
    %v3315 = vmul.f32 %v3310, 1.442695
    %v3316 = vpow.pop %v3315
    %v3317 = vmul.f32 %v3311, 1.442695
    %v3318 = vpow.pop %v3317
    %v3319 = vmul.f32 %v3312, 1.442695
    %v3320 = vpow.pop %v3319
    %v3321 = vsel %vm430, %v3314, 0.0
    %3322 = vadd.xlane.f32.xlu0 %v3321
    %v3323 = vpop.xlane.xlu0 %3322
    %v3324 = vsel %vm430, %v3316, 0.0
    %3325 = vadd.xlane.f32.xlu0 %v3324
    %v3326 = vpop.xlane.xlu0 %3325
    %v3327 = vsel %vm430, %v3318, 0.0
    %3328 = vadd.xlane.f32.xlu0 %v3327
    %v3329 = vpop.xlane.xlu0 %3328
    %v3330 = vsel %vm430, %v3320, 0.0
    %3331 = vadd.xlane.f32.xlu0 %v3330
    %v3332 = vpop.xlane.xlu0 %3331
    %v3333 = vrcp.pop %v3323
    %v3334 = vrcp.pop %v3326
    %v3335 = vrcp.pop %v3329
    %v3336 = vrcp.pop %v3332
    %v3337 = vmul.f32 %v3314, %v3333
    %v3338 = vmul.f32 %v3316, %v3334
    %v3339 = vmul.f32 %v3318, %v3335
    %v3340 = vmul.f32 %v3320, %v3336
    %3341 = vxpose.xlu0.b32.start [1/16] %v3337, 128
    %3342 = vxpose.xlu0.b32.cont [2/16] %v3338, 128
    %3343 = vxpose.xlu0.b32.cont [3/16] 0.0, 128
    %3344 = vxpose.xlu0.b32.cont [4/16] 0.0, 128
    %3345 = vxpose.xlu0.b32.cont [5/16] 0.0, 128
    %3346 = vxpose.xlu0.b32.cont [6/16] 0.0, 128
    %3347 = vxpose.xlu0.b32.cont [7/16] 0.0, 128
    %3348 = vxpose.xlu0.b32.cont [8/16] 0.0, 128
    %3349 = vxpose.xlu0.b32.cont [9/16] 0.0, 128
    %3350 = vxpose.xlu0.b32.cont [10/16] 0.0, 128
    %3351 = vxpose.xlu0.b32.cont [11/16] 0.0, 128
    %3352 = vxpose.xlu0.b32.cont [12/16] 0.0, 128
    %3353 = vxpose.xlu0.b32.cont [13/16] 0.0, 128
    %3354 = vxpose.xlu0.b32.cont [14/16] 0.0, 128
    %3355 = vxpose.xlu0.b32.cont [15/16] 0.0, 128
    %3356 = vxpose.xlu0.b32.end [16/16] 0.0, 128
    %v3357 = vpop.trf.xlu0
    %v3358 = vpop.trf.xlu0
    %v3359 = vpop.trf.xlu0
    %v3360 = vpop.trf.xlu0
    %v3361 = vpop.trf.xlu0
    %v3362 = vpop.trf.xlu0
    %v3363 = vpop.trf.xlu0
    %v3364 = vpop.trf.xlu0
    %v3365 = vpop.trf.xlu0
    %v3366 = vpop.trf.xlu0
    %v3367 = vpop.trf.xlu0
    %v3368 = vpop.trf.xlu0
    %v3369 = vpop.trf.xlu0
    %v3370 = vpop.trf.xlu0
    %v3371 = vpop.trf.xlu0
    %v3372 = vpop.trf.xlu0
    %v3374 = vsel %vm430, %v3357, 0
    %v3377 = vsel %vm430, %v3358, 0
    %3379 = vmatprep.subr.mxu0 0.0
    %3380 = vmatpush1.msra.mxu0 %v3128
    %3381 = vmatprep.subr.mxu0 0.0
    %3382 = vmatpush1.msra.mxu0 %v3135
    %3383 = vmatprep.subr.mxu0 0.0
    %3384 = vmatpush1.msra.mxu0 0.0
    %3385 = vmatprep.subr.mxu0 0.0
    %3386 = vmatpush1.msra.mxu0 0.0
    %3387 = vmatprep.subr.mxu0 0.0
    %3388 = vmatpush1.msra.mxu0 0.0
    %3389 = vmatprep.subr.mxu0 0.0
    %3390 = vmatpush1.msra.mxu0 0.0
    %3391 = vmatprep.subr.mxu0 0.0
    %3392 = vmatpush1.msra.mxu0 0.0
    %3393 = vmatprep.subr.mxu0 0.0
    %3394 = vmatpush1.msra.mxu0 0.0
    %3395 = vmatprep.subr.mxu0 0.0
    %3396 = vmatpush1.msra.mxu0 0.0
    %3397 = vmatprep.subr.mxu0 0.0
    %3398 = vmatpush1.msra.mxu0 0.0
    %3399 = vmatprep.subr.mxu0 0.0
    %3400 = vmatpush1.msra.mxu0 0.0
    %3401 = vmatprep.subr.mxu0 0.0
    %3402 = vmatpush1.msra.mxu0 0.0
    %3403 = vmatprep.subr.mxu0 0.0
    %3404 = vmatpush1.msra.mxu0 0.0
    %3405 = vmatprep.subr.mxu0 0.0
    %3406 = vmatpush1.msra.mxu0 0.0
    %3407 = vmatprep.subr.mxu0 0.0
    %3408 = vmatpush1.msra.mxu0 0.0
    %3409 = vmatprep.subr.mxu0 0.0
    %3410 = vmatpush1.msra.mxu0 0.0
    %3411 = vmatprep.subr.mxu0 0.0
    %3412 = vmatpush1.msra.mxu0 0.0
    %3413 = vmatprep.subr.mxu0 0.0
    %3414 = vmatpush1.msra.mxu0 0.0
    %3415 = vmatprep.subr.mxu0 0.0
    %3416 = vmatpush1.msra.mxu0 0.0
    %3417 = vmatprep.subr.mxu0 0.0
    %3418 = vmatpush1.msra.mxu0 0.0
    %3419 = vmatprep.subr.mxu0 0.0
    %3420 = vmatpush1.msra.mxu0 0.0
    %3421 = vmatprep.subr.mxu0 0.0
    %3422 = vmatpush1.msra.mxu0 0.0
    %3423 = vmatprep.subr.mxu0 0.0
    %3424 = vmatpush1.msra.mxu0 0.0
    %3425 = vmatprep.subr.mxu0 0.0
    %3426 = vmatpush1.msra.mxu0 0.0
    %3427 = vmatprep.subr.mxu0 0.0
    %3428 = vmatpush1.msra.mxu0 0.0
    %3429 = vmatprep.subr.mxu0 0.0
    %3430 = vmatpush1.msra.mxu0 0.0
    %3431 = vmatprep.subr.mxu0 0.0
    %3432 = vmatpush1.msra.mxu0 0.0
    %3433 = vmatprep.subr.mxu0 0.0
    %3434 = vmatpush1.msra.mxu0 0.0
    %3435 = vmatprep.subr.mxu0 0.0
    %3436 = vmatpush1.msra.mxu0 0.0
    %3437 = vmatprep.subr.mxu0 0.0
    %3438 = vmatpush1.msra.mxu0 0.0
    %3439 = vmatprep.subr.mxu0 0.0
    %3440 = vmatpush1.msra.mxu0 0.0
    %3441 = vmatprep.subr.mxu0 0.0
    %3442 = vmatpush1.msra.mxu0 0.0
    %3443 = vmatprep.mubr.f32.mxu0 0.0
    %3444 = vmatmul.mubr.f32.gmra.mrb[0].mxu0 %v3374
    %v3445 = vpop.f32.mrb[0].mxu0
    %v3446 = vadd.f32 0.0, %v3445
    %v3447 = vpop.f32.mrb[0].mxu0
    %3448 = vmatprep.mubr.f32.mxu0 0.0
    %3449 = vmatmul.mubr.f32.gmra.mrb[0].mxu0 %v3377
    %v3450 = vpop.f32.mrb[0].mxu0
    %v3451 = vadd.f32 0.0, %v3450
    %v3452 = vpop.f32.mrb[0].mxu0
    %3453 = vdwg.mxu0
    %3454 = vxpose.xlu0.b32.start [1/16] %v3339, 128
    %3455 = vxpose.xlu0.b32.cont [2/16] %v3340, 128
    %3456 = vxpose.xlu0.b32.cont [3/16] 0.0, 128
    %3457 = vxpose.xlu0.b32.cont [4/16] 0.0, 128
    %3458 = vxpose.xlu0.b32.cont [5/16] 0.0, 128
    %3459 = vxpose.xlu0.b32.cont [6/16] 0.0, 128
    %3460 = vxpose.xlu0.b32.cont [7/16] 0.0, 128
    %3461 = vxpose.xlu0.b32.cont [8/16] 0.0, 128
    %3462 = vxpose.xlu0.b32.cont [9/16] 0.0, 128
    %3463 = vxpose.xlu0.b32.cont [10/16] 0.0, 128
    %3464 = vxpose.xlu0.b32.cont [11/16] 0.0, 128
    %3465 = vxpose.xlu0.b32.cont [12/16] 0.0, 128
    %3466 = vxpose.xlu0.b32.cont [13/16] 0.0, 128
    %3467 = vxpose.xlu0.b32.cont [14/16] 0.0, 128
    %3468 = vxpose.xlu0.b32.cont [15/16] 0.0, 128
    %3469 = vxpose.xlu0.b32.end [16/16] 0.0, 128
    %v3470 = vpop.trf.xlu0
    %v3471 = vpop.trf.xlu0
    %v3472 = vpop.trf.xlu0
    %v3473 = vpop.trf.xlu0
    %v3474 = vpop.trf.xlu0
    %v3475 = vpop.trf.xlu0
    %v3476 = vpop.trf.xlu0
    %v3477 = vpop.trf.xlu0
    %v3478 = vpop.trf.xlu0
    %v3479 = vpop.trf.xlu0
    %v3480 = vpop.trf.xlu0
    %v3481 = vpop.trf.xlu0
    %v3482 = vpop.trf.xlu0
    %v3483 = vpop.trf.xlu0
    %v3484 = vpop.trf.xlu0
    %v3485 = vpop.trf.xlu0
    %v3487 = vsel %vm430, %v3470, 0
    %v3490 = vsel %vm430, %v3471, 0
    %3492 = vmatprep.subr.mxu0 0.0
    %3493 = vmatpush1.msra.mxu0 %v3186
    %3494 = vmatprep.subr.mxu0 0.0
    %3495 = vmatpush1.msra.mxu0 %v3193
    %3496 = vmatprep.subr.mxu0 0.0
    %3497 = vmatpush1.msra.mxu0 0.0
    %3498 = vmatprep.subr.mxu0 0.0
    %3499 = vmatpush1.msra.mxu0 0.0
    %3500 = vmatprep.subr.mxu0 0.0
    %3501 = vmatpush1.msra.mxu0 0.0
    %3502 = vmatprep.subr.mxu0 0.0
    %3503 = vmatpush1.msra.mxu0 0.0
    %3504 = vmatprep.subr.mxu0 0.0
    %3505 = vmatpush1.msra.mxu0 0.0
    %3506 = vmatprep.subr.mxu0 0.0
    %3507 = vmatpush1.msra.mxu0 0.0
    %3508 = vmatprep.subr.mxu0 0.0
    %3509 = vmatpush1.msra.mxu0 0.0
    %3510 = vmatprep.subr.mxu0 0.0
    %3511 = vmatpush1.msra.mxu0 0.0
    %3512 = vmatprep.subr.mxu0 0.0
    %3513 = vmatpush1.msra.mxu0 0.0
    %3514 = vmatprep.subr.mxu0 0.0
    %3515 = vmatpush1.msra.mxu0 0.0
    %3516 = vmatprep.subr.mxu0 0.0
    %3517 = vmatpush1.msra.mxu0 0.0
    %3518 = vmatprep.subr.mxu0 0.0
    %3519 = vmatpush1.msra.mxu0 0.0
    %3520 = vmatprep.subr.mxu0 0.0
    %3521 = vmatpush1.msra.mxu0 0.0
    %3522 = vmatprep.subr.mxu0 0.0
    %3523 = vmatpush1.msra.mxu0 0.0
    %3524 = vmatprep.subr.mxu0 0.0
    %3525 = vmatpush1.msra.mxu0 0.0
    %3526 = vmatprep.subr.mxu0 0.0
    %3527 = vmatpush1.msra.mxu0 0.0
    %3528 = vmatprep.subr.mxu0 0.0
    %3529 = vmatpush1.msra.mxu0 0.0
    %3530 = vmatprep.subr.mxu0 0.0
    %3531 = vmatpush1.msra.mxu0 0.0
    %3532 = vmatprep.subr.mxu0 0.0
    %3533 = vmatpush1.msra.mxu0 0.0
    %3534 = vmatprep.subr.mxu0 0.0
    %3535 = vmatpush1.msra.mxu0 0.0
    %3536 = vmatprep.subr.mxu0 0.0
    %3537 = vmatpush1.msra.mxu0 0.0
    %3538 = vmatprep.subr.mxu0 0.0
    %3539 = vmatpush1.msra.mxu0 0.0
    %3540 = vmatprep.subr.mxu0 0.0
    %3541 = vmatpush1.msra.mxu0 0.0
    %3542 = vmatprep.subr.mxu0 0.0
    %3543 = vmatpush1.msra.mxu0 0.0
    %3544 = vmatprep.subr.mxu0 0.0
    %3545 = vmatpush1.msra.mxu0 0.0
    %3546 = vmatprep.subr.mxu0 0.0
    %3547 = vmatpush1.msra.mxu0 0.0
    %3548 = vmatprep.subr.mxu0 0.0
    %3549 = vmatpush1.msra.mxu0 0.0
    %3550 = vmatprep.subr.mxu0 0.0
    %3551 = vmatpush1.msra.mxu0 0.0
    %3552 = vmatprep.subr.mxu0 0.0
    %3553 = vmatpush1.msra.mxu0 0.0
    %3554 = vmatprep.subr.mxu0 0.0
    %3555 = vmatpush1.msra.mxu0 0.0
    %3556 = vmatprep.mubr.f32.mxu0 0.0
    %3557 = vmatmul.mubr.f32.gmra.mrb[0].mxu0 %v3487
    %v3558 = vpop.f32.mrb[0].mxu0
    %v3559 = vadd.f32 0.0, %v3558
    %v3560 = vpop.f32.mrb[0].mxu0
    %3561 = vmatprep.mubr.f32.mxu0 0.0
    %3562 = vmatmul.mubr.f32.gmra.mrb[0].mxu0 %v3490
    %v3563 = vpop.f32.mrb[0].mxu0
    %v3564 = vadd.f32 0.0, %v3563
    %v3565 = vpop.f32.mrb[0].mxu0
    %3566 = vdwg.mxu0
    %v3567 = vld [vmem:[%s41] sm:$0xff]
    %v3568 = vld [vmem:[%s41 + $0x8] sm:$0xff]
    %v3569 = vld [vmem:[%s43] sm:$0x1]
    %v3570 = vld [vmem:[%s45] sm:$0xff]
    %v3571 = vld [vmem:[%s45 + $0x8] sm:$0xff]
    %v3572 = vld [vmem:[%s47] sm:$0x1]
    %v3573 = vld [vmem:[%s49] sm:$0x1]
    %v3574 = vld [vmem:[%s51] sm:$0x1]
    %v3575 = vld [vmem:[%s53] sm:$0xff]
    %v3576 = vld [vmem:[%s53 + $0x8] sm:$0xff]
    %v3577 = vld [vmem:[%s55] sm:$0x1]
    %v3578 = vld [vmem:[%s57] sm:$0xff]
    %v3579 = vld [vmem:[%s57 + $0x8] sm:$0xff]
    %v3580 = vld [vmem:[%s57 + $0x10] sm:$0xff]
    %v3581 = vld [vmem:[%s57 + $0x18] sm:$0xff]
    %v3582 = vld [vmem:[%s57 + $0x20] sm:$0xff]
    %v3583 = vld [vmem:[%s57 + $0x28] sm:$0xff]
    %v3584 = vld [vmem:[%s57 + $0x30] sm:$0xff]
    %v3585 = vld [vmem:[%s57 + $0x38] sm:$0xff]
    %v3586 = vld [vmem:[%s59] sm:$0x1]
    %v3587 = vld [vmem:[%s61] sm:$0x1]
    %v3588 = vld [vmem:[%s63] sm:$0x1]
    %v3589 = vld [vmem:[%s65] sm:$0xff]
    %v3590 = vld [vmem:[%s65 + $0x8] sm:$0xff]
    %v3591 = vld [vmem:[%s65 + $0x10] sm:$0xff]
    %v3592 = vld [vmem:[%s65 + $0x18] sm:$0xff]
    %v3593 = vld [vmem:[%s65 + $0x20] sm:$0xff]
    %v3594 = vld [vmem:[%s65 + $0x28] sm:$0xff]
    %v3595 = vld [vmem:[%s65 + $0x30] sm:$0xff]
    %v3596 = vld [vmem:[%s65 + $0x38] sm:$0xff]
    %v3597 = vld [vmem:[%s65 + $0x40] sm:$0xff]
    %v3598 = vld [vmem:[%s65 + $0x48] sm:$0xff]
    %v3599 = vld [vmem:[%s65 + $0x50] sm:$0xff]
    %v3600 = vld [vmem:[%s65 + $0x58] sm:$0xff]
    %v3601 = vld [vmem:[%s65 + $0x60] sm:$0xff]
    %v3602 = vld [vmem:[%s65 + $0x68] sm:$0xff]
    %v3603 = vld [vmem:[%s65 + $0x70] sm:$0xff]
    %v3604 = vld [vmem:[%s65 + $0x78] sm:$0xff]
    %v3605 = vld [vmem:[%s65 + $0x80] sm:$0xff]
    %v3606 = vld [vmem:[%s65 + $0x88] sm:$0xff]
    %v3607 = vld [vmem:[%s65 + $0x90] sm:$0xff]
    %v3608 = vld [vmem:[%s65 + $0x98] sm:$0xff]
    %v3609 = vld [vmem:[%s65 + $0xa0] sm:$0xff]
    %v3610 = vld [vmem:[%s65 + $0xa8] sm:$0xff]
    %v3611 = vld [vmem:[%s65 + $0xb0] sm:$0xff]
    %v3612 = vld [vmem:[%s65 + $0xb8] sm:$0xff]
    %v3613 = vld [vmem:[%s65 + $0xc0] sm:$0xff]
    %v3614 = vld [vmem:[%s65 + $0xc8] sm:$0xff]
    %v3615 = vld [vmem:[%s65 + $0xd0] sm:$0xff]
    %v3616 = vld [vmem:[%s65 + $0xd8] sm:$0xff]
    %v3617 = vld [vmem:[%s65 + $0xe0] sm:$0xff]
    %v3618 = vld [vmem:[%s65 + $0xe8] sm:$0xff]
    %v3619 = vld [vmem:[%s65 + $0xf0] sm:$0xff]
    %v3620 = vld [vmem:[%s65 + $0xf8] sm:$0xff]
    %v3621 = vld [vmem:[%s67] sm:$0x1]
    %v3622 = vld [vmem:[%s69] sm:$0xff]
    %v3623 = vld [vmem:[%s69 + $0x8] sm:$0xff]
    %v3624 = vld [vmem:[%s69 + $0x10] sm:$0xff]
    %v3625 = vld [vmem:[%s69 + $0x18] sm:$0xff]
    %v3626 = vld [vmem:[%s71] sm:$0x1]
    %v3627 = vld [vmem:[%s73] sm:$0xff]
    %v3628 = vld [vmem:[%s73 + $0x8] sm:$0xff]
    %v3629 = vld [vmem:[%s73 + $0x10] sm:$0xff]
    %v3630 = vld [vmem:[%s73 + $0x18] sm:$0xff]
    %v3631 = vld [vmem:[%s73 + $0x20] sm:$0xff]
    %v3632 = vld [vmem:[%s73 + $0x28] sm:$0xff]
    %v3633 = vld [vmem:[%s73 + $0x30] sm:$0xff]
    %v3634 = vld [vmem:[%s73 + $0x38] sm:$0xff]
    %v3635 = vld [vmem:[%s75] sm:$0x3]
    %v3636 = vld [vmem:[%s77] sm:$0xff]
    %v3638 = vlaneseq
    %v3639 = vshrl.u32 %v3638, 7
    %v3640 = vsub.s32 0, %v3639
    %v3641 = vrot.slane %v3569, %v3640
    %v3644 = vsel %vm430, %v3446, 0
    %v3647 = vsel %vm430, %v3451, 0
    %v3650 = vsel %vm430, %v3559, 0
    %v3653 = vsel %vm430, %v3564, 0
    %3655 = vmatprep.subr.mxu0 0.0
    %3656 = vmatpush1.msra.mxu0 %v3567
    %3657 = vmatprep.subr.mxu0 0.0
    %3658 = vmatpush1.msra.mxu0 %v3568
    %3659 = vmatprep.subr.mxu0 0.0
    %3660 = vmatpush1.msra.mxu0 0.0
    %3661 = vmatprep.subr.mxu0 0.0
    %3662 = vmatpush1.msra.mxu0 0.0
    %3663 = vmatprep.subr.mxu0 0.0
    %3664 = vmatpush1.msra.mxu0 0.0
    %3665 = vmatprep.subr.mxu0 0.0
    %3666 = vmatpush1.msra.mxu0 0.0
    %3667 = vmatprep.subr.mxu0 0.0
    %3668 = vmatpush1.msra.mxu0 0.0
    %3669 = vmatprep.subr.mxu0 0.0
    %3670 = vmatpush1.msra.mxu0 0.0
    %3671 = vmatprep.subr.mxu0 0.0
    %3672 = vmatpush1.msra.mxu0 0.0
    %3673 = vmatprep.subr.mxu0 0.0
    %3674 = vmatpush1.msra.mxu0 0.0
    %3675 = vmatprep.subr.mxu0 0.0
    %3676 = vmatpush1.msra.mxu0 0.0
    %3677 = vmatprep.subr.mxu0 0.0
    %3678 = vmatpush1.msra.mxu0 0.0
    %3679 = vmatprep.subr.mxu0 0.0
    %3680 = vmatpush1.msra.mxu0 0.0
    %3681 = vmatprep.subr.mxu0 0.0
    %3682 = vmatpush1.msra.mxu0 0.0
    %3683 = vmatprep.subr.mxu0 0.0
    %3684 = vmatpush1.msra.mxu0 0.0
    %3685 = vmatprep.subr.mxu0 0.0
    %3686 = vmatpush1.msra.mxu0 0.0
    %3687 = vmatprep.subr.mxu0 0.0
    %3688 = vmatpush1.msra.mxu0 0.0
    %3689 = vmatprep.subr.mxu0 0.0
    %3690 = vmatpush1.msra.mxu0 0.0
    %3691 = vmatprep.subr.mxu0 0.0
    %3692 = vmatpush1.msra.mxu0 0.0
    %3693 = vmatprep.subr.mxu0 0.0
    %3694 = vmatpush1.msra.mxu0 0.0
    %3695 = vmatprep.subr.mxu0 0.0
    %3696 = vmatpush1.msra.mxu0 0.0
    %3697 = vmatprep.subr.mxu0 0.0
    %3698 = vmatpush1.msra.mxu0 0.0
    %3699 = vmatprep.subr.mxu0 0.0
    %3700 = vmatpush1.msra.mxu0 0.0
    %3701 = vmatprep.subr.mxu0 0.0
    %3702 = vmatpush1.msra.mxu0 0.0
    %3703 = vmatprep.subr.mxu0 0.0
    %3704 = vmatpush1.msra.mxu0 0.0
    %3705 = vmatprep.subr.mxu0 0.0
    %3706 = vmatpush1.msra.mxu0 0.0
    %3707 = vmatprep.subr.mxu0 0.0
    %3708 = vmatpush1.msra.mxu0 0.0
    %3709 = vmatprep.subr.mxu0 0.0
    %3710 = vmatpush1.msra.mxu0 0.0
    %3711 = vmatprep.subr.mxu0 0.0
    %3712 = vmatpush1.msra.mxu0 0.0
    %3713 = vmatprep.subr.mxu0 0.0
    %3714 = vmatpush1.msra.mxu0 0.0
    %3715 = vmatprep.subr.mxu0 0.0
    %3716 = vmatpush1.msra.mxu0 0.0
    %3717 = vmatprep.subr.mxu0 0.0
    %3718 = vmatpush1.msra.mxu0 0.0
    %3719 = vmatprep.mubr.f32.mxu0 0.0
    %3720 = vmatmul.mubr.f32.gmra.mrb[0].mxu0 %v3644
    %v3721 = vpop.f32.mrb[0].mxu0
    %v3722 = vadd.f32 %v3641, %v3721
    %v3723 = vpop.f32.mrb[0].mxu0
    %3724 = vmatprep.mubr.f32.mxu0 0.0
    %3725 = vmatmul.mubr.f32.gmra.mrb[0].mxu0 %v3647
    %v3726 = vpop.f32.mrb[0].mxu0
    %v3727 = vadd.f32 %v3641, %v3726
    %v3728 = vpop.f32.mrb[0].mxu0
    %3729 = vmatprep.mubr.f32.mxu0 0.0
    %3730 = vmatmul.mubr.f32.gmra.mrb[0].mxu0 %v3650
    %v3731 = vpop.f32.mrb[0].mxu0
    %v3732 = vadd.f32 %v3641, %v3731
    %v3733 = vpop.f32.mrb[0].mxu0
    %3734 = vmatprep.mubr.f32.mxu0 0.0
    %3735 = vmatmul.mubr.f32.gmra.mrb[0].mxu0 %v3653
    %v3736 = vpop.f32.mrb[0].mxu0
    %v3737 = vadd.f32 %v3641, %v3736
    %v3738 = vpop.f32.mrb[0].mxu0
    %3739 = vdwg.mxu0
    %3742 = vrot.lane.b32.xlu0 %v3722, 112
    %v3743 = vpop.permute.xlu0 %3742
    %3744 = vrot.lane.b32.xlu0 %v3727, 112
    %v3745 = vpop.permute.xlu0 %3744
    %v3746 = vsel %vm534, %v3722, 0
    %v3748 = vsel %vm534, %v3727, 0
    %v3750 = vsel %vm534, %v3743, 0
    %v3752 = vsel %vm534, %v3745, 0
    %3754 = vmatprep.subr.mxu0 0.0
    %3755 = vmatpush1.xpose.msra.mxu0 %v3750
    %3756 = vmatprep.subr.mxu0 0.0
    %3757 = vmatpush1.xpose.msra.mxu0 %v3752
    %3758 = vmatprep.subr.mxu0 0.0
    %3759 = vmatpush1.xpose.msra.mxu0 0.0
    %3760 = vmatprep.subr.mxu0 0.0
    %3761 = vmatpush1.xpose.msra.mxu0 0.0
    %3762 = vmatprep.subr.mxu0 0.0
    %3763 = vmatpush1.xpose.msra.mxu0 0.0
    %3764 = vmatprep.subr.mxu0 0.0
    %3765 = vmatpush1.xpose.msra.mxu0 0.0
    %3766 = vmatprep.subr.mxu0 0.0
    %3767 = vmatpush1.xpose.msra.mxu0 0.0
    %3768 = vmatprep.subr.mxu0 0.0
    %3769 = vmatpush1.xpose.msra.mxu0 0.0
    %3770 = vmatprep.subr.mxu0 0.0
    %3771 = vmatpush1.xpose.msra.mxu0 0.0
    %3772 = vmatprep.subr.mxu0 0.0
    %3773 = vmatpush1.xpose.msra.mxu0 0.0
    %3774 = vmatprep.subr.mxu0 0.0
    %3775 = vmatpush1.xpose.msra.mxu0 0.0
    %3776 = vmatprep.subr.mxu0 0.0
    %3777 = vmatpush1.xpose.msra.mxu0 0.0
    %3778 = vmatprep.subr.mxu0 0.0
    %3779 = vmatpush1.xpose.msra.mxu0 0.0
    %3780 = vmatprep.subr.mxu0 0.0
    %3781 = vmatpush1.xpose.msra.mxu0 0.0
    %3782 = vmatprep.subr.mxu0 0.0
    %3783 = vmatpush1.xpose.msra.mxu0 0.0
    %3784 = vmatprep.subr.mxu0 0.0
    %3785 = vmatpush1.xpose.msra.mxu0 0.0
    %3786 = vmatprep.subr.mxu0 0.0
    %3787 = vmatpush1.xpose.msra.mxu0 0.0
    %3788 = vmatprep.subr.mxu0 0.0
    %3789 = vmatpush1.xpose.msra.mxu0 0.0
    %3790 = vmatprep.subr.mxu0 0.0
    %3791 = vmatpush1.xpose.msra.mxu0 0.0
    %3792 = vmatprep.subr.mxu0 0.0
    %3793 = vmatpush1.xpose.msra.mxu0 0.0
    %3794 = vmatprep.subr.mxu0 0.0
    %3795 = vmatpush1.xpose.msra.mxu0 0.0
    %3796 = vmatprep.subr.mxu0 0.0
    %3797 = vmatpush1.xpose.msra.mxu0 0.0
    %3798 = vmatprep.subr.mxu0 0.0
    %3799 = vmatpush1.xpose.msra.mxu0 0.0
    %3800 = vmatprep.subr.mxu0 0.0
    %3801 = vmatpush1.xpose.msra.mxu0 0.0
    %3802 = vmatprep.subr.mxu0 0.0
    %3803 = vmatpush1.xpose.msra.mxu0 0.0
    %3804 = vmatprep.subr.mxu0 0.0
    %3805 = vmatpush1.xpose.msra.mxu0 0.0
    %3806 = vmatprep.subr.mxu0 0.0
    %3807 = vmatpush1.xpose.msra.mxu0 0.0
    %3808 = vmatprep.subr.mxu0 0.0
    %3809 = vmatpush1.xpose.msra.mxu0 0.0
    %3810 = vmatprep.subr.mxu0 0.0
    %3811 = vmatpush1.xpose.msra.mxu0 0.0
    %3812 = vmatprep.subr.mxu0 0.0
    %3813 = vmatpush1.xpose.msra.mxu0 0.0
    %3814 = vmatprep.subr.mxu0 0.0
    %3815 = vmatpush1.xpose.msra.mxu0 0.0
    %3816 = vmatprep.subr.mxu0 0.0
    %3817 = vmatpush1.xpose.msra.mxu0 0.0
    %3818 = vmatprep.mubr.f32.mxu0 0.0
    %3819 = vmatmul.mubr.f32.gmra.mrb[0].mxu0 %v3746
    %v3820 = vpop.f32.mrb[0].mxu0
    %v3821 = vadd.f32 0.0, %v3820
    %v3822 = vpop.f32.mrb[0].mxu0
    %3823 = vmatprep.mubr.f32.mxu0 0.0
    %3824 = vmatmul.mubr.f32.gmra.mrb[0].mxu0 %v3748
    %v3825 = vpop.f32.mrb[0].mxu0
    %v3826 = vadd.f32 0.0, %v3825
    %v3827 = vpop.f32.mrb[0].mxu0
    %3828 = vdwg.mxu0
    %3831 = vrot.lane.b32.xlu0 %v3732, 112
    %v3832 = vpop.permute.xlu0 %3831
    %3833 = vrot.lane.b32.xlu0 %v3737, 112
    %v3834 = vpop.permute.xlu0 %3833
    %v3835 = vsel %vm534, %v3732, 0
    %v3837 = vsel %vm534, %v3737, 0
    %v3839 = vsel %vm534, %v3832, 0
    %v3841 = vsel %vm534, %v3834, 0
    %3843 = vmatprep.subr.mxu0 0.0
    %3844 = vmatpush1.xpose.msra.mxu0 %v3839
    %3845 = vmatprep.subr.mxu0 0.0
    %3846 = vmatpush1.xpose.msra.mxu0 %v3841
    %3847 = vmatprep.subr.mxu0 0.0
    %3848 = vmatpush1.xpose.msra.mxu0 0.0
    %3849 = vmatprep.subr.mxu0 0.0
    %3850 = vmatpush1.xpose.msra.mxu0 0.0
    %3851 = vmatprep.subr.mxu0 0.0
    %3852 = vmatpush1.xpose.msra.mxu0 0.0
    %3853 = vmatprep.subr.mxu0 0.0
    %3854 = vmatpush1.xpose.msra.mxu0 0.0
    %3855 = vmatprep.subr.mxu0 0.0
    %3856 = vmatpush1.xpose.msra.mxu0 0.0
    %3857 = vmatprep.subr.mxu0 0.0
    %3858 = vmatpush1.xpose.msra.mxu0 0.0
    %3859 = vmatprep.subr.mxu0 0.0
    %3860 = vmatpush1.xpose.msra.mxu0 0.0
    %3861 = vmatprep.subr.mxu0 0.0
    %3862 = vmatpush1.xpose.msra.mxu0 0.0
    %3863 = vmatprep.subr.mxu0 0.0
    %3864 = vmatpush1.xpose.msra.mxu0 0.0
    %3865 = vmatprep.subr.mxu0 0.0
    %3866 = vmatpush1.xpose.msra.mxu0 0.0
    %3867 = vmatprep.subr.mxu0 0.0
    %3868 = vmatpush1.xpose.msra.mxu0 0.0
    %3869 = vmatprep.subr.mxu0 0.0
    %3870 = vmatpush1.xpose.msra.mxu0 0.0
    %3871 = vmatprep.subr.mxu0 0.0
    %3872 = vmatpush1.xpose.msra.mxu0 0.0
    %3873 = vmatprep.subr.mxu0 0.0
    %3874 = vmatpush1.xpose.msra.mxu0 0.0
    %3875 = vmatprep.subr.mxu0 0.0
    %3876 = vmatpush1.xpose.msra.mxu0 0.0
    %3877 = vmatprep.subr.mxu0 0.0
    %3878 = vmatpush1.xpose.msra.mxu0 0.0
    %3879 = vmatprep.subr.mxu0 0.0
    %3880 = vmatpush1.xpose.msra.mxu0 0.0
    %3881 = vmatprep.subr.mxu0 0.0
    %3882 = vmatpush1.xpose.msra.mxu0 0.0
    %3883 = vmatprep.subr.mxu0 0.0
    %3884 = vmatpush1.xpose.msra.mxu0 0.0
    %3885 = vmatprep.subr.mxu0 0.0
    %3886 = vmatpush1.xpose.msra.mxu0 0.0
    %3887 = vmatprep.subr.mxu0 0.0
    %3888 = vmatpush1.xpose.msra.mxu0 0.0
    %3889 = vmatprep.subr.mxu0 0.0
    %3890 = vmatpush1.xpose.msra.mxu0 0.0
    %3891 = vmatprep.subr.mxu0 0.0
    %3892 = vmatpush1.xpose.msra.mxu0 0.0
    %3893 = vmatprep.subr.mxu0 0.0
    %3894 = vmatpush1.xpose.msra.mxu0 0.0
    %3895 = vmatprep.subr.mxu0 0.0
    %3896 = vmatpush1.xpose.msra.mxu0 0.0
    %3897 = vmatprep.subr.mxu0 0.0
    %3898 = vmatpush1.xpose.msra.mxu0 0.0
    %3899 = vmatprep.subr.mxu0 0.0
    %3900 = vmatpush1.xpose.msra.mxu0 0.0
    %3901 = vmatprep.subr.mxu0 0.0
    %3902 = vmatpush1.xpose.msra.mxu0 0.0
    %3903 = vmatprep.subr.mxu0 0.0
    %3904 = vmatpush1.xpose.msra.mxu0 0.0
    %3905 = vmatprep.subr.mxu0 0.0
    %3906 = vmatpush1.xpose.msra.mxu0 0.0
    %3907 = vmatprep.mubr.f32.mxu0 0.0
    %3908 = vmatmul.mubr.f32.gmra.mrb[0].mxu0 %v3835
    %v3909 = vpop.f32.mrb[0].mxu0
    %v3910 = vadd.f32 0.0, %v3909
    %v3911 = vpop.f32.mrb[0].mxu0
    %3912 = vmatprep.mubr.f32.mxu0 0.0
    %3913 = vmatmul.mubr.f32.gmra.mrb[0].mxu0 %v3837
    %v3914 = vpop.f32.mrb[0].mxu0
    %v3915 = vadd.f32 0.0, %v3914
    %v3916 = vpop.f32.mrb[0].mxu0
    %3917 = vdwg.mxu0
    %v3918 = vsel %vm430, %v3821, -inf
    %3919 = vmax.xlane.f32.xlu0 %v3918
    %v3920 = vpop.xlane.xlu0 %3919
    %v3921 = vsel %vm430, %v3826, -inf
    %3922 = vmax.xlane.f32.xlu0 %v3921
    %v3923 = vpop.xlane.xlu0 %3922
    %v3924 = vsel %vm430, %v3910, -inf
    %3925 = vmax.xlane.f32.xlu0 %v3924
    %v3926 = vpop.xlane.xlu0 %3925
    %v3927 = vsel %vm430, %v3915, -inf
    %3928 = vmax.xlane.f32.xlu0 %v3927
    %v3929 = vpop.xlane.xlu0 %3928
    %v3930 = vsub.f32 %v3821, %v3920
    %v3931 = vsub.f32 %v3826, %v3923
    %v3932 = vsub.f32 %v3910, %v3926
    %v3933 = vsub.f32 %v3915, %v3929
    %v3934 = vmul.f32 %v3930, 1.442695
    %v3935 = vpow.pop %v3934
    %v3936 = vmul.f32 %v3931, 1.442695
    %v3937 = vpow.pop %v3936
    %v3938 = vmul.f32 %v3932, 1.442695
    %v3939 = vpow.pop %v3938
    %v3940 = vmul.f32 %v3933, 1.442695
    %v3941 = vpow.pop %v3940
    %v3942 = vsel %vm430, %v3935, 0.0
    %3943 = vadd.xlane.f32.xlu0 %v3942
    %v3944 = vpop.xlane.xlu0 %3943
    %v3945 = vsel %vm430, %v3937, 0.0
    %3946 = vadd.xlane.f32.xlu0 %v3945
    %v3947 = vpop.xlane.xlu0 %3946
    %v3948 = vsel %vm430, %v3939, 0.0
    %3949 = vadd.xlane.f32.xlu0 %v3948
    %v3950 = vpop.xlane.xlu0 %3949
    %v3951 = vsel %vm430, %v3941, 0.0
    %3952 = vadd.xlane.f32.xlu0 %v3951
    %v3953 = vpop.xlane.xlu0 %3952
    %v3954 = vrcp.pop %v3944
    %v3955 = vrcp.pop %v3947
    %v3956 = vrcp.pop %v3950
    %v3957 = vrcp.pop %v3953
    %v3958 = vmul.f32 %v3935, %v3954
    %v3959 = vmul.f32 %v3937, %v3955
    %v3960 = vmul.f32 %v3939, %v3956
    %v3961 = vmul.f32 %v3941, %v3957
    %3962 = vrot.lane.b32.xlu0 %v3722, 96
    %v3963 = vpop.permute.xlu0 %3962
    %3964 = vrot.lane.b32.xlu0 %v3727, 96
    %v3965 = vpop.permute.xlu0 %3964
    %v3969 = vsel %vm430, %v3958, 0
    %v3972 = vsel %vm430, %v3959, 0
    %3974 = vmatprep.subr.mxu0 0.0
    %3975 = vmatpush1.msra.mxu0 %v3963
    %3976 = vmatprep.subr.mxu0 0.0
    %3977 = vmatpush1.msra.mxu0 %v3965
    %3978 = vmatprep.subr.mxu0 0.0
    %3979 = vmatpush1.msra.mxu0 0.0
    %3980 = vmatprep.subr.mxu0 0.0
    %3981 = vmatpush1.msra.mxu0 0.0
    %3982 = vmatprep.subr.mxu0 0.0
    %3983 = vmatpush1.msra.mxu0 0.0
    %3984 = vmatprep.subr.mxu0 0.0
    %3985 = vmatpush1.msra.mxu0 0.0
    %3986 = vmatprep.subr.mxu0 0.0
    %3987 = vmatpush1.msra.mxu0 0.0
    %3988 = vmatprep.subr.mxu0 0.0
    %3989 = vmatpush1.msra.mxu0 0.0
    %3990 = vmatprep.subr.mxu0 0.0
    %3991 = vmatpush1.msra.mxu0 0.0
    %3992 = vmatprep.subr.mxu0 0.0
    %3993 = vmatpush1.msra.mxu0 0.0
    %3994 = vmatprep.subr.mxu0 0.0
    %3995 = vmatpush1.msra.mxu0 0.0
    %3996 = vmatprep.subr.mxu0 0.0
    %3997 = vmatpush1.msra.mxu0 0.0
    %3998 = vmatprep.subr.mxu0 0.0
    %3999 = vmatpush1.msra.mxu0 0.0
    %4000 = vmatprep.subr.mxu0 0.0
    %4001 = vmatpush1.msra.mxu0 0.0
    %4002 = vmatprep.subr.mxu0 0.0
    %4003 = vmatpush1.msra.mxu0 0.0
    %4004 = vmatprep.subr.mxu0 0.0
    %4005 = vmatpush1.msra.mxu0 0.0
    %4006 = vmatprep.subr.mxu0 0.0
    %4007 = vmatpush1.msra.mxu0 0.0
    %4008 = vmatprep.subr.mxu0 0.0
    %4009 = vmatpush1.msra.mxu0 0.0
    %4010 = vmatprep.subr.mxu0 0.0
    %4011 = vmatpush1.msra.mxu0 0.0
    %4012 = vmatprep.subr.mxu0 0.0
    %4013 = vmatpush1.msra.mxu0 0.0
    %4014 = vmatprep.subr.mxu0 0.0
    %4015 = vmatpush1.msra.mxu0 0.0
    %4016 = vmatprep.subr.mxu0 0.0
    %4017 = vmatpush1.msra.mxu0 0.0
    %4018 = vmatprep.subr.mxu0 0.0
    %4019 = vmatpush1.msra.mxu0 0.0
    %4020 = vmatprep.subr.mxu0 0.0
    %4021 = vmatpush1.msra.mxu0 0.0
    %4022 = vmatprep.subr.mxu0 0.0
    %4023 = vmatpush1.msra.mxu0 0.0
    %4024 = vmatprep.subr.mxu0 0.0
    %4025 = vmatpush1.msra.mxu0 0.0
    %4026 = vmatprep.subr.mxu0 0.0
    %4027 = vmatpush1.msra.mxu0 0.0
    %4028 = vmatprep.subr.mxu0 0.0
    %4029 = vmatpush1.msra.mxu0 0.0
    %4030 = vmatprep.subr.mxu0 0.0
    %4031 = vmatpush1.msra.mxu0 0.0
    %4032 = vmatprep.subr.mxu0 0.0
    %4033 = vmatpush1.msra.mxu0 0.0
    %4034 = vmatprep.subr.mxu0 0.0
    %4035 = vmatpush1.msra.mxu0 0.0
    %4036 = vmatprep.subr.mxu0 0.0
    %4037 = vmatpush1.msra.mxu0 0.0
    %4038 = vmatprep.mubr.f32.mxu0 0.0
    %4039 = vmatmul.mubr.f32.gmra.mrb[0].mxu0 %v3969
    %v4040 = vpop.f32.mrb[0].mxu0
    %v4041 = vadd.f32 0.0, %v4040
    %v4042 = vpop.f32.mrb[0].mxu0
    %4043 = vmatprep.mubr.f32.mxu0 0.0
    %4044 = vmatmul.mubr.f32.gmra.mrb[0].mxu0 %v3972
    %v4045 = vpop.f32.mrb[0].mxu0
    %v4046 = vadd.f32 0.0, %v4045
    %v4047 = vpop.f32.mrb[0].mxu0
    %4048 = vdwg.mxu0
    %4049 = vrot.lane.b32.xlu0 %v3732, 96
    %v4050 = vpop.permute.xlu0 %4049
    %4051 = vrot.lane.b32.xlu0 %v3737, 96
    %v4052 = vpop.permute.xlu0 %4051
    %v4056 = vsel %vm430, %v3960, 0
    %v4059 = vsel %vm430, %v3961, 0
    %4061 = vmatprep.subr.mxu0 0.0
    %4062 = vmatpush1.msra.mxu0 %v4050
    %4063 = vmatprep.subr.mxu0 0.0
    %4064 = vmatpush1.msra.mxu0 %v4052
    %4065 = vmatprep.subr.mxu0 0.0
    %4066 = vmatpush1.msra.mxu0 0.0
    %4067 = vmatprep.subr.mxu0 0.0
    %4068 = vmatpush1.msra.mxu0 0.0
    %4069 = vmatprep.subr.mxu0 0.0
    %4070 = vmatpush1.msra.mxu0 0.0
    %4071 = vmatprep.subr.mxu0 0.0
    %4072 = vmatpush1.msra.mxu0 0.0
    %4073 = vmatprep.subr.mxu0 0.0
    %4074 = vmatpush1.msra.mxu0 0.0
    %4075 = vmatprep.subr.mxu0 0.0
    %4076 = vmatpush1.msra.mxu0 0.0
    %4077 = vmatprep.subr.mxu0 0.0
    %4078 = vmatpush1.msra.mxu0 0.0
    %4079 = vmatprep.subr.mxu0 0.0
    %4080 = vmatpush1.msra.mxu0 0.0
    %4081 = vmatprep.subr.mxu0 0.0
    %4082 = vmatpush1.msra.mxu0 0.0
    %4083 = vmatprep.subr.mxu0 0.0
    %4084 = vmatpush1.msra.mxu0 0.0
    %4085 = vmatprep.subr.mxu0 0.0
    %4086 = vmatpush1.msra.mxu0 0.0
    %4087 = vmatprep.subr.mxu0 0.0
    %4088 = vmatpush1.msra.mxu0 0.0
    %4089 = vmatprep.subr.mxu0 0.0
    %4090 = vmatpush1.msra.mxu0 0.0
    %4091 = vmatprep.subr.mxu0 0.0
    %4092 = vmatpush1.msra.mxu0 0.0
    %4093 = vmatprep.subr.mxu0 0.0
    %4094 = vmatpush1.msra.mxu0 0.0
    %4095 = vmatprep.subr.mxu0 0.0
    %4096 = vmatpush1.msra.mxu0 0.0
    %4097 = vmatprep.subr.mxu0 0.0
    %4098 = vmatpush1.msra.mxu0 0.0
    %4099 = vmatprep.subr.mxu0 0.0
    %4100 = vmatpush1.msra.mxu0 0.0
    %4101 = vmatprep.subr.mxu0 0.0
    %4102 = vmatpush1.msra.mxu0 0.0
    %4103 = vmatprep.subr.mxu0 0.0
    %4104 = vmatpush1.msra.mxu0 0.0
    %4105 = vmatprep.subr.mxu0 0.0
    %4106 = vmatpush1.msra.mxu0 0.0
    %4107 = vmatprep.subr.mxu0 0.0
    %4108 = vmatpush1.msra.mxu0 0.0
    %4109 = vmatprep.subr.mxu0 0.0
    %4110 = vmatpush1.msra.mxu0 0.0
    %4111 = vmatprep.subr.mxu0 0.0
    %4112 = vmatpush1.msra.mxu0 0.0
    %4113 = vmatprep.subr.mxu0 0.0
    %4114 = vmatpush1.msra.mxu0 0.0
    %4115 = vmatprep.subr.mxu0 0.0
    %4116 = vmatpush1.msra.mxu0 0.0
    %4117 = vmatprep.subr.mxu0 0.0
    %4118 = vmatpush1.msra.mxu0 0.0
    %4119 = vmatprep.subr.mxu0 0.0
    %4120 = vmatpush1.msra.mxu0 0.0
    %4121 = vmatprep.subr.mxu0 0.0
    %4122 = vmatpush1.msra.mxu0 0.0
    %4123 = vmatprep.subr.mxu0 0.0
    %4124 = vmatpush1.msra.mxu0 0.0
    %4125 = vmatprep.mubr.f32.mxu0 0.0
    %4126 = vmatmul.mubr.f32.gmra.mrb[0].mxu0 %v4056
    %v4127 = vpop.f32.mrb[0].mxu0
    %v4128 = vadd.f32 0.0, %v4127
    %v4129 = vpop.f32.mrb[0].mxu0
    %4130 = vmatprep.mubr.f32.mxu0 0.0
    %4131 = vmatmul.mubr.f32.gmra.mrb[0].mxu0 %v4059
    %v4132 = vpop.f32.mrb[0].mxu0
    %v4133 = vadd.f32 0.0, %v4132
    %v4134 = vpop.f32.mrb[0].mxu0
    %4135 = vdwg.mxu0
    %4136 = vrot.lane.b32.xlu0 %v3722, 124
    %v4137 = vpop.permute.xlu0 %4136
    %4138 = vrot.lane.b32.xlu0 %v3727, 124
    %v4139 = vpop.permute.xlu0 %4138
    %4140 = vrot.lane.b32.xlu0 %v3722, 108
    %v4141 = vpop.permute.xlu0 %4140
    %4142 = vrot.lane.b32.xlu0 %v3727, 108
    %v4143 = vpop.permute.xlu0 %4142
    %v4144 = vsel %vm534, %v4137, 0
    %v4146 = vsel %vm534, %v4139, 0
    %v4148 = vsel %vm534, %v4141, 0
    %v4150 = vsel %vm534, %v4143, 0
    %4152 = vmatprep.subr.mxu0 0.0
    %4153 = vmatpush1.xpose.msra.mxu0 %v4148
    %4154 = vmatprep.subr.mxu0 0.0
    %4155 = vmatpush1.xpose.msra.mxu0 %v4150
    %4156 = vmatprep.subr.mxu0 0.0
    %4157 = vmatpush1.xpose.msra.mxu0 0.0
    %4158 = vmatprep.subr.mxu0 0.0
    %4159 = vmatpush1.xpose.msra.mxu0 0.0
    %4160 = vmatprep.subr.mxu0 0.0
    %4161 = vmatpush1.xpose.msra.mxu0 0.0
    %4162 = vmatprep.subr.mxu0 0.0
    %4163 = vmatpush1.xpose.msra.mxu0 0.0
    %4164 = vmatprep.subr.mxu0 0.0
    %4165 = vmatpush1.xpose.msra.mxu0 0.0
    %4166 = vmatprep.subr.mxu0 0.0
    %4167 = vmatpush1.xpose.msra.mxu0 0.0
    %4168 = vmatprep.subr.mxu0 0.0
    %4169 = vmatpush1.xpose.msra.mxu0 0.0
    %4170 = vmatprep.subr.mxu0 0.0
    %4171 = vmatpush1.xpose.msra.mxu0 0.0
    %4172 = vmatprep.subr.mxu0 0.0
    %4173 = vmatpush1.xpose.msra.mxu0 0.0
    %4174 = vmatprep.subr.mxu0 0.0
    %4175 = vmatpush1.xpose.msra.mxu0 0.0
    %4176 = vmatprep.subr.mxu0 0.0
    %4177 = vmatpush1.xpose.msra.mxu0 0.0
    %4178 = vmatprep.subr.mxu0 0.0
    %4179 = vmatpush1.xpose.msra.mxu0 0.0
    %4180 = vmatprep.subr.mxu0 0.0
    %4181 = vmatpush1.xpose.msra.mxu0 0.0
    %4182 = vmatprep.subr.mxu0 0.0
    %4183 = vmatpush1.xpose.msra.mxu0 0.0
    %4184 = vmatprep.subr.mxu0 0.0
    %4185 = vmatpush1.xpose.msra.mxu0 0.0
    %4186 = vmatprep.subr.mxu0 0.0
    %4187 = vmatpush1.xpose.msra.mxu0 0.0
    %4188 = vmatprep.subr.mxu0 0.0
    %4189 = vmatpush1.xpose.msra.mxu0 0.0
    %4190 = vmatprep.subr.mxu0 0.0
    %4191 = vmatpush1.xpose.msra.mxu0 0.0
    %4192 = vmatprep.subr.mxu0 0.0
    %4193 = vmatpush1.xpose.msra.mxu0 0.0
    %4194 = vmatprep.subr.mxu0 0.0
    %4195 = vmatpush1.xpose.msra.mxu0 0.0
    %4196 = vmatprep.subr.mxu0 0.0
    %4197 = vmatpush1.xpose.msra.mxu0 0.0
    %4198 = vmatprep.subr.mxu0 0.0
    %4199 = vmatpush1.xpose.msra.mxu0 0.0
    %4200 = vmatprep.subr.mxu0 0.0
    %4201 = vmatpush1.xpose.msra.mxu0 0.0
    %4202 = vmatprep.subr.mxu0 0.0
    %4203 = vmatpush1.xpose.msra.mxu0 0.0
    %4204 = vmatprep.subr.mxu0 0.0
    %4205 = vmatpush1.xpose.msra.mxu0 0.0
    %4206 = vmatprep.subr.mxu0 0.0
    %4207 = vmatpush1.xpose.msra.mxu0 0.0
    %4208 = vmatprep.subr.mxu0 0.0
    %4209 = vmatpush1.xpose.msra.mxu0 0.0
    %4210 = vmatprep.subr.mxu0 0.0
    %4211 = vmatpush1.xpose.msra.mxu0 0.0
    %4212 = vmatprep.subr.mxu0 0.0
    %4213 = vmatpush1.xpose.msra.mxu0 0.0
    %4214 = vmatprep.subr.mxu0 0.0
    %4215 = vmatpush1.xpose.msra.mxu0 0.0
    %4216 = vmatprep.mubr.f32.mxu0 0.0
    %4217 = vmatmul.mubr.f32.gmra.mrb[0].mxu0 %v4144
    %v4218 = vpop.f32.mrb[0].mxu0
    %v4219 = vadd.f32 0.0, %v4218
    %v4220 = vpop.f32.mrb[0].mxu0
    %4221 = vmatprep.mubr.f32.mxu0 0.0
    %4222 = vmatmul.mubr.f32.gmra.mrb[0].mxu0 %v4146
    %v4223 = vpop.f32.mrb[0].mxu0
    %v4224 = vadd.f32 0.0, %v4223
    %v4225 = vpop.f32.mrb[0].mxu0
    %4226 = vdwg.mxu0
    %4227 = vrot.lane.b32.xlu0 %v3732, 124
    %v4228 = vpop.permute.xlu0 %4227
    %4229 = vrot.lane.b32.xlu0 %v3737, 124
    %v4230 = vpop.permute.xlu0 %4229
    %4231 = vrot.lane.b32.xlu0 %v3732, 108
    %v4232 = vpop.permute.xlu0 %4231
    %4233 = vrot.lane.b32.xlu0 %v3737, 108
    %v4234 = vpop.permute.xlu0 %4233
    %v4235 = vsel %vm534, %v4228, 0
    %v4237 = vsel %vm534, %v4230, 0
    %v4239 = vsel %vm534, %v4232, 0
    %v4241 = vsel %vm534, %v4234, 0
    %4243 = vmatprep.subr.mxu0 0.0
    %4244 = vmatpush1.xpose.msra.mxu0 %v4239
    %4245 = vmatprep.subr.mxu0 0.0
    %4246 = vmatpush1.xpose.msra.mxu0 %v4241
    %4247 = vmatprep.subr.mxu0 0.0
    %4248 = vmatpush1.xpose.msra.mxu0 0.0
    %4249 = vmatprep.subr.mxu0 0.0
    %4250 = vmatpush1.xpose.msra.mxu0 0.0
    %4251 = vmatprep.subr.mxu0 0.0
    %4252 = vmatpush1.xpose.msra.mxu0 0.0
    %4253 = vmatprep.subr.mxu0 0.0
    %4254 = vmatpush1.xpose.msra.mxu0 0.0
    %4255 = vmatprep.subr.mxu0 0.0
    %4256 = vmatpush1.xpose.msra.mxu0 0.0
    %4257 = vmatprep.subr.mxu0 0.0
    %4258 = vmatpush1.xpose.msra.mxu0 0.0
    %4259 = vmatprep.subr.mxu0 0.0
    %4260 = vmatpush1.xpose.msra.mxu0 0.0
    %4261 = vmatprep.subr.mxu0 0.0
    %4262 = vmatpush1.xpose.msra.mxu0 0.0
    %4263 = vmatprep.subr.mxu0 0.0
    %4264 = vmatpush1.xpose.msra.mxu0 0.0
    %4265 = vmatprep.subr.mxu0 0.0
    %4266 = vmatpush1.xpose.msra.mxu0 0.0
    %4267 = vmatprep.subr.mxu0 0.0
    %4268 = vmatpush1.xpose.msra.mxu0 0.0
    %4269 = vmatprep.subr.mxu0 0.0
    %4270 = vmatpush1.xpose.msra.mxu0 0.0
    %4271 = vmatprep.subr.mxu0 0.0
    %4272 = vmatpush1.xpose.msra.mxu0 0.0
    %4273 = vmatprep.subr.mxu0 0.0
    %4274 = vmatpush1.xpose.msra.mxu0 0.0
    %4275 = vmatprep.subr.mxu0 0.0
    %4276 = vmatpush1.xpose.msra.mxu0 0.0
    %4277 = vmatprep.subr.mxu0 0.0
    %4278 = vmatpush1.xpose.msra.mxu0 0.0
    %4279 = vmatprep.subr.mxu0 0.0
    %4280 = vmatpush1.xpose.msra.mxu0 0.0
    %4281 = vmatprep.subr.mxu0 0.0
    %4282 = vmatpush1.xpose.msra.mxu0 0.0
    %4283 = vmatprep.subr.mxu0 0.0
    %4284 = vmatpush1.xpose.msra.mxu0 0.0
    %4285 = vmatprep.subr.mxu0 0.0
    %4286 = vmatpush1.xpose.msra.mxu0 0.0
    %4287 = vmatprep.subr.mxu0 0.0
    %4288 = vmatpush1.xpose.msra.mxu0 0.0
    %4289 = vmatprep.subr.mxu0 0.0
    %4290 = vmatpush1.xpose.msra.mxu0 0.0
    %4291 = vmatprep.subr.mxu0 0.0
    %4292 = vmatpush1.xpose.msra.mxu0 0.0
    %4293 = vmatprep.subr.mxu0 0.0
    %4294 = vmatpush1.xpose.msra.mxu0 0.0
    %4295 = vmatprep.subr.mxu0 0.0
    %4296 = vmatpush1.xpose.msra.mxu0 0.0
    %4297 = vmatprep.subr.mxu0 0.0
    %4298 = vmatpush1.xpose.msra.mxu0 0.0
    %4299 = vmatprep.subr.mxu0 0.0
    %4300 = vmatpush1.xpose.msra.mxu0 0.0
    %4301 = vmatprep.subr.mxu0 0.0
    %4302 = vmatpush1.xpose.msra.mxu0 0.0
    %4303 = vmatprep.subr.mxu0 0.0
    %4304 = vmatpush1.xpose.msra.mxu0 0.0
    %4305 = vmatprep.subr.mxu0 0.0
    %4306 = vmatpush1.xpose.msra.mxu0 0.0
    %4307 = vmatprep.mubr.f32.mxu0 0.0
    %4308 = vmatmul.mubr.f32.gmra.mrb[0].mxu0 %v4235
    %v4309 = vpop.f32.mrb[0].mxu0
    %v4310 = vadd.f32 0.0, %v4309
    %v4311 = vpop.f32.mrb[0].mxu0
    %4312 = vmatprep.mubr.f32.mxu0 0.0
    %4313 = vmatmul.mubr.f32.gmra.mrb[0].mxu0 %v4237
    %v4314 = vpop.f32.mrb[0].mxu0
    %v4315 = vadd.f32 0.0, %v4314
    %v4316 = vpop.f32.mrb[0].mxu0
    %4317 = vdwg.mxu0
    %v4318 = vsel %vm430, %v4219, -inf
    %4319 = vmax.xlane.f32.xlu0 %v4318
    %v4320 = vpop.xlane.xlu0 %4319
    %v4321 = vsel %vm430, %v4224, -inf
    %4322 = vmax.xlane.f32.xlu0 %v4321
    %v4323 = vpop.xlane.xlu0 %4322
    %v4324 = vsel %vm430, %v4310, -inf
    %4325 = vmax.xlane.f32.xlu0 %v4324
    %v4326 = vpop.xlane.xlu0 %4325
    %v4327 = vsel %vm430, %v4315, -inf
    %4328 = vmax.xlane.f32.xlu0 %v4327
    %v4329 = vpop.xlane.xlu0 %4328
    %v4330 = vsub.f32 %v4219, %v4320
    %v4331 = vsub.f32 %v4224, %v4323
    %v4332 = vsub.f32 %v4310, %v4326
    %v4333 = vsub.f32 %v4315, %v4329
    %v4334 = vmul.f32 %v4330, 1.442695
    %v4335 = vpow.pop %v4334
    %v4336 = vmul.f32 %v4331, 1.442695
    %v4337 = vpow.pop %v4336
    %v4338 = vmul.f32 %v4332, 1.442695
    %v4339 = vpow.pop %v4338
    %v4340 = vmul.f32 %v4333, 1.442695
    %v4341 = vpow.pop %v4340
    %v4342 = vsel %vm430, %v4335, 0.0
    %4343 = vadd.xlane.f32.xlu0 %v4342
    %v4344 = vpop.xlane.xlu0 %4343
    %v4345 = vsel %vm430, %v4337, 0.0
    %4346 = vadd.xlane.f32.xlu0 %v4345
    %v4347 = vpop.xlane.xlu0 %4346
    %v4348 = vsel %vm430, %v4339, 0.0
    %4349 = vadd.xlane.f32.xlu0 %v4348
    %v4350 = vpop.xlane.xlu0 %4349
    %v4351 = vsel %vm430, %v4341, 0.0
    %4352 = vadd.xlane.f32.xlu0 %v4351
    %v4353 = vpop.xlane.xlu0 %4352
    %v4354 = vrcp.pop %v4344
    %v4355 = vrcp.pop %v4347
    %v4356 = vrcp.pop %v4350
    %v4357 = vrcp.pop %v4353
    %v4358 = vmul.f32 %v4335, %v4354
    %v4359 = vmul.f32 %v4337, %v4355
    %v4360 = vmul.f32 %v4339, %v4356
    %v4361 = vmul.f32 %v4341, %v4357
    %4362 = vrot.lane.b32.xlu0 %v3722, 92
    %v4363 = vpop.permute.xlu0 %4362
    %4364 = vrot.lane.b32.xlu0 %v3727, 92
    %v4365 = vpop.permute.xlu0 %4364
    %v4369 = vsel %vm430, %v4358, 0
    %v4372 = vsel %vm430, %v4359, 0
    %4374 = vmatprep.subr.mxu0 0.0
    %4375 = vmatpush1.msra.mxu0 %v4363
    %4376 = vmatprep.subr.mxu0 0.0
    %4377 = vmatpush1.msra.mxu0 %v4365
    %4378 = vmatprep.subr.mxu0 0.0
    %4379 = vmatpush1.msra.mxu0 0.0
    %4380 = vmatprep.subr.mxu0 0.0
    %4381 = vmatpush1.msra.mxu0 0.0
    %4382 = vmatprep.subr.mxu0 0.0
    %4383 = vmatpush1.msra.mxu0 0.0
    %4384 = vmatprep.subr.mxu0 0.0
    %4385 = vmatpush1.msra.mxu0 0.0
    %4386 = vmatprep.subr.mxu0 0.0
    %4387 = vmatpush1.msra.mxu0 0.0
    %4388 = vmatprep.subr.mxu0 0.0
    %4389 = vmatpush1.msra.mxu0 0.0
    %4390 = vmatprep.subr.mxu0 0.0
    %4391 = vmatpush1.msra.mxu0 0.0
    %4392 = vmatprep.subr.mxu0 0.0
    %4393 = vmatpush1.msra.mxu0 0.0
    %4394 = vmatprep.subr.mxu0 0.0
    %4395 = vmatpush1.msra.mxu0 0.0
    %4396 = vmatprep.subr.mxu0 0.0
    %4397 = vmatpush1.msra.mxu0 0.0
    %4398 = vmatprep.subr.mxu0 0.0
    %4399 = vmatpush1.msra.mxu0 0.0
    %4400 = vmatprep.subr.mxu0 0.0
    %4401 = vmatpush1.msra.mxu0 0.0
    %4402 = vmatprep.subr.mxu0 0.0
    %4403 = vmatpush1.msra.mxu0 0.0
    %4404 = vmatprep.subr.mxu0 0.0
    %4405 = vmatpush1.msra.mxu0 0.0
    %4406 = vmatprep.subr.mxu0 0.0
    %4407 = vmatpush1.msra.mxu0 0.0
    %4408 = vmatprep.subr.mxu0 0.0
    %4409 = vmatpush1.msra.mxu0 0.0
    %4410 = vmatprep.subr.mxu0 0.0
    %4411 = vmatpush1.msra.mxu0 0.0
    %4412 = vmatprep.subr.mxu0 0.0
    %4413 = vmatpush1.msra.mxu0 0.0
    %4414 = vmatprep.subr.mxu0 0.0
    %4415 = vmatpush1.msra.mxu0 0.0
    %4416 = vmatprep.subr.mxu0 0.0
    %4417 = vmatpush1.msra.mxu0 0.0
    %4418 = vmatprep.subr.mxu0 0.0
    %4419 = vmatpush1.msra.mxu0 0.0
    %4420 = vmatprep.subr.mxu0 0.0
    %4421 = vmatpush1.msra.mxu0 0.0
    %4422 = vmatprep.subr.mxu0 0.0
    %4423 = vmatpush1.msra.mxu0 0.0
    %4424 = vmatprep.subr.mxu0 0.0
    %4425 = vmatpush1.msra.mxu0 0.0
    %4426 = vmatprep.subr.mxu0 0.0
    %4427 = vmatpush1.msra.mxu0 0.0
    %4428 = vmatprep.subr.mxu0 0.0
    %4429 = vmatpush1.msra.mxu0 0.0
    %4430 = vmatprep.subr.mxu0 0.0
    %4431 = vmatpush1.msra.mxu0 0.0
    %4432 = vmatprep.subr.mxu0 0.0
    %4433 = vmatpush1.msra.mxu0 0.0
    %4434 = vmatprep.subr.mxu0 0.0
    %4435 = vmatpush1.msra.mxu0 0.0
    %4436 = vmatprep.subr.mxu0 0.0
    %4437 = vmatpush1.msra.mxu0 0.0
    %4438 = vmatprep.mubr.f32.mxu0 0.0
    %4439 = vmatmul.mubr.f32.gmra.mrb[0].mxu0 %v4369
    %v4440 = vpop.f32.mrb[0].mxu0
    %v4441 = vadd.f32 0.0, %v4440
    %v4442 = vpop.f32.mrb[0].mxu0
    %4443 = vmatprep.mubr.f32.mxu0 0.0
    %4444 = vmatmul.mubr.f32.gmra.mrb[0].mxu0 %v4372
    %v4445 = vpop.f32.mrb[0].mxu0
    %v4446 = vadd.f32 0.0, %v4445
    %v4447 = vpop.f32.mrb[0].mxu0
    %4448 = vdwg.mxu0
    %4449 = vrot.lane.b32.xlu0 %v3732, 92
    %v4450 = vpop.permute.xlu0 %4449
    %4451 = vrot.lane.b32.xlu0 %v3737, 92
    %v4452 = vpop.permute.xlu0 %4451
    %v4456 = vsel %vm430, %v4360, 0
    %v4459 = vsel %vm430, %v4361, 0
    %4461 = vmatprep.subr.mxu0 0.0
    %4462 = vmatpush1.msra.mxu0 %v4450
    %4463 = vmatprep.subr.mxu0 0.0
    %4464 = vmatpush1.msra.mxu0 %v4452
    %4465 = vmatprep.subr.mxu0 0.0
    %4466 = vmatpush1.msra.mxu0 0.0
    %4467 = vmatprep.subr.mxu0 0.0
    %4468 = vmatpush1.msra.mxu0 0.0
    %4469 = vmatprep.subr.mxu0 0.0
    %4470 = vmatpush1.msra.mxu0 0.0
    %4471 = vmatprep.subr.mxu0 0.0
    %4472 = vmatpush1.msra.mxu0 0.0
    %4473 = vmatprep.subr.mxu0 0.0
    %4474 = vmatpush1.msra.mxu0 0.0
    %4475 = vmatprep.subr.mxu0 0.0
    %4476 = vmatpush1.msra.mxu0 0.0
    %4477 = vmatprep.subr.mxu0 0.0
    %4478 = vmatpush1.msra.mxu0 0.0
    %4479 = vmatprep.subr.mxu0 0.0
    %4480 = vmatpush1.msra.mxu0 0.0
    %4481 = vmatprep.subr.mxu0 0.0
    %4482 = vmatpush1.msra.mxu0 0.0
    %4483 = vmatprep.subr.mxu0 0.0
    %4484 = vmatpush1.msra.mxu0 0.0
    %4485 = vmatprep.subr.mxu0 0.0
    %4486 = vmatpush1.msra.mxu0 0.0
    %4487 = vmatprep.subr.mxu0 0.0
    %4488 = vmatpush1.msra.mxu0 0.0
    %4489 = vmatprep.subr.mxu0 0.0
    %4490 = vmatpush1.msra.mxu0 0.0
    %4491 = vmatprep.subr.mxu0 0.0
    %4492 = vmatpush1.msra.mxu0 0.0
    %4493 = vmatprep.subr.mxu0 0.0
    %4494 = vmatpush1.msra.mxu0 0.0
    %4495 = vmatprep.subr.mxu0 0.0
    %4496 = vmatpush1.msra.mxu0 0.0
    %4497 = vmatprep.subr.mxu0 0.0
    %4498 = vmatpush1.msra.mxu0 0.0
    %4499 = vmatprep.subr.mxu0 0.0
    %4500 = vmatpush1.msra.mxu0 0.0
    %4501 = vmatprep.subr.mxu0 0.0
    %4502 = vmatpush1.msra.mxu0 0.0
    %4503 = vmatprep.subr.mxu0 0.0
    %4504 = vmatpush1.msra.mxu0 0.0
    %4505 = vmatprep.subr.mxu0 0.0
    %4506 = vmatpush1.msra.mxu0 0.0
    %4507 = vmatprep.subr.mxu0 0.0
    %4508 = vmatpush1.msra.mxu0 0.0
    %4509 = vmatprep.subr.mxu0 0.0
    %4510 = vmatpush1.msra.mxu0 0.0
    %4511 = vmatprep.subr.mxu0 0.0
    %4512 = vmatpush1.msra.mxu0 0.0
    %4513 = vmatprep.subr.mxu0 0.0
    %4514 = vmatpush1.msra.mxu0 0.0
    %4515 = vmatprep.subr.mxu0 0.0
    %4516 = vmatpush1.msra.mxu0 0.0
    %4517 = vmatprep.subr.mxu0 0.0
    %4518 = vmatpush1.msra.mxu0 0.0
    %4519 = vmatprep.subr.mxu0 0.0
    %4520 = vmatpush1.msra.mxu0 0.0
    %4521 = vmatprep.subr.mxu0 0.0
    %4522 = vmatpush1.msra.mxu0 0.0
    %4523 = vmatprep.subr.mxu0 0.0
    %4524 = vmatpush1.msra.mxu0 0.0
    %4525 = vmatprep.mubr.f32.mxu0 0.0
    %4526 = vmatmul.mubr.f32.gmra.mrb[0].mxu0 %v4456
    %v4527 = vpop.f32.mrb[0].mxu0
    %v4528 = vadd.f32 0.0, %v4527
    %v4529 = vpop.f32.mrb[0].mxu0
    %4530 = vmatprep.mubr.f32.mxu0 0.0
    %4531 = vmatmul.mubr.f32.gmra.mrb[0].mxu0 %v4459
    %v4532 = vpop.f32.mrb[0].mxu0
    %v4533 = vadd.f32 0.0, %v4532
    %v4534 = vpop.f32.mrb[0].mxu0
    %4535 = vdwg.mxu0
    %4536 = vrot.lane.b32.xlu0 %v3722, 120
    %v4537 = vpop.permute.xlu0 %4536
    %4538 = vrot.lane.b32.xlu0 %v3727, 120
    %v4539 = vpop.permute.xlu0 %4538
    %4540 = vrot.lane.b32.xlu0 %v3722, 104
    %v4541 = vpop.permute.xlu0 %4540
    %4542 = vrot.lane.b32.xlu0 %v3727, 104
    %v4543 = vpop.permute.xlu0 %4542
    %v4544 = vsel %vm534, %v4537, 0
    %v4546 = vsel %vm534, %v4539, 0
    %v4548 = vsel %vm534, %v4541, 0
    %v4550 = vsel %vm534, %v4543, 0
    %4552 = vmatprep.subr.mxu0 0.0
    %4553 = vmatpush1.xpose.msra.mxu0 %v4548
    %4554 = vmatprep.subr.mxu0 0.0
    %4555 = vmatpush1.xpose.msra.mxu0 %v4550
    %4556 = vmatprep.subr.mxu0 0.0
    %4557 = vmatpush1.xpose.msra.mxu0 0.0
    %4558 = vmatprep.subr.mxu0 0.0
    %4559 = vmatpush1.xpose.msra.mxu0 0.0
    %4560 = vmatprep.subr.mxu0 0.0
    %4561 = vmatpush1.xpose.msra.mxu0 0.0
    %4562 = vmatprep.subr.mxu0 0.0
    %4563 = vmatpush1.xpose.msra.mxu0 0.0
    %4564 = vmatprep.subr.mxu0 0.0
    %4565 = vmatpush1.xpose.msra.mxu0 0.0
    %4566 = vmatprep.subr.mxu0 0.0
    %4567 = vmatpush1.xpose.msra.mxu0 0.0
    %4568 = vmatprep.subr.mxu0 0.0
    %4569 = vmatpush1.xpose.msra.mxu0 0.0
    %4570 = vmatprep.subr.mxu0 0.0
    %4571 = vmatpush1.xpose.msra.mxu0 0.0
    %4572 = vmatprep.subr.mxu0 0.0
    %4573 = vmatpush1.xpose.msra.mxu0 0.0
    %4574 = vmatprep.subr.mxu0 0.0
    %4575 = vmatpush1.xpose.msra.mxu0 0.0
    %4576 = vmatprep.subr.mxu0 0.0
    %4577 = vmatpush1.xpose.msra.mxu0 0.0
    %4578 = vmatprep.subr.mxu0 0.0
    %4579 = vmatpush1.xpose.msra.mxu0 0.0
    %4580 = vmatprep.subr.mxu0 0.0
    %4581 = vmatpush1.xpose.msra.mxu0 0.0
    %4582 = vmatprep.subr.mxu0 0.0
    %4583 = vmatpush1.xpose.msra.mxu0 0.0
    %4584 = vmatprep.subr.mxu0 0.0
    %4585 = vmatpush1.xpose.msra.mxu0 0.0
    %4586 = vmatprep.subr.mxu0 0.0
    %4587 = vmatpush1.xpose.msra.mxu0 0.0
    %4588 = vmatprep.subr.mxu0 0.0
    %4589 = vmatpush1.xpose.msra.mxu0 0.0
    %4590 = vmatprep.subr.mxu0 0.0
    %4591 = vmatpush1.xpose.msra.mxu0 0.0
    %4592 = vmatprep.subr.mxu0 0.0
    %4593 = vmatpush1.xpose.msra.mxu0 0.0
    %4594 = vmatprep.subr.mxu0 0.0
    %4595 = vmatpush1.xpose.msra.mxu0 0.0
    %4596 = vmatprep.subr.mxu0 0.0
    %4597 = vmatpush1.xpose.msra.mxu0 0.0
    %4598 = vmatprep.subr.mxu0 0.0
    %4599 = vmatpush1.xpose.msra.mxu0 0.0
    %4600 = vmatprep.subr.mxu0 0.0
    %4601 = vmatpush1.xpose.msra.mxu0 0.0
    %4602 = vmatprep.subr.mxu0 0.0
    %4603 = vmatpush1.xpose.msra.mxu0 0.0
    %4604 = vmatprep.subr.mxu0 0.0
    %4605 = vmatpush1.xpose.msra.mxu0 0.0
    %4606 = vmatprep.subr.mxu0 0.0
    %4607 = vmatpush1.xpose.msra.mxu0 0.0
    %4608 = vmatprep.subr.mxu0 0.0
    %4609 = vmatpush1.xpose.msra.mxu0 0.0
    %4610 = vmatprep.subr.mxu0 0.0
    %4611 = vmatpush1.xpose.msra.mxu0 0.0
    %4612 = vmatprep.subr.mxu0 0.0
    %4613 = vmatpush1.xpose.msra.mxu0 0.0
    %4614 = vmatprep.subr.mxu0 0.0
    %4615 = vmatpush1.xpose.msra.mxu0 0.0
    %4616 = vmatprep.mubr.f32.mxu0 0.0
    %4617 = vmatmul.mubr.f32.gmra.mrb[0].mxu0 %v4544
    %v4618 = vpop.f32.mrb[0].mxu0
    %v4619 = vadd.f32 0.0, %v4618
    %v4620 = vpop.f32.mrb[0].mxu0
    %4621 = vmatprep.mubr.f32.mxu0 0.0
    %4622 = vmatmul.mubr.f32.gmra.mrb[0].mxu0 %v4546
    %v4623 = vpop.f32.mrb[0].mxu0
    %v4624 = vadd.f32 0.0, %v4623
    %v4625 = vpop.f32.mrb[0].mxu0
    %4626 = vdwg.mxu0
    %4627 = vrot.lane.b32.xlu0 %v3732, 120
    %v4628 = vpop.permute.xlu0 %4627
    %4629 = vrot.lane.b32.xlu0 %v3737, 120
    %v4630 = vpop.permute.xlu0 %4629
    %4631 = vrot.lane.b32.xlu0 %v3732, 104
    %v4632 = vpop.permute.xlu0 %4631
    %4633 = vrot.lane.b32.xlu0 %v3737, 104
    %v4634 = vpop.permute.xlu0 %4633
    %v4635 = vsel %vm534, %v4628, 0
    %v4637 = vsel %vm534, %v4630, 0
    %v4639 = vsel %vm534, %v4632, 0
    %v4641 = vsel %vm534, %v4634, 0
    %4643 = vmatprep.subr.mxu0 0.0
    %4644 = vmatpush1.xpose.msra.mxu0 %v4639
    %4645 = vmatprep.subr.mxu0 0.0
    %4646 = vmatpush1.xpose.msra.mxu0 %v4641
    %4647 = vmatprep.subr.mxu0 0.0
    %4648 = vmatpush1.xpose.msra.mxu0 0.0
    %4649 = vmatprep.subr.mxu0 0.0
    %4650 = vmatpush1.xpose.msra.mxu0 0.0
    %4651 = vmatprep.subr.mxu0 0.0
    %4652 = vmatpush1.xpose.msra.mxu0 0.0
    %4653 = vmatprep.subr.mxu0 0.0
    %4654 = vmatpush1.xpose.msra.mxu0 0.0
    %4655 = vmatprep.subr.mxu0 0.0
    %4656 = vmatpush1.xpose.msra.mxu0 0.0
    %4657 = vmatprep.subr.mxu0 0.0
    %4658 = vmatpush1.xpose.msra.mxu0 0.0
    %4659 = vmatprep.subr.mxu0 0.0
    %4660 = vmatpush1.xpose.msra.mxu0 0.0
    %4661 = vmatprep.subr.mxu0 0.0
    %4662 = vmatpush1.xpose.msra.mxu0 0.0
    %4663 = vmatprep.subr.mxu0 0.0
    %4664 = vmatpush1.xpose.msra.mxu0 0.0
    %4665 = vmatprep.subr.mxu0 0.0
    %4666 = vmatpush1.xpose.msra.mxu0 0.0
    %4667 = vmatprep.subr.mxu0 0.0
    %4668 = vmatpush1.xpose.msra.mxu0 0.0
    %4669 = vmatprep.subr.mxu0 0.0
    %4670 = vmatpush1.xpose.msra.mxu0 0.0
    %4671 = vmatprep.subr.mxu0 0.0
    %4672 = vmatpush1.xpose.msra.mxu0 0.0
    %4673 = vmatprep.subr.mxu0 0.0
    %4674 = vmatpush1.xpose.msra.mxu0 0.0
    %4675 = vmatprep.subr.mxu0 0.0
    %4676 = vmatpush1.xpose.msra.mxu0 0.0
    %4677 = vmatprep.subr.mxu0 0.0
    %4678 = vmatpush1.xpose.msra.mxu0 0.0
    %4679 = vmatprep.subr.mxu0 0.0
    %4680 = vmatpush1.xpose.msra.mxu0 0.0
    %4681 = vmatprep.subr.mxu0 0.0
    %4682 = vmatpush1.xpose.msra.mxu0 0.0
    %4683 = vmatprep.subr.mxu0 0.0
    %4684 = vmatpush1.xpose.msra.mxu0 0.0
    %4685 = vmatprep.subr.mxu0 0.0
    %4686 = vmatpush1.xpose.msra.mxu0 0.0
    %4687 = vmatprep.subr.mxu0 0.0
    %4688 = vmatpush1.xpose.msra.mxu0 0.0
    %4689 = vmatprep.subr.mxu0 0.0
    %4690 = vmatpush1.xpose.msra.mxu0 0.0
    %4691 = vmatprep.subr.mxu0 0.0
    %4692 = vmatpush1.xpose.msra.mxu0 0.0
    %4693 = vmatprep.subr.mxu0 0.0
    %4694 = vmatpush1.xpose.msra.mxu0 0.0
    %4695 = vmatprep.subr.mxu0 0.0
    %4696 = vmatpush1.xpose.msra.mxu0 0.0
    %4697 = vmatprep.subr.mxu0 0.0
    %4698 = vmatpush1.xpose.msra.mxu0 0.0
    %4699 = vmatprep.subr.mxu0 0.0
    %4700 = vmatpush1.xpose.msra.mxu0 0.0
    %4701 = vmatprep.subr.mxu0 0.0
    %4702 = vmatpush1.xpose.msra.mxu0 0.0
    %4703 = vmatprep.subr.mxu0 0.0
    %4704 = vmatpush1.xpose.msra.mxu0 0.0
    %4705 = vmatprep.subr.mxu0 0.0
    %4706 = vmatpush1.xpose.msra.mxu0 0.0
    %4707 = vmatprep.mubr.f32.mxu0 0.0
    %4708 = vmatmul.mubr.f32.gmra.mrb[0].mxu0 %v4635
    %v4709 = vpop.f32.mrb[0].mxu0
    %v4710 = vadd.f32 0.0, %v4709
    %v4711 = vpop.f32.mrb[0].mxu0
    %4712 = vmatprep.mubr.f32.mxu0 0.0
    %4713 = vmatmul.mubr.f32.gmra.mrb[0].mxu0 %v4637
    %v4714 = vpop.f32.mrb[0].mxu0
    %v4715 = vadd.f32 0.0, %v4714
    %v4716 = vpop.f32.mrb[0].mxu0
    %4717 = vdwg.mxu0
    %v4718 = vsel %vm430, %v4619, -inf
    %4719 = vmax.xlane.f32.xlu0 %v4718
    %v4720 = vpop.xlane.xlu0 %4719
    %v4721 = vsel %vm430, %v4624, -inf
    %4722 = vmax.xlane.f32.xlu0 %v4721
    %v4723 = vpop.xlane.xlu0 %4722
    %v4724 = vsel %vm430, %v4710, -inf
    %4725 = vmax.xlane.f32.xlu0 %v4724
    %v4726 = vpop.xlane.xlu0 %4725
    %v4727 = vsel %vm430, %v4715, -inf
    %4728 = vmax.xlane.f32.xlu0 %v4727
    %v4729 = vpop.xlane.xlu0 %4728
    %v4730 = vsub.f32 %v4619, %v4720
    %v4731 = vsub.f32 %v4624, %v4723
    %v4732 = vsub.f32 %v4710, %v4726
    %v4733 = vsub.f32 %v4715, %v4729
    %v4734 = vmul.f32 %v4730, 1.442695
    %v4735 = vpow.pop %v4734
    %v4736 = vmul.f32 %v4731, 1.442695
    %v4737 = vpow.pop %v4736
    %v4738 = vmul.f32 %v4732, 1.442695
    %v4739 = vpow.pop %v4738
    %v4740 = vmul.f32 %v4733, 1.442695
    %v4741 = vpow.pop %v4740
    %v4742 = vsel %vm430, %v4735, 0.0
    %4743 = vadd.xlane.f32.xlu0 %v4742
    %v4744 = vpop.xlane.xlu0 %4743
    %v4745 = vsel %vm430, %v4737, 0.0
    %4746 = vadd.xlane.f32.xlu0 %v4745
    %v4747 = vpop.xlane.xlu0 %4746
    %v4748 = vsel %vm430, %v4739, 0.0
    %4749 = vadd.xlane.f32.xlu0 %v4748
    %v4750 = vpop.xlane.xlu0 %4749
    %v4751 = vsel %vm430, %v4741, 0.0
    %4752 = vadd.xlane.f32.xlu0 %v4751
    %v4753 = vpop.xlane.xlu0 %4752
    %v4754 = vrcp.pop %v4744
    %v4755 = vrcp.pop %v4747
    %v4756 = vrcp.pop %v4750
    %v4757 = vrcp.pop %v4753
    %v4758 = vmul.f32 %v4735, %v4754
    %v4759 = vmul.f32 %v4737, %v4755
    %v4760 = vmul.f32 %v4739, %v4756
    %v4761 = vmul.f32 %v4741, %v4757
    %4762 = vrot.lane.b32.xlu0 %v3722, 88
    %v4763 = vpop.permute.xlu0 %4762
    %4764 = vrot.lane.b32.xlu0 %v3727, 88
    %v4765 = vpop.permute.xlu0 %4764
    %v4769 = vsel %vm430, %v4758, 0
    %v4772 = vsel %vm430, %v4759, 0
    %4774 = vmatprep.subr.mxu0 0.0
    %4775 = vmatpush1.msra.mxu0 %v4763
    %4776 = vmatprep.subr.mxu0 0.0
    %4777 = vmatpush1.msra.mxu0 %v4765
    %4778 = vmatprep.subr.mxu0 0.0
    %4779 = vmatpush1.msra.mxu0 0.0
    %4780 = vmatprep.subr.mxu0 0.0
    %4781 = vmatpush1.msra.mxu0 0.0
    %4782 = vmatprep.subr.mxu0 0.0
    %4783 = vmatpush1.msra.mxu0 0.0
    %4784 = vmatprep.subr.mxu0 0.0
    %4785 = vmatpush1.msra.mxu0 0.0
    %4786 = vmatprep.subr.mxu0 0.0
    %4787 = vmatpush1.msra.mxu0 0.0
    %4788 = vmatprep.subr.mxu0 0.0
    %4789 = vmatpush1.msra.mxu0 0.0
    %4790 = vmatprep.subr.mxu0 0.0
    %4791 = vmatpush1.msra.mxu0 0.0
    %4792 = vmatprep.subr.mxu0 0.0
    %4793 = vmatpush1.msra.mxu0 0.0
    %4794 = vmatprep.subr.mxu0 0.0
    %4795 = vmatpush1.msra.mxu0 0.0
    %4796 = vmatprep.subr.mxu0 0.0
    %4797 = vmatpush1.msra.mxu0 0.0
    %4798 = vmatprep.subr.mxu0 0.0
    %4799 = vmatpush1.msra.mxu0 0.0
    %4800 = vmatprep.subr.mxu0 0.0
    %4801 = vmatpush1.msra.mxu0 0.0
    %4802 = vmatprep.subr.mxu0 0.0
    %4803 = vmatpush1.msra.mxu0 0.0
    %4804 = vmatprep.subr.mxu0 0.0
    %4805 = vmatpush1.msra.mxu0 0.0
    %4806 = vmatprep.subr.mxu0 0.0
    %4807 = vmatpush1.msra.mxu0 0.0
    %4808 = vmatprep.subr.mxu0 0.0
    %4809 = vmatpush1.msra.mxu0 0.0
    %4810 = vmatprep.subr.mxu0 0.0
    %4811 = vmatpush1.msra.mxu0 0.0
    %4812 = vmatprep.subr.mxu0 0.0
    %4813 = vmatpush1.msra.mxu0 0.0
    %4814 = vmatprep.subr.mxu0 0.0
    %4815 = vmatpush1.msra.mxu0 0.0
    %4816 = vmatprep.subr.mxu0 0.0
    %4817 = vmatpush1.msra.mxu0 0.0
    %4818 = vmatprep.subr.mxu0 0.0
    %4819 = vmatpush1.msra.mxu0 0.0
    %4820 = vmatprep.subr.mxu0 0.0
    %4821 = vmatpush1.msra.mxu0 0.0
    %4822 = vmatprep.subr.mxu0 0.0
    %4823 = vmatpush1.msra.mxu0 0.0
    %4824 = vmatprep.subr.mxu0 0.0
    %4825 = vmatpush1.msra.mxu0 0.0
    %4826 = vmatprep.subr.mxu0 0.0
    %4827 = vmatpush1.msra.mxu0 0.0
    %4828 = vmatprep.subr.mxu0 0.0
    %4829 = vmatpush1.msra.mxu0 0.0
    %4830 = vmatprep.subr.mxu0 0.0
    %4831 = vmatpush1.msra.mxu0 0.0
    %4832 = vmatprep.subr.mxu0 0.0
    %4833 = vmatpush1.msra.mxu0 0.0
    %4834 = vmatprep.subr.mxu0 0.0
    %4835 = vmatpush1.msra.mxu0 0.0
    %4836 = vmatprep.subr.mxu0 0.0
    %4837 = vmatpush1.msra.mxu0 0.0
    %4838 = vmatprep.mubr.f32.mxu0 0.0
    %4839 = vmatmul.mubr.f32.gmra.mrb[0].mxu0 %v4769
    %v4840 = vpop.f32.mrb[0].mxu0
    %v4841 = vadd.f32 0.0, %v4840
    %v4842 = vpop.f32.mrb[0].mxu0
    %4843 = vmatprep.mubr.f32.mxu0 0.0
    %4844 = vmatmul.mubr.f32.gmra.mrb[0].mxu0 %v4772
    %v4845 = vpop.f32.mrb[0].mxu0
    %v4846 = vadd.f32 0.0, %v4845
    %v4847 = vpop.f32.mrb[0].mxu0
    %4848 = vdwg.mxu0
    %4849 = vrot.lane.b32.xlu0 %v3732, 88
    %v4850 = vpop.permute.xlu0 %4849
    %4851 = vrot.lane.b32.xlu0 %v3737, 88
    %v4852 = vpop.permute.xlu0 %4851
    %v4856 = vsel %vm430, %v4760, 0
    %v4859 = vsel %vm430, %v4761, 0
    %4861 = vmatprep.subr.mxu0 0.0
    %4862 = vmatpush1.msra.mxu0 %v4850
    %4863 = vmatprep.subr.mxu0 0.0
    %4864 = vmatpush1.msra.mxu0 %v4852
    %4865 = vmatprep.subr.mxu0 0.0
    %4866 = vmatpush1.msra.mxu0 0.0
    %4867 = vmatprep.subr.mxu0 0.0
    %4868 = vmatpush1.msra.mxu0 0.0
    %4869 = vmatprep.subr.mxu0 0.0
    %4870 = vmatpush1.msra.mxu0 0.0
    %4871 = vmatprep.subr.mxu0 0.0
    %4872 = vmatpush1.msra.mxu0 0.0
    %4873 = vmatprep.subr.mxu0 0.0
    %4874 = vmatpush1.msra.mxu0 0.0
    %4875 = vmatprep.subr.mxu0 0.0
    %4876 = vmatpush1.msra.mxu0 0.0
    %4877 = vmatprep.subr.mxu0 0.0
    %4878 = vmatpush1.msra.mxu0 0.0
    %4879 = vmatprep.subr.mxu0 0.0
    %4880 = vmatpush1.msra.mxu0 0.0
    %4881 = vmatprep.subr.mxu0 0.0
    %4882 = vmatpush1.msra.mxu0 0.0
    %4883 = vmatprep.subr.mxu0 0.0
    %4884 = vmatpush1.msra.mxu0 0.0
    %4885 = vmatprep.subr.mxu0 0.0
    %4886 = vmatpush1.msra.mxu0 0.0
    %4887 = vmatprep.subr.mxu0 0.0
    %4888 = vmatpush1.msra.mxu0 0.0
    %4889 = vmatprep.subr.mxu0 0.0
    %4890 = vmatpush1.msra.mxu0 0.0
    %4891 = vmatprep.subr.mxu0 0.0
    %4892 = vmatpush1.msra.mxu0 0.0
    %4893 = vmatprep.subr.mxu0 0.0
    %4894 = vmatpush1.msra.mxu0 0.0
    %4895 = vmatprep.subr.mxu0 0.0
    %4896 = vmatpush1.msra.mxu0 0.0
    %4897 = vmatprep.subr.mxu0 0.0
    %4898 = vmatpush1.msra.mxu0 0.0
    %4899 = vmatprep.subr.mxu0 0.0
    %4900 = vmatpush1.msra.mxu0 0.0
    %4901 = vmatprep.subr.mxu0 0.0
    %4902 = vmatpush1.msra.mxu0 0.0
    %4903 = vmatprep.subr.mxu0 0.0
    %4904 = vmatpush1.msra.mxu0 0.0
    %4905 = vmatprep.subr.mxu0 0.0
    %4906 = vmatpush1.msra.mxu0 0.0
    %4907 = vmatprep.subr.mxu0 0.0
    %4908 = vmatpush1.msra.mxu0 0.0
    %4909 = vmatprep.subr.mxu0 0.0
    %4910 = vmatpush1.msra.mxu0 0.0
    %4911 = vmatprep.subr.mxu0 0.0
    %4912 = vmatpush1.msra.mxu0 0.0
    %4913 = vmatprep.subr.mxu0 0.0
    %4914 = vmatpush1.msra.mxu0 0.0
    %4915 = vmatprep.subr.mxu0 0.0
    %4916 = vmatpush1.msra.mxu0 0.0
    %4917 = vmatprep.subr.mxu0 0.0
    %4918 = vmatpush1.msra.mxu0 0.0
    %4919 = vmatprep.subr.mxu0 0.0
    %4920 = vmatpush1.msra.mxu0 0.0
    %4921 = vmatprep.subr.mxu0 0.0
    %4922 = vmatpush1.msra.mxu0 0.0
    %4923 = vmatprep.subr.mxu0 0.0
    %4924 = vmatpush1.msra.mxu0 0.0
    %4925 = vmatprep.mubr.f32.mxu0 0.0
    %4926 = vmatmul.mubr.f32.gmra.mrb[0].mxu0 %v4856
    %v4927 = vpop.f32.mrb[0].mxu0
    %v4928 = vadd.f32 0.0, %v4927
    %v4929 = vpop.f32.mrb[0].mxu0
    %4930 = vmatprep.mubr.f32.mxu0 0.0
    %4931 = vmatmul.mubr.f32.gmra.mrb[0].mxu0 %v4859
    %v4932 = vpop.f32.mrb[0].mxu0
    %v4933 = vadd.f32 0.0, %v4932
    %v4934 = vpop.f32.mrb[0].mxu0
    %4935 = vdwg.mxu0
    %4936 = vrot.lane.b32.xlu0 %v3722, 116
    %v4937 = vpop.permute.xlu0 %4936
    %4938 = vrot.lane.b32.xlu0 %v3727, 116
    %v4939 = vpop.permute.xlu0 %4938
    %4940 = vrot.lane.b32.xlu0 %v3722, 100
    %v4941 = vpop.permute.xlu0 %4940
    %4942 = vrot.lane.b32.xlu0 %v3727, 100
    %v4943 = vpop.permute.xlu0 %4942
    %v4944 = vsel %vm534, %v4937, 0
    %v4946 = vsel %vm534, %v4939, 0
    %v4948 = vsel %vm534, %v4941, 0
    %v4950 = vsel %vm534, %v4943, 0
    %4952 = vmatprep.subr.mxu0 0.0
    %4953 = vmatpush1.xpose.msra.mxu0 %v4948
    %4954 = vmatprep.subr.mxu0 0.0
    %4955 = vmatpush1.xpose.msra.mxu0 %v4950
    %4956 = vmatprep.subr.mxu0 0.0
    %4957 = vmatpush1.xpose.msra.mxu0 0.0
    %4958 = vmatprep.subr.mxu0 0.0
    %4959 = vmatpush1.xpose.msra.mxu0 0.0
    %4960 = vmatprep.subr.mxu0 0.0
    %4961 = vmatpush1.xpose.msra.mxu0 0.0
    %4962 = vmatprep.subr.mxu0 0.0
    %4963 = vmatpush1.xpose.msra.mxu0 0.0
    %4964 = vmatprep.subr.mxu0 0.0
    %4965 = vmatpush1.xpose.msra.mxu0 0.0
    %4966 = vmatprep.subr.mxu0 0.0
    %4967 = vmatpush1.xpose.msra.mxu0 0.0
    %4968 = vmatprep.subr.mxu0 0.0
    %4969 = vmatpush1.xpose.msra.mxu0 0.0
    %4970 = vmatprep.subr.mxu0 0.0
    %4971 = vmatpush1.xpose.msra.mxu0 0.0
    %4972 = vmatprep.subr.mxu0 0.0
    %4973 = vmatpush1.xpose.msra.mxu0 0.0
    %4974 = vmatprep.subr.mxu0 0.0
    %4975 = vmatpush1.xpose.msra.mxu0 0.0
    %4976 = vmatprep.subr.mxu0 0.0
    %4977 = vmatpush1.xpose.msra.mxu0 0.0
    %4978 = vmatprep.subr.mxu0 0.0
    %4979 = vmatpush1.xpose.msra.mxu0 0.0
    %4980 = vmatprep.subr.mxu0 0.0
    %4981 = vmatpush1.xpose.msra.mxu0 0.0
    %4982 = vmatprep.subr.mxu0 0.0
    %4983 = vmatpush1.xpose.msra.mxu0 0.0
    %4984 = vmatprep.subr.mxu0 0.0
    %4985 = vmatpush1.xpose.msra.mxu0 0.0
    %4986 = vmatprep.subr.mxu0 0.0
    %4987 = vmatpush1.xpose.msra.mxu0 0.0
    %4988 = vmatprep.subr.mxu0 0.0
    %4989 = vmatpush1.xpose.msra.mxu0 0.0
    %4990 = vmatprep.subr.mxu0 0.0
    %4991 = vmatpush1.xpose.msra.mxu0 0.0
    %4992 = vmatprep.subr.mxu0 0.0
    %4993 = vmatpush1.xpose.msra.mxu0 0.0
    %4994 = vmatprep.subr.mxu0 0.0
    %4995 = vmatpush1.xpose.msra.mxu0 0.0
    %4996 = vmatprep.subr.mxu0 0.0
    %4997 = vmatpush1.xpose.msra.mxu0 0.0
    %4998 = vmatprep.subr.mxu0 0.0
    %4999 = vmatpush1.xpose.msra.mxu0 0.0
    %5000 = vmatprep.subr.mxu0 0.0
    %5001 = vmatpush1.xpose.msra.mxu0 0.0
    %5002 = vmatprep.subr.mxu0 0.0
    %5003 = vmatpush1.xpose.msra.mxu0 0.0
    %5004 = vmatprep.subr.mxu0 0.0
    %5005 = vmatpush1.xpose.msra.mxu0 0.0
    %5006 = vmatprep.subr.mxu0 0.0
    %5007 = vmatpush1.xpose.msra.mxu0 0.0
    %5008 = vmatprep.subr.mxu0 0.0
    %5009 = vmatpush1.xpose.msra.mxu0 0.0
    %5010 = vmatprep.subr.mxu0 0.0
    %5011 = vmatpush1.xpose.msra.mxu0 0.0
    %5012 = vmatprep.subr.mxu0 0.0
    %5013 = vmatpush1.xpose.msra.mxu0 0.0
    %5014 = vmatprep.subr.mxu0 0.0
    %5015 = vmatpush1.xpose.msra.mxu0 0.0
    %5016 = vmatprep.mubr.f32.mxu0 0.0
    %5017 = vmatmul.mubr.f32.gmra.mrb[0].mxu0 %v4944
    %v5018 = vpop.f32.mrb[0].mxu0
    %v5019 = vadd.f32 0.0, %v5018
    %v5020 = vpop.f32.mrb[0].mxu0
    %5021 = vmatprep.mubr.f32.mxu0 0.0
    %5022 = vmatmul.mubr.f32.gmra.mrb[0].mxu0 %v4946
    %v5023 = vpop.f32.mrb[0].mxu0
    %v5024 = vadd.f32 0.0, %v5023
    %v5025 = vpop.f32.mrb[0].mxu0
    %5026 = vdwg.mxu0
    %5027 = vrot.lane.b32.xlu0 %v3732, 116
    %v5028 = vpop.permute.xlu0 %5027
    %5029 = vrot.lane.b32.xlu0 %v3737, 116
    %v5030 = vpop.permute.xlu0 %5029
    %5031 = vrot.lane.b32.xlu0 %v3732, 100
    %v5032 = vpop.permute.xlu0 %5031
    %5033 = vrot.lane.b32.xlu0 %v3737, 100
    %v5034 = vpop.permute.xlu0 %5033
    %v5035 = vsel %vm534, %v5028, 0
    %v5037 = vsel %vm534, %v5030, 0
    %v5039 = vsel %vm534, %v5032, 0
    %v5041 = vsel %vm534, %v5034, 0
    %5043 = vmatprep.subr.mxu0 0.0
    %5044 = vmatpush1.xpose.msra.mxu0 %v5039
    %5045 = vmatprep.subr.mxu0 0.0
    %5046 = vmatpush1.xpose.msra.mxu0 %v5041
    %5047 = vmatprep.subr.mxu0 0.0
    %5048 = vmatpush1.xpose.msra.mxu0 0.0
    %5049 = vmatprep.subr.mxu0 0.0
    %5050 = vmatpush1.xpose.msra.mxu0 0.0
    %5051 = vmatprep.subr.mxu0 0.0
    %5052 = vmatpush1.xpose.msra.mxu0 0.0
    %5053 = vmatprep.subr.mxu0 0.0
    %5054 = vmatpush1.xpose.msra.mxu0 0.0
    %5055 = vmatprep.subr.mxu0 0.0
    %5056 = vmatpush1.xpose.msra.mxu0 0.0
    %5057 = vmatprep.subr.mxu0 0.0
    %5058 = vmatpush1.xpose.msra.mxu0 0.0
    %5059 = vmatprep.subr.mxu0 0.0
    %5060 = vmatpush1.xpose.msra.mxu0 0.0
    %5061 = vmatprep.subr.mxu0 0.0
    %5062 = vmatpush1.xpose.msra.mxu0 0.0
    %5063 = vmatprep.subr.mxu0 0.0
    %5064 = vmatpush1.xpose.msra.mxu0 0.0
    %5065 = vmatprep.subr.mxu0 0.0
    %5066 = vmatpush1.xpose.msra.mxu0 0.0
    %5067 = vmatprep.subr.mxu0 0.0
    %5068 = vmatpush1.xpose.msra.mxu0 0.0
    %5069 = vmatprep.subr.mxu0 0.0
    %5070 = vmatpush1.xpose.msra.mxu0 0.0
    %5071 = vmatprep.subr.mxu0 0.0
    %5072 = vmatpush1.xpose.msra.mxu0 0.0
    %5073 = vmatprep.subr.mxu0 0.0
    %5074 = vmatpush1.xpose.msra.mxu0 0.0
    %5075 = vmatprep.subr.mxu0 0.0
    %5076 = vmatpush1.xpose.msra.mxu0 0.0
    %5077 = vmatprep.subr.mxu0 0.0
    %5078 = vmatpush1.xpose.msra.mxu0 0.0
    %5079 = vmatprep.subr.mxu0 0.0
    %5080 = vmatpush1.xpose.msra.mxu0 0.0
    %5081 = vmatprep.subr.mxu0 0.0
    %5082 = vmatpush1.xpose.msra.mxu0 0.0
    %5083 = vmatprep.subr.mxu0 0.0
    %5084 = vmatpush1.xpose.msra.mxu0 0.0
    %5085 = vmatprep.subr.mxu0 0.0
    %5086 = vmatpush1.xpose.msra.mxu0 0.0
    %5087 = vmatprep.subr.mxu0 0.0
    %5088 = vmatpush1.xpose.msra.mxu0 0.0
    %5089 = vmatprep.subr.mxu0 0.0
    %5090 = vmatpush1.xpose.msra.mxu0 0.0
    %5091 = vmatprep.subr.mxu0 0.0
    %5092 = vmatpush1.xpose.msra.mxu0 0.0
    %5093 = vmatprep.subr.mxu0 0.0
    %5094 = vmatpush1.xpose.msra.mxu0 0.0
    %5095 = vmatprep.subr.mxu0 0.0
    %5096 = vmatpush1.xpose.msra.mxu0 0.0
    %5097 = vmatprep.subr.mxu0 0.0
    %5098 = vmatpush1.xpose.msra.mxu0 0.0
    %5099 = vmatprep.subr.mxu0 0.0
    %5100 = vmatpush1.xpose.msra.mxu0 0.0
    %5101 = vmatprep.subr.mxu0 0.0
    %5102 = vmatpush1.xpose.msra.mxu0 0.0
    %5103 = vmatprep.subr.mxu0 0.0
    %5104 = vmatpush1.xpose.msra.mxu0 0.0
    %5105 = vmatprep.subr.mxu0 0.0
    %5106 = vmatpush1.xpose.msra.mxu0 0.0
    %5107 = vmatprep.mubr.f32.mxu0 0.0
    %5108 = vmatmul.mubr.f32.gmra.mrb[0].mxu0 %v5035
    %v5109 = vpop.f32.mrb[0].mxu0
    %v5110 = vadd.f32 0.0, %v5109
    %v5111 = vpop.f32.mrb[0].mxu0
    %5112 = vmatprep.mubr.f32.mxu0 0.0
    %5113 = vmatmul.mubr.f32.gmra.mrb[0].mxu0 %v5037
    %v5114 = vpop.f32.mrb[0].mxu0
    %v5115 = vadd.f32 0.0, %v5114
    %v5116 = vpop.f32.mrb[0].mxu0
    %5117 = vdwg.mxu0
    %v5118 = vsel %vm430, %v5019, -inf
    %5119 = vmax.xlane.f32.xlu0 %v5118
    %v5120 = vpop.xlane.xlu0 %5119
    %v5121 = vsel %vm430, %v5024, -inf
    %5122 = vmax.xlane.f32.xlu0 %v5121
    %v5123 = vpop.xlane.xlu0 %5122
    %v5124 = vsel %vm430, %v5110, -inf
    %5125 = vmax.xlane.f32.xlu0 %v5124
    %v5126 = vpop.xlane.xlu0 %5125
    %v5127 = vsel %vm430, %v5115, -inf
    %5128 = vmax.xlane.f32.xlu0 %v5127
    %v5129 = vpop.xlane.xlu0 %5128
    %v5130 = vsub.f32 %v5019, %v5120
    %v5131 = vsub.f32 %v5024, %v5123
    %v5132 = vsub.f32 %v5110, %v5126
    %v5133 = vsub.f32 %v5115, %v5129
    %v5134 = vmul.f32 %v5130, 1.442695
    %v5135 = vpow.pop %v5134
    %v5136 = vmul.f32 %v5131, 1.442695
    %v5137 = vpow.pop %v5136
    %v5138 = vmul.f32 %v5132, 1.442695
    %v5139 = vpow.pop %v5138
    %v5140 = vmul.f32 %v5133, 1.442695
    %v5141 = vpow.pop %v5140
    %v5142 = vsel %vm430, %v5135, 0.0
    %5143 = vadd.xlane.f32.xlu0 %v5142
    %v5144 = vpop.xlane.xlu0 %5143
    %v5145 = vsel %vm430, %v5137, 0.0
    %5146 = vadd.xlane.f32.xlu0 %v5145
    %v5147 = vpop.xlane.xlu0 %5146
    %v5148 = vsel %vm430, %v5139, 0.0
    %5149 = vadd.xlane.f32.xlu0 %v5148
    %v5150 = vpop.xlane.xlu0 %5149
    %v5151 = vsel %vm430, %v5141, 0.0
    %5152 = vadd.xlane.f32.xlu0 %v5151
    %v5153 = vpop.xlane.xlu0 %5152
    %v5154 = vrcp.pop %v5144
    %v5155 = vrcp.pop %v5147
    %v5156 = vrcp.pop %v5150
    %v5157 = vrcp.pop %v5153
    %v5158 = vmul.f32 %v5135, %v5154
    %v5159 = vmul.f32 %v5137, %v5155
    %v5160 = vmul.f32 %v5139, %v5156
    %v5161 = vmul.f32 %v5141, %v5157
    %5162 = vrot.lane.b32.xlu0 %v3722, 84
    %v5163 = vpop.permute.xlu0 %5162
    %5164 = vrot.lane.b32.xlu0 %v3727, 84
    %v5165 = vpop.permute.xlu0 %5164
    %v5169 = vsel %vm430, %v5158, 0
    %v5172 = vsel %vm430, %v5159, 0
    %5174 = vmatprep.subr.mxu0 0.0
    %5175 = vmatpush1.msra.mxu0 %v5163
    %5176 = vmatprep.subr.mxu0 0.0
    %5177 = vmatpush1.msra.mxu0 %v5165
    %5178 = vmatprep.subr.mxu0 0.0
    %5179 = vmatpush1.msra.mxu0 0.0
    %5180 = vmatprep.subr.mxu0 0.0
    %5181 = vmatpush1.msra.mxu0 0.0
    %5182 = vmatprep.subr.mxu0 0.0
    %5183 = vmatpush1.msra.mxu0 0.0
    %5184 = vmatprep.subr.mxu0 0.0
    %5185 = vmatpush1.msra.mxu0 0.0
    %5186 = vmatprep.subr.mxu0 0.0
    %5187 = vmatpush1.msra.mxu0 0.0
    %5188 = vmatprep.subr.mxu0 0.0
    %5189 = vmatpush1.msra.mxu0 0.0
    %5190 = vmatprep.subr.mxu0 0.0
    %5191 = vmatpush1.msra.mxu0 0.0
    %5192 = vmatprep.subr.mxu0 0.0
    %5193 = vmatpush1.msra.mxu0 0.0
    %5194 = vmatprep.subr.mxu0 0.0
    %5195 = vmatpush1.msra.mxu0 0.0
    %5196 = vmatprep.subr.mxu0 0.0
    %5197 = vmatpush1.msra.mxu0 0.0
    %5198 = vmatprep.subr.mxu0 0.0
    %5199 = vmatpush1.msra.mxu0 0.0
    %5200 = vmatprep.subr.mxu0 0.0
    %5201 = vmatpush1.msra.mxu0 0.0
    %5202 = vmatprep.subr.mxu0 0.0
    %5203 = vmatpush1.msra.mxu0 0.0
    %5204 = vmatprep.subr.mxu0 0.0
    %5205 = vmatpush1.msra.mxu0 0.0
    %5206 = vmatprep.subr.mxu0 0.0
    %5207 = vmatpush1.msra.mxu0 0.0
    %5208 = vmatprep.subr.mxu0 0.0
    %5209 = vmatpush1.msra.mxu0 0.0
    %5210 = vmatprep.subr.mxu0 0.0
    %5211 = vmatpush1.msra.mxu0 0.0
    %5212 = vmatprep.subr.mxu0 0.0
    %5213 = vmatpush1.msra.mxu0 0.0
    %5214 = vmatprep.subr.mxu0 0.0
    %5215 = vmatpush1.msra.mxu0 0.0
    %5216 = vmatprep.subr.mxu0 0.0
    %5217 = vmatpush1.msra.mxu0 0.0
    %5218 = vmatprep.subr.mxu0 0.0
    %5219 = vmatpush1.msra.mxu0 0.0
    %5220 = vmatprep.subr.mxu0 0.0
    %5221 = vmatpush1.msra.mxu0 0.0
    %5222 = vmatprep.subr.mxu0 0.0
    %5223 = vmatpush1.msra.mxu0 0.0
    %5224 = vmatprep.subr.mxu0 0.0
    %5225 = vmatpush1.msra.mxu0 0.0
    %5226 = vmatprep.subr.mxu0 0.0
    %5227 = vmatpush1.msra.mxu0 0.0
    %5228 = vmatprep.subr.mxu0 0.0
    %5229 = vmatpush1.msra.mxu0 0.0
    %5230 = vmatprep.subr.mxu0 0.0
    %5231 = vmatpush1.msra.mxu0 0.0
    %5232 = vmatprep.subr.mxu0 0.0
    %5233 = vmatpush1.msra.mxu0 0.0
    %5234 = vmatprep.subr.mxu0 0.0
    %5235 = vmatpush1.msra.mxu0 0.0
    %5236 = vmatprep.subr.mxu0 0.0
    %5237 = vmatpush1.msra.mxu0 0.0
    %5238 = vmatprep.mubr.f32.mxu0 0.0
    %5239 = vmatmul.mubr.f32.gmra.mrb[0].mxu0 %v5169
    %v5240 = vpop.f32.mrb[0].mxu0
    %v5241 = vadd.f32 0.0, %v5240
    %v5242 = vpop.f32.mrb[0].mxu0
    %5243 = vmatprep.mubr.f32.mxu0 0.0
    %5244 = vmatmul.mubr.f32.gmra.mrb[0].mxu0 %v5172
    %v5245 = vpop.f32.mrb[0].mxu0
    %v5246 = vadd.f32 0.0, %v5245
    %v5247 = vpop.f32.mrb[0].mxu0
    %5248 = vdwg.mxu0
    %5249 = vrot.lane.b32.xlu0 %v3732, 84
    %v5250 = vpop.permute.xlu0 %5249
    %5251 = vrot.lane.b32.xlu0 %v3737, 84
    %v5252 = vpop.permute.xlu0 %5251
    %v5256 = vsel %vm430, %v5160, 0
    %v5259 = vsel %vm430, %v5161, 0
    %5261 = vmatprep.subr.mxu0 0.0
    %5262 = vmatpush1.msra.mxu0 %v5250
    %5263 = vmatprep.subr.mxu0 0.0
    %5264 = vmatpush1.msra.mxu0 %v5252
    %5265 = vmatprep.subr.mxu0 0.0
    %5266 = vmatpush1.msra.mxu0 0.0
    %5267 = vmatprep.subr.mxu0 0.0
    %5268 = vmatpush1.msra.mxu0 0.0
    %5269 = vmatprep.subr.mxu0 0.0
    %5270 = vmatpush1.msra.mxu0 0.0
    %5271 = vmatprep.subr.mxu0 0.0
    %5272 = vmatpush1.msra.mxu0 0.0
    %5273 = vmatprep.subr.mxu0 0.0
    %5274 = vmatpush1.msra.mxu0 0.0
    %5275 = vmatprep.subr.mxu0 0.0
    %5276 = vmatpush1.msra.mxu0 0.0
    %5277 = vmatprep.subr.mxu0 0.0
    %5278 = vmatpush1.msra.mxu0 0.0
    %5279 = vmatprep.subr.mxu0 0.0
    %5280 = vmatpush1.msra.mxu0 0.0
    %5281 = vmatprep.subr.mxu0 0.0
    %5282 = vmatpush1.msra.mxu0 0.0
    %5283 = vmatprep.subr.mxu0 0.0
    %5284 = vmatpush1.msra.mxu0 0.0
    %5285 = vmatprep.subr.mxu0 0.0
    %5286 = vmatpush1.msra.mxu0 0.0
    %5287 = vmatprep.subr.mxu0 0.0
    %5288 = vmatpush1.msra.mxu0 0.0
    %5289 = vmatprep.subr.mxu0 0.0
    %5290 = vmatpush1.msra.mxu0 0.0
    %5291 = vmatprep.subr.mxu0 0.0
    %5292 = vmatpush1.msra.mxu0 0.0
    %5293 = vmatprep.subr.mxu0 0.0
    %5294 = vmatpush1.msra.mxu0 0.0
    %5295 = vmatprep.subr.mxu0 0.0
    %5296 = vmatpush1.msra.mxu0 0.0
    %5297 = vmatprep.subr.mxu0 0.0
    %5298 = vmatpush1.msra.mxu0 0.0
    %5299 = vmatprep.subr.mxu0 0.0
    %5300 = vmatpush1.msra.mxu0 0.0
    %5301 = vmatprep.subr.mxu0 0.0
    %5302 = vmatpush1.msra.mxu0 0.0
    %5303 = vmatprep.subr.mxu0 0.0
    %5304 = vmatpush1.msra.mxu0 0.0
    %5305 = vmatprep.subr.mxu0 0.0
    %5306 = vmatpush1.msra.mxu0 0.0
    %5307 = vmatprep.subr.mxu0 0.0
    %5308 = vmatpush1.msra.mxu0 0.0
    %5309 = vmatprep.subr.mxu0 0.0
    %5310 = vmatpush1.msra.mxu0 0.0
    %5311 = vmatprep.subr.mxu0 0.0
    %5312 = vmatpush1.msra.mxu0 0.0
    %5313 = vmatprep.subr.mxu0 0.0
    %5314 = vmatpush1.msra.mxu0 0.0
    %5315 = vmatprep.subr.mxu0 0.0
    %5316 = vmatpush1.msra.mxu0 0.0
    %5317 = vmatprep.subr.mxu0 0.0
    %5318 = vmatpush1.msra.mxu0 0.0
    %5319 = vmatprep.subr.mxu0 0.0
    %5320 = vmatpush1.msra.mxu0 0.0
    %5321 = vmatprep.subr.mxu0 0.0
    %5322 = vmatpush1.msra.mxu0 0.0
    %5323 = vmatprep.subr.mxu0 0.0
    %5324 = vmatpush1.msra.mxu0 0.0
    %5325 = vmatprep.mubr.f32.mxu0 0.0
    %5326 = vmatmul.mubr.f32.gmra.mrb[0].mxu0 %v5256
    %v5327 = vpop.f32.mrb[0].mxu0
    %v5328 = vadd.f32 0.0, %v5327
    %v5329 = vpop.f32.mrb[0].mxu0
    %5330 = vmatprep.mubr.f32.mxu0 0.0
    %5331 = vmatmul.mubr.f32.gmra.mrb[0].mxu0 %v5259
    %v5332 = vpop.f32.mrb[0].mxu0
    %v5333 = vadd.f32 0.0, %v5332
    %v5334 = vpop.f32.mrb[0].mxu0
    %5335 = vdwg.mxu0
    %5340 = vrot.lane.b32.xlu0 %v4441, 4
    %v5341 = vpop.permute.xlu0 %5340
    %5342 = vrot.lane.b32.xlu0 %v4446, 4
    %v5343 = vpop.permute.xlu0 %5342
    %5344 = vrot.lane.b32.xlu0 %v4528, 4
    %v5345 = vpop.permute.xlu0 %5344
    %5346 = vrot.lane.b32.xlu0 %v4533, 4
    %v5347 = vpop.permute.xlu0 %5346
    %5356 = vrot.lane.b32.xlu0 %v4841, 8
    %v5357 = vpop.permute.xlu0 %5356
    %5358 = vrot.lane.b32.xlu0 %v4846, 8
    %v5359 = vpop.permute.xlu0 %5358
    %5360 = vrot.lane.b32.xlu0 %v4928, 8
    %v5361 = vpop.permute.xlu0 %5360
    %5362 = vrot.lane.b32.xlu0 %v4933, 8
    %v5363 = vpop.permute.xlu0 %5362
    %5372 = vrot.lane.b32.xlu0 %v5241, 12
    %v5373 = vpop.permute.xlu0 %5372
    %5374 = vrot.lane.b32.xlu0 %v5246, 12
    %v5375 = vpop.permute.xlu0 %5374
    %5376 = vrot.lane.b32.xlu0 %v5328, 12
    %v5377 = vpop.permute.xlu0 %5376
    %5378 = vrot.lane.b32.xlu0 %v5333, 12
    %v5379 = vpop.permute.xlu0 %5378
    %v5384 = vsel %vm534, %v4041, %v5341
    %v5385 = vsel %vm534, %v4046, %v5343
    %v5386 = vsel %vm534, %v4128, %v5345
    %v5387 = vsel %vm534, %v4133, %v5347
    %v5388 = vsel %vm2177, %v5384, %v5357
    %v5389 = vsel %vm2177, %v5385, %v5359
    %v5390 = vsel %vm2177, %v5386, %v5361
    %v5391 = vsel %vm2177, %v5387, %v5363
    %v5392 = vsel %vm2182, %v5388, %v5373
    %v5393 = vsel %vm2182, %v5389, %v5375
    %v5394 = vsel %vm2182, %v5390, %v5377
    %v5395 = vsel %vm2182, %v5391, %v5379
    %v5397 = vlaneseq
    %v5398 = vshrl.u32 %v5397, 7
    %v5399 = vsub.s32 0, %v5398
    %v5400 = vrot.slane %v3572, %v5399
    %v5403 = vsel %vm430, %v5392, 0
    %v5406 = vsel %vm430, %v5393, 0
    %v5409 = vsel %vm430, %v5394, 0
    %v5412 = vsel %vm430, %v5395, 0
    %5414 = vmatprep.subr.mxu0 0.0
    %5415 = vmatpush1.msra.mxu0 %v3570
    %5416 = vmatprep.subr.mxu0 0.0
    %5417 = vmatpush1.msra.mxu0 %v3571
    %5418 = vmatprep.subr.mxu0 0.0
    %5419 = vmatpush1.msra.mxu0 0.0
    %5420 = vmatprep.subr.mxu0 0.0
    %5421 = vmatpush1.msra.mxu0 0.0
    %5422 = vmatprep.subr.mxu0 0.0
    %5423 = vmatpush1.msra.mxu0 0.0
    %5424 = vmatprep.subr.mxu0 0.0
    %5425 = vmatpush1.msra.mxu0 0.0
    %5426 = vmatprep.subr.mxu0 0.0
    %5427 = vmatpush1.msra.mxu0 0.0
    %5428 = vmatprep.subr.mxu0 0.0
    %5429 = vmatpush1.msra.mxu0 0.0
    %5430 = vmatprep.subr.mxu0 0.0
    %5431 = vmatpush1.msra.mxu0 0.0
    %5432 = vmatprep.subr.mxu0 0.0
    %5433 = vmatpush1.msra.mxu0 0.0
    %5434 = vmatprep.subr.mxu0 0.0
    %5435 = vmatpush1.msra.mxu0 0.0
    %5436 = vmatprep.subr.mxu0 0.0
    %5437 = vmatpush1.msra.mxu0 0.0
    %5438 = vmatprep.subr.mxu0 0.0
    %5439 = vmatpush1.msra.mxu0 0.0
    %5440 = vmatprep.subr.mxu0 0.0
    %5441 = vmatpush1.msra.mxu0 0.0
    %5442 = vmatprep.subr.mxu0 0.0
    %5443 = vmatpush1.msra.mxu0 0.0
    %5444 = vmatprep.subr.mxu0 0.0
    %5445 = vmatpush1.msra.mxu0 0.0
    %5446 = vmatprep.subr.mxu0 0.0
    %5447 = vmatpush1.msra.mxu0 0.0
    %5448 = vmatprep.subr.mxu0 0.0
    %5449 = vmatpush1.msra.mxu0 0.0
    %5450 = vmatprep.subr.mxu0 0.0
    %5451 = vmatpush1.msra.mxu0 0.0
    %5452 = vmatprep.subr.mxu0 0.0
    %5453 = vmatpush1.msra.mxu0 0.0
    %5454 = vmatprep.subr.mxu0 0.0
    %5455 = vmatpush1.msra.mxu0 0.0
    %5456 = vmatprep.subr.mxu0 0.0
    %5457 = vmatpush1.msra.mxu0 0.0
    %5458 = vmatprep.subr.mxu0 0.0
    %5459 = vmatpush1.msra.mxu0 0.0
    %5460 = vmatprep.subr.mxu0 0.0
    %5461 = vmatpush1.msra.mxu0 0.0
    %5462 = vmatprep.subr.mxu0 0.0
    %5463 = vmatpush1.msra.mxu0 0.0
    %5464 = vmatprep.subr.mxu0 0.0
    %5465 = vmatpush1.msra.mxu0 0.0
    %5466 = vmatprep.subr.mxu0 0.0
    %5467 = vmatpush1.msra.mxu0 0.0
    %5468 = vmatprep.subr.mxu0 0.0
    %5469 = vmatpush1.msra.mxu0 0.0
    %5470 = vmatprep.subr.mxu0 0.0
    %5471 = vmatpush1.msra.mxu0 0.0
    %5472 = vmatprep.subr.mxu0 0.0
    %5473 = vmatpush1.msra.mxu0 0.0
    %5474 = vmatprep.subr.mxu0 0.0
    %5475 = vmatpush1.msra.mxu0 0.0
    %5476 = vmatprep.subr.mxu0 0.0
    %5477 = vmatpush1.msra.mxu0 0.0
    %5478 = vmatprep.mubr.f32.mxu0 0.0
    %5479 = vmatmul.mubr.f32.gmra.mrb[0].mxu0 %v5403
    %v5480 = vpop.f32.mrb[0].mxu0
    %v5481 = vadd.f32 %v5400, %v5480
    %v5482 = vpop.f32.mrb[0].mxu0
    %5483 = vmatprep.mubr.f32.mxu0 0.0
    %5484 = vmatmul.mubr.f32.gmra.mrb[0].mxu0 %v5406
    %v5485 = vpop.f32.mrb[0].mxu0
    %v5486 = vadd.f32 %v5400, %v5485
    %v5487 = vpop.f32.mrb[0].mxu0
    %5488 = vmatprep.mubr.f32.mxu0 0.0
    %5489 = vmatmul.mubr.f32.gmra.mrb[0].mxu0 %v5409
    %v5490 = vpop.f32.mrb[0].mxu0
    %v5491 = vadd.f32 %v5400, %v5490
    %v5492 = vpop.f32.mrb[0].mxu0
    %5493 = vmatprep.mubr.f32.mxu0 0.0
    %5494 = vmatmul.mubr.f32.gmra.mrb[0].mxu0 %v5412
    %v5495 = vpop.f32.mrb[0].mxu0
    %v5496 = vadd.f32 %v5400, %v5495
    %v5497 = vpop.f32.mrb[0].mxu0
    %5498 = vdwg.mxu0
    %v5499 = vadd.f32 %v3446, %v5481
    %v5500 = vadd.f32 %v3451, %v5486
    %v5501 = vadd.f32 %v3559, %v5491
    %v5502 = vadd.f32 %v3564, %v5496
    %v5503 = vsel %vm430, %v5499, 0.0
    %5504 = vadd.xlane.f32.xlu0 %v5503
    %v5505 = vpop.xlane.xlu0 %5504
    %v5506 = vsel %vm430, %v5500, 0.0
    %5507 = vadd.xlane.f32.xlu0 %v5506
    %v5508 = vpop.xlane.xlu0 %5507
    %v5509 = vsel %vm430, %v5501, 0.0
    %5510 = vadd.xlane.f32.xlu0 %v5509
    %v5511 = vpop.xlane.xlu0 %5510
    %v5512 = vsel %vm430, %v5502, 0.0
    %5513 = vadd.xlane.f32.xlu0 %v5512
    %v5514 = vpop.xlane.xlu0 %5513
    %v5515 = vmul.f32 %v5505, %v2306
    %v5516 = vmul.f32 %v5508, %v2306
    %v5517 = vmul.f32 %v5511, %v2306
    %v5518 = vmul.f32 %v5514, %v2306
    %v5519 = vsub.f32 %v5499, %v5515
    %v5520 = vsub.f32 %v5500, %v5516
    %v5521 = vsub.f32 %v5501, %v5517
    %v5522 = vsub.f32 %v5502, %v5518
    %v5523 = vmul.f32 %v5519, %v5519
    %v5524 = vmul.f32 %v5520, %v5520
    %v5525 = vmul.f32 %v5521, %v5521
    %v5526 = vmul.f32 %v5522, %v5522
    %v5527 = vsel %vm430, %v5523, 0.0
    %5528 = vadd.xlane.f32.xlu0 %v5527
    %v5529 = vpop.xlane.xlu0 %5528
    %v5530 = vsel %vm430, %v5524, 0.0
    %5531 = vadd.xlane.f32.xlu0 %v5530
    %v5532 = vpop.xlane.xlu0 %5531
    %v5533 = vsel %vm430, %v5525, 0.0
    %5534 = vadd.xlane.f32.xlu0 %v5533
    %v5535 = vpop.xlane.xlu0 %5534
    %v5536 = vsel %vm430, %v5526, 0.0
    %5537 = vadd.xlane.f32.xlu0 %v5536
    %v5538 = vpop.xlane.xlu0 %5537
    %v5539 = vmul.f32 %v5529, %v2306
    %v5540 = vmul.f32 %v5532, %v2306
    %v5541 = vmul.f32 %v5535, %v2306
    %v5542 = vmul.f32 %v5538, %v2306
    %v5543 = vadd.f32 %v5539, 1e-05
    %v5544 = vadd.f32 %v5540, 1e-05
    %v5545 = vadd.f32 %v5541, 1e-05
    %v5546 = vadd.f32 %v5542, 1e-05
    %v5547 = vrsqrt.pop %v5543
    %v5548 = vrsqrt.pop %v5544
    %v5549 = vrsqrt.pop %v5545
    %v5550 = vrsqrt.pop %v5546
    %v5551 = vmul.f32 %v5519, %v5547
    %v5552 = vmul.f32 %v5520, %v5548
    %v5553 = vmul.f32 %v5521, %v5549
    %v5554 = vmul.f32 %v5522, %v5550
    %v5556 = vlaneseq
    %v5557 = vshrl.u32 %v5556, 7
    %v5558 = vsub.s32 0, %v5557
    %v5559 = vrot.slane %v3573, %v5558
    %v5561 = vmul.f32 %v5551, %v5559
    %v5562 = vmul.f32 %v5552, %v5559
    %v5563 = vmul.f32 %v5553, %v5559
    %v5564 = vmul.f32 %v5554, %v5559
    %v5566 = vlaneseq
    %v5567 = vshrl.u32 %v5566, 7
    %v5568 = vsub.s32 0, %v5567
    %v5569 = vrot.slane %v3574, %v5568
    %v5571 = vadd.f32 %v5561, %v5569
    %v5572 = vadd.f32 %v5562, %v5569
    %v5573 = vadd.f32 %v5563, %v5569
    %v5574 = vadd.f32 %v5564, %v5569
    %v5576 = vlaneseq
    %v5577 = vshrl.u32 %v5576, 7
    %v5578 = vsub.s32 0, %v5577
    %v5579 = vrot.slane %v3577, %v5578
    %v5582 = vsel %vm430, %v5571, 0
    %v5585 = vsel %vm430, %v5572, 0
    %v5588 = vsel %vm430, %v5573, 0
    %v5591 = vsel %vm430, %v5574, 0
    %5593 = vmatprep.subr.mxu0 0.0
    %5594 = vmatpush1.msra.mxu0 %v3575
    %5595 = vmatprep.subr.mxu0 0.0
    %5596 = vmatpush1.msra.mxu0 %v3576
    %5597 = vmatprep.subr.mxu0 0.0
    %5598 = vmatpush1.msra.mxu0 0.0
    %5599 = vmatprep.subr.mxu0 0.0
    %5600 = vmatpush1.msra.mxu0 0.0
    %5601 = vmatprep.subr.mxu0 0.0
    %5602 = vmatpush1.msra.mxu0 0.0
    %5603 = vmatprep.subr.mxu0 0.0
    %5604 = vmatpush1.msra.mxu0 0.0
    %5605 = vmatprep.subr.mxu0 0.0
    %5606 = vmatpush1.msra.mxu0 0.0
    %5607 = vmatprep.subr.mxu0 0.0
    %5608 = vmatpush1.msra.mxu0 0.0
    %5609 = vmatprep.subr.mxu0 0.0
    %5610 = vmatpush1.msra.mxu0 0.0
    %5611 = vmatprep.subr.mxu0 0.0
    %5612 = vmatpush1.msra.mxu0 0.0
    %5613 = vmatprep.subr.mxu0 0.0
    %5614 = vmatpush1.msra.mxu0 0.0
    %5615 = vmatprep.subr.mxu0 0.0
    %5616 = vmatpush1.msra.mxu0 0.0
    %5617 = vmatprep.subr.mxu0 0.0
    %5618 = vmatpush1.msra.mxu0 0.0
    %5619 = vmatprep.subr.mxu0 0.0
    %5620 = vmatpush1.msra.mxu0 0.0
    %5621 = vmatprep.subr.mxu0 0.0
    %5622 = vmatpush1.msra.mxu0 0.0
    %5623 = vmatprep.subr.mxu0 0.0
    %5624 = vmatpush1.msra.mxu0 0.0
    %5625 = vmatprep.subr.mxu0 0.0
    %5626 = vmatpush1.msra.mxu0 0.0
    %5627 = vmatprep.subr.mxu0 0.0
    %5628 = vmatpush1.msra.mxu0 0.0
    %5629 = vmatprep.subr.mxu0 0.0
    %5630 = vmatpush1.msra.mxu0 0.0
    %5631 = vmatprep.subr.mxu0 0.0
    %5632 = vmatpush1.msra.mxu0 0.0
    %5633 = vmatprep.subr.mxu0 0.0
    %5634 = vmatpush1.msra.mxu0 0.0
    %5635 = vmatprep.subr.mxu0 0.0
    %5636 = vmatpush1.msra.mxu0 0.0
    %5637 = vmatprep.subr.mxu0 0.0
    %5638 = vmatpush1.msra.mxu0 0.0
    %5639 = vmatprep.subr.mxu0 0.0
    %5640 = vmatpush1.msra.mxu0 0.0
    %5641 = vmatprep.subr.mxu0 0.0
    %5642 = vmatpush1.msra.mxu0 0.0
    %5643 = vmatprep.subr.mxu0 0.0
    %5644 = vmatpush1.msra.mxu0 0.0
    %5645 = vmatprep.subr.mxu0 0.0
    %5646 = vmatpush1.msra.mxu0 0.0
    %5647 = vmatprep.subr.mxu0 0.0
    %5648 = vmatpush1.msra.mxu0 0.0
    %5649 = vmatprep.subr.mxu0 0.0
    %5650 = vmatpush1.msra.mxu0 0.0
    %5651 = vmatprep.subr.mxu0 0.0
    %5652 = vmatpush1.msra.mxu0 0.0
    %5653 = vmatprep.subr.mxu0 0.0
    %5654 = vmatpush1.msra.mxu0 0.0
    %5655 = vmatprep.subr.mxu0 0.0
    %5656 = vmatpush1.msra.mxu0 0.0
    %5657 = vmatprep.mubr.f32.mxu0 0.0
    %5658 = vmatmul.mubr.f32.gmra.mrb[0].mxu0 %v5582
    %v5659 = vpop.f32.mrb[0].mxu0
    %v5660 = vadd.f32 %v5579, %v5659
    %v5661 = vpop.f32.mrb[0].mxu0
    %5662 = vmatprep.mubr.f32.mxu0 0.0
    %5663 = vmatmul.mubr.f32.gmra.mrb[0].mxu0 %v5585
    %v5664 = vpop.f32.mrb[0].mxu0
    %v5665 = vadd.f32 %v5579, %v5664
    %v5666 = vpop.f32.mrb[0].mxu0
    %5667 = vmatprep.mubr.f32.mxu0 0.0
    %5668 = vmatmul.mubr.f32.gmra.mrb[0].mxu0 %v5588
    %v5669 = vpop.f32.mrb[0].mxu0
    %v5670 = vadd.f32 %v5579, %v5669
    %v5671 = vpop.f32.mrb[0].mxu0
    %5672 = vmatprep.mubr.f32.mxu0 0.0
    %5673 = vmatmul.mubr.f32.gmra.mrb[0].mxu0 %v5591
    %v5674 = vpop.f32.mrb[0].mxu0
    %v5675 = vadd.f32 %v5579, %v5674
    %v5676 = vpop.f32.mrb[0].mxu0
    %5677 = vdwg.mxu0
    %v5678 = vmax.f32 %v5660, 0.0
    %v5679 = vmax.f32 %v5665, 0.0
    %v5680 = vmax.f32 %v5670, 0.0
    %v5681 = vmax.f32 %v5675, 0.0
    %v5683 = vlaneseq
    %v5684 = vshrl.u32 %v5683, 7
    %v5685 = vsub.s32 0, %v5684
    %v5686 = vrot.slane %v3586, %v5685
    %v5689 = vsel %vm2480, %v5678, 0
    %v5692 = vsel %vm2480, %v5679, 0
    %v5695 = vsel %vm2480, %v5680, 0
    %v5698 = vsel %vm2480, %v5681, 0
    %5700 = vmatprep.subr.mxu0 0.0
    %5701 = vmatpush1.msra.mxu0 %v3578
    %5702 = vmatprep.subr.mxu0 0.0
    %5703 = vmatpush1.msra.mxu0 %v3579
    %5704 = vmatprep.subr.mxu0 0.0
    %5705 = vmatpush1.msra.mxu0 %v3580
    %5706 = vmatprep.subr.mxu0 0.0
    %5707 = vmatpush1.msra.mxu0 %v3581
    %5708 = vmatprep.subr.mxu0 0.0
    %5709 = vmatpush1.msra.mxu0 %v3582
    %5710 = vmatprep.subr.mxu0 0.0
    %5711 = vmatpush1.msra.mxu0 %v3583
    %5712 = vmatprep.subr.mxu0 0.0
    %5713 = vmatpush1.msra.mxu0 %v3584
    %5714 = vmatprep.subr.mxu0 0.0
    %5715 = vmatpush1.msra.mxu0 %v3585
    %5716 = vmatprep.subr.mxu0 0.0
    %5717 = vmatpush1.msra.mxu0 0.0
    %5718 = vmatprep.subr.mxu0 0.0
    %5719 = vmatpush1.msra.mxu0 0.0
    %5720 = vmatprep.subr.mxu0 0.0
    %5721 = vmatpush1.msra.mxu0 0.0
    %5722 = vmatprep.subr.mxu0 0.0
    %5723 = vmatpush1.msra.mxu0 0.0
    %5724 = vmatprep.subr.mxu0 0.0
    %5725 = vmatpush1.msra.mxu0 0.0
    %5726 = vmatprep.subr.mxu0 0.0
    %5727 = vmatpush1.msra.mxu0 0.0
    %5728 = vmatprep.subr.mxu0 0.0
    %5729 = vmatpush1.msra.mxu0 0.0
    %5730 = vmatprep.subr.mxu0 0.0
    %5731 = vmatpush1.msra.mxu0 0.0
    %5732 = vmatprep.subr.mxu0 0.0
    %5733 = vmatpush1.msra.mxu0 0.0
    %5734 = vmatprep.subr.mxu0 0.0
    %5735 = vmatpush1.msra.mxu0 0.0
    %5736 = vmatprep.subr.mxu0 0.0
    %5737 = vmatpush1.msra.mxu0 0.0
    %5738 = vmatprep.subr.mxu0 0.0
    %5739 = vmatpush1.msra.mxu0 0.0
    %5740 = vmatprep.subr.mxu0 0.0
    %5741 = vmatpush1.msra.mxu0 0.0
    %5742 = vmatprep.subr.mxu0 0.0
    %5743 = vmatpush1.msra.mxu0 0.0
    %5744 = vmatprep.subr.mxu0 0.0
    %5745 = vmatpush1.msra.mxu0 0.0
    %5746 = vmatprep.subr.mxu0 0.0
    %5747 = vmatpush1.msra.mxu0 0.0
    %5748 = vmatprep.subr.mxu0 0.0
    %5749 = vmatpush1.msra.mxu0 0.0
    %5750 = vmatprep.subr.mxu0 0.0
    %5751 = vmatpush1.msra.mxu0 0.0
    %5752 = vmatprep.subr.mxu0 0.0
    %5753 = vmatpush1.msra.mxu0 0.0
    %5754 = vmatprep.subr.mxu0 0.0
    %5755 = vmatpush1.msra.mxu0 0.0
    %5756 = vmatprep.subr.mxu0 0.0
    %5757 = vmatpush1.msra.mxu0 0.0
    %5758 = vmatprep.subr.mxu0 0.0
    %5759 = vmatpush1.msra.mxu0 0.0
    %5760 = vmatprep.subr.mxu0 0.0
    %5761 = vmatpush1.msra.mxu0 0.0
    %5762 = vmatprep.subr.mxu0 0.0
    %5763 = vmatpush1.msra.mxu0 0.0
    %5764 = vmatprep.mubr.f32.mxu0 0.0
    %5765 = vmatmul.mubr.f32.gmra.mrb[0].mxu0 %v5689
    %v5766 = vpop.f32.mrb[0].mxu0
    %v5767 = vadd.f32 %v5686, %v5766
    %v5768 = vpop.f32.mrb[0].mxu0
    %5769 = vmatprep.mubr.f32.mxu0 0.0
    %5770 = vmatmul.mubr.f32.gmra.mrb[0].mxu0 %v5692
    %v5771 = vpop.f32.mrb[0].mxu0
    %v5772 = vadd.f32 %v5686, %v5771
    %v5773 = vpop.f32.mrb[0].mxu0
    %5774 = vmatprep.mubr.f32.mxu0 0.0
    %5775 = vmatmul.mubr.f32.gmra.mrb[0].mxu0 %v5695
    %v5776 = vpop.f32.mrb[0].mxu0
    %v5777 = vadd.f32 %v5686, %v5776
    %v5778 = vpop.f32.mrb[0].mxu0
    %5779 = vmatprep.mubr.f32.mxu0 0.0
    %5780 = vmatmul.mubr.f32.gmra.mrb[0].mxu0 %v5698
    %v5781 = vpop.f32.mrb[0].mxu0
    %v5782 = vadd.f32 %v5686, %v5781
    %v5783 = vpop.f32.mrb[0].mxu0
    %5784 = vdwg.mxu0
    %v5785 = vadd.f32 %v5571, %v5767
    %v5786 = vadd.f32 %v5572, %v5772
    %v5787 = vadd.f32 %v5573, %v5777
    %v5788 = vadd.f32 %v5574, %v5782
    %v5789 = vsel %vm430, %v5785, 0.0
    %5790 = vadd.xlane.f32.xlu0 %v5789
    %v5791 = vpop.xlane.xlu0 %5790
    %v5792 = vsel %vm430, %v5786, 0.0
    %5793 = vadd.xlane.f32.xlu0 %v5792
    %v5794 = vpop.xlane.xlu0 %5793
    %v5795 = vsel %vm430, %v5787, 0.0
    %5796 = vadd.xlane.f32.xlu0 %v5795
    %v5797 = vpop.xlane.xlu0 %5796
    %v5798 = vsel %vm430, %v5788, 0.0
    %5799 = vadd.xlane.f32.xlu0 %v5798
    %v5800 = vpop.xlane.xlu0 %5799
    %v5801 = vmul.f32 %v5791, %v2306
    %v5802 = vmul.f32 %v5794, %v2306
    %v5803 = vmul.f32 %v5797, %v2306
    %v5804 = vmul.f32 %v5800, %v2306
    %v5805 = vsub.f32 %v5785, %v5801
    %v5806 = vsub.f32 %v5786, %v5802
    %v5807 = vsub.f32 %v5787, %v5803
    %v5808 = vsub.f32 %v5788, %v5804
    %v5809 = vmul.f32 %v5805, %v5805
    %v5810 = vmul.f32 %v5806, %v5806
    %v5811 = vmul.f32 %v5807, %v5807
    %v5812 = vmul.f32 %v5808, %v5808
    %v5813 = vsel %vm430, %v5809, 0.0
    %5814 = vadd.xlane.f32.xlu0 %v5813
    %v5815 = vpop.xlane.xlu0 %5814
    %v5816 = vsel %vm430, %v5810, 0.0
    %5817 = vadd.xlane.f32.xlu0 %v5816
    %v5818 = vpop.xlane.xlu0 %5817
    %v5819 = vsel %vm430, %v5811, 0.0
    %5820 = vadd.xlane.f32.xlu0 %v5819
    %v5821 = vpop.xlane.xlu0 %5820
    %v5822 = vsel %vm430, %v5812, 0.0
    %5823 = vadd.xlane.f32.xlu0 %v5822
    %v5824 = vpop.xlane.xlu0 %5823
    %v5825 = vmul.f32 %v5815, %v2306
    %v5826 = vmul.f32 %v5818, %v2306
    %v5827 = vmul.f32 %v5821, %v2306
    %v5828 = vmul.f32 %v5824, %v2306
    %v5829 = vadd.f32 %v5825, 1e-05
    %v5830 = vadd.f32 %v5826, 1e-05
    %v5831 = vadd.f32 %v5827, 1e-05
    %v5832 = vadd.f32 %v5828, 1e-05
    %v5833 = vrsqrt.pop %v5829
    %v5834 = vrsqrt.pop %v5830
    %v5835 = vrsqrt.pop %v5831
    %v5836 = vrsqrt.pop %v5832
    %v5837 = vmul.f32 %v5805, %v5833
    %v5838 = vmul.f32 %v5806, %v5834
    %v5839 = vmul.f32 %v5807, %v5835
    %v5840 = vmul.f32 %v5808, %v5836
    %v5842 = vlaneseq
    %v5843 = vshrl.u32 %v5842, 7
    %v5844 = vsub.s32 0, %v5843
    %v5845 = vrot.slane %v3587, %v5844
    %v5847 = vmul.f32 %v5837, %v5845
    %v5848 = vmul.f32 %v5838, %v5845
    %v5849 = vmul.f32 %v5839, %v5845
    %v5850 = vmul.f32 %v5840, %v5845
    %v5852 = vlaneseq
    %v5853 = vshrl.u32 %v5852, 7
    %v5854 = vsub.s32 0, %v5853
    %v5855 = vrot.slane %v3588, %v5854
    %v5857 = vadd.f32 %v5847, %v5855
    %v5858 = vadd.f32 %v5848, %v5855
    %v5859 = vadd.f32 %v5849, %v5855
    %v5860 = vadd.f32 %v5850, %v5855
    %v5862 = vrot.slane %v5857, 1
    %5863 = vrot.lane.b32.xlu0 %v5862, 16
    %v5864 = vpop.permute.xlu0 %5863
    %v5866 = vrot.slane %v5857, 2
    %5867 = vrot.lane.b32.xlu0 %v5866, 32
    %v5868 = vpop.permute.xlu0 %5867
    %v5870 = vrot.slane %v5857, 3
    %5871 = vrot.lane.b32.xlu0 %v5870, 48
    %v5872 = vpop.permute.xlu0 %5871
    %v5874 = vrot.slane %v5857, 4
    %5875 = vrot.lane.b32.xlu0 %v5874, 64
    %v5876 = vpop.permute.xlu0 %5875
    %v5878 = vrot.slane %v5857, 5
    %5879 = vrot.lane.b32.xlu0 %v5878, 80
    %v5880 = vpop.permute.xlu0 %5879
    %v5882 = vrot.slane %v5857, 6
    %5883 = vrot.lane.b32.xlu0 %v5882, 96
    %v5884 = vpop.permute.xlu0 %5883
    %v5886 = vrot.slane %v5857, 7
    %5887 = vrot.lane.b32.xlu0 %v5886, 112
    %v5888 = vpop.permute.xlu0 %5887
    %v5891 = vrot.slane %v5858, 1
    %5892 = vrot.lane.b32.xlu0 %v5891, 16
    %v5893 = vpop.permute.xlu0 %5892
    %v5895 = vrot.slane %v5858, 2
    %5896 = vrot.lane.b32.xlu0 %v5895, 32
    %v5897 = vpop.permute.xlu0 %5896
    %v5899 = vrot.slane %v5858, 3
    %5900 = vrot.lane.b32.xlu0 %v5899, 48
    %v5901 = vpop.permute.xlu0 %5900
    %v5903 = vrot.slane %v5858, 4
    %5904 = vrot.lane.b32.xlu0 %v5903, 64
    %v5905 = vpop.permute.xlu0 %5904
    %v5907 = vrot.slane %v5858, 5
    %5908 = vrot.lane.b32.xlu0 %v5907, 80
    %v5909 = vpop.permute.xlu0 %5908
    %v5911 = vrot.slane %v5858, 6
    %5912 = vrot.lane.b32.xlu0 %v5911, 96
    %v5913 = vpop.permute.xlu0 %5912
    %v5915 = vrot.slane %v5858, 7
    %5916 = vrot.lane.b32.xlu0 %v5915, 112
    %v5917 = vpop.permute.xlu0 %5916
    %v5919 = vsel %vm430, %v5857, %v5864
    %v5920 = vsel %vm2713, %v5919, %v5868
    %v5921 = vsel %vm2715, %v5920, %v5872
    %v5922 = vsel %vm2480, %v5921, %v5876
    %v5923 = vsel %vm2718, %v5922, %v5880
    %v5924 = vsel %vm2720, %v5923, %v5884
    %v5925 = vsel %vm2722, %v5924, %v5888
    %v5926 = vsel %vm430, %v5858, %v5893
    %v5927 = vsel %vm2713, %v5926, %v5897
    %v5928 = vsel %vm2715, %v5927, %v5901
    %v5929 = vsel %vm2480, %v5928, %v5905
    %v5930 = vsel %vm2718, %v5929, %v5909
    %v5931 = vsel %vm2720, %v5930, %v5913
    %v5932 = vsel %vm2722, %v5931, %v5917
    %v5934 = vrot.slane %v5859, 1
    %5935 = vrot.lane.b32.xlu0 %v5934, 16
    %v5936 = vpop.permute.xlu0 %5935
    %v5938 = vrot.slane %v5859, 2
    %5939 = vrot.lane.b32.xlu0 %v5938, 32
    %v5940 = vpop.permute.xlu0 %5939
    %v5942 = vrot.slane %v5859, 3
    %5943 = vrot.lane.b32.xlu0 %v5942, 48
    %v5944 = vpop.permute.xlu0 %5943
    %v5946 = vrot.slane %v5859, 4
    %5947 = vrot.lane.b32.xlu0 %v5946, 64
    %v5948 = vpop.permute.xlu0 %5947
    %v5950 = vrot.slane %v5859, 5
    %5951 = vrot.lane.b32.xlu0 %v5950, 80
    %v5952 = vpop.permute.xlu0 %5951
    %v5954 = vrot.slane %v5859, 6
    %5955 = vrot.lane.b32.xlu0 %v5954, 96
    %v5956 = vpop.permute.xlu0 %5955
    %v5958 = vrot.slane %v5859, 7
    %5959 = vrot.lane.b32.xlu0 %v5958, 112
    %v5960 = vpop.permute.xlu0 %5959
    %v5963 = vrot.slane %v5860, 1
    %5964 = vrot.lane.b32.xlu0 %v5963, 16
    %v5965 = vpop.permute.xlu0 %5964
    %v5967 = vrot.slane %v5860, 2
    %5968 = vrot.lane.b32.xlu0 %v5967, 32
    %v5969 = vpop.permute.xlu0 %5968
    %v5971 = vrot.slane %v5860, 3
    %5972 = vrot.lane.b32.xlu0 %v5971, 48
    %v5973 = vpop.permute.xlu0 %5972
    %v5975 = vrot.slane %v5860, 4
    %5976 = vrot.lane.b32.xlu0 %v5975, 64
    %v5977 = vpop.permute.xlu0 %5976
    %v5979 = vrot.slane %v5860, 5
    %5980 = vrot.lane.b32.xlu0 %v5979, 80
    %v5981 = vpop.permute.xlu0 %5980
    %v5983 = vrot.slane %v5860, 6
    %5984 = vrot.lane.b32.xlu0 %v5983, 96
    %v5985 = vpop.permute.xlu0 %5984
    %v5987 = vrot.slane %v5860, 7
    %5988 = vrot.lane.b32.xlu0 %v5987, 112
    %v5989 = vpop.permute.xlu0 %5988
    %v5991 = vsel %vm430, %v5859, %v5936
    %v5992 = vsel %vm2713, %v5991, %v5940
    %v5993 = vsel %vm2715, %v5992, %v5944
    %v5994 = vsel %vm2480, %v5993, %v5948
    %v5995 = vsel %vm2718, %v5994, %v5952
    %v5996 = vsel %vm2720, %v5995, %v5956
    %v5997 = vsel %vm2722, %v5996, %v5960
    %v5998 = vsel %vm430, %v5860, %v5965
    %v5999 = vsel %vm2713, %v5998, %v5969
    %v6000 = vsel %vm2715, %v5999, %v5973
    %v6001 = vsel %vm2480, %v6000, %v5977
    %v6002 = vsel %vm2718, %v6001, %v5981
    %v6003 = vsel %vm2720, %v6002, %v5985
    %v6004 = vsel %vm2722, %v6003, %v5989
    %v6007 = vrot.slane %v5997, 7
    %v6008 = vrot.slane %v6004, 7
    %v6011 = vsel %vm2809, %v5925, %v6007
    %v6012 = vsel %vm2809, %v5932, %v6008
    %v6014 = vlaneseq
    %v6015 = vshrl.u32 %v6014, 7
    %v6016 = vsub.s32 0, %v6015
    %v6017 = vrot.slane %v3621, %v6016
    %6019 = vmatprep.subr.mxu0 0.0
    %6020 = vmatpush1.msra.mxu0 %v3589
    %6021 = vmatprep.subr.mxu0 0.0
    %6022 = vmatpush1.msra.mxu0 %v3590
    %6023 = vmatprep.subr.mxu0 0.0
    %6024 = vmatpush1.msra.mxu0 %v3591
    %6025 = vmatprep.subr.mxu0 0.0
    %6026 = vmatpush1.msra.mxu0 %v3592
    %6027 = vmatprep.subr.mxu0 0.0
    %6028 = vmatpush1.msra.mxu0 %v3593
    %6029 = vmatprep.subr.mxu0 0.0
    %6030 = vmatpush1.msra.mxu0 %v3594
    %6031 = vmatprep.subr.mxu0 0.0
    %6032 = vmatpush1.msra.mxu0 %v3595
    %6033 = vmatprep.subr.mxu0 0.0
    %6034 = vmatpush1.msra.mxu0 %v3596
    %6035 = vmatprep.subr.mxu0 0.0
    %6036 = vmatpush1.msra.mxu0 %v3597
    %6037 = vmatprep.subr.mxu0 0.0
    %6038 = vmatpush1.msra.mxu0 %v3598
    %6039 = vmatprep.subr.mxu0 0.0
    %6040 = vmatpush1.msra.mxu0 %v3599
    %6041 = vmatprep.subr.mxu0 0.0
    %6042 = vmatpush1.msra.mxu0 %v3600
    %6043 = vmatprep.subr.mxu0 0.0
    %6044 = vmatpush1.msra.mxu0 %v3601
    %6045 = vmatprep.subr.mxu0 0.0
    %6046 = vmatpush1.msra.mxu0 %v3602
    %6047 = vmatprep.subr.mxu0 0.0
    %6048 = vmatpush1.msra.mxu0 %v3603
    %6049 = vmatprep.subr.mxu0 0.0
    %6050 = vmatpush1.msra.mxu0 %v3604
    %6051 = vmatprep.subr.mxu0 0.0
    %6052 = vmatpush1.msra.mxu0 %v3605
    %6053 = vmatprep.subr.mxu0 0.0
    %6054 = vmatpush1.msra.mxu0 %v3606
    %6055 = vmatprep.subr.mxu0 0.0
    %6056 = vmatpush1.msra.mxu0 %v3607
    %6057 = vmatprep.subr.mxu0 0.0
    %6058 = vmatpush1.msra.mxu0 %v3608
    %6059 = vmatprep.subr.mxu0 0.0
    %6060 = vmatpush1.msra.mxu0 %v3609
    %6061 = vmatprep.subr.mxu0 0.0
    %6062 = vmatpush1.msra.mxu0 %v3610
    %6063 = vmatprep.subr.mxu0 0.0
    %6064 = vmatpush1.msra.mxu0 %v3611
    %6065 = vmatprep.subr.mxu0 0.0
    %6066 = vmatpush1.msra.mxu0 %v3612
    %6067 = vmatprep.subr.mxu0 0.0
    %6068 = vmatpush1.msra.mxu0 %v3613
    %6069 = vmatprep.subr.mxu0 0.0
    %6070 = vmatpush1.msra.mxu0 %v3614
    %6071 = vmatprep.subr.mxu0 0.0
    %6072 = vmatpush1.msra.mxu0 %v3615
    %6073 = vmatprep.subr.mxu0 0.0
    %6074 = vmatpush1.msra.mxu0 %v3616
    %6075 = vmatprep.subr.mxu0 0.0
    %6076 = vmatpush1.msra.mxu0 %v3617
    %6077 = vmatprep.subr.mxu0 0.0
    %6078 = vmatpush1.msra.mxu0 %v3618
    %6079 = vmatprep.subr.mxu0 0.0
    %6080 = vmatpush1.msra.mxu0 %v3619
    %6081 = vmatprep.subr.mxu0 0.0
    %6082 = vmatpush1.msra.mxu0 %v3620
    %6083 = vmatprep.mubr.f32.mxu0 %v6012
    %6084 = vmatmul.mubr.f32.gmra.mrb[0].mxu0 %v6011
    %v6085 = vpop.f32.mrb[0].mxu0
    %v6086 = vadd.f32 %v6017, %v6085
    %v6087 = vpop.f32.mrb[0].mxu0
    %6088 = vdwg.mxu0
    %vm6089 = vcmp.ge.f32.partialorder %v6086, 0.0
    %v6090 = vmul.f32 %v6086, 0.01
    %v6091 = vsel %vm6089, %v6086, %v6090
    %v6093 = vlaneseq
    %v6094 = vshrl.u32 %v6093, 7
    %v6095 = vsub.s32 0, %v6094
    %v6096 = vrot.slane %v3626, %v6095
    %v6099 = vsel %vm2713, %v6091, 0
    %6101 = vmatprep.subr.mxu0 0.0
    %6102 = vmatpush1.msra.mxu0 %v3622
    %6103 = vmatprep.subr.mxu0 0.0
    %6104 = vmatpush1.msra.mxu0 %v3623
    %6105 = vmatprep.subr.mxu0 0.0
    %6106 = vmatpush1.msra.mxu0 %v3624
    %6107 = vmatprep.subr.mxu0 0.0
    %6108 = vmatpush1.msra.mxu0 %v3625
    %6109 = vmatprep.subr.mxu0 0.0
    %6110 = vmatpush1.msra.mxu0 0.0
    %6111 = vmatprep.subr.mxu0 0.0
    %6112 = vmatpush1.msra.mxu0 0.0
    %6113 = vmatprep.subr.mxu0 0.0
    %6114 = vmatpush1.msra.mxu0 0.0
    %6115 = vmatprep.subr.mxu0 0.0
    %6116 = vmatpush1.msra.mxu0 0.0
    %6117 = vmatprep.subr.mxu0 0.0
    %6118 = vmatpush1.msra.mxu0 0.0
    %6119 = vmatprep.subr.mxu0 0.0
    %6120 = vmatpush1.msra.mxu0 0.0
    %6121 = vmatprep.subr.mxu0 0.0
    %6122 = vmatpush1.msra.mxu0 0.0
    %6123 = vmatprep.subr.mxu0 0.0
    %6124 = vmatpush1.msra.mxu0 0.0
    %6125 = vmatprep.subr.mxu0 0.0
    %6126 = vmatpush1.msra.mxu0 0.0
    %6127 = vmatprep.subr.mxu0 0.0
    %6128 = vmatpush1.msra.mxu0 0.0
    %6129 = vmatprep.subr.mxu0 0.0
    %6130 = vmatpush1.msra.mxu0 0.0
    %6131 = vmatprep.subr.mxu0 0.0
    %6132 = vmatpush1.msra.mxu0 0.0
    %6133 = vmatprep.subr.mxu0 0.0
    %6134 = vmatpush1.msra.mxu0 0.0
    %6135 = vmatprep.subr.mxu0 0.0
    %6136 = vmatpush1.msra.mxu0 0.0
    %6137 = vmatprep.subr.mxu0 0.0
    %6138 = vmatpush1.msra.mxu0 0.0
    %6139 = vmatprep.subr.mxu0 0.0
    %6140 = vmatpush1.msra.mxu0 0.0
    %6141 = vmatprep.subr.mxu0 0.0
    %6142 = vmatpush1.msra.mxu0 0.0
    %6143 = vmatprep.subr.mxu0 0.0
    %6144 = vmatpush1.msra.mxu0 0.0
    %6145 = vmatprep.subr.mxu0 0.0
    %6146 = vmatpush1.msra.mxu0 0.0
    %6147 = vmatprep.subr.mxu0 0.0
    %6148 = vmatpush1.msra.mxu0 0.0
    %6149 = vmatprep.subr.mxu0 0.0
    %6150 = vmatpush1.msra.mxu0 0.0
    %6151 = vmatprep.subr.mxu0 0.0
    %6152 = vmatpush1.msra.mxu0 0.0
    %6153 = vmatprep.subr.mxu0 0.0
    %6154 = vmatpush1.msra.mxu0 0.0
    %6155 = vmatprep.subr.mxu0 0.0
    %6156 = vmatpush1.msra.mxu0 0.0
    %6157 = vmatprep.subr.mxu0 0.0
    %6158 = vmatpush1.msra.mxu0 0.0
    %6159 = vmatprep.subr.mxu0 0.0
    %6160 = vmatpush1.msra.mxu0 0.0
    %6161 = vmatprep.subr.mxu0 0.0
    %6162 = vmatpush1.msra.mxu0 0.0
    %6163 = vmatprep.subr.mxu0 0.0
    %6164 = vmatpush1.msra.mxu0 0.0
    %6165 = vmatprep.mubr.f32.mxu0 0.0
    %6166 = vmatmul.mubr.f32.gmra.mrb[0].mxu0 %v6099
    %v6167 = vpop.f32.mrb[0].mxu0
    %v6168 = vadd.f32 %v6096, %v6167
    %v6169 = vpop.f32.mrb[0].mxu0
    %6170 = vdwg.mxu0
    %vm6171 = vcmp.ge.f32.partialorder %v6168, 0.0
    %v6172 = vmul.f32 %v6168, 0.01
    %v6173 = vsel %vm6171, %v6168, %v6172
    %v6175 = vlaneseq
    %v6176 = vshrl.u32 %v6175, 7
    %v6177 = vsub.s32 0, %v6176
    %v6178 = vrot.slane %v3635, %v6177
    %v6179 = vlaneseq
    %v6180 = vshrl.u32 %v6179, 7
    %v6181 = vsub.s32 1, %v6180
    %v6182 = vrot.slane %v3635, %v6181
    %v6186 = vsel %vm2713, %v6173, 0
    %6188 = vmatprep.subr.mxu0 %v3628
    %6189 = vmatpush1.msra.mxu0 %v3627
    %6190 = vmatprep.subr.mxu0 %v3630
    %6191 = vmatpush1.msra.mxu0 %v3629
    %6192 = vmatprep.subr.mxu0 %v3632
    %6193 = vmatpush1.msra.mxu0 %v3631
    %6194 = vmatprep.subr.mxu0 %v3634
    %6195 = vmatpush1.msra.mxu0 %v3633
    %6196 = vmatprep.subr.mxu0 0.0
    %6197 = vmatpush1.msra.mxu0 0.0
    %6198 = vmatprep.subr.mxu0 0.0
    %6199 = vmatpush1.msra.mxu0 0.0
    %6200 = vmatprep.subr.mxu0 0.0
    %6201 = vmatpush1.msra.mxu0 0.0
    %6202 = vmatprep.subr.mxu0 0.0
    %6203 = vmatpush1.msra.mxu0 0.0
    %6204 = vmatprep.subr.mxu0 0.0
    %6205 = vmatpush1.msra.mxu0 0.0
    %6206 = vmatprep.subr.mxu0 0.0
    %6207 = vmatpush1.msra.mxu0 0.0
    %6208 = vmatprep.subr.mxu0 0.0
    %6209 = vmatpush1.msra.mxu0 0.0
    %6210 = vmatprep.subr.mxu0 0.0
    %6211 = vmatpush1.msra.mxu0 0.0
    %6212 = vmatprep.subr.mxu0 0.0
    %6213 = vmatpush1.msra.mxu0 0.0
    %6214 = vmatprep.subr.mxu0 0.0
    %6215 = vmatpush1.msra.mxu0 0.0
    %6216 = vmatprep.subr.mxu0 0.0
    %6217 = vmatpush1.msra.mxu0 0.0
    %6218 = vmatprep.subr.mxu0 0.0
    %6219 = vmatpush1.msra.mxu0 0.0
    %6220 = vmatprep.subr.mxu0 0.0
    %6221 = vmatpush1.msra.mxu0 0.0
    %6222 = vmatprep.subr.mxu0 0.0
    %6223 = vmatpush1.msra.mxu0 0.0
    %6224 = vmatprep.subr.mxu0 0.0
    %6225 = vmatpush1.msra.mxu0 0.0
    %6226 = vmatprep.subr.mxu0 0.0
    %6227 = vmatpush1.msra.mxu0 0.0
    %6228 = vmatprep.subr.mxu0 0.0
    %6229 = vmatpush1.msra.mxu0 0.0
    %6230 = vmatprep.subr.mxu0 0.0
    %6231 = vmatpush1.msra.mxu0 0.0
    %6232 = vmatprep.subr.mxu0 0.0
    %6233 = vmatpush1.msra.mxu0 0.0
    %6234 = vmatprep.subr.mxu0 0.0
    %6235 = vmatpush1.msra.mxu0 0.0
    %6236 = vmatprep.subr.mxu0 0.0
    %6237 = vmatpush1.msra.mxu0 0.0
    %6238 = vmatprep.subr.mxu0 0.0
    %6239 = vmatpush1.msra.mxu0 0.0
    %6240 = vmatprep.subr.mxu0 0.0
    %6241 = vmatpush1.msra.mxu0 0.0
    %6242 = vmatprep.subr.mxu0 0.0
    %6243 = vmatpush1.msra.mxu0 0.0
    %6244 = vmatprep.subr.mxu0 0.0
    %6245 = vmatpush1.msra.mxu0 0.0
    %6246 = vmatprep.subr.mxu0 0.0
    %6247 = vmatpush1.msra.mxu0 0.0
    %6248 = vmatprep.subr.mxu0 0.0
    %6249 = vmatpush1.msra.mxu0 0.0
    %6250 = vmatprep.subr.mxu0 0.0
    %6251 = vmatpush1.msra.mxu0 0.0
    %6252 = vmatprep.mubr.f32.mxu0 0.0
    %6253 = vmatmul.mubr.f32.gmra.mrb[0].mxu0 %v6186
    %v6254 = vpop.f32.mrb[0].mxu0
    %v6255 = vadd.f32 %v6178, %v6254
    %v6256 = vpop.f32.mrb[0].mxu0
    %v6257 = vadd.f32 %v6182, %v6256
    %6258 = vdwg.mxu0
    %v6260 = vrot.slane %v6255, 7
    %6261 = vrot.lane.b32.xlu0 %v6260, 112
    %v6262 = vpop.permute.xlu0 %6261
    %v6264 = vrot.slane %v6255, 6
    %6265 = vrot.lane.b32.xlu0 %v6264, 96
    %v6266 = vpop.permute.xlu0 %6265
    %v6268 = vrot.slane %v6255, 5
    %6269 = vrot.lane.b32.xlu0 %v6268, 80
    %v6270 = vpop.permute.xlu0 %6269
    %v6272 = vrot.slane %v6255, 4
    %6273 = vrot.lane.b32.xlu0 %v6272, 64
    %v6274 = vpop.permute.xlu0 %6273
    %v6276 = vrot.slane %v6255, 3
    %6277 = vrot.lane.b32.xlu0 %v6276, 48
    %v6278 = vpop.permute.xlu0 %6277
    %v6280 = vrot.slane %v6255, 2
    %6281 = vrot.lane.b32.xlu0 %v6280, 32
    %v6282 = vpop.permute.xlu0 %6281
    %v6284 = vrot.slane %v6255, 1
    %6285 = vrot.lane.b32.xlu0 %v6284, 16
    %v6286 = vpop.permute.xlu0 %6285
    %v6289 = vrot.slane %v6257, 7
    %6290 = vrot.lane.b32.xlu0 %v6289, 112
    %v6291 = vpop.permute.xlu0 %6290
    %v6293 = vrot.slane %v6257, 6
    %6294 = vrot.lane.b32.xlu0 %v6293, 96
    %v6295 = vpop.permute.xlu0 %6294
    %v6297 = vrot.slane %v6257, 5
    %6298 = vrot.lane.b32.xlu0 %v6297, 80
    %v6299 = vpop.permute.xlu0 %6298
    %v6301 = vrot.slane %v6257, 4
    %6302 = vrot.lane.b32.xlu0 %v6301, 64
    %v6303 = vpop.permute.xlu0 %6302
    %v6305 = vrot.slane %v6257, 3
    %6306 = vrot.lane.b32.xlu0 %v6305, 48
    %v6307 = vpop.permute.xlu0 %6306
    %v6309 = vrot.slane %v6257, 2
    %6310 = vrot.lane.b32.xlu0 %v6309, 32
    %v6311 = vpop.permute.xlu0 %6310
    %v6313 = vrot.slane %v6257, 1
    %6314 = vrot.lane.b32.xlu0 %v6313, 16
    %v6315 = vpop.permute.xlu0 %6314
    %v6317 = vsel %vm2809, %v6255, %v6262
    %v6318 = vsel %vm3117, %v6317, %v6266
    %v6319 = vsel %vm3119, %v6318, %v6270
    %v6320 = vsel %vm3121, %v6319, %v6274
    %v6321 = vsel %vm3123, %v6320, %v6278
    %v6322 = vsel %vm3125, %v6321, %v6282
    %v6323 = vsel %vm3127, %v6322, %v6286
    %v6324 = vsel %vm2809, %v6257, %v6291
    %v6325 = vsel %vm3117, %v6324, %v6295
    %v6326 = vsel %vm3119, %v6325, %v6299
    %v6327 = vsel %vm3121, %v6326, %v6303
    %v6328 = vsel %vm3123, %v6327, %v6307
    %v6329 = vsel %vm3125, %v6328, %v6311
    %v6330 = vsel %vm3127, %v6329, %v6315
    %6332 = vrot.lane.b32.xlu0 %v6255, 112
    %v6333 = vpop.permute.xlu0 %6332
    %6335 = vrot.lane.b32.xlu0 %v6260, 96
    %v6336 = vpop.permute.xlu0 %6335
    %6338 = vrot.lane.b32.xlu0 %v6264, 80
    %v6339 = vpop.permute.xlu0 %6338
    %6341 = vrot.lane.b32.xlu0 %v6268, 64
    %v6342 = vpop.permute.xlu0 %6341
    %6344 = vrot.lane.b32.xlu0 %v6272, 48
    %v6345 = vpop.permute.xlu0 %6344
    %6347 = vrot.lane.b32.xlu0 %v6276, 32
    %v6348 = vpop.permute.xlu0 %6347
    %6350 = vrot.lane.b32.xlu0 %v6280, 16
    %v6351 = vpop.permute.xlu0 %6350
    %6354 = vrot.lane.b32.xlu0 %v6257, 112
    %v6355 = vpop.permute.xlu0 %6354
    %6357 = vrot.lane.b32.xlu0 %v6289, 96
    %v6358 = vpop.permute.xlu0 %6357
    %6360 = vrot.lane.b32.xlu0 %v6293, 80
    %v6361 = vpop.permute.xlu0 %6360
    %6363 = vrot.lane.b32.xlu0 %v6297, 64
    %v6364 = vpop.permute.xlu0 %6363
    %6366 = vrot.lane.b32.xlu0 %v6301, 48
    %v6367 = vpop.permute.xlu0 %6366
    %6369 = vrot.lane.b32.xlu0 %v6305, 32
    %v6370 = vpop.permute.xlu0 %6369
    %6372 = vrot.lane.b32.xlu0 %v6309, 16
    %v6373 = vpop.permute.xlu0 %6372
    %v6375 = vsel %vm2809, %v6284, %v6333
    %v6376 = vsel %vm3117, %v6375, %v6336
    %v6377 = vsel %vm3119, %v6376, %v6339
    %v6378 = vsel %vm3121, %v6377, %v6342
    %v6379 = vsel %vm3123, %v6378, %v6345
    %v6380 = vsel %vm3125, %v6379, %v6348
    %v6381 = vsel %vm3127, %v6380, %v6351
    %v6382 = vsel %vm2809, %v6313, %v6355
    %v6383 = vsel %vm3117, %v6382, %v6358
    %v6384 = vsel %vm3119, %v6383, %v6361
    %v6385 = vsel %vm3121, %v6384, %v6364
    %v6386 = vsel %vm3123, %v6385, %v6367
    %v6387 = vsel %vm3125, %v6386, %v6370
    %v6388 = vsel %vm3127, %v6387, %v6373
    %v6390 = vsel %vm430, %v6323, 0
    %v6393 = vsel %vm430, %v6330, 0
    %v6396 = vsel %vm430, %v6381, 0
    %v6399 = vsel %vm430, %v6388, 0
    %v6402 = vsel %vm430, %v3636, 0
    %6404 = vmatprep.subr.mxu0 0.0
    %6405 = vmatpush1.xpose.msra.mxu0 %v6402
    %6406 = vmatprep.subr.mxu0 0.0
    %6407 = vmatpush1.xpose.msra.mxu0 0.0
    %6408 = vmatprep.subr.mxu0 0.0
    %6409 = vmatpush1.xpose.msra.mxu0 0.0
    %6410 = vmatprep.subr.mxu0 0.0
    %6411 = vmatpush1.xpose.msra.mxu0 0.0
    %6412 = vmatprep.subr.mxu0 0.0
    %6413 = vmatpush1.xpose.msra.mxu0 0.0
    %6414 = vmatprep.subr.mxu0 0.0
    %6415 = vmatpush1.xpose.msra.mxu0 0.0
    %6416 = vmatprep.subr.mxu0 0.0
    %6417 = vmatpush1.xpose.msra.mxu0 0.0
    %6418 = vmatprep.subr.mxu0 0.0
    %6419 = vmatpush1.xpose.msra.mxu0 0.0
    %6420 = vmatprep.subr.mxu0 0.0
    %6421 = vmatpush1.xpose.msra.mxu0 0.0
    %6422 = vmatprep.subr.mxu0 0.0
    %6423 = vmatpush1.xpose.msra.mxu0 0.0
    %6424 = vmatprep.subr.mxu0 0.0
    %6425 = vmatpush1.xpose.msra.mxu0 0.0
    %6426 = vmatprep.subr.mxu0 0.0
    %6427 = vmatpush1.xpose.msra.mxu0 0.0
    %6428 = vmatprep.subr.mxu0 0.0
    %6429 = vmatpush1.xpose.msra.mxu0 0.0
    %6430 = vmatprep.subr.mxu0 0.0
    %6431 = vmatpush1.xpose.msra.mxu0 0.0
    %6432 = vmatprep.subr.mxu0 0.0
    %6433 = vmatpush1.xpose.msra.mxu0 0.0
    %6434 = vmatprep.subr.mxu0 0.0
    %6435 = vmatpush1.xpose.msra.mxu0 0.0
    %6436 = vmatprep.subr.mxu0 0.0
    %6437 = vmatpush1.xpose.msra.mxu0 0.0
    %6438 = vmatprep.subr.mxu0 0.0
    %6439 = vmatpush1.xpose.msra.mxu0 0.0
    %6440 = vmatprep.subr.mxu0 0.0
    %6441 = vmatpush1.xpose.msra.mxu0 0.0
    %6442 = vmatprep.subr.mxu0 0.0
    %6443 = vmatpush1.xpose.msra.mxu0 0.0
    %6444 = vmatprep.subr.mxu0 0.0
    %6445 = vmatpush1.xpose.msra.mxu0 0.0
    %6446 = vmatprep.subr.mxu0 0.0
    %6447 = vmatpush1.xpose.msra.mxu0 0.0
    %6448 = vmatprep.subr.mxu0 0.0
    %6449 = vmatpush1.xpose.msra.mxu0 0.0
    %6450 = vmatprep.subr.mxu0 0.0
    %6451 = vmatpush1.xpose.msra.mxu0 0.0
    %6452 = vmatprep.subr.mxu0 0.0
    %6453 = vmatpush1.xpose.msra.mxu0 0.0
    %6454 = vmatprep.subr.mxu0 0.0
    %6455 = vmatpush1.xpose.msra.mxu0 0.0
    %6456 = vmatprep.subr.mxu0 0.0
    %6457 = vmatpush1.xpose.msra.mxu0 0.0
    %6458 = vmatprep.subr.mxu0 0.0
    %6459 = vmatpush1.xpose.msra.mxu0 0.0
    %6460 = vmatprep.subr.mxu0 0.0
    %6461 = vmatpush1.xpose.msra.mxu0 0.0
    %6462 = vmatprep.subr.mxu0 0.0
    %6463 = vmatpush1.xpose.msra.mxu0 0.0
    %6464 = vmatprep.subr.mxu0 0.0
    %6465 = vmatpush1.xpose.msra.mxu0 0.0
    %6466 = vmatprep.subr.mxu0 0.0
    %6467 = vmatpush1.xpose.msra.mxu0 0.0
    %6468 = vmatprep.mubr.f32.mxu0 0.0
    %6469 = vmatmul.mubr.f32.gmra.mrb[0].mxu0 %v6390
    %v6470 = vpop.f32.mrb[0].mxu0
    %v6471 = vadd.f32 0.0, %v6470
    %v6472 = vpop.f32.mrb[0].mxu0
    %6473 = vmatprep.mubr.f32.mxu0 0.0
    %6474 = vmatmul.mubr.f32.gmra.mrb[0].mxu0 %v6393
    %v6475 = vpop.f32.mrb[0].mxu0
    %v6476 = vadd.f32 0.0, %v6475
    %v6477 = vpop.f32.mrb[0].mxu0
    %6478 = vmatprep.mubr.f32.mxu0 0.0
    %6479 = vmatmul.mubr.f32.gmra.mrb[0].mxu0 %v6396
    %v6480 = vpop.f32.mrb[0].mxu0
    %v6481 = vadd.f32 0.0, %v6480
    %v6482 = vpop.f32.mrb[0].mxu0
    %6483 = vmatprep.mubr.f32.mxu0 0.0
    %6484 = vmatmul.mubr.f32.gmra.mrb[0].mxu0 %v6399
    %v6485 = vpop.f32.mrb[0].mxu0
    %v6486 = vadd.f32 0.0, %v6485
    %v6487 = vpop.f32.mrb[0].mxu0
    %6488 = vdwg.mxu0
    %v6489 = vsel %vm2177, %v6471, -inf
    %6490 = vmax.xlane.f32.xlu0 %v6489
    %v6491 = vpop.xlane.xlu0 %6490
    %v6492 = vsel %vm2177, %v6476, -inf
    %6493 = vmax.xlane.f32.xlu0 %v6492
    %v6494 = vpop.xlane.xlu0 %6493
    %v6495 = vsel %vm2177, %v6481, -inf
    %6496 = vmax.xlane.f32.xlu0 %v6495
    %v6497 = vpop.xlane.xlu0 %6496
    %v6498 = vsel %vm2177, %v6486, -inf
    %6499 = vmax.xlane.f32.xlu0 %v6498
    %v6500 = vpop.xlane.xlu0 %6499
    %v6501 = vsub.f32 %v6471, %v6491
    %v6502 = vsub.f32 %v6476, %v6494
    %v6503 = vsub.f32 %v6481, %v6497
    %v6504 = vsub.f32 %v6486, %v6500
    %v6505 = vmul.f32 %v6501, 1.442695
    %v6506 = vpow.pop %v6505
    %v6507 = vmul.f32 %v6502, 1.442695
    %v6508 = vpow.pop %v6507
    %v6509 = vmul.f32 %v6503, 1.442695
    %v6510 = vpow.pop %v6509
    %v6511 = vmul.f32 %v6504, 1.442695
    %v6512 = vpow.pop %v6511
    %v6513 = vsel %vm2177, %v6506, 0.0
    %6514 = vadd.xlane.f32.xlu0 %v6513
    %v6515 = vpop.xlane.xlu0 %6514
    %v6516 = vsel %vm2177, %v6508, 0.0
    %6517 = vadd.xlane.f32.xlu0 %v6516
    %v6518 = vpop.xlane.xlu0 %6517
    %v6519 = vsel %vm2177, %v6510, 0.0
    %6520 = vadd.xlane.f32.xlu0 %v6519
    %v6521 = vpop.xlane.xlu0 %6520
    %v6522 = vsel %vm2177, %v6512, 0.0
    %6523 = vadd.xlane.f32.xlu0 %v6522
    %v6524 = vpop.xlane.xlu0 %6523
    %v6525 = vrcp.pop %v6515
    %v6526 = vrcp.pop %v6518
    %v6527 = vrcp.pop %v6521
    %v6528 = vrcp.pop %v6524
    %v6529 = vmul.f32 %v6506, %v6525
    %v6530 = vmul.f32 %v6508, %v6526
    %v6531 = vmul.f32 %v6510, %v6527
    %v6532 = vmul.f32 %v6512, %v6528
    %6533 = vxpose.xlu0.b32.start [1/16] %v6529, 128
    %6534 = vxpose.xlu0.b32.cont [2/16] %v6530, 128
    %6535 = vxpose.xlu0.b32.cont [3/16] 0.0, 128
    %6536 = vxpose.xlu0.b32.cont [4/16] 0.0, 128
    %6537 = vxpose.xlu0.b32.cont [5/16] 0.0, 128
    %6538 = vxpose.xlu0.b32.cont [6/16] 0.0, 128
    %6539 = vxpose.xlu0.b32.cont [7/16] 0.0, 128
    %6540 = vxpose.xlu0.b32.cont [8/16] 0.0, 128
    %6541 = vxpose.xlu0.b32.cont [9/16] 0.0, 128
    %6542 = vxpose.xlu0.b32.cont [10/16] 0.0, 128
    %6543 = vxpose.xlu0.b32.cont [11/16] 0.0, 128
    %6544 = vxpose.xlu0.b32.cont [12/16] 0.0, 128
    %6545 = vxpose.xlu0.b32.cont [13/16] 0.0, 128
    %6546 = vxpose.xlu0.b32.cont [14/16] 0.0, 128
    %6547 = vxpose.xlu0.b32.cont [15/16] 0.0, 128
    %6548 = vxpose.xlu0.b32.end [16/16] 0.0, 128
    %v6549 = vpop.trf.xlu0
    %v6550 = vpop.trf.xlu0
    %v6551 = vpop.trf.xlu0
    %v6552 = vpop.trf.xlu0
    %v6553 = vpop.trf.xlu0
    %v6554 = vpop.trf.xlu0
    %v6555 = vpop.trf.xlu0
    %v6556 = vpop.trf.xlu0
    %v6557 = vpop.trf.xlu0
    %v6558 = vpop.trf.xlu0
    %v6559 = vpop.trf.xlu0
    %v6560 = vpop.trf.xlu0
    %v6561 = vpop.trf.xlu0
    %v6562 = vpop.trf.xlu0
    %v6563 = vpop.trf.xlu0
    %v6564 = vpop.trf.xlu0
    %v6566 = vsel %vm430, %v6549, 0
    %6568 = vmatprep.subr.mxu0 0.0
    %6569 = vmatpush1.msra.mxu0 %v6323
    %6570 = vmatprep.subr.mxu0 0.0
    %6571 = vmatpush1.msra.mxu0 %v6330
    %6572 = vmatprep.subr.mxu0 0.0
    %6573 = vmatpush1.msra.mxu0 0.0
    %6574 = vmatprep.subr.mxu0 0.0
    %6575 = vmatpush1.msra.mxu0 0.0
    %6576 = vmatprep.subr.mxu0 0.0
    %6577 = vmatpush1.msra.mxu0 0.0
    %6578 = vmatprep.subr.mxu0 0.0
    %6579 = vmatpush1.msra.mxu0 0.0
    %6580 = vmatprep.subr.mxu0 0.0
    %6581 = vmatpush1.msra.mxu0 0.0
    %6582 = vmatprep.subr.mxu0 0.0
    %6583 = vmatpush1.msra.mxu0 0.0
    %6584 = vmatprep.subr.mxu0 0.0
    %6585 = vmatpush1.msra.mxu0 0.0
    %6586 = vmatprep.subr.mxu0 0.0
    %6587 = vmatpush1.msra.mxu0 0.0
    %6588 = vmatprep.subr.mxu0 0.0
    %6589 = vmatpush1.msra.mxu0 0.0
    %6590 = vmatprep.subr.mxu0 0.0
    %6591 = vmatpush1.msra.mxu0 0.0
    %6592 = vmatprep.subr.mxu0 0.0
    %6593 = vmatpush1.msra.mxu0 0.0
    %6594 = vmatprep.subr.mxu0 0.0
    %6595 = vmatpush1.msra.mxu0 0.0
    %6596 = vmatprep.subr.mxu0 0.0
    %6597 = vmatpush1.msra.mxu0 0.0
    %6598 = vmatprep.subr.mxu0 0.0
    %6599 = vmatpush1.msra.mxu0 0.0
    %6600 = vmatprep.subr.mxu0 0.0
    %6601 = vmatpush1.msra.mxu0 0.0
    %6602 = vmatprep.subr.mxu0 0.0
    %6603 = vmatpush1.msra.mxu0 0.0
    %6604 = vmatprep.subr.mxu0 0.0
    %6605 = vmatpush1.msra.mxu0 0.0
    %6606 = vmatprep.subr.mxu0 0.0
    %6607 = vmatpush1.msra.mxu0 0.0
    %6608 = vmatprep.subr.mxu0 0.0
    %6609 = vmatpush1.msra.mxu0 0.0
    %6610 = vmatprep.subr.mxu0 0.0
    %6611 = vmatpush1.msra.mxu0 0.0
    %6612 = vmatprep.subr.mxu0 0.0
    %6613 = vmatpush1.msra.mxu0 0.0
    %6614 = vmatprep.subr.mxu0 0.0
    %6615 = vmatpush1.msra.mxu0 0.0
    %6616 = vmatprep.subr.mxu0 0.0
    %6617 = vmatpush1.msra.mxu0 0.0
    %6618 = vmatprep.subr.mxu0 0.0
    %6619 = vmatpush1.msra.mxu0 0.0
    %6620 = vmatprep.subr.mxu0 0.0
    %6621 = vmatpush1.msra.mxu0 0.0
    %6622 = vmatprep.subr.mxu0 0.0
    %6623 = vmatpush1.msra.mxu0 0.0
    %6624 = vmatprep.subr.mxu0 0.0
    %6625 = vmatpush1.msra.mxu0 0.0
    %6626 = vmatprep.subr.mxu0 0.0
    %6627 = vmatpush1.msra.mxu0 0.0
    %6628 = vmatprep.subr.mxu0 0.0
    %6629 = vmatpush1.msra.mxu0 0.0
    %6630 = vmatprep.subr.mxu0 0.0
    %6631 = vmatpush1.msra.mxu0 0.0
    %6632 = vmatprep.mubr.f32.mxu0 0.0
    %6633 = vmatmul.mubr.f32.gmra.mrb[0].mxu0 %v6566
    %v6634 = vpop.f32.mrb[0].mxu0
    %v6635 = vadd.f32 0.0, %v6634
    %v6636 = vpop.f32.mrb[0].mxu0
    %6637 = vdwg.mxu0
    %6638 = vxpose.xlu0.b32.start [1/16] %v6531, 128
    %6639 = vxpose.xlu0.b32.cont [2/16] %v6532, 128
    %6640 = vxpose.xlu0.b32.cont [3/16] 0.0, 128
    %6641 = vxpose.xlu0.b32.cont [4/16] 0.0, 128
    %6642 = vxpose.xlu0.b32.cont [5/16] 0.0, 128
    %6643 = vxpose.xlu0.b32.cont [6/16] 0.0, 128
    %6644 = vxpose.xlu0.b32.cont [7/16] 0.0, 128
    %6645 = vxpose.xlu0.b32.cont [8/16] 0.0, 128
    %6646 = vxpose.xlu0.b32.cont [9/16] 0.0, 128
    %6647 = vxpose.xlu0.b32.cont [10/16] 0.0, 128
    %6648 = vxpose.xlu0.b32.cont [11/16] 0.0, 128
    %6649 = vxpose.xlu0.b32.cont [12/16] 0.0, 128
    %6650 = vxpose.xlu0.b32.cont [13/16] 0.0, 128
    %6651 = vxpose.xlu0.b32.cont [14/16] 0.0, 128
    %6652 = vxpose.xlu0.b32.cont [15/16] 0.0, 128
    %6653 = vxpose.xlu0.b32.end [16/16] 0.0, 128
    %v6654 = vpop.trf.xlu0
    %v6655 = vpop.trf.xlu0
    %v6656 = vpop.trf.xlu0
    %v6657 = vpop.trf.xlu0
    %v6658 = vpop.trf.xlu0
    %v6659 = vpop.trf.xlu0
    %v6660 = vpop.trf.xlu0
    %v6661 = vpop.trf.xlu0
    %v6662 = vpop.trf.xlu0
    %v6663 = vpop.trf.xlu0
    %v6664 = vpop.trf.xlu0
    %v6665 = vpop.trf.xlu0
    %v6666 = vpop.trf.xlu0
    %v6667 = vpop.trf.xlu0
    %v6668 = vpop.trf.xlu0
    %v6669 = vpop.trf.xlu0
    %v6671 = vsel %vm430, %v6654, 0
    %6673 = vmatprep.subr.mxu0 0.0
    %6674 = vmatpush1.msra.mxu0 %v6381
    %6675 = vmatprep.subr.mxu0 0.0
    %6676 = vmatpush1.msra.mxu0 %v6388
    %6677 = vmatprep.subr.mxu0 0.0
    %6678 = vmatpush1.msra.mxu0 0.0
    %6679 = vmatprep.subr.mxu0 0.0
    %6680 = vmatpush1.msra.mxu0 0.0
    %6681 = vmatprep.subr.mxu0 0.0
    %6682 = vmatpush1.msra.mxu0 0.0
    %6683 = vmatprep.subr.mxu0 0.0
    %6684 = vmatpush1.msra.mxu0 0.0
    %6685 = vmatprep.subr.mxu0 0.0
    %6686 = vmatpush1.msra.mxu0 0.0
    %6687 = vmatprep.subr.mxu0 0.0
    %6688 = vmatpush1.msra.mxu0 0.0
    %6689 = vmatprep.subr.mxu0 0.0
    %6690 = vmatpush1.msra.mxu0 0.0
    %6691 = vmatprep.subr.mxu0 0.0
    %6692 = vmatpush1.msra.mxu0 0.0
    %6693 = vmatprep.subr.mxu0 0.0
    %6694 = vmatpush1.msra.mxu0 0.0
    %6695 = vmatprep.subr.mxu0 0.0
    %6696 = vmatpush1.msra.mxu0 0.0
    %6697 = vmatprep.subr.mxu0 0.0
    %6698 = vmatpush1.msra.mxu0 0.0
    %6699 = vmatprep.subr.mxu0 0.0
    %6700 = vmatpush1.msra.mxu0 0.0
    %6701 = vmatprep.subr.mxu0 0.0
    %6702 = vmatpush1.msra.mxu0 0.0
    %6703 = vmatprep.subr.mxu0 0.0
    %6704 = vmatpush1.msra.mxu0 0.0
    %6705 = vmatprep.subr.mxu0 0.0
    %6706 = vmatpush1.msra.mxu0 0.0
    %6707 = vmatprep.subr.mxu0 0.0
    %6708 = vmatpush1.msra.mxu0 0.0
    %6709 = vmatprep.subr.mxu0 0.0
    %6710 = vmatpush1.msra.mxu0 0.0
    %6711 = vmatprep.subr.mxu0 0.0
    %6712 = vmatpush1.msra.mxu0 0.0
    %6713 = vmatprep.subr.mxu0 0.0
    %6714 = vmatpush1.msra.mxu0 0.0
    %6715 = vmatprep.subr.mxu0 0.0
    %6716 = vmatpush1.msra.mxu0 0.0
    %6717 = vmatprep.subr.mxu0 0.0
    %6718 = vmatpush1.msra.mxu0 0.0
    %6719 = vmatprep.subr.mxu0 0.0
    %6720 = vmatpush1.msra.mxu0 0.0
    %6721 = vmatprep.subr.mxu0 0.0
    %6722 = vmatpush1.msra.mxu0 0.0
    %6723 = vmatprep.subr.mxu0 0.0
    %6724 = vmatpush1.msra.mxu0 0.0
    %6725 = vmatprep.subr.mxu0 0.0
    %6726 = vmatpush1.msra.mxu0 0.0
    %6727 = vmatprep.subr.mxu0 0.0
    %6728 = vmatpush1.msra.mxu0 0.0
    %6729 = vmatprep.subr.mxu0 0.0
    %6730 = vmatpush1.msra.mxu0 0.0
    %6731 = vmatprep.subr.mxu0 0.0
    %6732 = vmatpush1.msra.mxu0 0.0
    %6733 = vmatprep.subr.mxu0 0.0
    %6734 = vmatpush1.msra.mxu0 0.0
    %6735 = vmatprep.subr.mxu0 0.0
    %6736 = vmatpush1.msra.mxu0 0.0
    %6737 = vmatprep.mubr.f32.mxu0 0.0
    %6738 = vmatmul.mubr.f32.gmra.mrb[0].mxu0 %v6671
    %v6739 = vpop.f32.mrb[0].mxu0
    %v6740 = vadd.f32 0.0, %v6739
    %v6741 = vpop.f32.mrb[0].mxu0
    %6742 = vdwg.mxu0
    %v6743 = vld [vmem:[%s79] sm:$0xff]
    %v6744 = vld [vmem:[%s79 + $0x8] sm:$0xff]
    %v6745 = vld [vmem:[#allocation20] sm:$0x1]
    %v6746 = vld [vmem:[%s83] sm:$0xff]
    %v6747 = vld [vmem:[%s83 + $0x8] sm:$0xff]
    %v6748 = vld [vmem:[%s83 + $0x10] sm:$0xff]
    %v6749 = vld [vmem:[%s83 + $0x18] sm:$0xff]
    %v6750 = vld [vmem:[%s83 + $0x20] sm:$0xff]
    %v6751 = vld [vmem:[%s83 + $0x28] sm:$0xff]
    %v6752 = vld [vmem:[%s83 + $0x30] sm:$0xff]
    %v6753 = vld [vmem:[%s83 + $0x38] sm:$0xff]
    %v6754 = vld [vmem:[%s83 + $0x40] sm:$0xff]
    %v6755 = vld [vmem:[%s83 + $0x48] sm:$0xff]
    %v6756 = vld [vmem:[%s83 + $0x50] sm:$0xff]
    %v6757 = vld [vmem:[%s83 + $0x58] sm:$0xff]
    %v6758 = vld [vmem:[%s83 + $0x60] sm:$0xff]
    %v6759 = vld [vmem:[%s83 + $0x68] sm:$0xff]
    %v6760 = vld [vmem:[%s83 + $0x70] sm:$0xff]
    %v6761 = vld [vmem:[%s83 + $0x78] sm:$0xff]
    %v6762 = vld [vmem:[#allocation22] sm:$0x3]
    %v6763 = vld [vmem:[%s87] sm:$0xff]
    %v6764 = vld [vmem:[%s87 + $0x8] sm:$0xff]
    %v6765 = vld [vmem:[%s87 + $0x10] sm:$0xff]
    %v6766 = vld [vmem:[%s87 + $0x18] sm:$0xff]
    %v6767 = vld [vmem:[%s87 + $0x20] sm:$0xff]
    %v6768 = vld [vmem:[%s87 + $0x28] sm:$0xff]
    %v6769 = vld [vmem:[%s87 + $0x30] sm:$0xff]
    %v6770 = vld [vmem:[%s87 + $0x38] sm:$0xff]
    %v6771 = vld [vmem:[%s87 + $0x40] sm:$0xff]
    %v6772 = vld [vmem:[%s87 + $0x48] sm:$0xff]
    %v6773 = vld [vmem:[%s87 + $0x50] sm:$0xff]
    %v6774 = vld [vmem:[%s87 + $0x58] sm:$0xff]
    %v6775 = vld [vmem:[%s87 + $0x60] sm:$0xff]
    %v6776 = vld [vmem:[%s87 + $0x68] sm:$0xff]
    %v6777 = vld [vmem:[%s87 + $0x70] sm:$0xff]
    %v6778 = vld [vmem:[%s87 + $0x78] sm:$0xff]
    %v6779 = vld [vmem:[%s87 + $0x80] sm:$0xff]
    %v6780 = vld [vmem:[%s87 + $0x88] sm:$0xff]
    %v6781 = vld [vmem:[%s87 + $0x90] sm:$0xff]
    %v6782 = vld [vmem:[%s87 + $0x98] sm:$0xff]
    %v6783 = vld [vmem:[%s87 + $0xa0] sm:$0xff]
    %v6784 = vld [vmem:[%s87 + $0xa8] sm:$0xff]
    %v6785 = vld [vmem:[%s87 + $0xb0] sm:$0xff]
    %v6786 = vld [vmem:[%s87 + $0xb8] sm:$0xff]
    %v6787 = vld [vmem:[%s87 + $0xc0] sm:$0xff]
    %v6788 = vld [vmem:[%s87 + $0xc8] sm:$0xff]
    %v6789 = vld [vmem:[%s87 + $0xd0] sm:$0xff]
    %v6790 = vld [vmem:[%s87 + $0xd8] sm:$0xff]
    %v6791 = vld [vmem:[%s87 + $0xe0] sm:$0xff]
    %v6792 = vld [vmem:[%s87 + $0xe8] sm:$0xff]
    %v6793 = vld [vmem:[%s87 + $0xf0] sm:$0xff]
    %v6794 = vld [vmem:[%s87 + $0xf8] sm:$0xff]
    %v6795 = vld [vmem:[#allocation23] sm:$0x1]
    %v6797 = vlaneseq
    %v6798 = vshrl.u32 %v6797, 7
    %v6799 = vsub.s32 0, %v6798
    %v6800 = vrot.slane %v6745, %v6799
    %v6803 = vsel %vm430, %v6635, 0
    %v6806 = vsel %vm430, %v6740, 0
    %6808 = vmatprep.subr.mxu0 0.0
    %6809 = vmatpush1.msra.mxu0 %v6743
    %6810 = vmatprep.subr.mxu0 0.0
    %6811 = vmatpush1.msra.mxu0 %v6744
    %6812 = vmatprep.subr.mxu0 0.0
    %6813 = vmatpush1.msra.mxu0 0.0
    %6814 = vmatprep.subr.mxu0 0.0
    %6815 = vmatpush1.msra.mxu0 0.0
    %6816 = vmatprep.subr.mxu0 0.0
    %6817 = vmatpush1.msra.mxu0 0.0
    %6818 = vmatprep.subr.mxu0 0.0
    %6819 = vmatpush1.msra.mxu0 0.0
    %6820 = vmatprep.subr.mxu0 0.0
    %6821 = vmatpush1.msra.mxu0 0.0
    %6822 = vmatprep.subr.mxu0 0.0
    %6823 = vmatpush1.msra.mxu0 0.0
    %6824 = vmatprep.subr.mxu0 0.0
    %6825 = vmatpush1.msra.mxu0 0.0
    %6826 = vmatprep.subr.mxu0 0.0
    %6827 = vmatpush1.msra.mxu0 0.0
    %6828 = vmatprep.subr.mxu0 0.0
    %6829 = vmatpush1.msra.mxu0 0.0
    %6830 = vmatprep.subr.mxu0 0.0
    %6831 = vmatpush1.msra.mxu0 0.0
    %6832 = vmatprep.subr.mxu0 0.0
    %6833 = vmatpush1.msra.mxu0 0.0
    %6834 = vmatprep.subr.mxu0 0.0
    %6835 = vmatpush1.msra.mxu0 0.0
    %6836 = vmatprep.subr.mxu0 0.0
    %6837 = vmatpush1.msra.mxu0 0.0
    %6838 = vmatprep.subr.mxu0 0.0
    %6839 = vmatpush1.msra.mxu0 0.0
    %6840 = vmatprep.subr.mxu0 0.0
    %6841 = vmatpush1.msra.mxu0 0.0
    %6842 = vmatprep.subr.mxu0 0.0
    %6843 = vmatpush1.msra.mxu0 0.0
    %6844 = vmatprep.subr.mxu0 0.0
    %6845 = vmatpush1.msra.mxu0 0.0
    %6846 = vmatprep.subr.mxu0 0.0
    %6847 = vmatpush1.msra.mxu0 0.0
    %6848 = vmatprep.subr.mxu0 0.0
    %6849 = vmatpush1.msra.mxu0 0.0
    %6850 = vmatprep.subr.mxu0 0.0
    %6851 = vmatpush1.msra.mxu0 0.0
    %6852 = vmatprep.subr.mxu0 0.0
    %6853 = vmatpush1.msra.mxu0 0.0
    %6854 = vmatprep.subr.mxu0 0.0
    %6855 = vmatpush1.msra.mxu0 0.0
    %6856 = vmatprep.subr.mxu0 0.0
    %6857 = vmatpush1.msra.mxu0 0.0
    %6858 = vmatprep.subr.mxu0 0.0
    %6859 = vmatpush1.msra.mxu0 0.0
    %6860 = vmatprep.subr.mxu0 0.0
    %6861 = vmatpush1.msra.mxu0 0.0
    %6862 = vmatprep.subr.mxu0 0.0
    %6863 = vmatpush1.msra.mxu0 0.0
    %6864 = vmatprep.subr.mxu0 0.0
    %6865 = vmatpush1.msra.mxu0 0.0
    %6866 = vmatprep.subr.mxu0 0.0
    %6867 = vmatpush1.msra.mxu0 0.0
    %6868 = vmatprep.subr.mxu0 0.0
    %6869 = vmatpush1.msra.mxu0 0.0
    %6870 = vmatprep.subr.mxu0 0.0
    %6871 = vmatpush1.msra.mxu0 0.0
    %6872 = vmatprep.mubr.f32.mxu0 0.0
    %6873 = vmatmul.mubr.f32.gmra.mrb[0].mxu0 %v6803
    %v6874 = vpop.f32.mrb[0].mxu0
    %v6875 = vadd.f32 %v6800, %v6874
    %v6876 = vpop.f32.mrb[0].mxu0
    %6877 = vmatprep.mubr.f32.mxu0 0.0
    %6878 = vmatmul.mubr.f32.gmra.mrb[0].mxu0 %v6806
    %v6879 = vpop.f32.mrb[0].mxu0
    %v6880 = vadd.f32 %v6800, %v6879
    %v6881 = vpop.f32.mrb[0].mxu0
    %6882 = vdwg.mxu0
    %vm6883 = vcmp.ge.f32.partialorder %v6875, 0.0
    %vm6884 = vcmp.ge.f32.partialorder %v6880, 0.0
    %v6885 = vmul.f32 %v6875, 0.01
    %v6886 = vmul.f32 %v6880, 0.01
    %v6887 = vsel %vm6883, %v6875, %v6885
    %v6888 = vsel %vm6884, %v6880, %v6886
    %v6890 = vrot.slane %v6887, 1
    %6891 = vrot.lane.b32.xlu0 %v6890, 8
    %v6892 = vpop.permute.xlu0 %6891
    %v6894 = vrot.slane %v6887, 2
    %6895 = vrot.lane.b32.xlu0 %v6894, 16
    %v6896 = vpop.permute.xlu0 %6895
    %v6898 = vrot.slane %v6887, 3
    %6899 = vrot.lane.b32.xlu0 %v6898, 24
    %v6900 = vpop.permute.xlu0 %6899
    %v6902 = vrot.slane %v6887, 4
    %6903 = vrot.lane.b32.xlu0 %v6902, 32
    %v6904 = vpop.permute.xlu0 %6903
    %v6906 = vrot.slane %v6887, 5
    %6907 = vrot.lane.b32.xlu0 %v6906, 40
    %v6908 = vpop.permute.xlu0 %6907
    %v6910 = vrot.slane %v6887, 6
    %6911 = vrot.lane.b32.xlu0 %v6910, 48
    %v6912 = vpop.permute.xlu0 %6911
    %v6914 = vrot.slane %v6887, 7
    %6915 = vrot.lane.b32.xlu0 %v6914, 56
    %v6916 = vpop.permute.xlu0 %6915
    %v6918 = vsel %vm2177, %v6887, %v6892
    %v6919 = vsel %vm430, %v6918, %v6896
    %vm6920 = vcmask 195584
    %v6921 = vsel %vm6920, %v6919, %v6900
    %v6922 = vsel %vm2713, %v6921, %v6904
    %vm6923 = vcmask 326656
    %v6924 = vsel %vm6923, %v6922, %v6908
    %v6925 = vsel %vm2715, %v6924, %v6912
    %vm6926 = vcmask 457728
    %v6927 = vsel %vm6926, %v6925, %v6916
    %v6929 = vrot.slane %v6888, 1
    %6930 = vrot.lane.b32.xlu0 %v6929, 8
    %v6931 = vpop.permute.xlu0 %6930
    %v6933 = vrot.slane %v6888, 2
    %6934 = vrot.lane.b32.xlu0 %v6933, 16
    %v6935 = vpop.permute.xlu0 %6934
    %v6937 = vrot.slane %v6888, 3
    %6938 = vrot.lane.b32.xlu0 %v6937, 24
    %v6939 = vpop.permute.xlu0 %6938
    %v6941 = vrot.slane %v6888, 4
    %6942 = vrot.lane.b32.xlu0 %v6941, 32
    %v6943 = vpop.permute.xlu0 %6942
    %v6945 = vrot.slane %v6888, 5
    %6946 = vrot.lane.b32.xlu0 %v6945, 40
    %v6947 = vpop.permute.xlu0 %6946
    %v6949 = vrot.slane %v6888, 6
    %6950 = vrot.lane.b32.xlu0 %v6949, 48
    %v6951 = vpop.permute.xlu0 %6950
    %v6953 = vrot.slane %v6888, 7
    %6954 = vrot.lane.b32.xlu0 %v6953, 56
    %v6955 = vpop.permute.xlu0 %6954
    %v6957 = vsel %vm2177, %v6888, %v6931
    %v6958 = vsel %vm430, %v6957, %v6935
    %v6959 = vsel %vm6920, %v6958, %v6939
    %v6960 = vsel %vm2713, %v6959, %v6943
    %v6961 = vsel %vm6923, %v6960, %v6947
    %v6962 = vsel %vm2715, %v6961, %v6951
    %v6963 = vsel %vm6926, %v6962, %v6955
    %v6965 = vrot.slane %v6963, 7
    %v6967 = vsel %vm2809, %v6927, %v6965
    %v6969 = vlaneseq
    %v6970 = vshrl.u32 %v6969, 7
    %v6971 = vsub.s32 0, %v6970
    %v6972 = vrot.slane %v6762, %v6971
    %v6973 = vlaneseq
    %v6974 = vshrl.u32 %v6973, 7
    %v6975 = vsub.s32 1, %v6974
    %v6976 = vrot.slane %v6762, %v6975
    %v6980 = vsel %vm2480, %v6967, 0
    %6982 = vmatprep.subr.mxu0 %v6747
    %6983 = vmatpush1.msra.mxu0 %v6746
    %6984 = vmatprep.subr.mxu0 %v6749
    %6985 = vmatpush1.msra.mxu0 %v6748
    %6986 = vmatprep.subr.mxu0 %v6751
    %6987 = vmatpush1.msra.mxu0 %v6750
    %6988 = vmatprep.subr.mxu0 %v6753
    %6989 = vmatpush1.msra.mxu0 %v6752
    %6990 = vmatprep.subr.mxu0 %v6755
    %6991 = vmatpush1.msra.mxu0 %v6754
    %6992 = vmatprep.subr.mxu0 %v6757
    %6993 = vmatpush1.msra.mxu0 %v6756
    %6994 = vmatprep.subr.mxu0 %v6759
    %6995 = vmatpush1.msra.mxu0 %v6758
    %6996 = vmatprep.subr.mxu0 %v6761
    %6997 = vmatpush1.msra.mxu0 %v6760
    %6998 = vmatprep.subr.mxu0 0.0
    %6999 = vmatpush1.msra.mxu0 0.0
    %7000 = vmatprep.subr.mxu0 0.0
    %7001 = vmatpush1.msra.mxu0 0.0
    %7002 = vmatprep.subr.mxu0 0.0
    %7003 = vmatpush1.msra.mxu0 0.0
    %7004 = vmatprep.subr.mxu0 0.0
    %7005 = vmatpush1.msra.mxu0 0.0
    %7006 = vmatprep.subr.mxu0 0.0
    %7007 = vmatpush1.msra.mxu0 0.0
    %7008 = vmatprep.subr.mxu0 0.0
    %7009 = vmatpush1.msra.mxu0 0.0
    %7010 = vmatprep.subr.mxu0 0.0
    %7011 = vmatpush1.msra.mxu0 0.0
    %7012 = vmatprep.subr.mxu0 0.0
    %7013 = vmatpush1.msra.mxu0 0.0
    %7014 = vmatprep.subr.mxu0 0.0
    %7015 = vmatpush1.msra.mxu0 0.0
    %7016 = vmatprep.subr.mxu0 0.0
    %7017 = vmatpush1.msra.mxu0 0.0
    %7018 = vmatprep.subr.mxu0 0.0
    %7019 = vmatpush1.msra.mxu0 0.0
    %7020 = vmatprep.subr.mxu0 0.0
    %7021 = vmatpush1.msra.mxu0 0.0
    %7022 = vmatprep.subr.mxu0 0.0
    %7023 = vmatpush1.msra.mxu0 0.0
    %7024 = vmatprep.subr.mxu0 0.0
    %7025 = vmatpush1.msra.mxu0 0.0
    %7026 = vmatprep.subr.mxu0 0.0
    %7027 = vmatpush1.msra.mxu0 0.0
    %7028 = vmatprep.subr.mxu0 0.0
    %7029 = vmatpush1.msra.mxu0 0.0
    %7030 = vmatprep.subr.mxu0 0.0
    %7031 = vmatpush1.msra.mxu0 0.0
    %7032 = vmatprep.subr.mxu0 0.0
    %7033 = vmatpush1.msra.mxu0 0.0
    %7034 = vmatprep.subr.mxu0 0.0
    %7035 = vmatpush1.msra.mxu0 0.0
    %7036 = vmatprep.subr.mxu0 0.0
    %7037 = vmatpush1.msra.mxu0 0.0
    %7038 = vmatprep.subr.mxu0 0.0
    %7039 = vmatpush1.msra.mxu0 0.0
    %7040 = vmatprep.subr.mxu0 0.0
    %7041 = vmatpush1.msra.mxu0 0.0
    %7042 = vmatprep.subr.mxu0 0.0
    %7043 = vmatpush1.msra.mxu0 0.0
    %7044 = vmatprep.subr.mxu0 0.0
    %7045 = vmatpush1.msra.mxu0 0.0
    %7046 = vmatprep.mubr.f32.mxu0 0.0
    %7047 = vmatmul.mubr.f32.gmra.mrb[0].mxu0 %v6980
    %v7048 = vpop.f32.mrb[0].mxu0
    %v7049 = vadd.f32 %v6972, %v7048
    %v7050 = vpop.f32.mrb[0].mxu0
    %v7051 = vadd.f32 %v6976, %v7050
    %7052 = vdwg.mxu0
    %v7053 = vmax.f32 %v7049, 0.0
    %v7054 = vmax.f32 %v7051, 0.0
    %v7056 = vlaneseq
    %v7057 = vshrl.u32 %v7056, 7
    %v7058 = vsub.s32 0, %v7057
    %v7059 = vrot.slane %v6795, %v7058
    %7061 = vmatprep.subr.mxu0 0.0
    %7062 = vmatpush1.msra.mxu0 %v6763
    %7063 = vmatprep.subr.mxu0 0.0
    %7064 = vmatpush1.msra.mxu0 %v6764
    %7065 = vmatprep.subr.mxu0 0.0
    %7066 = vmatpush1.msra.mxu0 %v6765
    %7067 = vmatprep.subr.mxu0 0.0
    %7068 = vmatpush1.msra.mxu0 %v6766
    %7069 = vmatprep.subr.mxu0 0.0
    %7070 = vmatpush1.msra.mxu0 %v6767
    %7071 = vmatprep.subr.mxu0 0.0
    %7072 = vmatpush1.msra.mxu0 %v6768
    %7073 = vmatprep.subr.mxu0 0.0
    %7074 = vmatpush1.msra.mxu0 %v6769
    %7075 = vmatprep.subr.mxu0 0.0
    %7076 = vmatpush1.msra.mxu0 %v6770
    %7077 = vmatprep.subr.mxu0 0.0
    %7078 = vmatpush1.msra.mxu0 %v6771
    %7079 = vmatprep.subr.mxu0 0.0
    %7080 = vmatpush1.msra.mxu0 %v6772
    %7081 = vmatprep.subr.mxu0 0.0
    %7082 = vmatpush1.msra.mxu0 %v6773
    %7083 = vmatprep.subr.mxu0 0.0
    %7084 = vmatpush1.msra.mxu0 %v6774
    %7085 = vmatprep.subr.mxu0 0.0
    %7086 = vmatpush1.msra.mxu0 %v6775
    %7087 = vmatprep.subr.mxu0 0.0
    %7088 = vmatpush1.msra.mxu0 %v6776
    %7089 = vmatprep.subr.mxu0 0.0
    %7090 = vmatpush1.msra.mxu0 %v6777
    %7091 = vmatprep.subr.mxu0 0.0
    %7092 = vmatpush1.msra.mxu0 %v6778
    %7093 = vmatprep.subr.mxu0 0.0
    %7094 = vmatpush1.msra.mxu0 %v6779
    %7095 = vmatprep.subr.mxu0 0.0
    %7096 = vmatpush1.msra.mxu0 %v6780
    %7097 = vmatprep.subr.mxu0 0.0
    %7098 = vmatpush1.msra.mxu0 %v6781
    %7099 = vmatprep.subr.mxu0 0.0
    %7100 = vmatpush1.msra.mxu0 %v6782
    %7101 = vmatprep.subr.mxu0 0.0
    %7102 = vmatpush1.msra.mxu0 %v6783
    %7103 = vmatprep.subr.mxu0 0.0
    %7104 = vmatpush1.msra.mxu0 %v6784
    %7105 = vmatprep.subr.mxu0 0.0
    %7106 = vmatpush1.msra.mxu0 %v6785
    %7107 = vmatprep.subr.mxu0 0.0
    %7108 = vmatpush1.msra.mxu0 %v6786
    %7109 = vmatprep.subr.mxu0 0.0
    %7110 = vmatpush1.msra.mxu0 %v6787
    %7111 = vmatprep.subr.mxu0 0.0
    %7112 = vmatpush1.msra.mxu0 %v6788
    %7113 = vmatprep.subr.mxu0 0.0
    %7114 = vmatpush1.msra.mxu0 %v6789
    %7115 = vmatprep.subr.mxu0 0.0
    %7116 = vmatpush1.msra.mxu0 %v6790
    %7117 = vmatprep.subr.mxu0 0.0
    %7118 = vmatpush1.msra.mxu0 %v6791
    %7119 = vmatprep.subr.mxu0 0.0
    %7120 = vmatpush1.msra.mxu0 %v6792
    %7121 = vmatprep.subr.mxu0 0.0
    %7122 = vmatpush1.msra.mxu0 %v6793
    %7123 = vmatprep.subr.mxu0 0.0
    %7124 = vmatpush1.msra.mxu0 %v6794
    %7125 = vmatprep.mubr.f32.mxu0 %v7054
    %7126 = vmatmul.mubr.f32.gmra.mrb[0].mxu0 %v7053
    %v7127 = vpop.f32.mrb[0].mxu0
    %v7128 = vadd.f32 %v7059, %v7127
    %v7129 = vpop.f32.mrb[0].mxu0
    %7130 = vdwg.mxu0
    %7131 = vst [vmem:[#allocation25] sm:$0x3] %v7128
    // Predicated region
    $region238: #{bnt_forward_pallas.1} parent=1 // pred_check
      _
    $region239: #{bnt_forward_pallas.1} parent=1 // pred_check_branch
      %7133 = sbr.rel (0) target = $region241
    $region240: #{bnt_forward_pallas.1} parent=1 // pred_region
      %s7135 = ssub.s32 32, 32
      %7136 = vsyncadd [#allocation4], %s7135
      %s7138 = sshll.u32 [#allocation25], 4
      %s7139 = int_to_ptr.vmem [resolvable:$true] %s7138
      %7141 = dma.vmem_to_hbm [thread:$0]  %s7139, 32, %s91, [#allocation4]
    $region241: #{bnt_forward_pallas.1} parent=1 // pred_fallthru
      _
    // Predicated region
    $region242: #{bnt_forward_pallas.1} parent=1 // pred_check
      _
    $region243: #{bnt_forward_pallas.1} parent=1 // pred_check_branch
      %7143 = sbr.rel (0) target = $region245
    $region244: #{bnt_forward_pallas.1} parent=1 // pred_region
      %7144 = dma.done [#allocation4], 32
    $region245: #{bnt_forward_pallas.1} parent=1 // pred_fallthru
      _
    %7145 = vsyncpa [#allocation3], 1
    %7146 = vsyncpa [#allocation6], 1
    %7147 = vsyncpa [#allocation9], 1
    %7148 = vsyncpa [#allocation12], 1
    %7149 = vsyncpa [#allocation15], 1
    %7150 = vsyncpa [#allocation18], 1
    %7151 = vsyncpa [#allocation21], 1
    %7152 = vsyncpa [#allocation24], 1
    %7153 = vsyncpa [#allocation4], 1

</llo_original>
